<compile_context>
chip_gen: v7x
topology: tpu7x:2x2x1
jax: 0.10.0
libtpu: 0.0.40
codegen_flags: <defaults>
</compile_context>

<pallas_src>
import functools

import jax
import jax.numpy as jnp
from jax.experimental import pallas as pl
from jax.experimental.pallas import tpu as pltpu

# ---- module hyper-parameters (small shapes, consistent with the module) ----
D_MODEL = 32
N_HEADS = 8
D_K = D_MODEL // N_HEADS
BATCH = 2
SEQ = 8

_PREC = jax.lax.Precision.HIGHEST


def _mha_kernel(q_ref, k_ref, wqkv_ref, bqkv_ref, wo_ref, bo_ref, out_ref,
                *, n_heads, d_k):
    """One grid step == one batch element.

    q_ref, k_ref : (1, S, D)   activations for this batch element
    wqkv_ref     : (D, 3D)     [Wq^T | Wk^T | Wv^T]   (lane-dense, packed once)
    bqkv_ref     : (1, 3D)     [bq | bk | bv]
    wo_ref       : (D, D)      Wo^T
    bo_ref       : (1, D)
    out_ref      : (1, S, D)
    """
    H, dk = n_heads, d_k
    D = H * dk

    q2d = q_ref[0]                                     # (S, D)
    k2d = k_ref[0]                                     # (S, D)
    wqkv = wqkv_ref[...]                               # (D, 3D)
    bqkv = bqkv_ref[...]                               # (1, 3D)

    # Lane-dense projections: two plain 2-D GEMMs (no activation replication,
    # no per-head micro-matmuls with 4-wide outputs).
    proj_q = jnp.dot(q2d, wqkv[:, :D], precision=_PREC,
                     preferred_element_type=jnp.float32) + bqkv[:, :D]        # (S, D)
    proj_kv = jnp.dot(k2d, wqkv[:, D:], precision=_PREC,
                      preferred_element_type=jnp.float32) + bqkv[:, D:]       # (S, 2D)

    # Head split: static lane slices stacked on a new leading (head) axis.
    def split_heads(x2d):                              # (S, H*dk) -> (H, S, dk)
        return jnp.stack([x2d[:, h * dk:(h + 1) * dk] for h in range(H)], axis=0)

    q_h = split_heads(proj_q)                          # (H, S, dk)
    k_h = split_heads(proj_kv[:, :D])                  # (H, S, dk)
    v_h = split_heads(proj_kv[:, D:])                  # (H, S, dk)

    # Head-batched attention: single einsum pair, no per-batch/per-head loop.
    scale = 1.0 / (dk ** 0.5)
    s = jnp.einsum("hqe,hke->hqk", q_h, k_h, precision=_PREC,
                   preferred_element_type=jnp.float32) * scale                # (H, S, S)
    s = s - jnp.max(s, axis=-1, keepdims=True)
    p = jnp.exp(s)
    alphas = p / jnp.sum(p, axis=-1, keepdims=True)    # exact divide (review)
    # TODO(synk): Dropout(0.1) on `alphas` omitted (eval-mode identity).
    ctx = jnp.einsum("hqk,hke->hqe", alphas, v_h, precision=_PREC,
                     preferred_element_type=jnp.float32)                      # (H, S, dk)

    # Head concat back into lanes, fused into ONE (S,D)x(D,D) output GEMM
    # (no (H,N,D) intermediate, no leading-axis reduce).
    ctx2d = jnp.concatenate([ctx[h] for h in range(H)], axis=-1)              # (S, D)
    out = jnp.dot(ctx2d, wo_ref[...], precision=_PREC,
                  preferred_element_type=jnp.float32) + bo_ref[...]           # (S, D)
    out_ref[0] = out.astype(out_ref.dtype)


def pack_params(params, *, n_heads=N_HEADS):
    """One-time repack of torch-layout Linear params into lane-dense, MXU-ready
    layouts (hoisted out of the per-call path per the perf review)."""
    D = params["wq"].shape[0]
    w_qkv = jnp.concatenate(
        [params["wq"].T, params["wk"].T, params["wv"].T], axis=1)             # (D, 3D)
    b_qkv = jnp.concatenate(
        [params["bq"], params["bk"], params["bv"]]).reshape(1, 3 * D)         # (1, 3D)
    return dict(w_qkv=w_qkv, b_qkv=b_qkv,
                w_out=params["wo"].T,                                         # (D, D)
                b_out=params["bo"].reshape(1, D))                             # (1, D)


def multi_headed_attention(query, key, packed, *, n_heads=N_HEADS):
    """query, key: [B, S, D].  packed: output of pack_params()."""
    B, S, D = query.shape
    d_k = D // n_heads

    kern = functools.partial(_mha_kernel, n_heads=n_heads, d_k=d_k)

    act_spec = pl.BlockSpec((1, S, D), lambda b: (b, 0, 0))

    def const_spec(shape):
        nd = len(shape)
        return pl.BlockSpec(shape, lambda b, _nd=nd: (0,) * _nd)

    return pl.pallas_call(
        kern,
        out_shape=jax.ShapeDtypeStruct((B, S, D), query.dtype),
        grid=(B,),
        in_specs=[act_spec, act_spec,
                  const_spec((D, 3 * D)), const_spec((1, 3 * D)),
                  const_spec((D, D)), const_spec((1, D))],
        out_specs=act_spec,
        compiler_params=pltpu.CompilerParams(
            dimension_semantics=("parallel",)),
    )(query, key, packed["w_qkv"], packed["b_qkv"],
      packed["w_out"], packed["b_out"])


def _reference(query, key, params, n_heads=N_HEADS):
    """Pure-JAX reference mirroring the PyTorch forward (eval mode)."""
    B, S, D = query.shape
    d_k = D // n_heads

    def lin(x, w, b):   # torch Linear: x @ w.T + b, w is (out, in)
        return jnp.einsum("bsi,oi->bso", x, w, precision=_PREC) + b

    def chunks(x):      # (B,S,D) -> (B,H,S,d_k)
        return x.reshape(B, S, n_heads, d_k).transpose(0, 2, 1, 3)

    pq = chunks(lin(query, params["wq"], params["bq"]))
    pk = chunks(lin(key, params["wk"], params["bk"]))
    pv = chunks(lin(key, params["wv"], params["bv"]))

    scores = jnp.einsum("bhqd,bhkd->bhqk", pq, pk,
                        precision=_PREC) / jnp.sqrt(jnp.float32(d_k))
    alphas = jax.nn.softmax(scores, axis=-1)
    ctx = jnp.einsum("bhqk,bhkd->bhqd", alphas, pv, precision=_PREC)
    ctx = ctx.transpose(0, 2, 1, 3).reshape(B, S, D)
    return jnp.einsum("bsi,oi->bso", ctx, params["wo"],
                      precision=_PREC) + params["bo"]


if __name__ == "__main__":
    root = jax.random.PRNGKey(0)
    keys = jax.random.split(root, 10)

    def lin_init(kw, kb, fan_in, fan_out):
        bound = 1.0 / jnp.sqrt(jnp.float32(fan_in))
        w = jax.random.uniform(kw, (fan_out, fan_in), jnp.float32, -bound, bound)
        b = jax.random.uniform(kb, (fan_out,), jnp.float32, -bound, bound)
        return w, b

    wq, bq = lin_init(keys[0], keys[1], D_MODEL, D_MODEL)
    wk, bk = lin_init(keys[2], keys[3], D_MODEL, D_MODEL)
    wv, bv = lin_init(keys[4], keys[5], D_MODEL, D_MODEL)
    wo, bo = lin_init(keys[6], keys[7], D_MODEL, D_MODEL)
    params = dict(wq=wq, bq=bq, wk=wk, bk=bk, wv=wv, bv=bv, wo=wo, bo=bo)

    # One-time weight packing (not in the per-call path).
    packed = pack_params(params)

    query = jax.random.normal(keys[8], (BATCH, SEQ, D_MODEL), jnp.float32)
    key_in = jax.random.normal(keys[9], (BATCH, SEQ, D_MODEL), jnp.float32)

    out = multi_headed_attention(query, key_in, packed)
    out = jax.block_until_ready(out)

    ref = _reference(query, key_in, params)
    assert out.shape == (BATCH, SEQ, D_MODEL)
    # Tight tolerance restored: exact softmax divide + HIGHEST-precision
    # matmuls in both the kernel and the reference.
    err = float(jnp.max(jnp.abs(out - ref)))
    assert jnp.allclose(out, ref, atol=1e-4, rtol=1e-4), f"max abs err = {err}"
    print("KERNEL_OK")
</pallas_src>

<mosaic_0001>
module attributes {stable_mosaic.version = 11 : i64} {
  func.func @_mha_kernel(%arg0: i32, %arg1: memref<1x8x32xf32, #tpu.memory_space<vmem>>, %arg2: memref<1x8x32xf32, #tpu.memory_space<vmem>>, %arg3: memref<32x96xf32, #tpu.memory_space<vmem>>, %arg4: memref<1x96xf32, #tpu.memory_space<vmem>>, %arg5: memref<32x32xf32, #tpu.memory_space<vmem>>, %arg6: memref<1x32xf32, #tpu.memory_space<vmem>>, %arg7: memref<1x8x32xf32, #tpu.memory_space<vmem>>) attributes {dimension_semantics = [#tpu.dimension_semantics<parallel>], iteration_bounds = array<i64: 2>, scalar_prefetch = 0 : i64, scratch_operands = 0 : i64, tpu.core_type = #tpu.core_type<tc>, window_params = [{transform_indices = @transform_0, window_bounds = array<i64: 1, 8, 32>}, {transform_indices = @transform_1, window_bounds = array<i64: 1, 8, 32>}, {pipeline_mode = #tpu.pipeline_mode<synchronous>, transform_indices = @transform_2, window_bounds = array<i64: 32, 96>}, {pipeline_mode = #tpu.pipeline_mode<synchronous>, transform_indices = @transform_3, window_bounds = array<i64: 1, 96>}, {pipeline_mode = #tpu.pipeline_mode<synchronous>, transform_indices = @transform_4, window_bounds = array<i64: 32, 32>}, {pipeline_mode = #tpu.pipeline_mode<synchronous>, transform_indices = @transform_5, window_bounds = array<i64: 1, 32>}, {transform_indices = @transform_6, window_bounds = array<i64: 1, 8, 32>}]} {
    %c0 = arith.constant 0 : index
    %c0_0 = arith.constant 0 : index
    %c0_1 = arith.constant 0 : index
    %0 = vector.load %arg1[%c0, %c0_0, %c0_1] : memref<1x8x32xf32, #tpu.memory_space<vmem>>, vector<1x8x32xf32>
    %1 = vector.shape_cast %0 : vector<1x8x32xf32> to vector<8x32xf32>
    %c0_2 = arith.constant 0 : index
    %c0_3 = arith.constant 0 : index
    %c0_4 = arith.constant 0 : index
    %2 = vector.load %arg2[%c0_2, %c0_3, %c0_4] : memref<1x8x32xf32, #tpu.memory_space<vmem>>, vector<1x8x32xf32>
    %3 = vector.shape_cast %2 : vector<1x8x32xf32> to vector<8x32xf32>
    %c0_5 = arith.constant 0 : index
    %c0_6 = arith.constant 0 : index
    %4 = vector.load %arg3[%c0_5, %c0_6] : memref<32x96xf32, #tpu.memory_space<vmem>>, vector<32x96xf32>
    %c0_7 = arith.constant 0 : index
    %c0_8 = arith.constant 0 : index
    %5 = vector.load %arg4[%c0_7, %c0_8] : memref<1x96xf32, #tpu.memory_space<vmem>>, vector<1x96xf32>
    %6 = vector.extract_strided_slice %4 {offsets = [0, 0], sizes = [32, 32], strides = [1, 1]} : vector<32x96xf32> to vector<32x32xf32>
    %cst = arith.constant dense<0.000000e+00> : vector<8x32xf32>
    %7 = tpu.matmul %1, %6, %cst {dimension_numbers = #tpu.dot_dimension_numbers<[1], [0], [0], [1], [0, 0, 1, 1], [], []>, precision = #tpu.contract_precision<fp32>} : vector<8x32xf32>, vector<32x32xf32>, vector<8x32xf32> -> vector<8x32xf32>
    %8 = vector.extract_strided_slice %5 {offsets = [0, 0], sizes = [1, 32], strides = [1, 1]} : vector<1x96xf32> to vector<1x32xf32>
    %9 = vector.broadcast %8 : vector<1x32xf32> to vector<8x32xf32>
    %10 = arith.addf %7, %9 : vector<8x32xf32>
    %11 = vector.extract_strided_slice %4 {offsets = [0, 32], sizes = [32, 64], strides = [1, 1]} : vector<32x96xf32> to vector<32x64xf32>
    %cst_9 = arith.constant dense<0.000000e+00> : vector<8x64xf32>
    %12 = tpu.matmul %3, %11, %cst_9 {dimension_numbers = #tpu.dot_dimension_numbers<[1], [0], [0], [1], [0, 0, 1, 1], [], []>, precision = #tpu.contract_precision<fp32>} : vector<8x32xf32>, vector<32x64xf32>, vector<8x64xf32> -> vector<8x64xf32>
    %13 = vector.extract_strided_slice %5 {offsets = [0, 32], sizes = [1, 64], strides = [1, 1]} : vector<1x96xf32> to vector<1x64xf32>
    %14 = vector.broadcast %13 : vector<1x64xf32> to vector<8x64xf32>
    %15 = arith.addf %12, %14 : vector<8x64xf32>
    %16 = vector.extract_strided_slice %10 {offsets = [0, 0], sizes = [8, 4], strides = [1, 1]} : vector<8x32xf32> to vector<8x4xf32>
    %17 = vector.extract_strided_slice %10 {offsets = [0, 4], sizes = [8, 4], strides = [1, 1]} : vector<8x32xf32> to vector<8x4xf32>
    %18 = vector.extract_strided_slice %10 {offsets = [0, 8], sizes = [8, 4], strides = [1, 1]} : vector<8x32xf32> to vector<8x4xf32>
    %19 = vector.extract_strided_slice %10 {offsets = [0, 12], sizes = [8, 4], strides = [1, 1]} : vector<8x32xf32> to vector<8x4xf32>
    %20 = vector.extract_strided_slice %10 {offsets = [0, 16], sizes = [8, 4], strides = [1, 1]} : vector<8x32xf32> to vector<8x4xf32>
    %21 = vector.extract_strided_slice %10 {offsets = [0, 20], sizes = [8, 4], strides = [1, 1]} : vector<8x32xf32> to vector<8x4xf32>
    %22 = vector.extract_strided_slice %10 {offsets = [0, 24], sizes = [8, 4], strides = [1, 1]} : vector<8x32xf32> to vector<8x4xf32>
    %23 = vector.extract_strided_slice %10 {offsets = [0, 28], sizes = [8, 4], strides = [1, 1]} : vector<8x32xf32> to vector<8x4xf32>
    %24 = vector.shape_cast %16 : vector<8x4xf32> to vector<1x8x4xf32>
    %25 = vector.shape_cast %17 : vector<8x4xf32> to vector<1x8x4xf32>
    %26 = vector.shape_cast %18 : vector<8x4xf32> to vector<1x8x4xf32>
    %27 = vector.shape_cast %19 : vector<8x4xf32> to vector<1x8x4xf32>
    %28 = vector.shape_cast %20 : vector<8x4xf32> to vector<1x8x4xf32>
    %29 = vector.shape_cast %21 : vector<8x4xf32> to vector<1x8x4xf32>
    %30 = vector.shape_cast %22 : vector<8x4xf32> to vector<1x8x4xf32>
    %31 = vector.shape_cast %23 : vector<8x4xf32> to vector<1x8x4xf32>
    %32 = tpu.concatenate %24, %25, %26, %27, %28, %29, %30, %31 in 0 : vector<1x8x4xf32>, vector<1x8x4xf32>, vector<1x8x4xf32>, vector<1x8x4xf32>, vector<1x8x4xf32>, vector<1x8x4xf32>, vector<1x8x4xf32>, vector<1x8x4xf32> -> vector<8x8x4xf32>
    %33 = vector.extract_strided_slice %15 {offsets = [0, 0], sizes = [8, 32], strides = [1, 1]} : vector<8x64xf32> to vector<8x32xf32>
    %34 = vector.extract_strided_slice %33 {offsets = [0, 0], sizes = [8, 4], strides = [1, 1]} : vector<8x32xf32> to vector<8x4xf32>
    %35 = vector.extract_strided_slice %33 {offsets = [0, 4], sizes = [8, 4], strides = [1, 1]} : vector<8x32xf32> to vector<8x4xf32>
    %36 = vector.extract_strided_slice %33 {offsets = [0, 8], sizes = [8, 4], strides = [1, 1]} : vector<8x32xf32> to vector<8x4xf32>
    %37 = vector.extract_strided_slice %33 {offsets = [0, 12], sizes = [8, 4], strides = [1, 1]} : vector<8x32xf32> to vector<8x4xf32>
    %38 = vector.extract_strided_slice %33 {offsets = [0, 16], sizes = [8, 4], strides = [1, 1]} : vector<8x32xf32> to vector<8x4xf32>
    %39 = vector.extract_strided_slice %33 {offsets = [0, 20], sizes = [8, 4], strides = [1, 1]} : vector<8x32xf32> to vector<8x4xf32>
    %40 = vector.extract_strided_slice %33 {offsets = [0, 24], sizes = [8, 4], strides = [1, 1]} : vector<8x32xf32> to vector<8x4xf32>
    %41 = vector.extract_strided_slice %33 {offsets = [0, 28], sizes = [8, 4], strides = [1, 1]} : vector<8x32xf32> to vector<8x4xf32>
    %42 = vector.shape_cast %34 : vector<8x4xf32> to vector<1x8x4xf32>
    %43 = vector.shape_cast %35 : vector<8x4xf32> to vector<1x8x4xf32>
    %44 = vector.shape_cast %36 : vector<8x4xf32> to vector<1x8x4xf32>
    %45 = vector.shape_cast %37 : vector<8x4xf32> to vector<1x8x4xf32>
    %46 = vector.shape_cast %38 : vector<8x4xf32> to vector<1x8x4xf32>
    %47 = vector.shape_cast %39 : vector<8x4xf32> to vector<1x8x4xf32>
    %48 = vector.shape_cast %40 : vector<8x4xf32> to vector<1x8x4xf32>
    %49 = vector.shape_cast %41 : vector<8x4xf32> to vector<1x8x4xf32>
    %50 = tpu.concatenate %42, %43, %44, %45, %46, %47, %48, %49 in 0 : vector<1x8x4xf32>, vector<1x8x4xf32>, vector<1x8x4xf32>, vector<1x8x4xf32>, vector<1x8x4xf32>, vector<1x8x4xf32>, vector<1x8x4xf32>, vector<1x8x4xf32> -> vector<8x8x4xf32>
    %51 = vector.extract_strided_slice %15 {offsets = [0, 32], sizes = [8, 32], strides = [1, 1]} : vector<8x64xf32> to vector<8x32xf32>
    %52 = vector.extract_strided_slice %51 {offsets = [0, 0], sizes = [8, 4], strides = [1, 1]} : vector<8x32xf32> to vector<8x4xf32>
    %53 = vector.extract_strided_slice %51 {offsets = [0, 4], sizes = [8, 4], strides = [1, 1]} : vector<8x32xf32> to vector<8x4xf32>
    %54 = vector.extract_strided_slice %51 {offsets = [0, 8], sizes = [8, 4], strides = [1, 1]} : vector<8x32xf32> to vector<8x4xf32>
    %55 = vector.extract_strided_slice %51 {offsets = [0, 12], sizes = [8, 4], strides = [1, 1]} : vector<8x32xf32> to vector<8x4xf32>
    %56 = vector.extract_strided_slice %51 {offsets = [0, 16], sizes = [8, 4], strides = [1, 1]} : vector<8x32xf32> to vector<8x4xf32>
    %57 = vector.extract_strided_slice %51 {offsets = [0, 20], sizes = [8, 4], strides = [1, 1]} : vector<8x32xf32> to vector<8x4xf32>
    %58 = vector.extract_strided_slice %51 {offsets = [0, 24], sizes = [8, 4], strides = [1, 1]} : vector<8x32xf32> to vector<8x4xf32>
    %59 = vector.extract_strided_slice %51 {offsets = [0, 28], sizes = [8, 4], strides = [1, 1]} : vector<8x32xf32> to vector<8x4xf32>
    %60 = vector.shape_cast %52 : vector<8x4xf32> to vector<1x8x4xf32>
    %61 = vector.shape_cast %53 : vector<8x4xf32> to vector<1x8x4xf32>
    %62 = vector.shape_cast %54 : vector<8x4xf32> to vector<1x8x4xf32>
    %63 = vector.shape_cast %55 : vector<8x4xf32> to vector<1x8x4xf32>
    %64 = vector.shape_cast %56 : vector<8x4xf32> to vector<1x8x4xf32>
    %65 = vector.shape_cast %57 : vector<8x4xf32> to vector<1x8x4xf32>
    %66 = vector.shape_cast %58 : vector<8x4xf32> to vector<1x8x4xf32>
    %67 = vector.shape_cast %59 : vector<8x4xf32> to vector<1x8x4xf32>
    %68 = tpu.concatenate %60, %61, %62, %63, %64, %65, %66, %67 in 0 : vector<1x8x4xf32>, vector<1x8x4xf32>, vector<1x8x4xf32>, vector<1x8x4xf32>, vector<1x8x4xf32>, vector<1x8x4xf32>, vector<1x8x4xf32>, vector<1x8x4xf32> -> vector<8x8x4xf32>
    "tpu.trace_start"() <{level = 10 : i32, message = "hqe,hke->hqk"}> : () -> ()
    %cst_10 = arith.constant dense<0.000000e+00> : vector<8x8x8xf32>
    %69 = tpu.matmul %32, %50, %cst_10 {dimension_numbers = #tpu.dot_dimension_numbers<[2], [2], [1], [1], [0, 0, 0, 1, 1, 1], [0], [0]>, precision = #tpu.contract_precision<fp32>} : vector<8x8x4xf32>, vector<8x8x4xf32>, vector<8x8x8xf32> -> vector<8x8x8xf32>
    "tpu.trace_stop"() : () -> ()
    %cst_11 = arith.constant 5.000000e-01 : f32
    %70 = vector.broadcast %cst_11 : f32 to vector<8x8x8xf32>
    %71 = arith.mulf %69, %70 : vector<8x8x8xf32>
    %cst_12 = arith.constant dense<0xFF800000> : vector<8x8xf32>
    %72 = vector.multi_reduction <maximumf>, %71, %cst_12 [2] : vector<8x8x8xf32> to vector<8x8xf32>
    %73 = vector.shape_cast %72 : vector<8x8xf32> to vector<8x8x1xf32>
    %74 = vector.broadcast %73 : vector<8x8x1xf32> to vector<8x8x8xf32>
    %75 = arith.subf %71, %74 : vector<8x8x8xf32>
    %76 = math.exp %75 : vector<8x8x8xf32>
    %cst_13 = arith.constant dense<0.000000e+00> : vector<8x8xf32>
    %77 = vector.multi_reduction <add>, %76, %cst_13 [2] : vector<8x8x8xf32> to vector<8x8xf32>
    %78 = vector.shape_cast %77 : vector<8x8xf32> to vector<8x8x1xf32>
    %79 = vector.broadcast %78 : vector<8x8x1xf32> to vector<8x8x8xf32>
    %80 = arith.divf %76, %79 : vector<8x8x8xf32>
    "tpu.trace_start"() <{level = 10 : i32, message = "hqk,hke->hqe"}> : () -> ()
    %cst_14 = arith.constant dense<0.000000e+00> : vector<8x8x4xf32>
    %81 = tpu.matmul %80, %68, %cst_14 {dimension_numbers = #tpu.dot_dimension_numbers<[2], [1], [1], [2], [0, 0, 0, 1, 1, 2], [0], [0]>, precision = #tpu.contract_precision<fp32>} : vector<8x8x8xf32>, vector<8x8x4xf32>, vector<8x8x4xf32> -> vector<8x8x4xf32>
    "tpu.trace_stop"() : () -> ()
    %82 = vector.extract_strided_slice %81 {offsets = [0, 0, 0], sizes = [1, 8, 4], strides = [1, 1, 1]} : vector<8x8x4xf32> to vector<1x8x4xf32>
    %83 = vector.shape_cast %82 : vector<1x8x4xf32> to vector<8x4xf32>
    %84 = vector.extract_strided_slice %81 {offsets = [1, 0, 0], sizes = [1, 8, 4], strides = [1, 1, 1]} : vector<8x8x4xf32> to vector<1x8x4xf32>
    %85 = vector.shape_cast %84 : vector<1x8x4xf32> to vector<8x4xf32>
    %86 = vector.extract_strided_slice %81 {offsets = [2, 0, 0], sizes = [1, 8, 4], strides = [1, 1, 1]} : vector<8x8x4xf32> to vector<1x8x4xf32>
    %87 = vector.shape_cast %86 : vector<1x8x4xf32> to vector<8x4xf32>
    %88 = vector.extract_strided_slice %81 {offsets = [3, 0, 0], sizes = [1, 8, 4], strides = [1, 1, 1]} : vector<8x8x4xf32> to vector<1x8x4xf32>
    %89 = vector.shape_cast %88 : vector<1x8x4xf32> to vector<8x4xf32>
    %90 = vector.extract_strided_slice %81 {offsets = [4, 0, 0], sizes = [1, 8, 4], strides = [1, 1, 1]} : vector<8x8x4xf32> to vector<1x8x4xf32>
    %91 = vector.shape_cast %90 : vector<1x8x4xf32> to vector<8x4xf32>
    %92 = vector.extract_strided_slice %81 {offsets = [5, 0, 0], sizes = [1, 8, 4], strides = [1, 1, 1]} : vector<8x8x4xf32> to vector<1x8x4xf32>
    %93 = vector.shape_cast %92 : vector<1x8x4xf32> to vector<8x4xf32>
    %94 = vector.extract_strided_slice %81 {offsets = [6, 0, 0], sizes = [1, 8, 4], strides = [1, 1, 1]} : vector<8x8x4xf32> to vector<1x8x4xf32>
    %95 = vector.shape_cast %94 : vector<1x8x4xf32> to vector<8x4xf32>
    %96 = vector.extract_strided_slice %81 {offsets = [7, 0, 0], sizes = [1, 8, 4], strides = [1, 1, 1]} : vector<8x8x4xf32> to vector<1x8x4xf32>
    %97 = vector.shape_cast %96 : vector<1x8x4xf32> to vector<8x4xf32>
    %98 = tpu.concatenate %83, %85, %87, %89, %91, %93, %95, %97 in 1 : vector<8x4xf32>, vector<8x4xf32>, vector<8x4xf32>, vector<8x4xf32>, vector<8x4xf32>, vector<8x4xf32>, vector<8x4xf32>, vector<8x4xf32> -> vector<8x32xf32>
    %c0_15 = arith.constant 0 : index
    %c0_16 = arith.constant 0 : index
    %99 = vector.load %arg5[%c0_15, %c0_16] : memref<32x32xf32, #tpu.memory_space<vmem>>, vector<32x32xf32>
    %cst_17 = arith.constant dense<0.000000e+00> : vector<8x32xf32>
    %100 = tpu.matmul %98, %99, %cst_17 {dimension_numbers = #tpu.dot_dimension_numbers<[1], [0], [0], [1], [0, 0, 1, 1], [], []>, precision = #tpu.contract_precision<fp32>} : vector<8x32xf32>, vector<32x32xf32>, vector<8x32xf32> -> vector<8x32xf32>
    %c0_18 = arith.constant 0 : index
    %c0_19 = arith.constant 0 : index
    %101 = vector.load %arg6[%c0_18, %c0_19] : memref<1x32xf32, #tpu.memory_space<vmem>>, vector<1x32xf32>
    %102 = vector.broadcast %101 : vector<1x32xf32> to vector<8x32xf32>
    %103 = arith.addf %100, %102 : vector<8x32xf32>
    %c0_20 = arith.constant 0 : index
    %c0_21 = arith.constant 0 : index
    %c0_22 = arith.constant 0 : index
    %104 = vector.load %arg7[%c0_20, %c0_21, %c0_22] : memref<1x8x32xf32, #tpu.memory_space<vmem>>, vector<1x8x32xf32>
    %105 = vector.shape_cast %104 : vector<1x8x32xf32> to vector<8x32xf32>
    %106 = vector.shape_cast %103 : vector<8x32xf32> to vector<1x8x32xf32>
    tpu.vector_store %arg7[%c0_20, %c0_21, %c0_22], %106 {strides = array<i32>} : memref<1x8x32xf32, #tpu.memory_space<vmem>>, vector<1x8x32xf32>,
    return
  }
  func.func @transform_0(%arg0: i32) -> (i32, i32, i32) {
    %c0_i32 = arith.constant 0 : i32
    %c0_i32_0 = arith.constant 0 : i32
    %c0_i32_1 = arith.constant 0 : i32
    return %arg0, %c0_i32, %c0_i32_0 : i32, i32, i32
  }
  func.func @transform_1(%arg0: i32) -> (i32, i32, i32) {
    %c0_i32 = arith.constant 0 : i32
    %c0_i32_0 = arith.constant 0 : i32
    %c0_i32_1 = arith.constant 0 : i32
    return %arg0, %c0_i32, %c0_i32_0 : i32, i32, i32
  }
  func.func @transform_2(%arg0: i32) -> (i32, i32) {
    %c0_i32 = arith.constant 0 : i32
    %c0_i32_0 = arith.constant 0 : i32
    %c0_i32_1 = arith.constant 0 : i32
    return %c0_i32, %c0_i32_0 : i32, i32
  }
  func.func @transform_3(%arg0: i32) -> (i32, i32) {
    %c0_i32 = arith.constant 0 : i32
    %c0_i32_0 = arith.constant 0 : i32
    %c0_i32_1 = arith.constant 0 : i32
    return %c0_i32, %c0_i32_0 : i32, i32
  }
  func.func @transform_4(%arg0: i32) -> (i32, i32) {
    %c0_i32 = arith.constant 0 : i32
    %c0_i32_0 = arith.constant 0 : i32
    %c0_i32_1 = arith.constant 0 : i32
    return %c0_i32, %c0_i32_0 : i32, i32
  }
  func.func @transform_5(%arg0: i32) -> (i32, i32) {
    %c0_i32 = arith.constant 0 : i32
    %c0_i32_0 = arith.constant 0 : i32
    %c0_i32_1 = arith.constant 0 : i32
    return %c0_i32, %c0_i32_0 : i32, i32
  }
  func.func @transform_6(%arg0: i32) -> (i32, i32, i32) {
    %c0_i32 = arith.constant 0 : i32
    %c0_i32_0 = arith.constant 0 : i32
    %c0_i32_1 = arith.constant 0 : i32
    return %arg0, %c0_i32, %c0_i32_0 : i32, i32, i32
  }
}

</mosaic_0001>

<llo_original>
// kernel: tpu_custom_call.1
$region0: #{tpu_custom_call.1}
  #allocation0 [shape = 'u32[]', space=smem, size = 0x4, offset = 0x4, fixed_abs, tag = 'smem constant byte address 0x4 - core index']
  #allocation1 [shape = 'u32[144,128]{1,0:T(1,128)}', space=vmem, size = 0x12000, scoped, tag = 'internal scratch']
  %s0 = inlined_call_operand.hbm [shape: f32[2,8,32], index: 0, kind: input, shape index: {}]
  %s1 = inlined_call_operand.hbm [shape: f32[2,8,32], index: 1, kind: input, shape index: {}]
  %s2 = inlined_call_operand.hbm [shape: f32[32,96], index: 2, kind: input, shape index: {}]
  %s3 = inlined_call_operand.vmem [shape: f32[1,96], index: 3, kind: input, shape index: {}]
  %s4 = inlined_call_operand.hbm [shape: f32[32,32], index: 4, kind: input, shape index: {}]
  %s5 = inlined_call_operand.vmem [shape: f32[1,32], index: 5, kind: input, shape index: {}]
  %s6 = inlined_call_operand.hbm [shape: f32[2,8,32], index: 6, kind: output, shape index: {}]
  %s7 = sld [smem:[#allocation0]]
  $region73: #{tpu_custom_call.1} parent=0
    _
  %s9 = ssub.s32 1, %s7
  %s10 = scalar_select 0, %s9, %s7
  $region1: #{tpu_custom_call.1} parent=0
    #allocation2 [shape = 'u8[8192]{0}', space=vmem, size = 0x2000, scoped, tag = 'input window, operand 0']
    #allocation3 [shape = 's32[2]{0}', space=sflag, size = 0x8, scoped, tag = 'scoped memory for tpu_custom_call.1']
    #allocation4 [shape = 's32[2]{0}', space=sflag, size = 0x8, scoped, tag = 'scoped memory for tpu_custom_call.1']
    #allocation5 [shape = 'u8[8192]{0}', space=vmem, size = 0x2000, scoped, tag = 'input window, operand 1']
    #allocation6 [shape = 's32[2]{0}', space=sflag, size = 0x8, scoped, tag = 'scoped memory for tpu_custom_call.1']
    #allocation7 [shape = 'u8[16384]{0}', space=vmem, size = 0x4000, scoped, tag = 'input window, operand 2, single buffered']
    #allocation8 [shape = 'u8[16384]{0}', space=vmem, size = 0x4000, scoped, tag = 'input window, operand 4, single buffered']
    #allocation9 [shape = 's32[1]{0}', space=sflag, size = 0x4, scoped, tag = 'scoped memory for tpu_custom_call.1']
    #allocation10 [shape = 'u8[8192]{0}', space=vmem, size = 0x2000, scoped, tag = 'output window, operand 0']
    %11 = vsyncpa [#allocation3], 0
    %s12 = scalar_lea.sflag [#allocation3], 1
    %13 = vsyncpa %s12, 0
    %14 = vsyncpa [#allocation6], 0
    %s15 = scalar_lea.sflag [#allocation6], 1
    %16 = vsyncpa %s15, 0
    %17 = vsyncpa [#allocation9], 0
    %18 = vsyncpa [#allocation4], 0
    %s19 = scalar_lea.sflag [#allocation4], 1
    %20 = vsyncpa %s19, 0
    loop: start=0, step=1, limit=4
    $region2: #{tpu_custom_call.1} parent=1 // loop_pre_header
      _
    $region3: #{tpu_custom_call.1} parent=1 // loop_header
      %s22 = sphi 0, %s26
      %p23 = scmp.ge.s32.totalorder %s22, 4
      %s32 = sphi 0, %s34
      %s35 = sphi 0, %s32
      %s36 = sphi 0, %s35
      %s52 = sphi 0, %s36
      %s58 = sphi 0, %s60
      %s61 = sphi 0, %s58
      %s62 = sphi 0, %s61
      %s78 = sphi 0, %s62
      %s82 = sphi 0, %s82
      %s84 = sphi 0, %s82
      %s85 = sphi 0, %s84
      %s99 = sphi 0, %s85
      %s103 = sphi 0, %s103
      %s105 = sphi 0, %s103
      %s106 = sphi 0, %s105
      %s120 = sphi 0, %s106
      %s124 = sphi 0, %s124
      %s126 = sphi 0, %s124
      %s127 = sphi 0, %s126
      %s141 = sphi 0, %s127
      %s145 = sphi 0, %s145
      %s147 = sphi 0, %s145
      %s148 = sphi 0, %s147
      %s162 = sphi 0, %s148
      %s168 = sphi 0, %s170
      %s171 = sphi 0, %s168
      %s172 = sphi 0, %s171
      %s188 = sphi 0, %s172
    $region4: #{tpu_custom_call.1} parent=1 // loop_header_branch
      %25 = sbr.rel (%p23) target = $region8
    $region5: #{tpu_custom_call.1} parent=1 // loop_body
      %s27 = ssub.s32 %s22, 1
      %s28 = ssub.s32 %s22, 2
      %s29 = sadd.s32 %s22, 1
      %s30 = ssub.s32 %s22, %s29
      %p31 = scmp.eq.s32.totalorder %s30, 0
      %s33 = sadd.s32 %s32, 1
      %s34 = scalar_select %p31, %s32, %s33
      %p37 = pneg %p31
      %p38 = scmp.eq.s32.totalorder %s22, 1
      %p39 = por %p37, %p38
      %p40 = scmp.ne.s32.totalorder %s32, %s35
      %p41 = scmp.eq.s32.totalorder %s22, 0
      %p42 = por %p40, %p41
      %p43 = scmp.ne.s32.totalorder %s32, %s35
      %p44 = scmp.eq.s32.totalorder %s27, 1
      %p45 = por %p43, %p44
      %p46 = scmp.ne.s32.totalorder %s35, %s36
      %p47 = scmp.eq.s32.totalorder %s27, 0
      %p48 = por %p46, %p47
      %p49 = scmp.ne.s32.totalorder %s35, %s36
      %p50 = scmp.eq.s32.totalorder %s28, 1
      %p51 = por %p49, %p50
      %p53 = scmp.ne.s32.totalorder %s36, %s52
      %p54 = scmp.eq.s32.totalorder %s28, 0
      %p55 = por %p53, %p54
      %s56 = ssub.s32 %s22, %s29
      %p57 = scmp.eq.s32.totalorder %s56, 0
      %s59 = sadd.s32 %s58, 1
      %s60 = scalar_select %p57, %s58, %s59
      %p63 = pneg %p57
      %p64 = scmp.eq.s32.totalorder %s22, 1
      %p65 = por %p63, %p64
      %p66 = scmp.ne.s32.totalorder %s58, %s61
      %p67 = scmp.eq.s32.totalorder %s22, 0
      %p68 = por %p66, %p67
      %p69 = scmp.ne.s32.totalorder %s58, %s61
      %p70 = scmp.eq.s32.totalorder %s27, 1
      %p71 = por %p69, %p70
      %p72 = scmp.ne.s32.totalorder %s61, %s62
      %p73 = scmp.eq.s32.totalorder %s27, 0
      %p74 = por %p72, %p73
      %p75 = scmp.ne.s32.totalorder %s61, %s62
      %p76 = scmp.eq.s32.totalorder %s28, 1
      %p77 = por %p75, %p76
      %p79 = scmp.ne.s32.totalorder %s62, %s78
      %p80 = scmp.eq.s32.totalorder %s28, 0
      %p81 = por %p79, %p80
      %s83 = sadd.s32 %s82, 1
      %p86 = scmp.eq.s32.totalorder %s22, 1
      %p87 = scmp.ne.s32.totalorder %s82, %s84
      %p88 = scmp.eq.s32.totalorder %s22, 0
      %p89 = por %p87, %p88
      %p90 = scmp.ne.s32.totalorder %s82, %s84
      %p91 = scmp.eq.s32.totalorder %s27, 1
      %p92 = por %p90, %p91
      %p93 = scmp.ne.s32.totalorder %s84, %s85
      %p94 = scmp.eq.s32.totalorder %s27, 0
      %p95 = por %p93, %p94
      %p96 = scmp.ne.s32.totalorder %s84, %s85
      %p97 = scmp.eq.s32.totalorder %s28, 1
      %p98 = por %p96, %p97
      %p100 = scmp.ne.s32.totalorder %s85, %s99
      %p101 = scmp.eq.s32.totalorder %s28, 0
      %p102 = por %p100, %p101
      %s104 = sadd.s32 %s103, 1
      %p107 = scmp.eq.s32.totalorder %s22, 1
      %p108 = scmp.ne.s32.totalorder %s103, %s105
      %p109 = scmp.eq.s32.totalorder %s22, 0
      %p110 = por %p108, %p109
      %p111 = scmp.ne.s32.totalorder %s103, %s105
      %p112 = scmp.eq.s32.totalorder %s27, 1
      %p113 = por %p111, %p112
      %p114 = scmp.ne.s32.totalorder %s105, %s106
      %p115 = scmp.eq.s32.totalorder %s27, 0
      %p116 = por %p114, %p115
      %p117 = scmp.ne.s32.totalorder %s105, %s106
      %p118 = scmp.eq.s32.totalorder %s28, 1
      %p119 = por %p117, %p118
      %p121 = scmp.ne.s32.totalorder %s106, %s120
      %p122 = scmp.eq.s32.totalorder %s28, 0
      %p123 = por %p121, %p122
      %s125 = sadd.s32 %s124, 1
      %p128 = scmp.eq.s32.totalorder %s22, 1
      %p129 = scmp.ne.s32.totalorder %s124, %s126
      %p130 = scmp.eq.s32.totalorder %s22, 0
      %p131 = por %p129, %p130
      %p132 = scmp.ne.s32.totalorder %s124, %s126
      %p133 = scmp.eq.s32.totalorder %s27, 1
      %p134 = por %p132, %p133
      %p135 = scmp.ne.s32.totalorder %s126, %s127
      %p136 = scmp.eq.s32.totalorder %s27, 0
      %p137 = por %p135, %p136
      %p138 = scmp.ne.s32.totalorder %s126, %s127
      %p139 = scmp.eq.s32.totalorder %s28, 1
      %p140 = por %p138, %p139
      %p142 = scmp.ne.s32.totalorder %s127, %s141
      %p143 = scmp.eq.s32.totalorder %s28, 0
      %p144 = por %p142, %p143
      %s146 = sadd.s32 %s145, 1
      %p149 = scmp.eq.s32.totalorder %s22, 1
      %p150 = scmp.ne.s32.totalorder %s145, %s147
      %p151 = scmp.eq.s32.totalorder %s22, 0
      %p152 = por %p150, %p151
      %p153 = scmp.ne.s32.totalorder %s145, %s147
      %p154 = scmp.eq.s32.totalorder %s27, 1
      %p155 = por %p153, %p154
      %p156 = scmp.ne.s32.totalorder %s147, %s148
      %p157 = scmp.eq.s32.totalorder %s27, 0
      %p158 = por %p156, %p157
      %p159 = scmp.ne.s32.totalorder %s147, %s148
      %p160 = scmp.eq.s32.totalorder %s28, 1
      %p161 = por %p159, %p160
      %p163 = scmp.ne.s32.totalorder %s148, %s162
      %p164 = scmp.eq.s32.totalorder %s28, 0
      %p165 = por %p163, %p164
      %s166 = ssub.s32 %s22, %s29
      %p167 = scmp.eq.s32.totalorder %s166, 0
      %s169 = sadd.s32 %s168, 1
      %s170 = scalar_select %p167, %s168, %s169
      %p173 = pneg %p167
      %p174 = scmp.eq.s32.totalorder %s22, 1
      %p175 = por %p173, %p174
      %p176 = scmp.ne.s32.totalorder %s168, %s171
      %p177 = scmp.eq.s32.totalorder %s22, 0
      %p178 = por %p176, %p177
      %p179 = scmp.ne.s32.totalorder %s168, %s171
      %p180 = scmp.eq.s32.totalorder %s27, 1
      %p181 = por %p179, %p180
      %p182 = scmp.ne.s32.totalorder %s171, %s172
      %p183 = scmp.eq.s32.totalorder %s27, 0
      %p184 = por %p182, %p183
      %p185 = scmp.ne.s32.totalorder %s171, %s172
      %p186 = scmp.eq.s32.totalorder %s28, 1
      %p187 = por %p185, %p186
      %p189 = scmp.ne.s32.totalorder %s172, %s188
      %p190 = scmp.eq.s32.totalorder %s28, 0
      %p191 = por %p189, %p190
      %p192 = scmp.le.s32.totalorder 1, %s22
      %p193 = scmp.lt.s32.totalorder %s22, 3
      %p194 = pnand %p192, %p193
      %p195 = pneg %p194
      // Predicated region
      $region9: #{tpu_custom_call.1} parent=5 // pred_check
        _
      $region10: #{tpu_custom_call.1} parent=5 // pred_check_branch
        %197 = sbr.rel (%p194) target = $region12
      $region11: #{tpu_custom_call.1} parent=5 // pred_region
        %s198 = ssub.s32 %s22, 1
        // Predicated region
        $region13: #{tpu_custom_call.1} parent=11 // pred_check
          %p199 = pneg %p95
        $region14: #{tpu_custom_call.1} parent=11 // pred_check_branch
          %201 = sbr.rel (%p199) target = $region16
        $region15: #{tpu_custom_call.1} parent=11 // pred_region
          %s203 = ssub.s32 512, 512
          %204 = vsyncadd [#allocation6], %s203
          %s205 = sshll.u32 [#allocation7], 4
          %s206 = int_to_ptr.vmem [resolvable:$true] %s205
          %211 = dma.hbm_to_vmem [thread:$0]  %s2, 512, %s206, [#allocation6], 128, 128, 8
        $region16: #{tpu_custom_call.1} parent=11 // pred_fallthru
          _
        // Predicated region
        $region17: #{tpu_custom_call.1} parent=11 // pred_check
          %p212 = pneg %p116
        $region18: #{tpu_custom_call.1} parent=11 // pred_check_branch
          %214 = sbr.rel (%p212) target = $region20
        $region19: #{tpu_custom_call.1} parent=11 // pred_region
          _
        $region20: #{tpu_custom_call.1} parent=11 // pred_fallthru
          _
        // Predicated region
        $region21: #{tpu_custom_call.1} parent=11 // pred_check
          %p215 = pneg %p137
        $region22: #{tpu_custom_call.1} parent=11 // pred_check_branch
          %217 = sbr.rel (%p215) target = $region24
        $region23: #{tpu_custom_call.1} parent=11 // pred_region
          %s219 = ssub.s32 512, 512
          %220 = vsyncadd [#allocation9], %s219
          %s221 = sshll.u32 [#allocation8], 4
          %s222 = int_to_ptr.vmem [resolvable:$true] %s221
          %227 = dma.hbm_to_vmem [thread:$0]  %s4, 512, %s222, [#allocation9], 128, 128, 8
        $region24: #{tpu_custom_call.1} parent=11 // pred_fallthru
          _
        // Predicated region
        $region25: #{tpu_custom_call.1} parent=11 // pred_check
          %p228 = pneg %p158
        $region26: #{tpu_custom_call.1} parent=11 // pred_check_branch
          %230 = sbr.rel (%p228) target = $region28
        $region27: #{tpu_custom_call.1} parent=11 // pred_region
          _
        $region28: #{tpu_custom_call.1} parent=11 // pred_fallthru
          _
      $region12: #{tpu_custom_call.1} parent=5 // pred_fallthru
        _
      %p231 = scmp.lt.s32.totalorder %s22, 2
      // Predicated region
      $region29: #{tpu_custom_call.1} parent=5 // pred_check
        %p232 = pneg %p231
      $region30: #{tpu_custom_call.1} parent=5 // pred_check_branch
        %234 = sbr.rel (%p232) target = $region32
      $region31: #{tpu_custom_call.1} parent=5 // pred_region
        // Predicated region
        $region33: #{tpu_custom_call.1} parent=31 // pred_check
          %p235 = pneg %p42
        $region34: #{tpu_custom_call.1} parent=31 // pred_check_branch
          %237 = sbr.rel (%p235) target = $region36
        $region35: #{tpu_custom_call.1} parent=31 // pred_region
          %s238 = sand.u32 %s32, 1
          %s239 = scalar_lea.sflag [#allocation3], %s238
          %s240 = sand.u32 %s32, 1
          %s241 = smul.addr %s240, 8
          %s242 = scalar_lea.vmem [#allocation2], %s241
          %s244 = ssub.s32 128, 128
          %245 = vsyncadd %s239, %s244
          %s246 = smul.addr %s22, 128
          %s247 = scalar_lea.hbm %s0, %s246
          %s249 = sshll.u32 %s242, 4
          %s250 = int_to_ptr.vmem [resolvable:$true] %s249
          %252 = dma.hbm_to_vmem [thread:$0]  %s247, 128, %s250, %s239
        $region36: #{tpu_custom_call.1} parent=31 // pred_fallthru
          _
        // Predicated region
        $region37: #{tpu_custom_call.1} parent=31 // pred_check
          %p253 = pneg %p68
        $region38: #{tpu_custom_call.1} parent=31 // pred_check_branch
          %255 = sbr.rel (%p253) target = $region40
        $region39: #{tpu_custom_call.1} parent=31 // pred_region
          %s256 = sand.u32 %s22, 1
          %s257 = scalar_lea.sflag [#allocation6], %s256
          %s258 = sand.u32 %s58, 1
          %s259 = smul.addr %s258, 8
          %s260 = scalar_lea.vmem [#allocation5], %s259
          %s262 = ssub.s32 128, 128
          %263 = vsyncadd %s257, %s262
          %s264 = smul.addr %s22, 128
          %s265 = scalar_lea.hbm %s1, %s264
          %s267 = sshll.u32 %s260, 4
          %s268 = int_to_ptr.vmem [resolvable:$true] %s267
          %270 = dma.hbm_to_vmem [thread:$0]  %s265, 128, %s268, %s257
        $region40: #{tpu_custom_call.1} parent=31 // pred_fallthru
          _
      $region32: #{tpu_custom_call.1} parent=5 // pred_fallthru
        _
      %p271 = scmp.le.s32.totalorder 1, %s22
      %p272 = scmp.lt.s32.totalorder %s22, 3
      %p273 = pnand %p271, %p272
      %p274 = pneg %p273
      // Predicated region
      $region41: #{tpu_custom_call.1} parent=5 // pred_check
        _
      $region42: #{tpu_custom_call.1} parent=5 // pred_check_branch
        %276 = sbr.rel (%p273) target = $region44
      $region43: #{tpu_custom_call.1} parent=5 // pred_region
        %s277 = ssub.s32 %s22, 1
        %s278 = sand.u32 %s35, 1
        %s279 = scalar_lea.sflag [#allocation3], %s278
        %s280 = sand.u32 %s35, 1
        %s281 = smul.addr %s280, 8
        %s282 = scalar_lea.vmem [#allocation2], %s281
        // Predicated region
        $region45: #{tpu_custom_call.1} parent=43 // pred_check
          %p283 = pneg %p48
        $region46: #{tpu_custom_call.1} parent=43 // pred_check_branch
          %285 = sbr.rel (%p283) target = $region48
        $region47: #{tpu_custom_call.1} parent=43 // pred_region
          %286 = dma.done %s279, 128
        $region48: #{tpu_custom_call.1} parent=43 // pred_fallthru
          _
        %s287 = sand.u32 %s27, 1
        %s288 = scalar_lea.sflag [#allocation6], %s287
        %s289 = sand.u32 %s61, 1
        %s290 = smul.addr %s289, 8
        %s291 = scalar_lea.vmem [#allocation5], %s290
        // Predicated region
        $region49: #{tpu_custom_call.1} parent=43 // pred_check
          %p292 = pneg %p74
        $region50: #{tpu_custom_call.1} parent=43 // pred_check_branch
          %294 = sbr.rel (%p292) target = $region52
        $region51: #{tpu_custom_call.1} parent=43 // pred_region
          %295 = dma.done %s288, 128
        $region52: #{tpu_custom_call.1} parent=43 // pred_fallthru
          _
        // Predicated region
        $region53: #{tpu_custom_call.1} parent=43 // pred_check
          %p296 = pneg %p95
        $region54: #{tpu_custom_call.1} parent=43 // pred_check_branch
          %298 = sbr.rel (%p296) target = $region56
        $region55: #{tpu_custom_call.1} parent=43 // pred_region
          %299 = dma.done [#allocation6], 512
        $region56: #{tpu_custom_call.1} parent=43 // pred_fallthru
          _
        // Predicated region
        $region57: #{tpu_custom_call.1} parent=43 // pred_check
          %p300 = pneg %p137
        $region58: #{tpu_custom_call.1} parent=43 // pred_check_branch
          %302 = sbr.rel (%p300) target = $region60
        $region59: #{tpu_custom_call.1} parent=43 // pred_region
          %303 = dma.done [#allocation9], 512
        $region60: #{tpu_custom_call.1} parent=43 // pred_fallthru
          _
        %s304 = sand.u32 %s35, 1
        %s305 = scalar_lea.sflag [#allocation3], %s304
        %s306 = sand.u32 %s35, 1
        %s307 = smul.addr %s306, 8
        %s308 = scalar_lea.vmem [#allocation2], %s307
        %p309 = pneg %p48
        %p310 = pneg %p45
        %s311 = sand.u32 %s27, 1
        %s312 = scalar_lea.sflag [#allocation6], %s311
        %s313 = sand.u32 %s61, 1
        %s314 = smul.addr %s313, 8
        %s315 = scalar_lea.vmem [#allocation5], %s314
        %p316 = pneg %p74
        %p317 = pneg %p71
        %p318 = pneg %p95
        %p319 = pneg %p92
        %p320 = pneg %p116
        %p321 = pneg %p113
        %p322 = pneg %p137
        %p323 = pneg %p134
        %p324 = pneg %p158
        %p325 = pneg %p155
        %p326 = pneg %p184
        %p327 = pneg %p181
        %s328 = sand.u32 %s171, 1
        %s329 = scalar_lea.sflag [#allocation4], %s328
        %s330 = sand.u32 %s171, 1
        %s331 = smul.addr %s330, 8
        %s332 = scalar_lea.vmem [#allocation10], %s331
        %v333 = vld [vmem:[%s282] sm:$0xff]
        %v334 = vld [vmem:[%s291] sm:$0xff]
        %v335 = vld [vmem:[#allocation7] sm:$0xff]
        %v336 = vld [vmem:[#allocation7 + $0x8] sm:$0xff]
        %v337 = vld [vmem:[#allocation7 + $0x10] sm:$0xff]
        %v338 = vld [vmem:[#allocation7 + $0x18] sm:$0xff]
        %v339 = vld [vmem:[%s3] sm:$0x1]
        %v341 = vlaneseq
        %v342 = vshrl.u32 %v341, 7
        %v343 = vsub.s32 0, %v342
        %v344 = vrot.slane %v339, %v343
        %vm346 = vcmask 261120
        %v348 = vsel %vm346, %v333, 0
        %350 = vmatprep.subr.mxu0 0.0
        %v351 = vand.u32 %v335, 4294901760
        %352 = vmatpush1.msra.mxu0 %v351
        %353 = vmatprep.subr.mxu0 0.0
        %v354 = vand.u32 %v336, 4294901760
        %355 = vmatpush1.msra.mxu0 %v354
        %356 = vmatprep.subr.mxu0 0.0
        %v357 = vand.u32 %v337, 4294901760
        %358 = vmatpush1.msra.mxu0 %v357
        %359 = vmatprep.subr.mxu0 0.0
        %v360 = vand.u32 %v338, 4294901760
        %361 = vmatpush1.msra.mxu0 %v360
        %362 = vmatprep.subr.mxu0 0.0
        %363 = vmatpush1.msra.mxu0 0.0
        %364 = vmatprep.subr.mxu0 0.0
        %365 = vmatpush1.msra.mxu0 0.0
        %366 = vmatprep.subr.mxu0 0.0
        %367 = vmatpush1.msra.mxu0 0.0
        %368 = vmatprep.subr.mxu0 0.0
        %369 = vmatpush1.msra.mxu0 0.0
        %370 = vmatprep.subr.mxu0 0.0
        %371 = vmatpush1.msra.mxu0 0.0
        %372 = vmatprep.subr.mxu0 0.0
        %373 = vmatpush1.msra.mxu0 0.0
        %374 = vmatprep.subr.mxu0 0.0
        %375 = vmatpush1.msra.mxu0 0.0
        %376 = vmatprep.subr.mxu0 0.0
        %377 = vmatpush1.msra.mxu0 0.0
        %378 = vmatprep.subr.mxu0 0.0
        %379 = vmatpush1.msra.mxu0 0.0
        %380 = vmatprep.subr.mxu0 0.0
        %381 = vmatpush1.msra.mxu0 0.0
        %382 = vmatprep.subr.mxu0 0.0
        %383 = vmatpush1.msra.mxu0 0.0
        %384 = vmatprep.subr.mxu0 0.0
        %385 = vmatpush1.msra.mxu0 0.0
        %386 = vmatprep.subr.mxu0 0.0
        %387 = vmatpush1.msra.mxu0 0.0
        %388 = vmatprep.subr.mxu0 0.0
        %389 = vmatpush1.msra.mxu0 0.0
        %390 = vmatprep.subr.mxu0 0.0
        %391 = vmatpush1.msra.mxu0 0.0
        %392 = vmatprep.subr.mxu0 0.0
        %393 = vmatpush1.msra.mxu0 0.0
        %394 = vmatprep.subr.mxu0 0.0
        %395 = vmatpush1.msra.mxu0 0.0
        %396 = vmatprep.subr.mxu0 0.0
        %397 = vmatpush1.msra.mxu0 0.0
        %398 = vmatprep.subr.mxu0 0.0
        %399 = vmatpush1.msra.mxu0 0.0
        %400 = vmatprep.subr.mxu0 0.0
        %401 = vmatpush1.msra.mxu0 0.0
        %402 = vmatprep.subr.mxu0 0.0
        %403 = vmatpush1.msra.mxu0 0.0
        %404 = vmatprep.subr.mxu0 0.0
        %405 = vmatpush1.msra.mxu0 0.0
        %406 = vmatprep.subr.mxu0 0.0
        %407 = vmatpush1.msra.mxu0 0.0
        %408 = vmatprep.subr.mxu0 0.0
        %409 = vmatpush1.msra.mxu0 0.0
        %410 = vmatprep.subr.mxu0 0.0
        %411 = vmatpush1.msra.mxu0 0.0
        %412 = vmatprep.subr.mxu0 0.0
        %413 = vmatpush1.msra.mxu0 0.0
        %414 = vmatprep.subr.mxu0 0.0
        %415 = vmatpush1.msra.mxu0 0.0
        %416 = vmatprep.subr.mxu0 0.0
        %417 = vmatpush1.msra.mxu0 0.0
        %418 = vmatprep.mubr.f32.mxu0 0.0
        %v419 = vand.u32 %v348, 4294901760
        %v420 = vsub.f32 %v348, %v419
        %v421 = vand.u32 %v420, 4294901760
        %v422 = vsub.f32 %v420, %v421
        %v423 = vand.u32 %v422, 4294901760
        %424 = vmatmul.mubr.f32.gmra.mrb[0].mxu0 %v423
        %v425 = vpop.f32.mrb[0].mxu0
        %v426 = vadd.f32 %v344, %v425
        %v427 = vpop.f32.mrb[0].mxu0
        %428 = vdwg.mxu0
        %429 = vmatprep.subr.mxu0 0.0
        %v430 = vand.u32 %v335, 4294901760
        %v431 = vsub.f32 %v335, %v430
        %v432 = vand.u32 %v431, 4294901760
        %v433 = vsub.f32 %v431, %v432
        %v434 = vand.u32 %v433, 4294901760
        %435 = vmatpush1.msra.mxu0 %v434
        %436 = vmatprep.subr.mxu0 0.0
        %v437 = vand.u32 %v336, 4294901760
        %v438 = vsub.f32 %v336, %v437
        %v439 = vand.u32 %v438, 4294901760
        %v440 = vsub.f32 %v438, %v439
        %v441 = vand.u32 %v440, 4294901760
        %442 = vmatpush1.msra.mxu0 %v441
        %443 = vmatprep.subr.mxu0 0.0
        %v444 = vand.u32 %v337, 4294901760
        %v445 = vsub.f32 %v337, %v444
        %v446 = vand.u32 %v445, 4294901760
        %v447 = vsub.f32 %v445, %v446
        %v448 = vand.u32 %v447, 4294901760
        %449 = vmatpush1.msra.mxu0 %v448
        %450 = vmatprep.subr.mxu0 0.0
        %v451 = vand.u32 %v338, 4294901760
        %v452 = vsub.f32 %v338, %v451
        %v453 = vand.u32 %v452, 4294901760
        %v454 = vsub.f32 %v452, %v453
        %v455 = vand.u32 %v454, 4294901760
        %456 = vmatpush1.msra.mxu0 %v455
        %457 = vmatprep.subr.mxu0 0.0
        %458 = vmatpush1.msra.mxu0 0.0
        %459 = vmatprep.subr.mxu0 0.0
        %460 = vmatpush1.msra.mxu0 0.0
        %461 = vmatprep.subr.mxu0 0.0
        %462 = vmatpush1.msra.mxu0 0.0
        %463 = vmatprep.subr.mxu0 0.0
        %464 = vmatpush1.msra.mxu0 0.0
        %465 = vmatprep.subr.mxu0 0.0
        %466 = vmatpush1.msra.mxu0 0.0
        %467 = vmatprep.subr.mxu0 0.0
        %468 = vmatpush1.msra.mxu0 0.0
        %469 = vmatprep.subr.mxu0 0.0
        %470 = vmatpush1.msra.mxu0 0.0
        %471 = vmatprep.subr.mxu0 0.0
        %472 = vmatpush1.msra.mxu0 0.0
        %473 = vmatprep.subr.mxu0 0.0
        %474 = vmatpush1.msra.mxu0 0.0
        %475 = vmatprep.subr.mxu0 0.0
        %476 = vmatpush1.msra.mxu0 0.0
        %477 = vmatprep.subr.mxu0 0.0
        %478 = vmatpush1.msra.mxu0 0.0
        %479 = vmatprep.subr.mxu0 0.0
        %480 = vmatpush1.msra.mxu0 0.0
        %481 = vmatprep.subr.mxu0 0.0
        %482 = vmatpush1.msra.mxu0 0.0
        %483 = vmatprep.subr.mxu0 0.0
        %484 = vmatpush1.msra.mxu0 0.0
        %485 = vmatprep.subr.mxu0 0.0
        %486 = vmatpush1.msra.mxu0 0.0
        %487 = vmatprep.subr.mxu0 0.0
        %488 = vmatpush1.msra.mxu0 0.0
        %489 = vmatprep.subr.mxu0 0.0
        %490 = vmatpush1.msra.mxu0 0.0
        %491 = vmatprep.subr.mxu0 0.0
        %492 = vmatpush1.msra.mxu0 0.0
        %493 = vmatprep.subr.mxu0 0.0
        %494 = vmatpush1.msra.mxu0 0.0
        %495 = vmatprep.subr.mxu0 0.0
        %496 = vmatpush1.msra.mxu0 0.0
        %497 = vmatprep.subr.mxu0 0.0
        %498 = vmatpush1.msra.mxu0 0.0
        %499 = vmatprep.subr.mxu0 0.0
        %500 = vmatpush1.msra.mxu0 0.0
        %501 = vmatprep.subr.mxu0 0.0
        %502 = vmatpush1.msra.mxu0 0.0
        %503 = vmatprep.subr.mxu0 0.0
        %504 = vmatpush1.msra.mxu0 0.0
        %505 = vmatprep.subr.mxu0 0.0
        %506 = vmatpush1.msra.mxu0 0.0
        %507 = vmatprep.subr.mxu0 0.0
        %508 = vmatpush1.msra.mxu0 0.0
        %509 = vmatprep.subr.mxu0 0.0
        %510 = vmatpush1.msra.mxu0 0.0
        %511 = vmatprep.subr.mxu0 0.0
        %512 = vmatpush1.msra.mxu0 0.0
        %513 = vmatprep.mubr.f32.mxu0 0.0
        %v514 = vand.u32 %v348, 4294901760
        %515 = vmatmul.mubr.f32.gmra.mrb[0].mxu0 %v514
        %v516 = vpop.f32.mrb[0].mxu0
        %v517 = vadd.f32 %v426, %v516
        %v518 = vpop.f32.mrb[0].mxu0
        %519 = vdwg.mxu0
        %520 = vmatprep.subr.mxu0 0.0
        %v521 = vand.u32 %v335, 4294901760
        %v522 = vsub.f32 %v335, %v521
        %523 = vmatpush1.msra.mxu0 %v522
        %524 = vmatprep.subr.mxu0 0.0
        %v525 = vand.u32 %v336, 4294901760
        %v526 = vsub.f32 %v336, %v525
        %527 = vmatpush1.msra.mxu0 %v526
        %528 = vmatprep.subr.mxu0 0.0
        %v529 = vand.u32 %v337, 4294901760
        %v530 = vsub.f32 %v337, %v529
        %531 = vmatpush1.msra.mxu0 %v530
        %532 = vmatprep.subr.mxu0 0.0
        %v533 = vand.u32 %v338, 4294901760
        %v534 = vsub.f32 %v338, %v533
        %535 = vmatpush1.msra.mxu0 %v534
        %536 = vmatprep.subr.mxu0 0.0
        %537 = vmatpush1.msra.mxu0 0.0
        %538 = vmatprep.subr.mxu0 0.0
        %539 = vmatpush1.msra.mxu0 0.0
        %540 = vmatprep.subr.mxu0 0.0
        %541 = vmatpush1.msra.mxu0 0.0
        %542 = vmatprep.subr.mxu0 0.0
        %543 = vmatpush1.msra.mxu0 0.0
        %544 = vmatprep.subr.mxu0 0.0
        %545 = vmatpush1.msra.mxu0 0.0
        %546 = vmatprep.subr.mxu0 0.0
        %547 = vmatpush1.msra.mxu0 0.0
        %548 = vmatprep.subr.mxu0 0.0
        %549 = vmatpush1.msra.mxu0 0.0
        %550 = vmatprep.subr.mxu0 0.0
        %551 = vmatpush1.msra.mxu0 0.0
        %552 = vmatprep.subr.mxu0 0.0
        %553 = vmatpush1.msra.mxu0 0.0
        %554 = vmatprep.subr.mxu0 0.0
        %555 = vmatpush1.msra.mxu0 0.0
        %556 = vmatprep.subr.mxu0 0.0
        %557 = vmatpush1.msra.mxu0 0.0
        %558 = vmatprep.subr.mxu0 0.0
        %559 = vmatpush1.msra.mxu0 0.0
        %560 = vmatprep.subr.mxu0 0.0
        %561 = vmatpush1.msra.mxu0 0.0
        %562 = vmatprep.subr.mxu0 0.0
        %563 = vmatpush1.msra.mxu0 0.0
        %564 = vmatprep.subr.mxu0 0.0
        %565 = vmatpush1.msra.mxu0 0.0
        %566 = vmatprep.subr.mxu0 0.0
        %567 = vmatpush1.msra.mxu0 0.0
        %568 = vmatprep.subr.mxu0 0.0
        %569 = vmatpush1.msra.mxu0 0.0
        %570 = vmatprep.subr.mxu0 0.0
        %571 = vmatpush1.msra.mxu0 0.0
        %572 = vmatprep.subr.mxu0 0.0
        %573 = vmatpush1.msra.mxu0 0.0
        %574 = vmatprep.subr.mxu0 0.0
        %575 = vmatpush1.msra.mxu0 0.0
        %576 = vmatprep.subr.mxu0 0.0
        %577 = vmatpush1.msra.mxu0 0.0
        %578 = vmatprep.subr.mxu0 0.0
        %579 = vmatpush1.msra.mxu0 0.0
        %580 = vmatprep.subr.mxu0 0.0
        %581 = vmatpush1.msra.mxu0 0.0
        %582 = vmatprep.subr.mxu0 0.0
        %583 = vmatpush1.msra.mxu0 0.0
        %584 = vmatprep.subr.mxu0 0.0
        %585 = vmatpush1.msra.mxu0 0.0
        %586 = vmatprep.subr.mxu0 0.0
        %587 = vmatpush1.msra.mxu0 0.0
        %588 = vmatprep.subr.mxu0 0.0
        %589 = vmatpush1.msra.mxu0 0.0
        %590 = vmatprep.subr.mxu0 0.0
        %591 = vmatpush1.msra.mxu0 0.0
        %592 = vmatprep.mubr.f32.mxu0 0.0
        %v593 = vand.u32 %v348, 4294901760
        %v594 = vsub.f32 %v348, %v593
        %595 = vmatmul.mubr.f32.gmra.mrb[0].mxu0 %v594
        %v596 = vpop.f32.mrb[0].mxu0
        %v597 = vadd.f32 %v517, %v596
        %v598 = vpop.f32.mrb[0].mxu0
        %599 = vdwg.mxu0
        %600 = vmatprep.subr.mxu0 0.0
        %v601 = vand.u32 %v335, 4294901760
        %602 = vmatpush1.msra.mxu0 %v601
        %603 = vmatprep.subr.mxu0 0.0
        %v604 = vand.u32 %v336, 4294901760
        %605 = vmatpush1.msra.mxu0 %v604
        %606 = vmatprep.subr.mxu0 0.0
        %v607 = vand.u32 %v337, 4294901760
        %608 = vmatpush1.msra.mxu0 %v607
        %609 = vmatprep.subr.mxu0 0.0
        %v610 = vand.u32 %v338, 4294901760
        %611 = vmatpush1.msra.mxu0 %v610
        %612 = vmatprep.subr.mxu0 0.0
        %613 = vmatpush1.msra.mxu0 0.0
        %614 = vmatprep.subr.mxu0 0.0
        %615 = vmatpush1.msra.mxu0 0.0
        %616 = vmatprep.subr.mxu0 0.0
        %617 = vmatpush1.msra.mxu0 0.0
        %618 = vmatprep.subr.mxu0 0.0
        %619 = vmatpush1.msra.mxu0 0.0
        %620 = vmatprep.subr.mxu0 0.0
        %621 = vmatpush1.msra.mxu0 0.0
        %622 = vmatprep.subr.mxu0 0.0
        %623 = vmatpush1.msra.mxu0 0.0
        %624 = vmatprep.subr.mxu0 0.0
        %625 = vmatpush1.msra.mxu0 0.0
        %626 = vmatprep.subr.mxu0 0.0
        %627 = vmatpush1.msra.mxu0 0.0
        %628 = vmatprep.subr.mxu0 0.0
        %629 = vmatpush1.msra.mxu0 0.0
        %630 = vmatprep.subr.mxu0 0.0
        %631 = vmatpush1.msra.mxu0 0.0
        %632 = vmatprep.subr.mxu0 0.0
        %633 = vmatpush1.msra.mxu0 0.0
        %634 = vmatprep.subr.mxu0 0.0
        %635 = vmatpush1.msra.mxu0 0.0
        %636 = vmatprep.subr.mxu0 0.0
        %637 = vmatpush1.msra.mxu0 0.0
        %638 = vmatprep.subr.mxu0 0.0
        %639 = vmatpush1.msra.mxu0 0.0
        %640 = vmatprep.subr.mxu0 0.0
        %641 = vmatpush1.msra.mxu0 0.0
        %642 = vmatprep.subr.mxu0 0.0
        %643 = vmatpush1.msra.mxu0 0.0
        %644 = vmatprep.subr.mxu0 0.0
        %645 = vmatpush1.msra.mxu0 0.0
        %646 = vmatprep.subr.mxu0 0.0
        %647 = vmatpush1.msra.mxu0 0.0
        %648 = vmatprep.subr.mxu0 0.0
        %649 = vmatpush1.msra.mxu0 0.0
        %650 = vmatprep.subr.mxu0 0.0
        %651 = vmatpush1.msra.mxu0 0.0
        %652 = vmatprep.subr.mxu0 0.0
        %653 = vmatpush1.msra.mxu0 0.0
        %654 = vmatprep.subr.mxu0 0.0
        %655 = vmatpush1.msra.mxu0 0.0
        %656 = vmatprep.subr.mxu0 0.0
        %657 = vmatpush1.msra.mxu0 0.0
        %658 = vmatprep.subr.mxu0 0.0
        %659 = vmatpush1.msra.mxu0 0.0
        %660 = vmatprep.subr.mxu0 0.0
        %661 = vmatpush1.msra.mxu0 0.0
        %662 = vmatprep.subr.mxu0 0.0
        %663 = vmatpush1.msra.mxu0 0.0
        %664 = vmatprep.subr.mxu0 0.0
        %665 = vmatpush1.msra.mxu0 0.0
        %666 = vmatprep.subr.mxu0 0.0
        %667 = vmatpush1.msra.mxu0 0.0
        %668 = vmatprep.mubr.f32.mxu0 0.0
        %v669 = vand.u32 %v348, 4294901760
        %v670 = vsub.f32 %v348, %v669
        %v671 = vand.u32 %v670, 4294901760
        %672 = vmatmul.mubr.f32.gmra.mrb[0].mxu0 %v671
        %v673 = vpop.f32.mrb[0].mxu0
        %v674 = vadd.f32 %v597, %v673
        %v675 = vpop.f32.mrb[0].mxu0
        %676 = vdwg.mxu0
        %677 = vmatprep.subr.mxu0 0.0
        %v678 = vand.u32 %v335, 4294901760
        %v679 = vsub.f32 %v335, %v678
        %v680 = vand.u32 %v679, 4294901760
        %681 = vmatpush1.msra.mxu0 %v680
        %682 = vmatprep.subr.mxu0 0.0
        %v683 = vand.u32 %v336, 4294901760
        %v684 = vsub.f32 %v336, %v683
        %v685 = vand.u32 %v684, 4294901760
        %686 = vmatpush1.msra.mxu0 %v685
        %687 = vmatprep.subr.mxu0 0.0
        %v688 = vand.u32 %v337, 4294901760
        %v689 = vsub.f32 %v337, %v688
        %v690 = vand.u32 %v689, 4294901760
        %691 = vmatpush1.msra.mxu0 %v690
        %692 = vmatprep.subr.mxu0 0.0
        %v693 = vand.u32 %v338, 4294901760
        %v694 = vsub.f32 %v338, %v693
        %v695 = vand.u32 %v694, 4294901760
        %696 = vmatpush1.msra.mxu0 %v695
        %697 = vmatprep.subr.mxu0 0.0
        %698 = vmatpush1.msra.mxu0 0.0
        %699 = vmatprep.subr.mxu0 0.0
        %700 = vmatpush1.msra.mxu0 0.0
        %701 = vmatprep.subr.mxu0 0.0
        %702 = vmatpush1.msra.mxu0 0.0
        %703 = vmatprep.subr.mxu0 0.0
        %704 = vmatpush1.msra.mxu0 0.0
        %705 = vmatprep.subr.mxu0 0.0
        %706 = vmatpush1.msra.mxu0 0.0
        %707 = vmatprep.subr.mxu0 0.0
        %708 = vmatpush1.msra.mxu0 0.0
        %709 = vmatprep.subr.mxu0 0.0
        %710 = vmatpush1.msra.mxu0 0.0
        %711 = vmatprep.subr.mxu0 0.0
        %712 = vmatpush1.msra.mxu0 0.0
        %713 = vmatprep.subr.mxu0 0.0
        %714 = vmatpush1.msra.mxu0 0.0
        %715 = vmatprep.subr.mxu0 0.0
        %716 = vmatpush1.msra.mxu0 0.0
        %717 = vmatprep.subr.mxu0 0.0
        %718 = vmatpush1.msra.mxu0 0.0
        %719 = vmatprep.subr.mxu0 0.0
        %720 = vmatpush1.msra.mxu0 0.0
        %721 = vmatprep.subr.mxu0 0.0
        %722 = vmatpush1.msra.mxu0 0.0
        %723 = vmatprep.subr.mxu0 0.0
        %724 = vmatpush1.msra.mxu0 0.0
        %725 = vmatprep.subr.mxu0 0.0
        %726 = vmatpush1.msra.mxu0 0.0
        %727 = vmatprep.subr.mxu0 0.0
        %728 = vmatpush1.msra.mxu0 0.0
        %729 = vmatprep.subr.mxu0 0.0
        %730 = vmatpush1.msra.mxu0 0.0
        %731 = vmatprep.subr.mxu0 0.0
        %732 = vmatpush1.msra.mxu0 0.0
        %733 = vmatprep.subr.mxu0 0.0
        %734 = vmatpush1.msra.mxu0 0.0
        %735 = vmatprep.subr.mxu0 0.0
        %736 = vmatpush1.msra.mxu0 0.0
        %737 = vmatprep.subr.mxu0 0.0
        %738 = vmatpush1.msra.mxu0 0.0
        %739 = vmatprep.subr.mxu0 0.0
        %740 = vmatpush1.msra.mxu0 0.0
        %741 = vmatprep.subr.mxu0 0.0
        %742 = vmatpush1.msra.mxu0 0.0
        %743 = vmatprep.subr.mxu0 0.0
        %744 = vmatpush1.msra.mxu0 0.0
        %745 = vmatprep.subr.mxu0 0.0
        %746 = vmatpush1.msra.mxu0 0.0
        %747 = vmatprep.subr.mxu0 0.0
        %748 = vmatpush1.msra.mxu0 0.0
        %749 = vmatprep.subr.mxu0 0.0
        %750 = vmatpush1.msra.mxu0 0.0
        %751 = vmatprep.subr.mxu0 0.0
        %752 = vmatpush1.msra.mxu0 0.0
        %753 = vmatprep.mubr.f32.mxu0 0.0
        %v754 = vand.u32 %v348, 4294901760
        %755 = vmatmul.mubr.f32.gmra.mrb[0].mxu0 %v754
        %v756 = vpop.f32.mrb[0].mxu0
        %v757 = vadd.f32 %v674, %v756
        %v758 = vpop.f32.mrb[0].mxu0
        %759 = vdwg.mxu0
        %760 = vmatprep.subr.mxu0 0.0
        %v761 = vand.u32 %v335, 4294901760
        %762 = vmatpush1.msra.mxu0 %v761
        %763 = vmatprep.subr.mxu0 0.0
        %v764 = vand.u32 %v336, 4294901760
        %765 = vmatpush1.msra.mxu0 %v764
        %766 = vmatprep.subr.mxu0 0.0
        %v767 = vand.u32 %v337, 4294901760
        %768 = vmatpush1.msra.mxu0 %v767
        %769 = vmatprep.subr.mxu0 0.0
        %v770 = vand.u32 %v338, 4294901760
        %771 = vmatpush1.msra.mxu0 %v770
        %772 = vmatprep.subr.mxu0 0.0
        %773 = vmatpush1.msra.mxu0 0.0
        %774 = vmatprep.subr.mxu0 0.0
        %775 = vmatpush1.msra.mxu0 0.0
        %776 = vmatprep.subr.mxu0 0.0
        %777 = vmatpush1.msra.mxu0 0.0
        %778 = vmatprep.subr.mxu0 0.0
        %779 = vmatpush1.msra.mxu0 0.0
        %780 = vmatprep.subr.mxu0 0.0
        %781 = vmatpush1.msra.mxu0 0.0
        %782 = vmatprep.subr.mxu0 0.0
        %783 = vmatpush1.msra.mxu0 0.0
        %784 = vmatprep.subr.mxu0 0.0
        %785 = vmatpush1.msra.mxu0 0.0
        %786 = vmatprep.subr.mxu0 0.0
        %787 = vmatpush1.msra.mxu0 0.0
        %788 = vmatprep.subr.mxu0 0.0
        %789 = vmatpush1.msra.mxu0 0.0
        %790 = vmatprep.subr.mxu0 0.0
        %791 = vmatpush1.msra.mxu0 0.0
        %792 = vmatprep.subr.mxu0 0.0
        %793 = vmatpush1.msra.mxu0 0.0
        %794 = vmatprep.subr.mxu0 0.0
        %795 = vmatpush1.msra.mxu0 0.0
        %796 = vmatprep.subr.mxu0 0.0
        %797 = vmatpush1.msra.mxu0 0.0
        %798 = vmatprep.subr.mxu0 0.0
        %799 = vmatpush1.msra.mxu0 0.0
        %800 = vmatprep.subr.mxu0 0.0
        %801 = vmatpush1.msra.mxu0 0.0
        %802 = vmatprep.subr.mxu0 0.0
        %803 = vmatpush1.msra.mxu0 0.0
        %804 = vmatprep.subr.mxu0 0.0
        %805 = vmatpush1.msra.mxu0 0.0
        %806 = vmatprep.subr.mxu0 0.0
        %807 = vmatpush1.msra.mxu0 0.0
        %808 = vmatprep.subr.mxu0 0.0
        %809 = vmatpush1.msra.mxu0 0.0
        %810 = vmatprep.subr.mxu0 0.0
        %811 = vmatpush1.msra.mxu0 0.0
        %812 = vmatprep.subr.mxu0 0.0
        %813 = vmatpush1.msra.mxu0 0.0
        %814 = vmatprep.subr.mxu0 0.0
        %815 = vmatpush1.msra.mxu0 0.0
        %816 = vmatprep.subr.mxu0 0.0
        %817 = vmatpush1.msra.mxu0 0.0
        %818 = vmatprep.subr.mxu0 0.0
        %819 = vmatpush1.msra.mxu0 0.0
        %820 = vmatprep.subr.mxu0 0.0
        %821 = vmatpush1.msra.mxu0 0.0
        %822 = vmatprep.subr.mxu0 0.0
        %823 = vmatpush1.msra.mxu0 0.0
        %824 = vmatprep.subr.mxu0 0.0
        %825 = vmatpush1.msra.mxu0 0.0
        %826 = vmatprep.subr.mxu0 0.0
        %827 = vmatpush1.msra.mxu0 0.0
        %828 = vmatprep.mubr.f32.mxu0 0.0
        %v829 = vand.u32 %v348, 4294901760
        %830 = vmatmul.mubr.f32.gmra.mrb[0].mxu0 %v829
        %v831 = vpop.f32.mrb[0].mxu0
        %v832 = vadd.f32 %v757, %v831
        %v833 = vpop.f32.mrb[0].mxu0
        %834 = vdwg.mxu0
        %839 = vrot.lane.b32.xlu0 %v335, 96
        %v840 = vpop.permute.xlu0 %839
        %841 = vrot.lane.b32.xlu0 %v336, 96
        %v842 = vpop.permute.xlu0 %841
        %843 = vrot.lane.b32.xlu0 %v337, 96
        %v844 = vpop.permute.xlu0 %843
        %845 = vrot.lane.b32.xlu0 %v338, 96
        %v846 = vpop.permute.xlu0 %845
        %851 = vrot.lane.b32.xlu0 %v344, 96
        %v852 = vpop.permute.xlu0 %851
        %v855 = vsel %vm346, %v334, 0
        %857 = vmatprep.subr.mxu0 0.0
        %v858 = vand.u32 %v840, 4294901760
        %859 = vmatpush1.msra.mxu0 %v858
        %860 = vmatprep.subr.mxu0 0.0
        %v861 = vand.u32 %v842, 4294901760
        %862 = vmatpush1.msra.mxu0 %v861
        %863 = vmatprep.subr.mxu0 0.0
        %v864 = vand.u32 %v844, 4294901760
        %865 = vmatpush1.msra.mxu0 %v864
        %866 = vmatprep.subr.mxu0 0.0
        %v867 = vand.u32 %v846, 4294901760
        %868 = vmatpush1.msra.mxu0 %v867
        %869 = vmatprep.subr.mxu0 0.0
        %870 = vmatpush1.msra.mxu0 0.0
        %871 = vmatprep.subr.mxu0 0.0
        %872 = vmatpush1.msra.mxu0 0.0
        %873 = vmatprep.subr.mxu0 0.0
        %874 = vmatpush1.msra.mxu0 0.0
        %875 = vmatprep.subr.mxu0 0.0
        %876 = vmatpush1.msra.mxu0 0.0
        %877 = vmatprep.subr.mxu0 0.0
        %878 = vmatpush1.msra.mxu0 0.0
        %879 = vmatprep.subr.mxu0 0.0
        %880 = vmatpush1.msra.mxu0 0.0
        %881 = vmatprep.subr.mxu0 0.0
        %882 = vmatpush1.msra.mxu0 0.0
        %883 = vmatprep.subr.mxu0 0.0
        %884 = vmatpush1.msra.mxu0 0.0
        %885 = vmatprep.subr.mxu0 0.0
        %886 = vmatpush1.msra.mxu0 0.0
        %887 = vmatprep.subr.mxu0 0.0
        %888 = vmatpush1.msra.mxu0 0.0
        %889 = vmatprep.subr.mxu0 0.0
        %890 = vmatpush1.msra.mxu0 0.0
        %891 = vmatprep.subr.mxu0 0.0
        %892 = vmatpush1.msra.mxu0 0.0
        %893 = vmatprep.subr.mxu0 0.0
        %894 = vmatpush1.msra.mxu0 0.0
        %895 = vmatprep.subr.mxu0 0.0
        %896 = vmatpush1.msra.mxu0 0.0
        %897 = vmatprep.subr.mxu0 0.0
        %898 = vmatpush1.msra.mxu0 0.0
        %899 = vmatprep.subr.mxu0 0.0
        %900 = vmatpush1.msra.mxu0 0.0
        %901 = vmatprep.subr.mxu0 0.0
        %902 = vmatpush1.msra.mxu0 0.0
        %903 = vmatprep.subr.mxu0 0.0
        %904 = vmatpush1.msra.mxu0 0.0
        %905 = vmatprep.subr.mxu0 0.0
        %906 = vmatpush1.msra.mxu0 0.0
        %907 = vmatprep.subr.mxu0 0.0
        %908 = vmatpush1.msra.mxu0 0.0
        %909 = vmatprep.subr.mxu0 0.0
        %910 = vmatpush1.msra.mxu0 0.0
        %911 = vmatprep.subr.mxu0 0.0
        %912 = vmatpush1.msra.mxu0 0.0
        %913 = vmatprep.subr.mxu0 0.0
        %914 = vmatpush1.msra.mxu0 0.0
        %915 = vmatprep.subr.mxu0 0.0
        %916 = vmatpush1.msra.mxu0 0.0
        %917 = vmatprep.subr.mxu0 0.0
        %918 = vmatpush1.msra.mxu0 0.0
        %919 = vmatprep.subr.mxu0 0.0
        %920 = vmatpush1.msra.mxu0 0.0
        %921 = vmatprep.subr.mxu0 0.0
        %922 = vmatpush1.msra.mxu0 0.0
        %923 = vmatprep.subr.mxu0 0.0
        %924 = vmatpush1.msra.mxu0 0.0
        %925 = vmatprep.mubr.f32.mxu0 0.0
        %v926 = vand.u32 %v855, 4294901760
        %v927 = vsub.f32 %v855, %v926
        %v928 = vand.u32 %v927, 4294901760
        %v929 = vsub.f32 %v927, %v928
        %v930 = vand.u32 %v929, 4294901760
        %931 = vmatmul.mubr.f32.gmra.mrb[0].mxu0 %v930
        %v932 = vpop.f32.mrb[0].mxu0
        %v933 = vadd.f32 %v852, %v932
        %v934 = vpop.f32.mrb[0].mxu0
        %935 = vdwg.mxu0
        %936 = vmatprep.subr.mxu0 0.0
        %v937 = vand.u32 %v840, 4294901760
        %v938 = vsub.f32 %v840, %v937
        %v939 = vand.u32 %v938, 4294901760
        %v940 = vsub.f32 %v938, %v939
        %v941 = vand.u32 %v940, 4294901760
        %942 = vmatpush1.msra.mxu0 %v941
        %943 = vmatprep.subr.mxu0 0.0
        %v944 = vand.u32 %v842, 4294901760
        %v945 = vsub.f32 %v842, %v944
        %v946 = vand.u32 %v945, 4294901760
        %v947 = vsub.f32 %v945, %v946
        %v948 = vand.u32 %v947, 4294901760
        %949 = vmatpush1.msra.mxu0 %v948
        %950 = vmatprep.subr.mxu0 0.0
        %v951 = vand.u32 %v844, 4294901760
        %v952 = vsub.f32 %v844, %v951
        %v953 = vand.u32 %v952, 4294901760
        %v954 = vsub.f32 %v952, %v953
        %v955 = vand.u32 %v954, 4294901760
        %956 = vmatpush1.msra.mxu0 %v955
        %957 = vmatprep.subr.mxu0 0.0
        %v958 = vand.u32 %v846, 4294901760
        %v959 = vsub.f32 %v846, %v958
        %v960 = vand.u32 %v959, 4294901760
        %v961 = vsub.f32 %v959, %v960
        %v962 = vand.u32 %v961, 4294901760
        %963 = vmatpush1.msra.mxu0 %v962
        %964 = vmatprep.subr.mxu0 0.0
        %965 = vmatpush1.msra.mxu0 0.0
        %966 = vmatprep.subr.mxu0 0.0
        %967 = vmatpush1.msra.mxu0 0.0
        %968 = vmatprep.subr.mxu0 0.0
        %969 = vmatpush1.msra.mxu0 0.0
        %970 = vmatprep.subr.mxu0 0.0
        %971 = vmatpush1.msra.mxu0 0.0
        %972 = vmatprep.subr.mxu0 0.0
        %973 = vmatpush1.msra.mxu0 0.0
        %974 = vmatprep.subr.mxu0 0.0
        %975 = vmatpush1.msra.mxu0 0.0
        %976 = vmatprep.subr.mxu0 0.0
        %977 = vmatpush1.msra.mxu0 0.0
        %978 = vmatprep.subr.mxu0 0.0
        %979 = vmatpush1.msra.mxu0 0.0
        %980 = vmatprep.subr.mxu0 0.0
        %981 = vmatpush1.msra.mxu0 0.0
        %982 = vmatprep.subr.mxu0 0.0
        %983 = vmatpush1.msra.mxu0 0.0
        %984 = vmatprep.subr.mxu0 0.0
        %985 = vmatpush1.msra.mxu0 0.0
        %986 = vmatprep.subr.mxu0 0.0
        %987 = vmatpush1.msra.mxu0 0.0
        %988 = vmatprep.subr.mxu0 0.0
        %989 = vmatpush1.msra.mxu0 0.0
        %990 = vmatprep.subr.mxu0 0.0
        %991 = vmatpush1.msra.mxu0 0.0
        %992 = vmatprep.subr.mxu0 0.0
        %993 = vmatpush1.msra.mxu0 0.0
        %994 = vmatprep.subr.mxu0 0.0
        %995 = vmatpush1.msra.mxu0 0.0
        %996 = vmatprep.subr.mxu0 0.0
        %997 = vmatpush1.msra.mxu0 0.0
        %998 = vmatprep.subr.mxu0 0.0
        %999 = vmatpush1.msra.mxu0 0.0
        %1000 = vmatprep.subr.mxu0 0.0
        %1001 = vmatpush1.msra.mxu0 0.0
        %1002 = vmatprep.subr.mxu0 0.0
        %1003 = vmatpush1.msra.mxu0 0.0
        %1004 = vmatprep.subr.mxu0 0.0
        %1005 = vmatpush1.msra.mxu0 0.0
        %1006 = vmatprep.subr.mxu0 0.0
        %1007 = vmatpush1.msra.mxu0 0.0
        %1008 = vmatprep.subr.mxu0 0.0
        %1009 = vmatpush1.msra.mxu0 0.0
        %1010 = vmatprep.subr.mxu0 0.0
        %1011 = vmatpush1.msra.mxu0 0.0
        %1012 = vmatprep.subr.mxu0 0.0
        %1013 = vmatpush1.msra.mxu0 0.0
        %1014 = vmatprep.subr.mxu0 0.0
        %1015 = vmatpush1.msra.mxu0 0.0
        %1016 = vmatprep.subr.mxu0 0.0
        %1017 = vmatpush1.msra.mxu0 0.0
        %1018 = vmatprep.subr.mxu0 0.0
        %1019 = vmatpush1.msra.mxu0 0.0
        %1020 = vmatprep.mubr.f32.mxu0 0.0
        %v1021 = vand.u32 %v855, 4294901760
        %1022 = vmatmul.mubr.f32.gmra.mrb[0].mxu0 %v1021
        %v1023 = vpop.f32.mrb[0].mxu0
        %v1024 = vadd.f32 %v933, %v1023
        %v1025 = vpop.f32.mrb[0].mxu0
        %1026 = vdwg.mxu0
        %1027 = vmatprep.subr.mxu0 0.0
        %v1028 = vand.u32 %v840, 4294901760
        %v1029 = vsub.f32 %v840, %v1028
        %1030 = vmatpush1.msra.mxu0 %v1029
        %1031 = vmatprep.subr.mxu0 0.0
        %v1032 = vand.u32 %v842, 4294901760
        %v1033 = vsub.f32 %v842, %v1032
        %1034 = vmatpush1.msra.mxu0 %v1033
        %1035 = vmatprep.subr.mxu0 0.0
        %v1036 = vand.u32 %v844, 4294901760
        %v1037 = vsub.f32 %v844, %v1036
        %1038 = vmatpush1.msra.mxu0 %v1037
        %1039 = vmatprep.subr.mxu0 0.0
        %v1040 = vand.u32 %v846, 4294901760
        %v1041 = vsub.f32 %v846, %v1040
        %1042 = vmatpush1.msra.mxu0 %v1041
        %1043 = vmatprep.subr.mxu0 0.0
        %1044 = vmatpush1.msra.mxu0 0.0
        %1045 = vmatprep.subr.mxu0 0.0
        %1046 = vmatpush1.msra.mxu0 0.0
        %1047 = vmatprep.subr.mxu0 0.0
        %1048 = vmatpush1.msra.mxu0 0.0
        %1049 = vmatprep.subr.mxu0 0.0
        %1050 = vmatpush1.msra.mxu0 0.0
        %1051 = vmatprep.subr.mxu0 0.0
        %1052 = vmatpush1.msra.mxu0 0.0
        %1053 = vmatprep.subr.mxu0 0.0
        %1054 = vmatpush1.msra.mxu0 0.0
        %1055 = vmatprep.subr.mxu0 0.0
        %1056 = vmatpush1.msra.mxu0 0.0
        %1057 = vmatprep.subr.mxu0 0.0
        %1058 = vmatpush1.msra.mxu0 0.0
        %1059 = vmatprep.subr.mxu0 0.0
        %1060 = vmatpush1.msra.mxu0 0.0
        %1061 = vmatprep.subr.mxu0 0.0
        %1062 = vmatpush1.msra.mxu0 0.0
        %1063 = vmatprep.subr.mxu0 0.0
        %1064 = vmatpush1.msra.mxu0 0.0
        %1065 = vmatprep.subr.mxu0 0.0
        %1066 = vmatpush1.msra.mxu0 0.0
        %1067 = vmatprep.subr.mxu0 0.0
        %1068 = vmatpush1.msra.mxu0 0.0
        %1069 = vmatprep.subr.mxu0 0.0
        %1070 = vmatpush1.msra.mxu0 0.0
        %1071 = vmatprep.subr.mxu0 0.0
        %1072 = vmatpush1.msra.mxu0 0.0
        %1073 = vmatprep.subr.mxu0 0.0
        %1074 = vmatpush1.msra.mxu0 0.0
        %1075 = vmatprep.subr.mxu0 0.0
        %1076 = vmatpush1.msra.mxu0 0.0
        %1077 = vmatprep.subr.mxu0 0.0
        %1078 = vmatpush1.msra.mxu0 0.0
        %1079 = vmatprep.subr.mxu0 0.0
        %1080 = vmatpush1.msra.mxu0 0.0
        %1081 = vmatprep.subr.mxu0 0.0
        %1082 = vmatpush1.msra.mxu0 0.0
        %1083 = vmatprep.subr.mxu0 0.0
        %1084 = vmatpush1.msra.mxu0 0.0
        %1085 = vmatprep.subr.mxu0 0.0
        %1086 = vmatpush1.msra.mxu0 0.0
        %1087 = vmatprep.subr.mxu0 0.0
        %1088 = vmatpush1.msra.mxu0 0.0
        %1089 = vmatprep.subr.mxu0 0.0
        %1090 = vmatpush1.msra.mxu0 0.0
        %1091 = vmatprep.subr.mxu0 0.0
        %1092 = vmatpush1.msra.mxu0 0.0
        %1093 = vmatprep.subr.mxu0 0.0
        %1094 = vmatpush1.msra.mxu0 0.0
        %1095 = vmatprep.subr.mxu0 0.0
        %1096 = vmatpush1.msra.mxu0 0.0
        %1097 = vmatprep.subr.mxu0 0.0
        %1098 = vmatpush1.msra.mxu0 0.0
        %1099 = vmatprep.mubr.f32.mxu0 0.0
        %v1100 = vand.u32 %v855, 4294901760
        %v1101 = vsub.f32 %v855, %v1100
        %1102 = vmatmul.mubr.f32.gmra.mrb[0].mxu0 %v1101
        %v1103 = vpop.f32.mrb[0].mxu0
        %v1104 = vadd.f32 %v1024, %v1103
        %v1105 = vpop.f32.mrb[0].mxu0
        %1106 = vdwg.mxu0
        %1107 = vmatprep.subr.mxu0 0.0
        %v1108 = vand.u32 %v840, 4294901760
        %1109 = vmatpush1.msra.mxu0 %v1108
        %1110 = vmatprep.subr.mxu0 0.0
        %v1111 = vand.u32 %v842, 4294901760
        %1112 = vmatpush1.msra.mxu0 %v1111
        %1113 = vmatprep.subr.mxu0 0.0
        %v1114 = vand.u32 %v844, 4294901760
        %1115 = vmatpush1.msra.mxu0 %v1114
        %1116 = vmatprep.subr.mxu0 0.0
        %v1117 = vand.u32 %v846, 4294901760
        %1118 = vmatpush1.msra.mxu0 %v1117
        %1119 = vmatprep.subr.mxu0 0.0
        %1120 = vmatpush1.msra.mxu0 0.0
        %1121 = vmatprep.subr.mxu0 0.0
        %1122 = vmatpush1.msra.mxu0 0.0
        %1123 = vmatprep.subr.mxu0 0.0
        %1124 = vmatpush1.msra.mxu0 0.0
        %1125 = vmatprep.subr.mxu0 0.0
        %1126 = vmatpush1.msra.mxu0 0.0
        %1127 = vmatprep.subr.mxu0 0.0
        %1128 = vmatpush1.msra.mxu0 0.0
        %1129 = vmatprep.subr.mxu0 0.0
        %1130 = vmatpush1.msra.mxu0 0.0
        %1131 = vmatprep.subr.mxu0 0.0
        %1132 = vmatpush1.msra.mxu0 0.0
        %1133 = vmatprep.subr.mxu0 0.0
        %1134 = vmatpush1.msra.mxu0 0.0
        %1135 = vmatprep.subr.mxu0 0.0
        %1136 = vmatpush1.msra.mxu0 0.0
        %1137 = vmatprep.subr.mxu0 0.0
        %1138 = vmatpush1.msra.mxu0 0.0
        %1139 = vmatprep.subr.mxu0 0.0
        %1140 = vmatpush1.msra.mxu0 0.0
        %1141 = vmatprep.subr.mxu0 0.0
        %1142 = vmatpush1.msra.mxu0 0.0
        %1143 = vmatprep.subr.mxu0 0.0
        %1144 = vmatpush1.msra.mxu0 0.0
        %1145 = vmatprep.subr.mxu0 0.0
        %1146 = vmatpush1.msra.mxu0 0.0
        %1147 = vmatprep.subr.mxu0 0.0
        %1148 = vmatpush1.msra.mxu0 0.0
        %1149 = vmatprep.subr.mxu0 0.0
        %1150 = vmatpush1.msra.mxu0 0.0
        %1151 = vmatprep.subr.mxu0 0.0
        %1152 = vmatpush1.msra.mxu0 0.0
        %1153 = vmatprep.subr.mxu0 0.0
        %1154 = vmatpush1.msra.mxu0 0.0
        %1155 = vmatprep.subr.mxu0 0.0
        %1156 = vmatpush1.msra.mxu0 0.0
        %1157 = vmatprep.subr.mxu0 0.0
        %1158 = vmatpush1.msra.mxu0 0.0
        %1159 = vmatprep.subr.mxu0 0.0
        %1160 = vmatpush1.msra.mxu0 0.0
        %1161 = vmatprep.subr.mxu0 0.0
        %1162 = vmatpush1.msra.mxu0 0.0
        %1163 = vmatprep.subr.mxu0 0.0
        %1164 = vmatpush1.msra.mxu0 0.0
        %1165 = vmatprep.subr.mxu0 0.0
        %1166 = vmatpush1.msra.mxu0 0.0
        %1167 = vmatprep.subr.mxu0 0.0
        %1168 = vmatpush1.msra.mxu0 0.0
        %1169 = vmatprep.subr.mxu0 0.0
        %1170 = vmatpush1.msra.mxu0 0.0
        %1171 = vmatprep.subr.mxu0 0.0
        %1172 = vmatpush1.msra.mxu0 0.0
        %1173 = vmatprep.subr.mxu0 0.0
        %1174 = vmatpush1.msra.mxu0 0.0
        %1175 = vmatprep.mubr.f32.mxu0 0.0
        %v1176 = vand.u32 %v855, 4294901760
        %v1177 = vsub.f32 %v855, %v1176
        %v1178 = vand.u32 %v1177, 4294901760
        %1179 = vmatmul.mubr.f32.gmra.mrb[0].mxu0 %v1178
        %v1180 = vpop.f32.mrb[0].mxu0
        %v1181 = vadd.f32 %v1104, %v1180
        %v1182 = vpop.f32.mrb[0].mxu0
        %1183 = vdwg.mxu0
        %1184 = vmatprep.subr.mxu0 0.0
        %v1185 = vand.u32 %v840, 4294901760
        %v1186 = vsub.f32 %v840, %v1185
        %v1187 = vand.u32 %v1186, 4294901760
        %1188 = vmatpush1.msra.mxu0 %v1187
        %1189 = vmatprep.subr.mxu0 0.0
        %v1190 = vand.u32 %v842, 4294901760
        %v1191 = vsub.f32 %v842, %v1190
        %v1192 = vand.u32 %v1191, 4294901760
        %1193 = vmatpush1.msra.mxu0 %v1192
        %1194 = vmatprep.subr.mxu0 0.0
        %v1195 = vand.u32 %v844, 4294901760
        %v1196 = vsub.f32 %v844, %v1195
        %v1197 = vand.u32 %v1196, 4294901760
        %1198 = vmatpush1.msra.mxu0 %v1197
        %1199 = vmatprep.subr.mxu0 0.0
        %v1200 = vand.u32 %v846, 4294901760
        %v1201 = vsub.f32 %v846, %v1200
        %v1202 = vand.u32 %v1201, 4294901760
        %1203 = vmatpush1.msra.mxu0 %v1202
        %1204 = vmatprep.subr.mxu0 0.0
        %1205 = vmatpush1.msra.mxu0 0.0
        %1206 = vmatprep.subr.mxu0 0.0
        %1207 = vmatpush1.msra.mxu0 0.0
        %1208 = vmatprep.subr.mxu0 0.0
        %1209 = vmatpush1.msra.mxu0 0.0
        %1210 = vmatprep.subr.mxu0 0.0
        %1211 = vmatpush1.msra.mxu0 0.0
        %1212 = vmatprep.subr.mxu0 0.0
        %1213 = vmatpush1.msra.mxu0 0.0
        %1214 = vmatprep.subr.mxu0 0.0
        %1215 = vmatpush1.msra.mxu0 0.0
        %1216 = vmatprep.subr.mxu0 0.0
        %1217 = vmatpush1.msra.mxu0 0.0
        %1218 = vmatprep.subr.mxu0 0.0
        %1219 = vmatpush1.msra.mxu0 0.0
        %1220 = vmatprep.subr.mxu0 0.0
        %1221 = vmatpush1.msra.mxu0 0.0
        %1222 = vmatprep.subr.mxu0 0.0
        %1223 = vmatpush1.msra.mxu0 0.0
        %1224 = vmatprep.subr.mxu0 0.0
        %1225 = vmatpush1.msra.mxu0 0.0
        %1226 = vmatprep.subr.mxu0 0.0
        %1227 = vmatpush1.msra.mxu0 0.0
        %1228 = vmatprep.subr.mxu0 0.0
        %1229 = vmatpush1.msra.mxu0 0.0
        %1230 = vmatprep.subr.mxu0 0.0
        %1231 = vmatpush1.msra.mxu0 0.0
        %1232 = vmatprep.subr.mxu0 0.0
        %1233 = vmatpush1.msra.mxu0 0.0
        %1234 = vmatprep.subr.mxu0 0.0
        %1235 = vmatpush1.msra.mxu0 0.0
        %1236 = vmatprep.subr.mxu0 0.0
        %1237 = vmatpush1.msra.mxu0 0.0
        %1238 = vmatprep.subr.mxu0 0.0
        %1239 = vmatpush1.msra.mxu0 0.0
        %1240 = vmatprep.subr.mxu0 0.0
        %1241 = vmatpush1.msra.mxu0 0.0
        %1242 = vmatprep.subr.mxu0 0.0
        %1243 = vmatpush1.msra.mxu0 0.0
        %1244 = vmatprep.subr.mxu0 0.0
        %1245 = vmatpush1.msra.mxu0 0.0
        %1246 = vmatprep.subr.mxu0 0.0
        %1247 = vmatpush1.msra.mxu0 0.0
        %1248 = vmatprep.subr.mxu0 0.0
        %1249 = vmatpush1.msra.mxu0 0.0
        %1250 = vmatprep.subr.mxu0 0.0
        %1251 = vmatpush1.msra.mxu0 0.0
        %1252 = vmatprep.subr.mxu0 0.0
        %1253 = vmatpush1.msra.mxu0 0.0
        %1254 = vmatprep.subr.mxu0 0.0
        %1255 = vmatpush1.msra.mxu0 0.0
        %1256 = vmatprep.subr.mxu0 0.0
        %1257 = vmatpush1.msra.mxu0 0.0
        %1258 = vmatprep.subr.mxu0 0.0
        %1259 = vmatpush1.msra.mxu0 0.0
        %1260 = vmatprep.mubr.f32.mxu0 0.0
        %v1261 = vand.u32 %v855, 4294901760
        %1262 = vmatmul.mubr.f32.gmra.mrb[0].mxu0 %v1261
        %v1263 = vpop.f32.mrb[0].mxu0
        %v1264 = vadd.f32 %v1181, %v1263
        %v1265 = vpop.f32.mrb[0].mxu0
        %1266 = vdwg.mxu0
        %1267 = vmatprep.subr.mxu0 0.0
        %v1268 = vand.u32 %v840, 4294901760
        %1269 = vmatpush1.msra.mxu0 %v1268
        %1270 = vmatprep.subr.mxu0 0.0
        %v1271 = vand.u32 %v842, 4294901760
        %1272 = vmatpush1.msra.mxu0 %v1271
        %1273 = vmatprep.subr.mxu0 0.0
        %v1274 = vand.u32 %v844, 4294901760
        %1275 = vmatpush1.msra.mxu0 %v1274
        %1276 = vmatprep.subr.mxu0 0.0
        %v1277 = vand.u32 %v846, 4294901760
        %1278 = vmatpush1.msra.mxu0 %v1277
        %1279 = vmatprep.subr.mxu0 0.0
        %1280 = vmatpush1.msra.mxu0 0.0
        %1281 = vmatprep.subr.mxu0 0.0
        %1282 = vmatpush1.msra.mxu0 0.0
        %1283 = vmatprep.subr.mxu0 0.0
        %1284 = vmatpush1.msra.mxu0 0.0
        %1285 = vmatprep.subr.mxu0 0.0
        %1286 = vmatpush1.msra.mxu0 0.0
        %1287 = vmatprep.subr.mxu0 0.0
        %1288 = vmatpush1.msra.mxu0 0.0
        %1289 = vmatprep.subr.mxu0 0.0
        %1290 = vmatpush1.msra.mxu0 0.0
        %1291 = vmatprep.subr.mxu0 0.0
        %1292 = vmatpush1.msra.mxu0 0.0
        %1293 = vmatprep.subr.mxu0 0.0
        %1294 = vmatpush1.msra.mxu0 0.0
        %1295 = vmatprep.subr.mxu0 0.0
        %1296 = vmatpush1.msra.mxu0 0.0
        %1297 = vmatprep.subr.mxu0 0.0
        %1298 = vmatpush1.msra.mxu0 0.0
        %1299 = vmatprep.subr.mxu0 0.0
        %1300 = vmatpush1.msra.mxu0 0.0
        %1301 = vmatprep.subr.mxu0 0.0
        %1302 = vmatpush1.msra.mxu0 0.0
        %1303 = vmatprep.subr.mxu0 0.0
        %1304 = vmatpush1.msra.mxu0 0.0
        %1305 = vmatprep.subr.mxu0 0.0
        %1306 = vmatpush1.msra.mxu0 0.0
        %1307 = vmatprep.subr.mxu0 0.0
        %1308 = vmatpush1.msra.mxu0 0.0
        %1309 = vmatprep.subr.mxu0 0.0
        %1310 = vmatpush1.msra.mxu0 0.0
        %1311 = vmatprep.subr.mxu0 0.0
        %1312 = vmatpush1.msra.mxu0 0.0
        %1313 = vmatprep.subr.mxu0 0.0
        %1314 = vmatpush1.msra.mxu0 0.0
        %1315 = vmatprep.subr.mxu0 0.0
        %1316 = vmatpush1.msra.mxu0 0.0
        %1317 = vmatprep.subr.mxu0 0.0
        %1318 = vmatpush1.msra.mxu0 0.0
        %1319 = vmatprep.subr.mxu0 0.0
        %1320 = vmatpush1.msra.mxu0 0.0
        %1321 = vmatprep.subr.mxu0 0.0
        %1322 = vmatpush1.msra.mxu0 0.0
        %1323 = vmatprep.subr.mxu0 0.0
        %1324 = vmatpush1.msra.mxu0 0.0
        %1325 = vmatprep.subr.mxu0 0.0
        %1326 = vmatpush1.msra.mxu0 0.0
        %1327 = vmatprep.subr.mxu0 0.0
        %1328 = vmatpush1.msra.mxu0 0.0
        %1329 = vmatprep.subr.mxu0 0.0
        %1330 = vmatpush1.msra.mxu0 0.0
        %1331 = vmatprep.subr.mxu0 0.0
        %1332 = vmatpush1.msra.mxu0 0.0
        %1333 = vmatprep.subr.mxu0 0.0
        %1334 = vmatpush1.msra.mxu0 0.0
        %1335 = vmatprep.mubr.f32.mxu0 0.0
        %v1336 = vand.u32 %v855, 4294901760
        %1337 = vmatmul.mubr.f32.gmra.mrb[0].mxu0 %v1336
        %v1338 = vpop.f32.mrb[0].mxu0
        %v1339 = vadd.f32 %v1264, %v1338
        %v1340 = vpop.f32.mrb[0].mxu0
        %1341 = vdwg.mxu0
        %1343 = vrot.lane.b32.xlu0 %v832, 124
        %v1344 = vpop.permute.xlu0 %1343
        %1345 = vrot.lane.b32.xlu0 %v832, 120
        %v1346 = vpop.permute.xlu0 %1345
        %1347 = vrot.lane.b32.xlu0 %v832, 116
        %v1348 = vpop.permute.xlu0 %1347
        %1349 = vrot.lane.b32.xlu0 %v832, 112
        %v1350 = vpop.permute.xlu0 %1349
        %1351 = vrot.lane.b32.xlu0 %v832, 108
        %v1352 = vpop.permute.xlu0 %1351
        %1353 = vrot.lane.b32.xlu0 %v832, 104
        %v1354 = vpop.permute.xlu0 %1353
        %1355 = vrot.lane.b32.xlu0 %v832, 100
        %v1356 = vpop.permute.xlu0 %1355
        %1358 = vrot.lane.b32.xlu0 %v1339, 124
        %v1359 = vpop.permute.xlu0 %1358
        %1360 = vrot.lane.b32.xlu0 %v1339, 120
        %v1361 = vpop.permute.xlu0 %1360
        %1362 = vrot.lane.b32.xlu0 %v1339, 116
        %v1363 = vpop.permute.xlu0 %1362
        %1364 = vrot.lane.b32.xlu0 %v1339, 112
        %v1365 = vpop.permute.xlu0 %1364
        %1366 = vrot.lane.b32.xlu0 %v1339, 108
        %v1367 = vpop.permute.xlu0 %1366
        %1368 = vrot.lane.b32.xlu0 %v1339, 104
        %v1369 = vpop.permute.xlu0 %1368
        %1370 = vrot.lane.b32.xlu0 %v1339, 100
        %v1371 = vpop.permute.xlu0 %1370
        %vm1372 = vcmask 31744
        %v1373 = vsel %vm1372, %v832, 0
        %v1375 = vsel %vm1372, %v1339, 0
        %1377 = vmatprep.subr.mxu0 0.0
        %v1378 = vand.u32 %v1375, 4294901760
        %1379 = vmatpush1.xpose.msra.mxu0 %v1378
        %1380 = vmatprep.subr.mxu0 0.0
        %1381 = vmatpush1.xpose.msra.mxu0 0.0
        %1382 = vmatprep.subr.mxu0 0.0
        %1383 = vmatpush1.xpose.msra.mxu0 0.0
        %1384 = vmatprep.subr.mxu0 0.0
        %1385 = vmatpush1.xpose.msra.mxu0 0.0
        %1386 = vmatprep.subr.mxu0 0.0
        %1387 = vmatpush1.xpose.msra.mxu0 0.0
        %1388 = vmatprep.subr.mxu0 0.0
        %1389 = vmatpush1.xpose.msra.mxu0 0.0
        %1390 = vmatprep.subr.mxu0 0.0
        %1391 = vmatpush1.xpose.msra.mxu0 0.0
        %1392 = vmatprep.subr.mxu0 0.0
        %1393 = vmatpush1.xpose.msra.mxu0 0.0
        %1394 = vmatprep.subr.mxu0 0.0
        %1395 = vmatpush1.xpose.msra.mxu0 0.0
        %1396 = vmatprep.subr.mxu0 0.0
        %1397 = vmatpush1.xpose.msra.mxu0 0.0
        %1398 = vmatprep.subr.mxu0 0.0
        %1399 = vmatpush1.xpose.msra.mxu0 0.0
        %1400 = vmatprep.subr.mxu0 0.0
        %1401 = vmatpush1.xpose.msra.mxu0 0.0
        %1402 = vmatprep.subr.mxu0 0.0
        %1403 = vmatpush1.xpose.msra.mxu0 0.0
        %1404 = vmatprep.subr.mxu0 0.0
        %1405 = vmatpush1.xpose.msra.mxu0 0.0
        %1406 = vmatprep.subr.mxu0 0.0
        %1407 = vmatpush1.xpose.msra.mxu0 0.0
        %1408 = vmatprep.subr.mxu0 0.0
        %1409 = vmatpush1.xpose.msra.mxu0 0.0
        %1410 = vmatprep.subr.mxu0 0.0
        %1411 = vmatpush1.xpose.msra.mxu0 0.0
        %1412 = vmatprep.subr.mxu0 0.0
        %1413 = vmatpush1.xpose.msra.mxu0 0.0
        %1414 = vmatprep.subr.mxu0 0.0
        %1415 = vmatpush1.xpose.msra.mxu0 0.0
        %1416 = vmatprep.subr.mxu0 0.0
        %1417 = vmatpush1.xpose.msra.mxu0 0.0
        %1418 = vmatprep.subr.mxu0 0.0
        %1419 = vmatpush1.xpose.msra.mxu0 0.0
        %1420 = vmatprep.subr.mxu0 0.0
        %1421 = vmatpush1.xpose.msra.mxu0 0.0
        %1422 = vmatprep.subr.mxu0 0.0
        %1423 = vmatpush1.xpose.msra.mxu0 0.0
        %1424 = vmatprep.subr.mxu0 0.0
        %1425 = vmatpush1.xpose.msra.mxu0 0.0
        %1426 = vmatprep.subr.mxu0 0.0
        %1427 = vmatpush1.xpose.msra.mxu0 0.0
        %1428 = vmatprep.subr.mxu0 0.0
        %1429 = vmatpush1.xpose.msra.mxu0 0.0
        %1430 = vmatprep.subr.mxu0 0.0
        %1431 = vmatpush1.xpose.msra.mxu0 0.0
        %1432 = vmatprep.subr.mxu0 0.0
        %1433 = vmatpush1.xpose.msra.mxu0 0.0
        %1434 = vmatprep.subr.mxu0 0.0
        %1435 = vmatpush1.xpose.msra.mxu0 0.0
        %1436 = vmatprep.subr.mxu0 0.0
        %1437 = vmatpush1.xpose.msra.mxu0 0.0
        %1438 = vmatprep.subr.mxu0 0.0
        %1439 = vmatpush1.xpose.msra.mxu0 0.0
        %1440 = vmatprep.subr.mxu0 0.0
        %1441 = vmatpush1.xpose.msra.mxu0 0.0
        %1442 = vmatprep.mubr.f32.mxu0 0.0
        %v1443 = vand.u32 %v1373, 4294901760
        %v1444 = vsub.f32 %v1373, %v1443
        %v1445 = vand.u32 %v1444, 4294901760
        %v1446 = vsub.f32 %v1444, %v1445
        %v1447 = vand.u32 %v1446, 4294901760
        %1448 = vmatmul.mubr.f32.gmra.mrb[0].mxu0 %v1447
        %v1449 = vpop.f32.mrb[0].mxu0
        %v1450 = vadd.f32 0.0, %v1449
        %v1451 = vpop.f32.mrb[0].mxu0
        %1452 = vdwg.mxu0
        %1453 = vmatprep.subr.mxu0 0.0
        %v1454 = vand.u32 %v1375, 4294901760
        %v1455 = vsub.f32 %v1375, %v1454
        %v1456 = vand.u32 %v1455, 4294901760
        %v1457 = vsub.f32 %v1455, %v1456
        %v1458 = vand.u32 %v1457, 4294901760
        %1459 = vmatpush1.xpose.msra.mxu0 %v1458
        %1460 = vmatprep.subr.mxu0 0.0
        %1461 = vmatpush1.xpose.msra.mxu0 0.0
        %1462 = vmatprep.subr.mxu0 0.0
        %1463 = vmatpush1.xpose.msra.mxu0 0.0
        %1464 = vmatprep.subr.mxu0 0.0
        %1465 = vmatpush1.xpose.msra.mxu0 0.0
        %1466 = vmatprep.subr.mxu0 0.0
        %1467 = vmatpush1.xpose.msra.mxu0 0.0
        %1468 = vmatprep.subr.mxu0 0.0
        %1469 = vmatpush1.xpose.msra.mxu0 0.0
        %1470 = vmatprep.subr.mxu0 0.0
        %1471 = vmatpush1.xpose.msra.mxu0 0.0
        %1472 = vmatprep.subr.mxu0 0.0
        %1473 = vmatpush1.xpose.msra.mxu0 0.0
        %1474 = vmatprep.subr.mxu0 0.0
        %1475 = vmatpush1.xpose.msra.mxu0 0.0
        %1476 = vmatprep.subr.mxu0 0.0
        %1477 = vmatpush1.xpose.msra.mxu0 0.0
        %1478 = vmatprep.subr.mxu0 0.0
        %1479 = vmatpush1.xpose.msra.mxu0 0.0
        %1480 = vmatprep.subr.mxu0 0.0
        %1481 = vmatpush1.xpose.msra.mxu0 0.0
        %1482 = vmatprep.subr.mxu0 0.0
        %1483 = vmatpush1.xpose.msra.mxu0 0.0
        %1484 = vmatprep.subr.mxu0 0.0
        %1485 = vmatpush1.xpose.msra.mxu0 0.0
        %1486 = vmatprep.subr.mxu0 0.0
        %1487 = vmatpush1.xpose.msra.mxu0 0.0
        %1488 = vmatprep.subr.mxu0 0.0
        %1489 = vmatpush1.xpose.msra.mxu0 0.0
        %1490 = vmatprep.subr.mxu0 0.0
        %1491 = vmatpush1.xpose.msra.mxu0 0.0
        %1492 = vmatprep.subr.mxu0 0.0
        %1493 = vmatpush1.xpose.msra.mxu0 0.0
        %1494 = vmatprep.subr.mxu0 0.0
        %1495 = vmatpush1.xpose.msra.mxu0 0.0
        %1496 = vmatprep.subr.mxu0 0.0
        %1497 = vmatpush1.xpose.msra.mxu0 0.0
        %1498 = vmatprep.subr.mxu0 0.0
        %1499 = vmatpush1.xpose.msra.mxu0 0.0
        %1500 = vmatprep.subr.mxu0 0.0
        %1501 = vmatpush1.xpose.msra.mxu0 0.0
        %1502 = vmatprep.subr.mxu0 0.0
        %1503 = vmatpush1.xpose.msra.mxu0 0.0
        %1504 = vmatprep.subr.mxu0 0.0
        %1505 = vmatpush1.xpose.msra.mxu0 0.0
        %1506 = vmatprep.subr.mxu0 0.0
        %1507 = vmatpush1.xpose.msra.mxu0 0.0
        %1508 = vmatprep.subr.mxu0 0.0
        %1509 = vmatpush1.xpose.msra.mxu0 0.0
        %1510 = vmatprep.subr.mxu0 0.0
        %1511 = vmatpush1.xpose.msra.mxu0 0.0
        %1512 = vmatprep.subr.mxu0 0.0
        %1513 = vmatpush1.xpose.msra.mxu0 0.0
        %1514 = vmatprep.subr.mxu0 0.0
        %1515 = vmatpush1.xpose.msra.mxu0 0.0
        %1516 = vmatprep.subr.mxu0 0.0
        %1517 = vmatpush1.xpose.msra.mxu0 0.0
        %1518 = vmatprep.subr.mxu0 0.0
        %1519 = vmatpush1.xpose.msra.mxu0 0.0
        %1520 = vmatprep.subr.mxu0 0.0
        %1521 = vmatpush1.xpose.msra.mxu0 0.0
        %1522 = vmatprep.mubr.f32.mxu0 0.0
        %v1523 = vand.u32 %v1373, 4294901760
        %1524 = vmatmul.mubr.f32.gmra.mrb[0].mxu0 %v1523
        %v1525 = vpop.f32.mrb[0].mxu0
        %v1526 = vadd.f32 %v1450, %v1525
        %v1527 = vpop.f32.mrb[0].mxu0
        %1528 = vdwg.mxu0
        %1529 = vmatprep.subr.mxu0 0.0
        %v1530 = vand.u32 %v1375, 4294901760
        %v1531 = vsub.f32 %v1375, %v1530
        %1532 = vmatpush1.xpose.msra.mxu0 %v1531
        %1533 = vmatprep.subr.mxu0 0.0
        %1534 = vmatpush1.xpose.msra.mxu0 0.0
        %1535 = vmatprep.subr.mxu0 0.0
        %1536 = vmatpush1.xpose.msra.mxu0 0.0
        %1537 = vmatprep.subr.mxu0 0.0
        %1538 = vmatpush1.xpose.msra.mxu0 0.0
        %1539 = vmatprep.subr.mxu0 0.0
        %1540 = vmatpush1.xpose.msra.mxu0 0.0
        %1541 = vmatprep.subr.mxu0 0.0
        %1542 = vmatpush1.xpose.msra.mxu0 0.0
        %1543 = vmatprep.subr.mxu0 0.0
        %1544 = vmatpush1.xpose.msra.mxu0 0.0
        %1545 = vmatprep.subr.mxu0 0.0
        %1546 = vmatpush1.xpose.msra.mxu0 0.0
        %1547 = vmatprep.subr.mxu0 0.0
        %1548 = vmatpush1.xpose.msra.mxu0 0.0
        %1549 = vmatprep.subr.mxu0 0.0
        %1550 = vmatpush1.xpose.msra.mxu0 0.0
        %1551 = vmatprep.subr.mxu0 0.0
        %1552 = vmatpush1.xpose.msra.mxu0 0.0
        %1553 = vmatprep.subr.mxu0 0.0
        %1554 = vmatpush1.xpose.msra.mxu0 0.0
        %1555 = vmatprep.subr.mxu0 0.0
        %1556 = vmatpush1.xpose.msra.mxu0 0.0
        %1557 = vmatprep.subr.mxu0 0.0
        %1558 = vmatpush1.xpose.msra.mxu0 0.0
        %1559 = vmatprep.subr.mxu0 0.0
        %1560 = vmatpush1.xpose.msra.mxu0 0.0
        %1561 = vmatprep.subr.mxu0 0.0
        %1562 = vmatpush1.xpose.msra.mxu0 0.0
        %1563 = vmatprep.subr.mxu0 0.0
        %1564 = vmatpush1.xpose.msra.mxu0 0.0
        %1565 = vmatprep.subr.mxu0 0.0
        %1566 = vmatpush1.xpose.msra.mxu0 0.0
        %1567 = vmatprep.subr.mxu0 0.0
        %1568 = vmatpush1.xpose.msra.mxu0 0.0
        %1569 = vmatprep.subr.mxu0 0.0
        %1570 = vmatpush1.xpose.msra.mxu0 0.0
        %1571 = vmatprep.subr.mxu0 0.0
        %1572 = vmatpush1.xpose.msra.mxu0 0.0
        %1573 = vmatprep.subr.mxu0 0.0
        %1574 = vmatpush1.xpose.msra.mxu0 0.0
        %1575 = vmatprep.subr.mxu0 0.0
        %1576 = vmatpush1.xpose.msra.mxu0 0.0
        %1577 = vmatprep.subr.mxu0 0.0
        %1578 = vmatpush1.xpose.msra.mxu0 0.0
        %1579 = vmatprep.subr.mxu0 0.0
        %1580 = vmatpush1.xpose.msra.mxu0 0.0
        %1581 = vmatprep.subr.mxu0 0.0
        %1582 = vmatpush1.xpose.msra.mxu0 0.0
        %1583 = vmatprep.subr.mxu0 0.0
        %1584 = vmatpush1.xpose.msra.mxu0 0.0
        %1585 = vmatprep.subr.mxu0 0.0
        %1586 = vmatpush1.xpose.msra.mxu0 0.0
        %1587 = vmatprep.subr.mxu0 0.0
        %1588 = vmatpush1.xpose.msra.mxu0 0.0
        %1589 = vmatprep.subr.mxu0 0.0
        %1590 = vmatpush1.xpose.msra.mxu0 0.0
        %1591 = vmatprep.subr.mxu0 0.0
        %1592 = vmatpush1.xpose.msra.mxu0 0.0
        %1593 = vmatprep.subr.mxu0 0.0
        %1594 = vmatpush1.xpose.msra.mxu0 0.0
        %1595 = vmatprep.mubr.f32.mxu0 0.0
        %v1596 = vand.u32 %v1373, 4294901760
        %v1597 = vsub.f32 %v1373, %v1596
        %1598 = vmatmul.mubr.f32.gmra.mrb[0].mxu0 %v1597
        %v1599 = vpop.f32.mrb[0].mxu0
        %v1600 = vadd.f32 %v1526, %v1599
        %v1601 = vpop.f32.mrb[0].mxu0
        %1602 = vdwg.mxu0
        %1603 = vmatprep.subr.mxu0 0.0
        %v1604 = vand.u32 %v1375, 4294901760
        %1605 = vmatpush1.xpose.msra.mxu0 %v1604
        %1606 = vmatprep.subr.mxu0 0.0
        %1607 = vmatpush1.xpose.msra.mxu0 0.0
        %1608 = vmatprep.subr.mxu0 0.0
        %1609 = vmatpush1.xpose.msra.mxu0 0.0
        %1610 = vmatprep.subr.mxu0 0.0
        %1611 = vmatpush1.xpose.msra.mxu0 0.0
        %1612 = vmatprep.subr.mxu0 0.0
        %1613 = vmatpush1.xpose.msra.mxu0 0.0
        %1614 = vmatprep.subr.mxu0 0.0
        %1615 = vmatpush1.xpose.msra.mxu0 0.0
        %1616 = vmatprep.subr.mxu0 0.0
        %1617 = vmatpush1.xpose.msra.mxu0 0.0
        %1618 = vmatprep.subr.mxu0 0.0
        %1619 = vmatpush1.xpose.msra.mxu0 0.0
        %1620 = vmatprep.subr.mxu0 0.0
        %1621 = vmatpush1.xpose.msra.mxu0 0.0
        %1622 = vmatprep.subr.mxu0 0.0
        %1623 = vmatpush1.xpose.msra.mxu0 0.0
        %1624 = vmatprep.subr.mxu0 0.0
        %1625 = vmatpush1.xpose.msra.mxu0 0.0
        %1626 = vmatprep.subr.mxu0 0.0
        %1627 = vmatpush1.xpose.msra.mxu0 0.0
        %1628 = vmatprep.subr.mxu0 0.0
        %1629 = vmatpush1.xpose.msra.mxu0 0.0
        %1630 = vmatprep.subr.mxu0 0.0
        %1631 = vmatpush1.xpose.msra.mxu0 0.0
        %1632 = vmatprep.subr.mxu0 0.0
        %1633 = vmatpush1.xpose.msra.mxu0 0.0
        %1634 = vmatprep.subr.mxu0 0.0
        %1635 = vmatpush1.xpose.msra.mxu0 0.0
        %1636 = vmatprep.subr.mxu0 0.0
        %1637 = vmatpush1.xpose.msra.mxu0 0.0
        %1638 = vmatprep.subr.mxu0 0.0
        %1639 = vmatpush1.xpose.msra.mxu0 0.0
        %1640 = vmatprep.subr.mxu0 0.0
        %1641 = vmatpush1.xpose.msra.mxu0 0.0
        %1642 = vmatprep.subr.mxu0 0.0
        %1643 = vmatpush1.xpose.msra.mxu0 0.0
        %1644 = vmatprep.subr.mxu0 0.0
        %1645 = vmatpush1.xpose.msra.mxu0 0.0
        %1646 = vmatprep.subr.mxu0 0.0
        %1647 = vmatpush1.xpose.msra.mxu0 0.0
        %1648 = vmatprep.subr.mxu0 0.0
        %1649 = vmatpush1.xpose.msra.mxu0 0.0
        %1650 = vmatprep.subr.mxu0 0.0
        %1651 = vmatpush1.xpose.msra.mxu0 0.0
        %1652 = vmatprep.subr.mxu0 0.0
        %1653 = vmatpush1.xpose.msra.mxu0 0.0
        %1654 = vmatprep.subr.mxu0 0.0
        %1655 = vmatpush1.xpose.msra.mxu0 0.0
        %1656 = vmatprep.subr.mxu0 0.0
        %1657 = vmatpush1.xpose.msra.mxu0 0.0
        %1658 = vmatprep.subr.mxu0 0.0
        %1659 = vmatpush1.xpose.msra.mxu0 0.0
        %1660 = vmatprep.subr.mxu0 0.0
        %1661 = vmatpush1.xpose.msra.mxu0 0.0
        %1662 = vmatprep.subr.mxu0 0.0
        %1663 = vmatpush1.xpose.msra.mxu0 0.0
        %1664 = vmatprep.subr.mxu0 0.0
        %1665 = vmatpush1.xpose.msra.mxu0 0.0
        %1666 = vmatprep.subr.mxu0 0.0
        %1667 = vmatpush1.xpose.msra.mxu0 0.0
        %1668 = vmatprep.mubr.f32.mxu0 0.0
        %v1669 = vand.u32 %v1373, 4294901760
        %v1670 = vsub.f32 %v1373, %v1669
        %v1671 = vand.u32 %v1670, 4294901760
        %1672 = vmatmul.mubr.f32.gmra.mrb[0].mxu0 %v1671
        %v1673 = vpop.f32.mrb[0].mxu0
        %v1674 = vadd.f32 %v1600, %v1673
        %v1675 = vpop.f32.mrb[0].mxu0
        %1676 = vdwg.mxu0
        %1677 = vmatprep.subr.mxu0 0.0
        %v1678 = vand.u32 %v1375, 4294901760
        %v1679 = vsub.f32 %v1375, %v1678
        %v1680 = vand.u32 %v1679, 4294901760
        %1681 = vmatpush1.xpose.msra.mxu0 %v1680
        %1682 = vmatprep.subr.mxu0 0.0
        %1683 = vmatpush1.xpose.msra.mxu0 0.0
        %1684 = vmatprep.subr.mxu0 0.0
        %1685 = vmatpush1.xpose.msra.mxu0 0.0
        %1686 = vmatprep.subr.mxu0 0.0
        %1687 = vmatpush1.xpose.msra.mxu0 0.0
        %1688 = vmatprep.subr.mxu0 0.0
        %1689 = vmatpush1.xpose.msra.mxu0 0.0
        %1690 = vmatprep.subr.mxu0 0.0
        %1691 = vmatpush1.xpose.msra.mxu0 0.0
        %1692 = vmatprep.subr.mxu0 0.0
        %1693 = vmatpush1.xpose.msra.mxu0 0.0
        %1694 = vmatprep.subr.mxu0 0.0
        %1695 = vmatpush1.xpose.msra.mxu0 0.0
        %1696 = vmatprep.subr.mxu0 0.0
        %1697 = vmatpush1.xpose.msra.mxu0 0.0
        %1698 = vmatprep.subr.mxu0 0.0
        %1699 = vmatpush1.xpose.msra.mxu0 0.0
        %1700 = vmatprep.subr.mxu0 0.0
        %1701 = vmatpush1.xpose.msra.mxu0 0.0
        %1702 = vmatprep.subr.mxu0 0.0
        %1703 = vmatpush1.xpose.msra.mxu0 0.0
        %1704 = vmatprep.subr.mxu0 0.0
        %1705 = vmatpush1.xpose.msra.mxu0 0.0
        %1706 = vmatprep.subr.mxu0 0.0
        %1707 = vmatpush1.xpose.msra.mxu0 0.0
        %1708 = vmatprep.subr.mxu0 0.0
        %1709 = vmatpush1.xpose.msra.mxu0 0.0
        %1710 = vmatprep.subr.mxu0 0.0
        %1711 = vmatpush1.xpose.msra.mxu0 0.0
        %1712 = vmatprep.subr.mxu0 0.0
        %1713 = vmatpush1.xpose.msra.mxu0 0.0
        %1714 = vmatprep.subr.mxu0 0.0
        %1715 = vmatpush1.xpose.msra.mxu0 0.0
        %1716 = vmatprep.subr.mxu0 0.0
        %1717 = vmatpush1.xpose.msra.mxu0 0.0
        %1718 = vmatprep.subr.mxu0 0.0
        %1719 = vmatpush1.xpose.msra.mxu0 0.0
        %1720 = vmatprep.subr.mxu0 0.0
        %1721 = vmatpush1.xpose.msra.mxu0 0.0
        %1722 = vmatprep.subr.mxu0 0.0
        %1723 = vmatpush1.xpose.msra.mxu0 0.0
        %1724 = vmatprep.subr.mxu0 0.0
        %1725 = vmatpush1.xpose.msra.mxu0 0.0
        %1726 = vmatprep.subr.mxu0 0.0
        %1727 = vmatpush1.xpose.msra.mxu0 0.0
        %1728 = vmatprep.subr.mxu0 0.0
        %1729 = vmatpush1.xpose.msra.mxu0 0.0
        %1730 = vmatprep.subr.mxu0 0.0
        %1731 = vmatpush1.xpose.msra.mxu0 0.0
        %1732 = vmatprep.subr.mxu0 0.0
        %1733 = vmatpush1.xpose.msra.mxu0 0.0
        %1734 = vmatprep.subr.mxu0 0.0
        %1735 = vmatpush1.xpose.msra.mxu0 0.0
        %1736 = vmatprep.subr.mxu0 0.0
        %1737 = vmatpush1.xpose.msra.mxu0 0.0
        %1738 = vmatprep.subr.mxu0 0.0
        %1739 = vmatpush1.xpose.msra.mxu0 0.0
        %1740 = vmatprep.subr.mxu0 0.0
        %1741 = vmatpush1.xpose.msra.mxu0 0.0
        %1742 = vmatprep.subr.mxu0 0.0
        %1743 = vmatpush1.xpose.msra.mxu0 0.0
        %1744 = vmatprep.mubr.f32.mxu0 0.0
        %v1745 = vand.u32 %v1373, 4294901760
        %1746 = vmatmul.mubr.f32.gmra.mrb[0].mxu0 %v1745
        %v1747 = vpop.f32.mrb[0].mxu0
        %v1748 = vadd.f32 %v1674, %v1747
        %v1749 = vpop.f32.mrb[0].mxu0
        %1750 = vdwg.mxu0
        %1751 = vmatprep.subr.mxu0 0.0
        %v1752 = vand.u32 %v1375, 4294901760
        %1753 = vmatpush1.xpose.msra.mxu0 %v1752
        %1754 = vmatprep.subr.mxu0 0.0
        %1755 = vmatpush1.xpose.msra.mxu0 0.0
        %1756 = vmatprep.subr.mxu0 0.0
        %1757 = vmatpush1.xpose.msra.mxu0 0.0
        %1758 = vmatprep.subr.mxu0 0.0
        %1759 = vmatpush1.xpose.msra.mxu0 0.0
        %1760 = vmatprep.subr.mxu0 0.0
        %1761 = vmatpush1.xpose.msra.mxu0 0.0
        %1762 = vmatprep.subr.mxu0 0.0
        %1763 = vmatpush1.xpose.msra.mxu0 0.0
        %1764 = vmatprep.subr.mxu0 0.0
        %1765 = vmatpush1.xpose.msra.mxu0 0.0
        %1766 = vmatprep.subr.mxu0 0.0
        %1767 = vmatpush1.xpose.msra.mxu0 0.0
        %1768 = vmatprep.subr.mxu0 0.0
        %1769 = vmatpush1.xpose.msra.mxu0 0.0
        %1770 = vmatprep.subr.mxu0 0.0
        %1771 = vmatpush1.xpose.msra.mxu0 0.0
        %1772 = vmatprep.subr.mxu0 0.0
        %1773 = vmatpush1.xpose.msra.mxu0 0.0
        %1774 = vmatprep.subr.mxu0 0.0
        %1775 = vmatpush1.xpose.msra.mxu0 0.0
        %1776 = vmatprep.subr.mxu0 0.0
        %1777 = vmatpush1.xpose.msra.mxu0 0.0
        %1778 = vmatprep.subr.mxu0 0.0
        %1779 = vmatpush1.xpose.msra.mxu0 0.0
        %1780 = vmatprep.subr.mxu0 0.0
        %1781 = vmatpush1.xpose.msra.mxu0 0.0
        %1782 = vmatprep.subr.mxu0 0.0
        %1783 = vmatpush1.xpose.msra.mxu0 0.0
        %1784 = vmatprep.subr.mxu0 0.0
        %1785 = vmatpush1.xpose.msra.mxu0 0.0
        %1786 = vmatprep.subr.mxu0 0.0
        %1787 = vmatpush1.xpose.msra.mxu0 0.0
        %1788 = vmatprep.subr.mxu0 0.0
        %1789 = vmatpush1.xpose.msra.mxu0 0.0
        %1790 = vmatprep.subr.mxu0 0.0
        %1791 = vmatpush1.xpose.msra.mxu0 0.0
        %1792 = vmatprep.subr.mxu0 0.0
        %1793 = vmatpush1.xpose.msra.mxu0 0.0
        %1794 = vmatprep.subr.mxu0 0.0
        %1795 = vmatpush1.xpose.msra.mxu0 0.0
        %1796 = vmatprep.subr.mxu0 0.0
        %1797 = vmatpush1.xpose.msra.mxu0 0.0
        %1798 = vmatprep.subr.mxu0 0.0
        %1799 = vmatpush1.xpose.msra.mxu0 0.0
        %1800 = vmatprep.subr.mxu0 0.0
        %1801 = vmatpush1.xpose.msra.mxu0 0.0
        %1802 = vmatprep.subr.mxu0 0.0
        %1803 = vmatpush1.xpose.msra.mxu0 0.0
        %1804 = vmatprep.subr.mxu0 0.0
        %1805 = vmatpush1.xpose.msra.mxu0 0.0
        %1806 = vmatprep.subr.mxu0 0.0
        %1807 = vmatpush1.xpose.msra.mxu0 0.0
        %1808 = vmatprep.subr.mxu0 0.0
        %1809 = vmatpush1.xpose.msra.mxu0 0.0
        %1810 = vmatprep.subr.mxu0 0.0
        %1811 = vmatpush1.xpose.msra.mxu0 0.0
        %1812 = vmatprep.subr.mxu0 0.0
        %1813 = vmatpush1.xpose.msra.mxu0 0.0
        %1814 = vmatprep.subr.mxu0 0.0
        %1815 = vmatpush1.xpose.msra.mxu0 0.0
        %1816 = vmatprep.mubr.f32.mxu0 0.0
        %v1817 = vand.u32 %v1373, 4294901760
        %1818 = vmatmul.mubr.f32.gmra.mrb[0].mxu0 %v1817
        %v1819 = vpop.f32.mrb[0].mxu0
        %v1820 = vadd.f32 %v1748, %v1819
        %v1821 = vpop.f32.mrb[0].mxu0
        %1822 = vdwg.mxu0
        %v1823 = vsel %vm1372, %v1344, 0
        %v1825 = vsel %vm1372, %v1359, 0
        %1827 = vmatprep.subr.mxu0 0.0
        %v1828 = vand.u32 %v1825, 4294901760
        %1829 = vmatpush1.xpose.msra.mxu0 %v1828
        %1830 = vmatprep.subr.mxu0 0.0
        %1831 = vmatpush1.xpose.msra.mxu0 0.0
        %1832 = vmatprep.subr.mxu0 0.0
        %1833 = vmatpush1.xpose.msra.mxu0 0.0
        %1834 = vmatprep.subr.mxu0 0.0
        %1835 = vmatpush1.xpose.msra.mxu0 0.0
        %1836 = vmatprep.subr.mxu0 0.0
        %1837 = vmatpush1.xpose.msra.mxu0 0.0
        %1838 = vmatprep.subr.mxu0 0.0
        %1839 = vmatpush1.xpose.msra.mxu0 0.0
        %1840 = vmatprep.subr.mxu0 0.0
        %1841 = vmatpush1.xpose.msra.mxu0 0.0
        %1842 = vmatprep.subr.mxu0 0.0
        %1843 = vmatpush1.xpose.msra.mxu0 0.0
        %1844 = vmatprep.subr.mxu0 0.0
        %1845 = vmatpush1.xpose.msra.mxu0 0.0
        %1846 = vmatprep.subr.mxu0 0.0
        %1847 = vmatpush1.xpose.msra.mxu0 0.0
        %1848 = vmatprep.subr.mxu0 0.0
        %1849 = vmatpush1.xpose.msra.mxu0 0.0
        %1850 = vmatprep.subr.mxu0 0.0
        %1851 = vmatpush1.xpose.msra.mxu0 0.0
        %1852 = vmatprep.subr.mxu0 0.0
        %1853 = vmatpush1.xpose.msra.mxu0 0.0
        %1854 = vmatprep.subr.mxu0 0.0
        %1855 = vmatpush1.xpose.msra.mxu0 0.0
        %1856 = vmatprep.subr.mxu0 0.0
        %1857 = vmatpush1.xpose.msra.mxu0 0.0
        %1858 = vmatprep.subr.mxu0 0.0
        %1859 = vmatpush1.xpose.msra.mxu0 0.0
        %1860 = vmatprep.subr.mxu0 0.0
        %1861 = vmatpush1.xpose.msra.mxu0 0.0
        %1862 = vmatprep.subr.mxu0 0.0
        %1863 = vmatpush1.xpose.msra.mxu0 0.0
        %1864 = vmatprep.subr.mxu0 0.0
        %1865 = vmatpush1.xpose.msra.mxu0 0.0
        %1866 = vmatprep.subr.mxu0 0.0
        %1867 = vmatpush1.xpose.msra.mxu0 0.0
        %1868 = vmatprep.subr.mxu0 0.0
        %1869 = vmatpush1.xpose.msra.mxu0 0.0
        %1870 = vmatprep.subr.mxu0 0.0
        %1871 = vmatpush1.xpose.msra.mxu0 0.0
        %1872 = vmatprep.subr.mxu0 0.0
        %1873 = vmatpush1.xpose.msra.mxu0 0.0
        %1874 = vmatprep.subr.mxu0 0.0
        %1875 = vmatpush1.xpose.msra.mxu0 0.0
        %1876 = vmatprep.subr.mxu0 0.0
        %1877 = vmatpush1.xpose.msra.mxu0 0.0
        %1878 = vmatprep.subr.mxu0 0.0
        %1879 = vmatpush1.xpose.msra.mxu0 0.0
        %1880 = vmatprep.subr.mxu0 0.0
        %1881 = vmatpush1.xpose.msra.mxu0 0.0
        %1882 = vmatprep.subr.mxu0 0.0
        %1883 = vmatpush1.xpose.msra.mxu0 0.0
        %1884 = vmatprep.subr.mxu0 0.0
        %1885 = vmatpush1.xpose.msra.mxu0 0.0
        %1886 = vmatprep.subr.mxu0 0.0
        %1887 = vmatpush1.xpose.msra.mxu0 0.0
        %1888 = vmatprep.subr.mxu0 0.0
        %1889 = vmatpush1.xpose.msra.mxu0 0.0
        %1890 = vmatprep.subr.mxu0 0.0
        %1891 = vmatpush1.xpose.msra.mxu0 0.0
        %1892 = vmatprep.mubr.f32.mxu0 0.0
        %v1893 = vand.u32 %v1823, 4294901760
        %v1894 = vsub.f32 %v1823, %v1893
        %v1895 = vand.u32 %v1894, 4294901760
        %v1896 = vsub.f32 %v1894, %v1895
        %v1897 = vand.u32 %v1896, 4294901760
        %1898 = vmatmul.mubr.f32.gmra.mrb[0].mxu0 %v1897
        %v1899 = vpop.f32.mrb[0].mxu0
        %v1900 = vadd.f32 0.0, %v1899
        %v1901 = vpop.f32.mrb[0].mxu0
        %1902 = vdwg.mxu0
        %1903 = vmatprep.subr.mxu0 0.0
        %v1904 = vand.u32 %v1825, 4294901760
        %v1905 = vsub.f32 %v1825, %v1904
        %v1906 = vand.u32 %v1905, 4294901760
        %v1907 = vsub.f32 %v1905, %v1906
        %v1908 = vand.u32 %v1907, 4294901760
        %1909 = vmatpush1.xpose.msra.mxu0 %v1908
        %1910 = vmatprep.subr.mxu0 0.0
        %1911 = vmatpush1.xpose.msra.mxu0 0.0
        %1912 = vmatprep.subr.mxu0 0.0
        %1913 = vmatpush1.xpose.msra.mxu0 0.0
        %1914 = vmatprep.subr.mxu0 0.0
        %1915 = vmatpush1.xpose.msra.mxu0 0.0
        %1916 = vmatprep.subr.mxu0 0.0
        %1917 = vmatpush1.xpose.msra.mxu0 0.0
        %1918 = vmatprep.subr.mxu0 0.0
        %1919 = vmatpush1.xpose.msra.mxu0 0.0
        %1920 = vmatprep.subr.mxu0 0.0
        %1921 = vmatpush1.xpose.msra.mxu0 0.0
        %1922 = vmatprep.subr.mxu0 0.0
        %1923 = vmatpush1.xpose.msra.mxu0 0.0
        %1924 = vmatprep.subr.mxu0 0.0
        %1925 = vmatpush1.xpose.msra.mxu0 0.0
        %1926 = vmatprep.subr.mxu0 0.0
        %1927 = vmatpush1.xpose.msra.mxu0 0.0
        %1928 = vmatprep.subr.mxu0 0.0
        %1929 = vmatpush1.xpose.msra.mxu0 0.0
        %1930 = vmatprep.subr.mxu0 0.0
        %1931 = vmatpush1.xpose.msra.mxu0 0.0
        %1932 = vmatprep.subr.mxu0 0.0
        %1933 = vmatpush1.xpose.msra.mxu0 0.0
        %1934 = vmatprep.subr.mxu0 0.0
        %1935 = vmatpush1.xpose.msra.mxu0 0.0
        %1936 = vmatprep.subr.mxu0 0.0
        %1937 = vmatpush1.xpose.msra.mxu0 0.0
        %1938 = vmatprep.subr.mxu0 0.0
        %1939 = vmatpush1.xpose.msra.mxu0 0.0
        %1940 = vmatprep.subr.mxu0 0.0
        %1941 = vmatpush1.xpose.msra.mxu0 0.0
        %1942 = vmatprep.subr.mxu0 0.0
        %1943 = vmatpush1.xpose.msra.mxu0 0.0
        %1944 = vmatprep.subr.mxu0 0.0
        %1945 = vmatpush1.xpose.msra.mxu0 0.0
        %1946 = vmatprep.subr.mxu0 0.0
        %1947 = vmatpush1.xpose.msra.mxu0 0.0
        %1948 = vmatprep.subr.mxu0 0.0
        %1949 = vmatpush1.xpose.msra.mxu0 0.0
        %1950 = vmatprep.subr.mxu0 0.0
        %1951 = vmatpush1.xpose.msra.mxu0 0.0
        %1952 = vmatprep.subr.mxu0 0.0
        %1953 = vmatpush1.xpose.msra.mxu0 0.0
        %1954 = vmatprep.subr.mxu0 0.0
        %1955 = vmatpush1.xpose.msra.mxu0 0.0
        %1956 = vmatprep.subr.mxu0 0.0
        %1957 = vmatpush1.xpose.msra.mxu0 0.0
        %1958 = vmatprep.subr.mxu0 0.0
        %1959 = vmatpush1.xpose.msra.mxu0 0.0
        %1960 = vmatprep.subr.mxu0 0.0
        %1961 = vmatpush1.xpose.msra.mxu0 0.0
        %1962 = vmatprep.subr.mxu0 0.0
        %1963 = vmatpush1.xpose.msra.mxu0 0.0
        %1964 = vmatprep.subr.mxu0 0.0
        %1965 = vmatpush1.xpose.msra.mxu0 0.0
        %1966 = vmatprep.subr.mxu0 0.0
        %1967 = vmatpush1.xpose.msra.mxu0 0.0
        %1968 = vmatprep.subr.mxu0 0.0
        %1969 = vmatpush1.xpose.msra.mxu0 0.0
        %1970 = vmatprep.subr.mxu0 0.0
        %1971 = vmatpush1.xpose.msra.mxu0 0.0
        %1972 = vmatprep.mubr.f32.mxu0 0.0
        %v1973 = vand.u32 %v1823, 4294901760
        %1974 = vmatmul.mubr.f32.gmra.mrb[0].mxu0 %v1973
        %v1975 = vpop.f32.mrb[0].mxu0
        %v1976 = vadd.f32 %v1900, %v1975
        %v1977 = vpop.f32.mrb[0].mxu0
        %1978 = vdwg.mxu0
        %1979 = vmatprep.subr.mxu0 0.0
        %v1980 = vand.u32 %v1825, 4294901760
        %v1981 = vsub.f32 %v1825, %v1980
        %1982 = vmatpush1.xpose.msra.mxu0 %v1981
        %1983 = vmatprep.subr.mxu0 0.0
        %1984 = vmatpush1.xpose.msra.mxu0 0.0
        %1985 = vmatprep.subr.mxu0 0.0
        %1986 = vmatpush1.xpose.msra.mxu0 0.0
        %1987 = vmatprep.subr.mxu0 0.0
        %1988 = vmatpush1.xpose.msra.mxu0 0.0
        %1989 = vmatprep.subr.mxu0 0.0
        %1990 = vmatpush1.xpose.msra.mxu0 0.0
        %1991 = vmatprep.subr.mxu0 0.0
        %1992 = vmatpush1.xpose.msra.mxu0 0.0
        %1993 = vmatprep.subr.mxu0 0.0
        %1994 = vmatpush1.xpose.msra.mxu0 0.0
        %1995 = vmatprep.subr.mxu0 0.0
        %1996 = vmatpush1.xpose.msra.mxu0 0.0
        %1997 = vmatprep.subr.mxu0 0.0
        %1998 = vmatpush1.xpose.msra.mxu0 0.0
        %1999 = vmatprep.subr.mxu0 0.0
        %2000 = vmatpush1.xpose.msra.mxu0 0.0
        %2001 = vmatprep.subr.mxu0 0.0
        %2002 = vmatpush1.xpose.msra.mxu0 0.0
        %2003 = vmatprep.subr.mxu0 0.0
        %2004 = vmatpush1.xpose.msra.mxu0 0.0
        %2005 = vmatprep.subr.mxu0 0.0
        %2006 = vmatpush1.xpose.msra.mxu0 0.0
        %2007 = vmatprep.subr.mxu0 0.0
        %2008 = vmatpush1.xpose.msra.mxu0 0.0
        %2009 = vmatprep.subr.mxu0 0.0
        %2010 = vmatpush1.xpose.msra.mxu0 0.0
        %2011 = vmatprep.subr.mxu0 0.0
        %2012 = vmatpush1.xpose.msra.mxu0 0.0
        %2013 = vmatprep.subr.mxu0 0.0
        %2014 = vmatpush1.xpose.msra.mxu0 0.0
        %2015 = vmatprep.subr.mxu0 0.0
        %2016 = vmatpush1.xpose.msra.mxu0 0.0
        %2017 = vmatprep.subr.mxu0 0.0
        %2018 = vmatpush1.xpose.msra.mxu0 0.0
        %2019 = vmatprep.subr.mxu0 0.0
        %2020 = vmatpush1.xpose.msra.mxu0 0.0
        %2021 = vmatprep.subr.mxu0 0.0
        %2022 = vmatpush1.xpose.msra.mxu0 0.0
        %2023 = vmatprep.subr.mxu0 0.0
        %2024 = vmatpush1.xpose.msra.mxu0 0.0
        %2025 = vmatprep.subr.mxu0 0.0
        %2026 = vmatpush1.xpose.msra.mxu0 0.0
        %2027 = vmatprep.subr.mxu0 0.0
        %2028 = vmatpush1.xpose.msra.mxu0 0.0
        %2029 = vmatprep.subr.mxu0 0.0
        %2030 = vmatpush1.xpose.msra.mxu0 0.0
        %2031 = vmatprep.subr.mxu0 0.0
        %2032 = vmatpush1.xpose.msra.mxu0 0.0
        %2033 = vmatprep.subr.mxu0 0.0
        %2034 = vmatpush1.xpose.msra.mxu0 0.0
        %2035 = vmatprep.subr.mxu0 0.0
        %2036 = vmatpush1.xpose.msra.mxu0 0.0
        %2037 = vmatprep.subr.mxu0 0.0
        %2038 = vmatpush1.xpose.msra.mxu0 0.0
        %2039 = vmatprep.subr.mxu0 0.0
        %2040 = vmatpush1.xpose.msra.mxu0 0.0
        %2041 = vmatprep.subr.mxu0 0.0
        %2042 = vmatpush1.xpose.msra.mxu0 0.0
        %2043 = vmatprep.subr.mxu0 0.0
        %2044 = vmatpush1.xpose.msra.mxu0 0.0
        %2045 = vmatprep.mubr.f32.mxu0 0.0
        %v2046 = vand.u32 %v1823, 4294901760
        %v2047 = vsub.f32 %v1823, %v2046
        %2048 = vmatmul.mubr.f32.gmra.mrb[0].mxu0 %v2047
        %v2049 = vpop.f32.mrb[0].mxu0
        %v2050 = vadd.f32 %v1976, %v2049
        %v2051 = vpop.f32.mrb[0].mxu0
        %2052 = vdwg.mxu0
        %2053 = vmatprep.subr.mxu0 0.0
        %v2054 = vand.u32 %v1825, 4294901760
        %2055 = vmatpush1.xpose.msra.mxu0 %v2054
        %2056 = vmatprep.subr.mxu0 0.0
        %2057 = vmatpush1.xpose.msra.mxu0 0.0
        %2058 = vmatprep.subr.mxu0 0.0
        %2059 = vmatpush1.xpose.msra.mxu0 0.0
        %2060 = vmatprep.subr.mxu0 0.0
        %2061 = vmatpush1.xpose.msra.mxu0 0.0
        %2062 = vmatprep.subr.mxu0 0.0
        %2063 = vmatpush1.xpose.msra.mxu0 0.0
        %2064 = vmatprep.subr.mxu0 0.0
        %2065 = vmatpush1.xpose.msra.mxu0 0.0
        %2066 = vmatprep.subr.mxu0 0.0
        %2067 = vmatpush1.xpose.msra.mxu0 0.0
        %2068 = vmatprep.subr.mxu0 0.0
        %2069 = vmatpush1.xpose.msra.mxu0 0.0
        %2070 = vmatprep.subr.mxu0 0.0
        %2071 = vmatpush1.xpose.msra.mxu0 0.0
        %2072 = vmatprep.subr.mxu0 0.0
        %2073 = vmatpush1.xpose.msra.mxu0 0.0
        %2074 = vmatprep.subr.mxu0 0.0
        %2075 = vmatpush1.xpose.msra.mxu0 0.0
        %2076 = vmatprep.subr.mxu0 0.0
        %2077 = vmatpush1.xpose.msra.mxu0 0.0
        %2078 = vmatprep.subr.mxu0 0.0
        %2079 = vmatpush1.xpose.msra.mxu0 0.0
        %2080 = vmatprep.subr.mxu0 0.0
        %2081 = vmatpush1.xpose.msra.mxu0 0.0
        %2082 = vmatprep.subr.mxu0 0.0
        %2083 = vmatpush1.xpose.msra.mxu0 0.0
        %2084 = vmatprep.subr.mxu0 0.0
        %2085 = vmatpush1.xpose.msra.mxu0 0.0
        %2086 = vmatprep.subr.mxu0 0.0
        %2087 = vmatpush1.xpose.msra.mxu0 0.0
        %2088 = vmatprep.subr.mxu0 0.0
        %2089 = vmatpush1.xpose.msra.mxu0 0.0
        %2090 = vmatprep.subr.mxu0 0.0
        %2091 = vmatpush1.xpose.msra.mxu0 0.0
        %2092 = vmatprep.subr.mxu0 0.0
        %2093 = vmatpush1.xpose.msra.mxu0 0.0
        %2094 = vmatprep.subr.mxu0 0.0
        %2095 = vmatpush1.xpose.msra.mxu0 0.0
        %2096 = vmatprep.subr.mxu0 0.0
        %2097 = vmatpush1.xpose.msra.mxu0 0.0
        %2098 = vmatprep.subr.mxu0 0.0
        %2099 = vmatpush1.xpose.msra.mxu0 0.0
        %2100 = vmatprep.subr.mxu0 0.0
        %2101 = vmatpush1.xpose.msra.mxu0 0.0
        %2102 = vmatprep.subr.mxu0 0.0
        %2103 = vmatpush1.xpose.msra.mxu0 0.0
        %2104 = vmatprep.subr.mxu0 0.0
        %2105 = vmatpush1.xpose.msra.mxu0 0.0
        %2106 = vmatprep.subr.mxu0 0.0
        %2107 = vmatpush1.xpose.msra.mxu0 0.0
        %2108 = vmatprep.subr.mxu0 0.0
        %2109 = vmatpush1.xpose.msra.mxu0 0.0
        %2110 = vmatprep.subr.mxu0 0.0
        %2111 = vmatpush1.xpose.msra.mxu0 0.0
        %2112 = vmatprep.subr.mxu0 0.0
        %2113 = vmatpush1.xpose.msra.mxu0 0.0
        %2114 = vmatprep.subr.mxu0 0.0
        %2115 = vmatpush1.xpose.msra.mxu0 0.0
        %2116 = vmatprep.subr.mxu0 0.0
        %2117 = vmatpush1.xpose.msra.mxu0 0.0
        %2118 = vmatprep.mubr.f32.mxu0 0.0
        %v2119 = vand.u32 %v1823, 4294901760
        %v2120 = vsub.f32 %v1823, %v2119
        %v2121 = vand.u32 %v2120, 4294901760
        %2122 = vmatmul.mubr.f32.gmra.mrb[0].mxu0 %v2121
        %v2123 = vpop.f32.mrb[0].mxu0
        %v2124 = vadd.f32 %v2050, %v2123
        %v2125 = vpop.f32.mrb[0].mxu0
        %2126 = vdwg.mxu0
        %2127 = vmatprep.subr.mxu0 0.0
        %v2128 = vand.u32 %v1825, 4294901760
        %v2129 = vsub.f32 %v1825, %v2128
        %v2130 = vand.u32 %v2129, 4294901760
        %2131 = vmatpush1.xpose.msra.mxu0 %v2130
        %2132 = vmatprep.subr.mxu0 0.0
        %2133 = vmatpush1.xpose.msra.mxu0 0.0
        %2134 = vmatprep.subr.mxu0 0.0
        %2135 = vmatpush1.xpose.msra.mxu0 0.0
        %2136 = vmatprep.subr.mxu0 0.0
        %2137 = vmatpush1.xpose.msra.mxu0 0.0
        %2138 = vmatprep.subr.mxu0 0.0
        %2139 = vmatpush1.xpose.msra.mxu0 0.0
        %2140 = vmatprep.subr.mxu0 0.0
        %2141 = vmatpush1.xpose.msra.mxu0 0.0
        %2142 = vmatprep.subr.mxu0 0.0
        %2143 = vmatpush1.xpose.msra.mxu0 0.0
        %2144 = vmatprep.subr.mxu0 0.0
        %2145 = vmatpush1.xpose.msra.mxu0 0.0
        %2146 = vmatprep.subr.mxu0 0.0
        %2147 = vmatpush1.xpose.msra.mxu0 0.0
        %2148 = vmatprep.subr.mxu0 0.0
        %2149 = vmatpush1.xpose.msra.mxu0 0.0
        %2150 = vmatprep.subr.mxu0 0.0
        %2151 = vmatpush1.xpose.msra.mxu0 0.0
        %2152 = vmatprep.subr.mxu0 0.0
        %2153 = vmatpush1.xpose.msra.mxu0 0.0
        %2154 = vmatprep.subr.mxu0 0.0
        %2155 = vmatpush1.xpose.msra.mxu0 0.0
        %2156 = vmatprep.subr.mxu0 0.0
        %2157 = vmatpush1.xpose.msra.mxu0 0.0
        %2158 = vmatprep.subr.mxu0 0.0
        %2159 = vmatpush1.xpose.msra.mxu0 0.0
        %2160 = vmatprep.subr.mxu0 0.0
        %2161 = vmatpush1.xpose.msra.mxu0 0.0
        %2162 = vmatprep.subr.mxu0 0.0
        %2163 = vmatpush1.xpose.msra.mxu0 0.0
        %2164 = vmatprep.subr.mxu0 0.0
        %2165 = vmatpush1.xpose.msra.mxu0 0.0
        %2166 = vmatprep.subr.mxu0 0.0
        %2167 = vmatpush1.xpose.msra.mxu0 0.0
        %2168 = vmatprep.subr.mxu0 0.0
        %2169 = vmatpush1.xpose.msra.mxu0 0.0
        %2170 = vmatprep.subr.mxu0 0.0
        %2171 = vmatpush1.xpose.msra.mxu0 0.0
        %2172 = vmatprep.subr.mxu0 0.0
        %2173 = vmatpush1.xpose.msra.mxu0 0.0
        %2174 = vmatprep.subr.mxu0 0.0
        %2175 = vmatpush1.xpose.msra.mxu0 0.0
        %2176 = vmatprep.subr.mxu0 0.0
        %2177 = vmatpush1.xpose.msra.mxu0 0.0
        %2178 = vmatprep.subr.mxu0 0.0
        %2179 = vmatpush1.xpose.msra.mxu0 0.0
        %2180 = vmatprep.subr.mxu0 0.0
        %2181 = vmatpush1.xpose.msra.mxu0 0.0
        %2182 = vmatprep.subr.mxu0 0.0
        %2183 = vmatpush1.xpose.msra.mxu0 0.0
        %2184 = vmatprep.subr.mxu0 0.0
        %2185 = vmatpush1.xpose.msra.mxu0 0.0
        %2186 = vmatprep.subr.mxu0 0.0
        %2187 = vmatpush1.xpose.msra.mxu0 0.0
        %2188 = vmatprep.subr.mxu0 0.0
        %2189 = vmatpush1.xpose.msra.mxu0 0.0
        %2190 = vmatprep.subr.mxu0 0.0
        %2191 = vmatpush1.xpose.msra.mxu0 0.0
        %2192 = vmatprep.subr.mxu0 0.0
        %2193 = vmatpush1.xpose.msra.mxu0 0.0
        %2194 = vmatprep.mubr.f32.mxu0 0.0
        %v2195 = vand.u32 %v1823, 4294901760
        %2196 = vmatmul.mubr.f32.gmra.mrb[0].mxu0 %v2195
        %v2197 = vpop.f32.mrb[0].mxu0
        %v2198 = vadd.f32 %v2124, %v2197
        %v2199 = vpop.f32.mrb[0].mxu0
        %2200 = vdwg.mxu0
        %2201 = vmatprep.subr.mxu0 0.0
        %v2202 = vand.u32 %v1825, 4294901760
        %2203 = vmatpush1.xpose.msra.mxu0 %v2202
        %2204 = vmatprep.subr.mxu0 0.0
        %2205 = vmatpush1.xpose.msra.mxu0 0.0
        %2206 = vmatprep.subr.mxu0 0.0
        %2207 = vmatpush1.xpose.msra.mxu0 0.0
        %2208 = vmatprep.subr.mxu0 0.0
        %2209 = vmatpush1.xpose.msra.mxu0 0.0
        %2210 = vmatprep.subr.mxu0 0.0
        %2211 = vmatpush1.xpose.msra.mxu0 0.0
        %2212 = vmatprep.subr.mxu0 0.0
        %2213 = vmatpush1.xpose.msra.mxu0 0.0
        %2214 = vmatprep.subr.mxu0 0.0
        %2215 = vmatpush1.xpose.msra.mxu0 0.0
        %2216 = vmatprep.subr.mxu0 0.0
        %2217 = vmatpush1.xpose.msra.mxu0 0.0
        %2218 = vmatprep.subr.mxu0 0.0
        %2219 = vmatpush1.xpose.msra.mxu0 0.0
        %2220 = vmatprep.subr.mxu0 0.0
        %2221 = vmatpush1.xpose.msra.mxu0 0.0
        %2222 = vmatprep.subr.mxu0 0.0
        %2223 = vmatpush1.xpose.msra.mxu0 0.0
        %2224 = vmatprep.subr.mxu0 0.0
        %2225 = vmatpush1.xpose.msra.mxu0 0.0
        %2226 = vmatprep.subr.mxu0 0.0
        %2227 = vmatpush1.xpose.msra.mxu0 0.0
        %2228 = vmatprep.subr.mxu0 0.0
        %2229 = vmatpush1.xpose.msra.mxu0 0.0
        %2230 = vmatprep.subr.mxu0 0.0
        %2231 = vmatpush1.xpose.msra.mxu0 0.0
        %2232 = vmatprep.subr.mxu0 0.0
        %2233 = vmatpush1.xpose.msra.mxu0 0.0
        %2234 = vmatprep.subr.mxu0 0.0
        %2235 = vmatpush1.xpose.msra.mxu0 0.0
        %2236 = vmatprep.subr.mxu0 0.0
        %2237 = vmatpush1.xpose.msra.mxu0 0.0
        %2238 = vmatprep.subr.mxu0 0.0
        %2239 = vmatpush1.xpose.msra.mxu0 0.0
        %2240 = vmatprep.subr.mxu0 0.0
        %2241 = vmatpush1.xpose.msra.mxu0 0.0
        %2242 = vmatprep.subr.mxu0 0.0
        %2243 = vmatpush1.xpose.msra.mxu0 0.0
        %2244 = vmatprep.subr.mxu0 0.0
        %2245 = vmatpush1.xpose.msra.mxu0 0.0
        %2246 = vmatprep.subr.mxu0 0.0
        %2247 = vmatpush1.xpose.msra.mxu0 0.0
        %2248 = vmatprep.subr.mxu0 0.0
        %2249 = vmatpush1.xpose.msra.mxu0 0.0
        %2250 = vmatprep.subr.mxu0 0.0
        %2251 = vmatpush1.xpose.msra.mxu0 0.0
        %2252 = vmatprep.subr.mxu0 0.0
        %2253 = vmatpush1.xpose.msra.mxu0 0.0
        %2254 = vmatprep.subr.mxu0 0.0
        %2255 = vmatpush1.xpose.msra.mxu0 0.0
        %2256 = vmatprep.subr.mxu0 0.0
        %2257 = vmatpush1.xpose.msra.mxu0 0.0
        %2258 = vmatprep.subr.mxu0 0.0
        %2259 = vmatpush1.xpose.msra.mxu0 0.0
        %2260 = vmatprep.subr.mxu0 0.0
        %2261 = vmatpush1.xpose.msra.mxu0 0.0
        %2262 = vmatprep.subr.mxu0 0.0
        %2263 = vmatpush1.xpose.msra.mxu0 0.0
        %2264 = vmatprep.subr.mxu0 0.0
        %2265 = vmatpush1.xpose.msra.mxu0 0.0
        %2266 = vmatprep.mubr.f32.mxu0 0.0
        %v2267 = vand.u32 %v1823, 4294901760
        %2268 = vmatmul.mubr.f32.gmra.mrb[0].mxu0 %v2267
        %v2269 = vpop.f32.mrb[0].mxu0
        %v2270 = vadd.f32 %v2198, %v2269
        %v2271 = vpop.f32.mrb[0].mxu0
        %2272 = vdwg.mxu0
        %v2273 = vsel %vm1372, %v1346, 0
        %v2275 = vsel %vm1372, %v1361, 0
        %2277 = vmatprep.subr.mxu0 0.0
        %v2278 = vand.u32 %v2275, 4294901760
        %2279 = vmatpush1.xpose.msra.mxu0 %v2278
        %2280 = vmatprep.subr.mxu0 0.0
        %2281 = vmatpush1.xpose.msra.mxu0 0.0
        %2282 = vmatprep.subr.mxu0 0.0
        %2283 = vmatpush1.xpose.msra.mxu0 0.0
        %2284 = vmatprep.subr.mxu0 0.0
        %2285 = vmatpush1.xpose.msra.mxu0 0.0
        %2286 = vmatprep.subr.mxu0 0.0
        %2287 = vmatpush1.xpose.msra.mxu0 0.0
        %2288 = vmatprep.subr.mxu0 0.0
        %2289 = vmatpush1.xpose.msra.mxu0 0.0
        %2290 = vmatprep.subr.mxu0 0.0
        %2291 = vmatpush1.xpose.msra.mxu0 0.0
        %2292 = vmatprep.subr.mxu0 0.0
        %2293 = vmatpush1.xpose.msra.mxu0 0.0
        %2294 = vmatprep.subr.mxu0 0.0
        %2295 = vmatpush1.xpose.msra.mxu0 0.0
        %2296 = vmatprep.subr.mxu0 0.0
        %2297 = vmatpush1.xpose.msra.mxu0 0.0
        %2298 = vmatprep.subr.mxu0 0.0
        %2299 = vmatpush1.xpose.msra.mxu0 0.0
        %2300 = vmatprep.subr.mxu0 0.0
        %2301 = vmatpush1.xpose.msra.mxu0 0.0
        %2302 = vmatprep.subr.mxu0 0.0
        %2303 = vmatpush1.xpose.msra.mxu0 0.0
        %2304 = vmatprep.subr.mxu0 0.0
        %2305 = vmatpush1.xpose.msra.mxu0 0.0
        %2306 = vmatprep.subr.mxu0 0.0
        %2307 = vmatpush1.xpose.msra.mxu0 0.0
        %2308 = vmatprep.subr.mxu0 0.0
        %2309 = vmatpush1.xpose.msra.mxu0 0.0
        %2310 = vmatprep.subr.mxu0 0.0
        %2311 = vmatpush1.xpose.msra.mxu0 0.0
        %2312 = vmatprep.subr.mxu0 0.0
        %2313 = vmatpush1.xpose.msra.mxu0 0.0
        %2314 = vmatprep.subr.mxu0 0.0
        %2315 = vmatpush1.xpose.msra.mxu0 0.0
        %2316 = vmatprep.subr.mxu0 0.0
        %2317 = vmatpush1.xpose.msra.mxu0 0.0
        %2318 = vmatprep.subr.mxu0 0.0
        %2319 = vmatpush1.xpose.msra.mxu0 0.0
        %2320 = vmatprep.subr.mxu0 0.0
        %2321 = vmatpush1.xpose.msra.mxu0 0.0
        %2322 = vmatprep.subr.mxu0 0.0
        %2323 = vmatpush1.xpose.msra.mxu0 0.0
        %2324 = vmatprep.subr.mxu0 0.0
        %2325 = vmatpush1.xpose.msra.mxu0 0.0
        %2326 = vmatprep.subr.mxu0 0.0
        %2327 = vmatpush1.xpose.msra.mxu0 0.0
        %2328 = vmatprep.subr.mxu0 0.0
        %2329 = vmatpush1.xpose.msra.mxu0 0.0
        %2330 = vmatprep.subr.mxu0 0.0
        %2331 = vmatpush1.xpose.msra.mxu0 0.0
        %2332 = vmatprep.subr.mxu0 0.0
        %2333 = vmatpush1.xpose.msra.mxu0 0.0
        %2334 = vmatprep.subr.mxu0 0.0
        %2335 = vmatpush1.xpose.msra.mxu0 0.0
        %2336 = vmatprep.subr.mxu0 0.0
        %2337 = vmatpush1.xpose.msra.mxu0 0.0
        %2338 = vmatprep.subr.mxu0 0.0
        %2339 = vmatpush1.xpose.msra.mxu0 0.0
        %2340 = vmatprep.subr.mxu0 0.0
        %2341 = vmatpush1.xpose.msra.mxu0 0.0
        %2342 = vmatprep.mubr.f32.mxu0 0.0
        %v2343 = vand.u32 %v2273, 4294901760
        %v2344 = vsub.f32 %v2273, %v2343
        %v2345 = vand.u32 %v2344, 4294901760
        %v2346 = vsub.f32 %v2344, %v2345
        %v2347 = vand.u32 %v2346, 4294901760
        %2348 = vmatmul.mubr.f32.gmra.mrb[0].mxu0 %v2347
        %v2349 = vpop.f32.mrb[0].mxu0
        %v2350 = vadd.f32 0.0, %v2349
        %v2351 = vpop.f32.mrb[0].mxu0
        %2352 = vdwg.mxu0
        %2353 = vmatprep.subr.mxu0 0.0
        %v2354 = vand.u32 %v2275, 4294901760
        %v2355 = vsub.f32 %v2275, %v2354
        %v2356 = vand.u32 %v2355, 4294901760
        %v2357 = vsub.f32 %v2355, %v2356
        %v2358 = vand.u32 %v2357, 4294901760
        %2359 = vmatpush1.xpose.msra.mxu0 %v2358
        %2360 = vmatprep.subr.mxu0 0.0
        %2361 = vmatpush1.xpose.msra.mxu0 0.0
        %2362 = vmatprep.subr.mxu0 0.0
        %2363 = vmatpush1.xpose.msra.mxu0 0.0
        %2364 = vmatprep.subr.mxu0 0.0
        %2365 = vmatpush1.xpose.msra.mxu0 0.0
        %2366 = vmatprep.subr.mxu0 0.0
        %2367 = vmatpush1.xpose.msra.mxu0 0.0
        %2368 = vmatprep.subr.mxu0 0.0
        %2369 = vmatpush1.xpose.msra.mxu0 0.0
        %2370 = vmatprep.subr.mxu0 0.0
        %2371 = vmatpush1.xpose.msra.mxu0 0.0
        %2372 = vmatprep.subr.mxu0 0.0
        %2373 = vmatpush1.xpose.msra.mxu0 0.0
        %2374 = vmatprep.subr.mxu0 0.0
        %2375 = vmatpush1.xpose.msra.mxu0 0.0
        %2376 = vmatprep.subr.mxu0 0.0
        %2377 = vmatpush1.xpose.msra.mxu0 0.0
        %2378 = vmatprep.subr.mxu0 0.0
        %2379 = vmatpush1.xpose.msra.mxu0 0.0
        %2380 = vmatprep.subr.mxu0 0.0
        %2381 = vmatpush1.xpose.msra.mxu0 0.0
        %2382 = vmatprep.subr.mxu0 0.0
        %2383 = vmatpush1.xpose.msra.mxu0 0.0
        %2384 = vmatprep.subr.mxu0 0.0
        %2385 = vmatpush1.xpose.msra.mxu0 0.0
        %2386 = vmatprep.subr.mxu0 0.0
        %2387 = vmatpush1.xpose.msra.mxu0 0.0
        %2388 = vmatprep.subr.mxu0 0.0
        %2389 = vmatpush1.xpose.msra.mxu0 0.0
        %2390 = vmatprep.subr.mxu0 0.0
        %2391 = vmatpush1.xpose.msra.mxu0 0.0
        %2392 = vmatprep.subr.mxu0 0.0
        %2393 = vmatpush1.xpose.msra.mxu0 0.0
        %2394 = vmatprep.subr.mxu0 0.0
        %2395 = vmatpush1.xpose.msra.mxu0 0.0
        %2396 = vmatprep.subr.mxu0 0.0
        %2397 = vmatpush1.xpose.msra.mxu0 0.0
        %2398 = vmatprep.subr.mxu0 0.0
        %2399 = vmatpush1.xpose.msra.mxu0 0.0
        %2400 = vmatprep.subr.mxu0 0.0
        %2401 = vmatpush1.xpose.msra.mxu0 0.0
        %2402 = vmatprep.subr.mxu0 0.0
        %2403 = vmatpush1.xpose.msra.mxu0 0.0
        %2404 = vmatprep.subr.mxu0 0.0
        %2405 = vmatpush1.xpose.msra.mxu0 0.0
        %2406 = vmatprep.subr.mxu0 0.0
        %2407 = vmatpush1.xpose.msra.mxu0 0.0
        %2408 = vmatprep.subr.mxu0 0.0
        %2409 = vmatpush1.xpose.msra.mxu0 0.0
        %2410 = vmatprep.subr.mxu0 0.0
        %2411 = vmatpush1.xpose.msra.mxu0 0.0
        %2412 = vmatprep.subr.mxu0 0.0
        %2413 = vmatpush1.xpose.msra.mxu0 0.0
        %2414 = vmatprep.subr.mxu0 0.0
        %2415 = vmatpush1.xpose.msra.mxu0 0.0
        %2416 = vmatprep.subr.mxu0 0.0
        %2417 = vmatpush1.xpose.msra.mxu0 0.0
        %2418 = vmatprep.subr.mxu0 0.0
        %2419 = vmatpush1.xpose.msra.mxu0 0.0
        %2420 = vmatprep.subr.mxu0 0.0
        %2421 = vmatpush1.xpose.msra.mxu0 0.0
        %2422 = vmatprep.mubr.f32.mxu0 0.0
        %v2423 = vand.u32 %v2273, 4294901760
        %2424 = vmatmul.mubr.f32.gmra.mrb[0].mxu0 %v2423
        %v2425 = vpop.f32.mrb[0].mxu0
        %v2426 = vadd.f32 %v2350, %v2425
        %v2427 = vpop.f32.mrb[0].mxu0
        %2428 = vdwg.mxu0
        %2429 = vmatprep.subr.mxu0 0.0
        %v2430 = vand.u32 %v2275, 4294901760
        %v2431 = vsub.f32 %v2275, %v2430
        %2432 = vmatpush1.xpose.msra.mxu0 %v2431
        %2433 = vmatprep.subr.mxu0 0.0
        %2434 = vmatpush1.xpose.msra.mxu0 0.0
        %2435 = vmatprep.subr.mxu0 0.0
        %2436 = vmatpush1.xpose.msra.mxu0 0.0
        %2437 = vmatprep.subr.mxu0 0.0
        %2438 = vmatpush1.xpose.msra.mxu0 0.0
        %2439 = vmatprep.subr.mxu0 0.0
        %2440 = vmatpush1.xpose.msra.mxu0 0.0
        %2441 = vmatprep.subr.mxu0 0.0
        %2442 = vmatpush1.xpose.msra.mxu0 0.0
        %2443 = vmatprep.subr.mxu0 0.0
        %2444 = vmatpush1.xpose.msra.mxu0 0.0
        %2445 = vmatprep.subr.mxu0 0.0
        %2446 = vmatpush1.xpose.msra.mxu0 0.0
        %2447 = vmatprep.subr.mxu0 0.0
        %2448 = vmatpush1.xpose.msra.mxu0 0.0
        %2449 = vmatprep.subr.mxu0 0.0
        %2450 = vmatpush1.xpose.msra.mxu0 0.0
        %2451 = vmatprep.subr.mxu0 0.0
        %2452 = vmatpush1.xpose.msra.mxu0 0.0
        %2453 = vmatprep.subr.mxu0 0.0
        %2454 = vmatpush1.xpose.msra.mxu0 0.0
        %2455 = vmatprep.subr.mxu0 0.0
        %2456 = vmatpush1.xpose.msra.mxu0 0.0
        %2457 = vmatprep.subr.mxu0 0.0
        %2458 = vmatpush1.xpose.msra.mxu0 0.0
        %2459 = vmatprep.subr.mxu0 0.0
        %2460 = vmatpush1.xpose.msra.mxu0 0.0
        %2461 = vmatprep.subr.mxu0 0.0
        %2462 = vmatpush1.xpose.msra.mxu0 0.0
        %2463 = vmatprep.subr.mxu0 0.0
        %2464 = vmatpush1.xpose.msra.mxu0 0.0
        %2465 = vmatprep.subr.mxu0 0.0
        %2466 = vmatpush1.xpose.msra.mxu0 0.0
        %2467 = vmatprep.subr.mxu0 0.0
        %2468 = vmatpush1.xpose.msra.mxu0 0.0
        %2469 = vmatprep.subr.mxu0 0.0
        %2470 = vmatpush1.xpose.msra.mxu0 0.0
        %2471 = vmatprep.subr.mxu0 0.0
        %2472 = vmatpush1.xpose.msra.mxu0 0.0
        %2473 = vmatprep.subr.mxu0 0.0
        %2474 = vmatpush1.xpose.msra.mxu0 0.0
        %2475 = vmatprep.subr.mxu0 0.0
        %2476 = vmatpush1.xpose.msra.mxu0 0.0
        %2477 = vmatprep.subr.mxu0 0.0
        %2478 = vmatpush1.xpose.msra.mxu0 0.0
        %2479 = vmatprep.subr.mxu0 0.0
        %2480 = vmatpush1.xpose.msra.mxu0 0.0
        %2481 = vmatprep.subr.mxu0 0.0
        %2482 = vmatpush1.xpose.msra.mxu0 0.0
        %2483 = vmatprep.subr.mxu0 0.0
        %2484 = vmatpush1.xpose.msra.mxu0 0.0
        %2485 = vmatprep.subr.mxu0 0.0
        %2486 = vmatpush1.xpose.msra.mxu0 0.0
        %2487 = vmatprep.subr.mxu0 0.0
        %2488 = vmatpush1.xpose.msra.mxu0 0.0
        %2489 = vmatprep.subr.mxu0 0.0
        %2490 = vmatpush1.xpose.msra.mxu0 0.0
        %2491 = vmatprep.subr.mxu0 0.0
        %2492 = vmatpush1.xpose.msra.mxu0 0.0
        %2493 = vmatprep.subr.mxu0 0.0
        %2494 = vmatpush1.xpose.msra.mxu0 0.0
        %2495 = vmatprep.mubr.f32.mxu0 0.0
        %v2496 = vand.u32 %v2273, 4294901760
        %v2497 = vsub.f32 %v2273, %v2496
        %2498 = vmatmul.mubr.f32.gmra.mrb[0].mxu0 %v2497
        %v2499 = vpop.f32.mrb[0].mxu0
        %v2500 = vadd.f32 %v2426, %v2499
        %v2501 = vpop.f32.mrb[0].mxu0
        %2502 = vdwg.mxu0
        %2503 = vmatprep.subr.mxu0 0.0
        %v2504 = vand.u32 %v2275, 4294901760
        %2505 = vmatpush1.xpose.msra.mxu0 %v2504
        %2506 = vmatprep.subr.mxu0 0.0
        %2507 = vmatpush1.xpose.msra.mxu0 0.0
        %2508 = vmatprep.subr.mxu0 0.0
        %2509 = vmatpush1.xpose.msra.mxu0 0.0
        %2510 = vmatprep.subr.mxu0 0.0
        %2511 = vmatpush1.xpose.msra.mxu0 0.0
        %2512 = vmatprep.subr.mxu0 0.0
        %2513 = vmatpush1.xpose.msra.mxu0 0.0
        %2514 = vmatprep.subr.mxu0 0.0
        %2515 = vmatpush1.xpose.msra.mxu0 0.0
        %2516 = vmatprep.subr.mxu0 0.0
        %2517 = vmatpush1.xpose.msra.mxu0 0.0
        %2518 = vmatprep.subr.mxu0 0.0
        %2519 = vmatpush1.xpose.msra.mxu0 0.0
        %2520 = vmatprep.subr.mxu0 0.0
        %2521 = vmatpush1.xpose.msra.mxu0 0.0
        %2522 = vmatprep.subr.mxu0 0.0
        %2523 = vmatpush1.xpose.msra.mxu0 0.0
        %2524 = vmatprep.subr.mxu0 0.0
        %2525 = vmatpush1.xpose.msra.mxu0 0.0
        %2526 = vmatprep.subr.mxu0 0.0
        %2527 = vmatpush1.xpose.msra.mxu0 0.0
        %2528 = vmatprep.subr.mxu0 0.0
        %2529 = vmatpush1.xpose.msra.mxu0 0.0
        %2530 = vmatprep.subr.mxu0 0.0
        %2531 = vmatpush1.xpose.msra.mxu0 0.0
        %2532 = vmatprep.subr.mxu0 0.0
        %2533 = vmatpush1.xpose.msra.mxu0 0.0
        %2534 = vmatprep.subr.mxu0 0.0
        %2535 = vmatpush1.xpose.msra.mxu0 0.0
        %2536 = vmatprep.subr.mxu0 0.0
        %2537 = vmatpush1.xpose.msra.mxu0 0.0
        %2538 = vmatprep.subr.mxu0 0.0
        %2539 = vmatpush1.xpose.msra.mxu0 0.0
        %2540 = vmatprep.subr.mxu0 0.0
        %2541 = vmatpush1.xpose.msra.mxu0 0.0
        %2542 = vmatprep.subr.mxu0 0.0
        %2543 = vmatpush1.xpose.msra.mxu0 0.0
        %2544 = vmatprep.subr.mxu0 0.0
        %2545 = vmatpush1.xpose.msra.mxu0 0.0
        %2546 = vmatprep.subr.mxu0 0.0
        %2547 = vmatpush1.xpose.msra.mxu0 0.0
        %2548 = vmatprep.subr.mxu0 0.0
        %2549 = vmatpush1.xpose.msra.mxu0 0.0
        %2550 = vmatprep.subr.mxu0 0.0
        %2551 = vmatpush1.xpose.msra.mxu0 0.0
        %2552 = vmatprep.subr.mxu0 0.0
        %2553 = vmatpush1.xpose.msra.mxu0 0.0
        %2554 = vmatprep.subr.mxu0 0.0
        %2555 = vmatpush1.xpose.msra.mxu0 0.0
        %2556 = vmatprep.subr.mxu0 0.0
        %2557 = vmatpush1.xpose.msra.mxu0 0.0
        %2558 = vmatprep.subr.mxu0 0.0
        %2559 = vmatpush1.xpose.msra.mxu0 0.0
        %2560 = vmatprep.subr.mxu0 0.0
        %2561 = vmatpush1.xpose.msra.mxu0 0.0
        %2562 = vmatprep.subr.mxu0 0.0
        %2563 = vmatpush1.xpose.msra.mxu0 0.0
        %2564 = vmatprep.subr.mxu0 0.0
        %2565 = vmatpush1.xpose.msra.mxu0 0.0
        %2566 = vmatprep.subr.mxu0 0.0
        %2567 = vmatpush1.xpose.msra.mxu0 0.0
        %2568 = vmatprep.mubr.f32.mxu0 0.0
        %v2569 = vand.u32 %v2273, 4294901760
        %v2570 = vsub.f32 %v2273, %v2569
        %v2571 = vand.u32 %v2570, 4294901760
        %2572 = vmatmul.mubr.f32.gmra.mrb[0].mxu0 %v2571
        %v2573 = vpop.f32.mrb[0].mxu0
        %v2574 = vadd.f32 %v2500, %v2573
        %v2575 = vpop.f32.mrb[0].mxu0
        %2576 = vdwg.mxu0
        %2577 = vmatprep.subr.mxu0 0.0
        %v2578 = vand.u32 %v2275, 4294901760
        %v2579 = vsub.f32 %v2275, %v2578
        %v2580 = vand.u32 %v2579, 4294901760
        %2581 = vmatpush1.xpose.msra.mxu0 %v2580
        %2582 = vmatprep.subr.mxu0 0.0
        %2583 = vmatpush1.xpose.msra.mxu0 0.0
        %2584 = vmatprep.subr.mxu0 0.0
        %2585 = vmatpush1.xpose.msra.mxu0 0.0
        %2586 = vmatprep.subr.mxu0 0.0
        %2587 = vmatpush1.xpose.msra.mxu0 0.0
        %2588 = vmatprep.subr.mxu0 0.0
        %2589 = vmatpush1.xpose.msra.mxu0 0.0
        %2590 = vmatprep.subr.mxu0 0.0
        %2591 = vmatpush1.xpose.msra.mxu0 0.0
        %2592 = vmatprep.subr.mxu0 0.0
        %2593 = vmatpush1.xpose.msra.mxu0 0.0
        %2594 = vmatprep.subr.mxu0 0.0
        %2595 = vmatpush1.xpose.msra.mxu0 0.0
        %2596 = vmatprep.subr.mxu0 0.0
        %2597 = vmatpush1.xpose.msra.mxu0 0.0
        %2598 = vmatprep.subr.mxu0 0.0
        %2599 = vmatpush1.xpose.msra.mxu0 0.0
        %2600 = vmatprep.subr.mxu0 0.0
        %2601 = vmatpush1.xpose.msra.mxu0 0.0
        %2602 = vmatprep.subr.mxu0 0.0
        %2603 = vmatpush1.xpose.msra.mxu0 0.0
        %2604 = vmatprep.subr.mxu0 0.0
        %2605 = vmatpush1.xpose.msra.mxu0 0.0
        %2606 = vmatprep.subr.mxu0 0.0
        %2607 = vmatpush1.xpose.msra.mxu0 0.0
        %2608 = vmatprep.subr.mxu0 0.0
        %2609 = vmatpush1.xpose.msra.mxu0 0.0
        %2610 = vmatprep.subr.mxu0 0.0
        %2611 = vmatpush1.xpose.msra.mxu0 0.0
        %2612 = vmatprep.subr.mxu0 0.0
        %2613 = vmatpush1.xpose.msra.mxu0 0.0
        %2614 = vmatprep.subr.mxu0 0.0
        %2615 = vmatpush1.xpose.msra.mxu0 0.0
        %2616 = vmatprep.subr.mxu0 0.0
        %2617 = vmatpush1.xpose.msra.mxu0 0.0
        %2618 = vmatprep.subr.mxu0 0.0
        %2619 = vmatpush1.xpose.msra.mxu0 0.0
        %2620 = vmatprep.subr.mxu0 0.0
        %2621 = vmatpush1.xpose.msra.mxu0 0.0
        %2622 = vmatprep.subr.mxu0 0.0
        %2623 = vmatpush1.xpose.msra.mxu0 0.0
        %2624 = vmatprep.subr.mxu0 0.0
        %2625 = vmatpush1.xpose.msra.mxu0 0.0
        %2626 = vmatprep.subr.mxu0 0.0
        %2627 = vmatpush1.xpose.msra.mxu0 0.0
        %2628 = vmatprep.subr.mxu0 0.0
        %2629 = vmatpush1.xpose.msra.mxu0 0.0
        %2630 = vmatprep.subr.mxu0 0.0
        %2631 = vmatpush1.xpose.msra.mxu0 0.0
        %2632 = vmatprep.subr.mxu0 0.0
        %2633 = vmatpush1.xpose.msra.mxu0 0.0
        %2634 = vmatprep.subr.mxu0 0.0
        %2635 = vmatpush1.xpose.msra.mxu0 0.0
        %2636 = vmatprep.subr.mxu0 0.0
        %2637 = vmatpush1.xpose.msra.mxu0 0.0
        %2638 = vmatprep.subr.mxu0 0.0
        %2639 = vmatpush1.xpose.msra.mxu0 0.0
        %2640 = vmatprep.subr.mxu0 0.0
        %2641 = vmatpush1.xpose.msra.mxu0 0.0
        %2642 = vmatprep.subr.mxu0 0.0
        %2643 = vmatpush1.xpose.msra.mxu0 0.0
        %2644 = vmatprep.mubr.f32.mxu0 0.0
        %v2645 = vand.u32 %v2273, 4294901760
        %2646 = vmatmul.mubr.f32.gmra.mrb[0].mxu0 %v2645
        %v2647 = vpop.f32.mrb[0].mxu0
        %v2648 = vadd.f32 %v2574, %v2647
        %v2649 = vpop.f32.mrb[0].mxu0
        %2650 = vdwg.mxu0
        %2651 = vmatprep.subr.mxu0 0.0
        %v2652 = vand.u32 %v2275, 4294901760
        %2653 = vmatpush1.xpose.msra.mxu0 %v2652
        %2654 = vmatprep.subr.mxu0 0.0
        %2655 = vmatpush1.xpose.msra.mxu0 0.0
        %2656 = vmatprep.subr.mxu0 0.0
        %2657 = vmatpush1.xpose.msra.mxu0 0.0
        %2658 = vmatprep.subr.mxu0 0.0
        %2659 = vmatpush1.xpose.msra.mxu0 0.0
        %2660 = vmatprep.subr.mxu0 0.0
        %2661 = vmatpush1.xpose.msra.mxu0 0.0
        %2662 = vmatprep.subr.mxu0 0.0
        %2663 = vmatpush1.xpose.msra.mxu0 0.0
        %2664 = vmatprep.subr.mxu0 0.0
        %2665 = vmatpush1.xpose.msra.mxu0 0.0
        %2666 = vmatprep.subr.mxu0 0.0
        %2667 = vmatpush1.xpose.msra.mxu0 0.0
        %2668 = vmatprep.subr.mxu0 0.0
        %2669 = vmatpush1.xpose.msra.mxu0 0.0
        %2670 = vmatprep.subr.mxu0 0.0
        %2671 = vmatpush1.xpose.msra.mxu0 0.0
        %2672 = vmatprep.subr.mxu0 0.0
        %2673 = vmatpush1.xpose.msra.mxu0 0.0
        %2674 = vmatprep.subr.mxu0 0.0
        %2675 = vmatpush1.xpose.msra.mxu0 0.0
        %2676 = vmatprep.subr.mxu0 0.0
        %2677 = vmatpush1.xpose.msra.mxu0 0.0
        %2678 = vmatprep.subr.mxu0 0.0
        %2679 = vmatpush1.xpose.msra.mxu0 0.0
        %2680 = vmatprep.subr.mxu0 0.0
        %2681 = vmatpush1.xpose.msra.mxu0 0.0
        %2682 = vmatprep.subr.mxu0 0.0
        %2683 = vmatpush1.xpose.msra.mxu0 0.0
        %2684 = vmatprep.subr.mxu0 0.0
        %2685 = vmatpush1.xpose.msra.mxu0 0.0
        %2686 = vmatprep.subr.mxu0 0.0
        %2687 = vmatpush1.xpose.msra.mxu0 0.0
        %2688 = vmatprep.subr.mxu0 0.0
        %2689 = vmatpush1.xpose.msra.mxu0 0.0
        %2690 = vmatprep.subr.mxu0 0.0
        %2691 = vmatpush1.xpose.msra.mxu0 0.0
        %2692 = vmatprep.subr.mxu0 0.0
        %2693 = vmatpush1.xpose.msra.mxu0 0.0
        %2694 = vmatprep.subr.mxu0 0.0
        %2695 = vmatpush1.xpose.msra.mxu0 0.0
        %2696 = vmatprep.subr.mxu0 0.0
        %2697 = vmatpush1.xpose.msra.mxu0 0.0
        %2698 = vmatprep.subr.mxu0 0.0
        %2699 = vmatpush1.xpose.msra.mxu0 0.0
        %2700 = vmatprep.subr.mxu0 0.0
        %2701 = vmatpush1.xpose.msra.mxu0 0.0
        %2702 = vmatprep.subr.mxu0 0.0
        %2703 = vmatpush1.xpose.msra.mxu0 0.0
        %2704 = vmatprep.subr.mxu0 0.0
        %2705 = vmatpush1.xpose.msra.mxu0 0.0
        %2706 = vmatprep.subr.mxu0 0.0
        %2707 = vmatpush1.xpose.msra.mxu0 0.0
        %2708 = vmatprep.subr.mxu0 0.0
        %2709 = vmatpush1.xpose.msra.mxu0 0.0
        %2710 = vmatprep.subr.mxu0 0.0
        %2711 = vmatpush1.xpose.msra.mxu0 0.0
        %2712 = vmatprep.subr.mxu0 0.0
        %2713 = vmatpush1.xpose.msra.mxu0 0.0
        %2714 = vmatprep.subr.mxu0 0.0
        %2715 = vmatpush1.xpose.msra.mxu0 0.0
        %2716 = vmatprep.mubr.f32.mxu0 0.0
        %v2717 = vand.u32 %v2273, 4294901760
        %2718 = vmatmul.mubr.f32.gmra.mrb[0].mxu0 %v2717
        %v2719 = vpop.f32.mrb[0].mxu0
        %v2720 = vadd.f32 %v2648, %v2719
        %v2721 = vpop.f32.mrb[0].mxu0
        %2722 = vdwg.mxu0
        %v2723 = vsel %vm1372, %v1348, 0
        %v2725 = vsel %vm1372, %v1363, 0
        %2727 = vmatprep.subr.mxu0 0.0
        %v2728 = vand.u32 %v2725, 4294901760
        %2729 = vmatpush1.xpose.msra.mxu0 %v2728
        %2730 = vmatprep.subr.mxu0 0.0
        %2731 = vmatpush1.xpose.msra.mxu0 0.0
        %2732 = vmatprep.subr.mxu0 0.0
        %2733 = vmatpush1.xpose.msra.mxu0 0.0
        %2734 = vmatprep.subr.mxu0 0.0
        %2735 = vmatpush1.xpose.msra.mxu0 0.0
        %2736 = vmatprep.subr.mxu0 0.0
        %2737 = vmatpush1.xpose.msra.mxu0 0.0
        %2738 = vmatprep.subr.mxu0 0.0
        %2739 = vmatpush1.xpose.msra.mxu0 0.0
        %2740 = vmatprep.subr.mxu0 0.0
        %2741 = vmatpush1.xpose.msra.mxu0 0.0
        %2742 = vmatprep.subr.mxu0 0.0
        %2743 = vmatpush1.xpose.msra.mxu0 0.0
        %2744 = vmatprep.subr.mxu0 0.0
        %2745 = vmatpush1.xpose.msra.mxu0 0.0
        %2746 = vmatprep.subr.mxu0 0.0
        %2747 = vmatpush1.xpose.msra.mxu0 0.0
        %2748 = vmatprep.subr.mxu0 0.0
        %2749 = vmatpush1.xpose.msra.mxu0 0.0
        %2750 = vmatprep.subr.mxu0 0.0
        %2751 = vmatpush1.xpose.msra.mxu0 0.0
        %2752 = vmatprep.subr.mxu0 0.0
        %2753 = vmatpush1.xpose.msra.mxu0 0.0
        %2754 = vmatprep.subr.mxu0 0.0
        %2755 = vmatpush1.xpose.msra.mxu0 0.0
        %2756 = vmatprep.subr.mxu0 0.0
        %2757 = vmatpush1.xpose.msra.mxu0 0.0
        %2758 = vmatprep.subr.mxu0 0.0
        %2759 = vmatpush1.xpose.msra.mxu0 0.0
        %2760 = vmatprep.subr.mxu0 0.0
        %2761 = vmatpush1.xpose.msra.mxu0 0.0
        %2762 = vmatprep.subr.mxu0 0.0
        %2763 = vmatpush1.xpose.msra.mxu0 0.0
        %2764 = vmatprep.subr.mxu0 0.0
        %2765 = vmatpush1.xpose.msra.mxu0 0.0
        %2766 = vmatprep.subr.mxu0 0.0
        %2767 = vmatpush1.xpose.msra.mxu0 0.0
        %2768 = vmatprep.subr.mxu0 0.0
        %2769 = vmatpush1.xpose.msra.mxu0 0.0
        %2770 = vmatprep.subr.mxu0 0.0
        %2771 = vmatpush1.xpose.msra.mxu0 0.0
        %2772 = vmatprep.subr.mxu0 0.0
        %2773 = vmatpush1.xpose.msra.mxu0 0.0
        %2774 = vmatprep.subr.mxu0 0.0
        %2775 = vmatpush1.xpose.msra.mxu0 0.0
        %2776 = vmatprep.subr.mxu0 0.0
        %2777 = vmatpush1.xpose.msra.mxu0 0.0
        %2778 = vmatprep.subr.mxu0 0.0
        %2779 = vmatpush1.xpose.msra.mxu0 0.0
        %2780 = vmatprep.subr.mxu0 0.0
        %2781 = vmatpush1.xpose.msra.mxu0 0.0
        %2782 = vmatprep.subr.mxu0 0.0
        %2783 = vmatpush1.xpose.msra.mxu0 0.0
        %2784 = vmatprep.subr.mxu0 0.0
        %2785 = vmatpush1.xpose.msra.mxu0 0.0
        %2786 = vmatprep.subr.mxu0 0.0
        %2787 = vmatpush1.xpose.msra.mxu0 0.0
        %2788 = vmatprep.subr.mxu0 0.0
        %2789 = vmatpush1.xpose.msra.mxu0 0.0
        %2790 = vmatprep.subr.mxu0 0.0
        %2791 = vmatpush1.xpose.msra.mxu0 0.0
        %2792 = vmatprep.mubr.f32.mxu0 0.0
        %v2793 = vand.u32 %v2723, 4294901760
        %v2794 = vsub.f32 %v2723, %v2793
        %v2795 = vand.u32 %v2794, 4294901760
        %v2796 = vsub.f32 %v2794, %v2795
        %v2797 = vand.u32 %v2796, 4294901760
        %2798 = vmatmul.mubr.f32.gmra.mrb[0].mxu0 %v2797
        %v2799 = vpop.f32.mrb[0].mxu0
        %v2800 = vadd.f32 0.0, %v2799
        %v2801 = vpop.f32.mrb[0].mxu0
        %2802 = vdwg.mxu0
        %2803 = vmatprep.subr.mxu0 0.0
        %v2804 = vand.u32 %v2725, 4294901760
        %v2805 = vsub.f32 %v2725, %v2804
        %v2806 = vand.u32 %v2805, 4294901760
        %v2807 = vsub.f32 %v2805, %v2806
        %v2808 = vand.u32 %v2807, 4294901760
        %2809 = vmatpush1.xpose.msra.mxu0 %v2808
        %2810 = vmatprep.subr.mxu0 0.0
        %2811 = vmatpush1.xpose.msra.mxu0 0.0
        %2812 = vmatprep.subr.mxu0 0.0
        %2813 = vmatpush1.xpose.msra.mxu0 0.0
        %2814 = vmatprep.subr.mxu0 0.0
        %2815 = vmatpush1.xpose.msra.mxu0 0.0
        %2816 = vmatprep.subr.mxu0 0.0
        %2817 = vmatpush1.xpose.msra.mxu0 0.0
        %2818 = vmatprep.subr.mxu0 0.0
        %2819 = vmatpush1.xpose.msra.mxu0 0.0
        %2820 = vmatprep.subr.mxu0 0.0
        %2821 = vmatpush1.xpose.msra.mxu0 0.0
        %2822 = vmatprep.subr.mxu0 0.0
        %2823 = vmatpush1.xpose.msra.mxu0 0.0
        %2824 = vmatprep.subr.mxu0 0.0
        %2825 = vmatpush1.xpose.msra.mxu0 0.0
        %2826 = vmatprep.subr.mxu0 0.0
        %2827 = vmatpush1.xpose.msra.mxu0 0.0
        %2828 = vmatprep.subr.mxu0 0.0
        %2829 = vmatpush1.xpose.msra.mxu0 0.0
        %2830 = vmatprep.subr.mxu0 0.0
        %2831 = vmatpush1.xpose.msra.mxu0 0.0
        %2832 = vmatprep.subr.mxu0 0.0
        %2833 = vmatpush1.xpose.msra.mxu0 0.0
        %2834 = vmatprep.subr.mxu0 0.0
        %2835 = vmatpush1.xpose.msra.mxu0 0.0
        %2836 = vmatprep.subr.mxu0 0.0
        %2837 = vmatpush1.xpose.msra.mxu0 0.0
        %2838 = vmatprep.subr.mxu0 0.0
        %2839 = vmatpush1.xpose.msra.mxu0 0.0
        %2840 = vmatprep.subr.mxu0 0.0
        %2841 = vmatpush1.xpose.msra.mxu0 0.0
        %2842 = vmatprep.subr.mxu0 0.0
        %2843 = vmatpush1.xpose.msra.mxu0 0.0
        %2844 = vmatprep.subr.mxu0 0.0
        %2845 = vmatpush1.xpose.msra.mxu0 0.0
        %2846 = vmatprep.subr.mxu0 0.0
        %2847 = vmatpush1.xpose.msra.mxu0 0.0
        %2848 = vmatprep.subr.mxu0 0.0
        %2849 = vmatpush1.xpose.msra.mxu0 0.0
        %2850 = vmatprep.subr.mxu0 0.0
        %2851 = vmatpush1.xpose.msra.mxu0 0.0
        %2852 = vmatprep.subr.mxu0 0.0
        %2853 = vmatpush1.xpose.msra.mxu0 0.0
        %2854 = vmatprep.subr.mxu0 0.0
        %2855 = vmatpush1.xpose.msra.mxu0 0.0
        %2856 = vmatprep.subr.mxu0 0.0
        %2857 = vmatpush1.xpose.msra.mxu0 0.0
        %2858 = vmatprep.subr.mxu0 0.0
        %2859 = vmatpush1.xpose.msra.mxu0 0.0
        %2860 = vmatprep.subr.mxu0 0.0
        %2861 = vmatpush1.xpose.msra.mxu0 0.0
        %2862 = vmatprep.subr.mxu0 0.0
        %2863 = vmatpush1.xpose.msra.mxu0 0.0
        %2864 = vmatprep.subr.mxu0 0.0
        %2865 = vmatpush1.xpose.msra.mxu0 0.0
        %2866 = vmatprep.subr.mxu0 0.0
        %2867 = vmatpush1.xpose.msra.mxu0 0.0
        %2868 = vmatprep.subr.mxu0 0.0
        %2869 = vmatpush1.xpose.msra.mxu0 0.0
        %2870 = vmatprep.subr.mxu0 0.0
        %2871 = vmatpush1.xpose.msra.mxu0 0.0
        %2872 = vmatprep.mubr.f32.mxu0 0.0
        %v2873 = vand.u32 %v2723, 4294901760
        %2874 = vmatmul.mubr.f32.gmra.mrb[0].mxu0 %v2873
        %v2875 = vpop.f32.mrb[0].mxu0
        %v2876 = vadd.f32 %v2800, %v2875
        %v2877 = vpop.f32.mrb[0].mxu0
        %2878 = vdwg.mxu0
        %2879 = vmatprep.subr.mxu0 0.0
        %v2880 = vand.u32 %v2725, 4294901760
        %v2881 = vsub.f32 %v2725, %v2880
        %2882 = vmatpush1.xpose.msra.mxu0 %v2881
        %2883 = vmatprep.subr.mxu0 0.0
        %2884 = vmatpush1.xpose.msra.mxu0 0.0
        %2885 = vmatprep.subr.mxu0 0.0
        %2886 = vmatpush1.xpose.msra.mxu0 0.0
        %2887 = vmatprep.subr.mxu0 0.0
        %2888 = vmatpush1.xpose.msra.mxu0 0.0
        %2889 = vmatprep.subr.mxu0 0.0
        %2890 = vmatpush1.xpose.msra.mxu0 0.0
        %2891 = vmatprep.subr.mxu0 0.0
        %2892 = vmatpush1.xpose.msra.mxu0 0.0
        %2893 = vmatprep.subr.mxu0 0.0
        %2894 = vmatpush1.xpose.msra.mxu0 0.0
        %2895 = vmatprep.subr.mxu0 0.0
        %2896 = vmatpush1.xpose.msra.mxu0 0.0
        %2897 = vmatprep.subr.mxu0 0.0
        %2898 = vmatpush1.xpose.msra.mxu0 0.0
        %2899 = vmatprep.subr.mxu0 0.0
        %2900 = vmatpush1.xpose.msra.mxu0 0.0
        %2901 = vmatprep.subr.mxu0 0.0
        %2902 = vmatpush1.xpose.msra.mxu0 0.0
        %2903 = vmatprep.subr.mxu0 0.0
        %2904 = vmatpush1.xpose.msra.mxu0 0.0
        %2905 = vmatprep.subr.mxu0 0.0
        %2906 = vmatpush1.xpose.msra.mxu0 0.0
        %2907 = vmatprep.subr.mxu0 0.0
        %2908 = vmatpush1.xpose.msra.mxu0 0.0
        %2909 = vmatprep.subr.mxu0 0.0
        %2910 = vmatpush1.xpose.msra.mxu0 0.0
        %2911 = vmatprep.subr.mxu0 0.0
        %2912 = vmatpush1.xpose.msra.mxu0 0.0
        %2913 = vmatprep.subr.mxu0 0.0
        %2914 = vmatpush1.xpose.msra.mxu0 0.0
        %2915 = vmatprep.subr.mxu0 0.0
        %2916 = vmatpush1.xpose.msra.mxu0 0.0
        %2917 = vmatprep.subr.mxu0 0.0
        %2918 = vmatpush1.xpose.msra.mxu0 0.0
        %2919 = vmatprep.subr.mxu0 0.0
        %2920 = vmatpush1.xpose.msra.mxu0 0.0
        %2921 = vmatprep.subr.mxu0 0.0
        %2922 = vmatpush1.xpose.msra.mxu0 0.0
        %2923 = vmatprep.subr.mxu0 0.0
        %2924 = vmatpush1.xpose.msra.mxu0 0.0
        %2925 = vmatprep.subr.mxu0 0.0
        %2926 = vmatpush1.xpose.msra.mxu0 0.0
        %2927 = vmatprep.subr.mxu0 0.0
        %2928 = vmatpush1.xpose.msra.mxu0 0.0
        %2929 = vmatprep.subr.mxu0 0.0
        %2930 = vmatpush1.xpose.msra.mxu0 0.0
        %2931 = vmatprep.subr.mxu0 0.0
        %2932 = vmatpush1.xpose.msra.mxu0 0.0
        %2933 = vmatprep.subr.mxu0 0.0
        %2934 = vmatpush1.xpose.msra.mxu0 0.0
        %2935 = vmatprep.subr.mxu0 0.0
        %2936 = vmatpush1.xpose.msra.mxu0 0.0
        %2937 = vmatprep.subr.mxu0 0.0
        %2938 = vmatpush1.xpose.msra.mxu0 0.0
        %2939 = vmatprep.subr.mxu0 0.0
        %2940 = vmatpush1.xpose.msra.mxu0 0.0
        %2941 = vmatprep.subr.mxu0 0.0
        %2942 = vmatpush1.xpose.msra.mxu0 0.0
        %2943 = vmatprep.subr.mxu0 0.0
        %2944 = vmatpush1.xpose.msra.mxu0 0.0
        %2945 = vmatprep.mubr.f32.mxu0 0.0
        %v2946 = vand.u32 %v2723, 4294901760
        %v2947 = vsub.f32 %v2723, %v2946
        %2948 = vmatmul.mubr.f32.gmra.mrb[0].mxu0 %v2947
        %v2949 = vpop.f32.mrb[0].mxu0
        %v2950 = vadd.f32 %v2876, %v2949
        %v2951 = vpop.f32.mrb[0].mxu0
        %2952 = vdwg.mxu0
        %2953 = vmatprep.subr.mxu0 0.0
        %v2954 = vand.u32 %v2725, 4294901760
        %2955 = vmatpush1.xpose.msra.mxu0 %v2954
        %2956 = vmatprep.subr.mxu0 0.0
        %2957 = vmatpush1.xpose.msra.mxu0 0.0
        %2958 = vmatprep.subr.mxu0 0.0
        %2959 = vmatpush1.xpose.msra.mxu0 0.0
        %2960 = vmatprep.subr.mxu0 0.0
        %2961 = vmatpush1.xpose.msra.mxu0 0.0
        %2962 = vmatprep.subr.mxu0 0.0
        %2963 = vmatpush1.xpose.msra.mxu0 0.0
        %2964 = vmatprep.subr.mxu0 0.0
        %2965 = vmatpush1.xpose.msra.mxu0 0.0
        %2966 = vmatprep.subr.mxu0 0.0
        %2967 = vmatpush1.xpose.msra.mxu0 0.0
        %2968 = vmatprep.subr.mxu0 0.0
        %2969 = vmatpush1.xpose.msra.mxu0 0.0
        %2970 = vmatprep.subr.mxu0 0.0
        %2971 = vmatpush1.xpose.msra.mxu0 0.0
        %2972 = vmatprep.subr.mxu0 0.0
        %2973 = vmatpush1.xpose.msra.mxu0 0.0
        %2974 = vmatprep.subr.mxu0 0.0
        %2975 = vmatpush1.xpose.msra.mxu0 0.0
        %2976 = vmatprep.subr.mxu0 0.0
        %2977 = vmatpush1.xpose.msra.mxu0 0.0
        %2978 = vmatprep.subr.mxu0 0.0
        %2979 = vmatpush1.xpose.msra.mxu0 0.0
        %2980 = vmatprep.subr.mxu0 0.0
        %2981 = vmatpush1.xpose.msra.mxu0 0.0
        %2982 = vmatprep.subr.mxu0 0.0
        %2983 = vmatpush1.xpose.msra.mxu0 0.0
        %2984 = vmatprep.subr.mxu0 0.0
        %2985 = vmatpush1.xpose.msra.mxu0 0.0
        %2986 = vmatprep.subr.mxu0 0.0
        %2987 = vmatpush1.xpose.msra.mxu0 0.0
        %2988 = vmatprep.subr.mxu0 0.0
        %2989 = vmatpush1.xpose.msra.mxu0 0.0
        %2990 = vmatprep.subr.mxu0 0.0
        %2991 = vmatpush1.xpose.msra.mxu0 0.0
        %2992 = vmatprep.subr.mxu0 0.0
        %2993 = vmatpush1.xpose.msra.mxu0 0.0
        %2994 = vmatprep.subr.mxu0 0.0
        %2995 = vmatpush1.xpose.msra.mxu0 0.0
        %2996 = vmatprep.subr.mxu0 0.0
        %2997 = vmatpush1.xpose.msra.mxu0 0.0
        %2998 = vmatprep.subr.mxu0 0.0
        %2999 = vmatpush1.xpose.msra.mxu0 0.0
        %3000 = vmatprep.subr.mxu0 0.0
        %3001 = vmatpush1.xpose.msra.mxu0 0.0
        %3002 = vmatprep.subr.mxu0 0.0
        %3003 = vmatpush1.xpose.msra.mxu0 0.0
        %3004 = vmatprep.subr.mxu0 0.0
        %3005 = vmatpush1.xpose.msra.mxu0 0.0
        %3006 = vmatprep.subr.mxu0 0.0
        %3007 = vmatpush1.xpose.msra.mxu0 0.0
        %3008 = vmatprep.subr.mxu0 0.0
        %3009 = vmatpush1.xpose.msra.mxu0 0.0
        %3010 = vmatprep.subr.mxu0 0.0
        %3011 = vmatpush1.xpose.msra.mxu0 0.0
        %3012 = vmatprep.subr.mxu0 0.0
        %3013 = vmatpush1.xpose.msra.mxu0 0.0
        %3014 = vmatprep.subr.mxu0 0.0
        %3015 = vmatpush1.xpose.msra.mxu0 0.0
        %3016 = vmatprep.subr.mxu0 0.0
        %3017 = vmatpush1.xpose.msra.mxu0 0.0
        %3018 = vmatprep.mubr.f32.mxu0 0.0
        %v3019 = vand.u32 %v2723, 4294901760
        %v3020 = vsub.f32 %v2723, %v3019
        %v3021 = vand.u32 %v3020, 4294901760
        %3022 = vmatmul.mubr.f32.gmra.mrb[0].mxu0 %v3021
        %v3023 = vpop.f32.mrb[0].mxu0
        %v3024 = vadd.f32 %v2950, %v3023
        %v3025 = vpop.f32.mrb[0].mxu0
        %3026 = vdwg.mxu0
        %3027 = vmatprep.subr.mxu0 0.0
        %v3028 = vand.u32 %v2725, 4294901760
        %v3029 = vsub.f32 %v2725, %v3028
        %v3030 = vand.u32 %v3029, 4294901760
        %3031 = vmatpush1.xpose.msra.mxu0 %v3030
        %3032 = vmatprep.subr.mxu0 0.0
        %3033 = vmatpush1.xpose.msra.mxu0 0.0
        %3034 = vmatprep.subr.mxu0 0.0
        %3035 = vmatpush1.xpose.msra.mxu0 0.0
        %3036 = vmatprep.subr.mxu0 0.0
        %3037 = vmatpush1.xpose.msra.mxu0 0.0
        %3038 = vmatprep.subr.mxu0 0.0
        %3039 = vmatpush1.xpose.msra.mxu0 0.0
        %3040 = vmatprep.subr.mxu0 0.0
        %3041 = vmatpush1.xpose.msra.mxu0 0.0
        %3042 = vmatprep.subr.mxu0 0.0
        %3043 = vmatpush1.xpose.msra.mxu0 0.0
        %3044 = vmatprep.subr.mxu0 0.0
        %3045 = vmatpush1.xpose.msra.mxu0 0.0
        %3046 = vmatprep.subr.mxu0 0.0
        %3047 = vmatpush1.xpose.msra.mxu0 0.0
        %3048 = vmatprep.subr.mxu0 0.0
        %3049 = vmatpush1.xpose.msra.mxu0 0.0
        %3050 = vmatprep.subr.mxu0 0.0
        %3051 = vmatpush1.xpose.msra.mxu0 0.0
        %3052 = vmatprep.subr.mxu0 0.0
        %3053 = vmatpush1.xpose.msra.mxu0 0.0
        %3054 = vmatprep.subr.mxu0 0.0
        %3055 = vmatpush1.xpose.msra.mxu0 0.0
        %3056 = vmatprep.subr.mxu0 0.0
        %3057 = vmatpush1.xpose.msra.mxu0 0.0
        %3058 = vmatprep.subr.mxu0 0.0
        %3059 = vmatpush1.xpose.msra.mxu0 0.0
        %3060 = vmatprep.subr.mxu0 0.0
        %3061 = vmatpush1.xpose.msra.mxu0 0.0
        %3062 = vmatprep.subr.mxu0 0.0
        %3063 = vmatpush1.xpose.msra.mxu0 0.0
        %3064 = vmatprep.subr.mxu0 0.0
        %3065 = vmatpush1.xpose.msra.mxu0 0.0
        %3066 = vmatprep.subr.mxu0 0.0
        %3067 = vmatpush1.xpose.msra.mxu0 0.0
        %3068 = vmatprep.subr.mxu0 0.0
        %3069 = vmatpush1.xpose.msra.mxu0 0.0
        %3070 = vmatprep.subr.mxu0 0.0
        %3071 = vmatpush1.xpose.msra.mxu0 0.0
        %3072 = vmatprep.subr.mxu0 0.0
        %3073 = vmatpush1.xpose.msra.mxu0 0.0
        %3074 = vmatprep.subr.mxu0 0.0
        %3075 = vmatpush1.xpose.msra.mxu0 0.0
        %3076 = vmatprep.subr.mxu0 0.0
        %3077 = vmatpush1.xpose.msra.mxu0 0.0
        %3078 = vmatprep.subr.mxu0 0.0
        %3079 = vmatpush1.xpose.msra.mxu0 0.0
        %3080 = vmatprep.subr.mxu0 0.0
        %3081 = vmatpush1.xpose.msra.mxu0 0.0
        %3082 = vmatprep.subr.mxu0 0.0
        %3083 = vmatpush1.xpose.msra.mxu0 0.0
        %3084 = vmatprep.subr.mxu0 0.0
        %3085 = vmatpush1.xpose.msra.mxu0 0.0
        %3086 = vmatprep.subr.mxu0 0.0
        %3087 = vmatpush1.xpose.msra.mxu0 0.0
        %3088 = vmatprep.subr.mxu0 0.0
        %3089 = vmatpush1.xpose.msra.mxu0 0.0
        %3090 = vmatprep.subr.mxu0 0.0
        %3091 = vmatpush1.xpose.msra.mxu0 0.0
        %3092 = vmatprep.subr.mxu0 0.0
        %3093 = vmatpush1.xpose.msra.mxu0 0.0
        %3094 = vmatprep.mubr.f32.mxu0 0.0
        %v3095 = vand.u32 %v2723, 4294901760
        %3096 = vmatmul.mubr.f32.gmra.mrb[0].mxu0 %v3095
        %v3097 = vpop.f32.mrb[0].mxu0
        %v3098 = vadd.f32 %v3024, %v3097
        %v3099 = vpop.f32.mrb[0].mxu0
        %3100 = vdwg.mxu0
        %3101 = vmatprep.subr.mxu0 0.0
        %v3102 = vand.u32 %v2725, 4294901760
        %3103 = vmatpush1.xpose.msra.mxu0 %v3102
        %3104 = vmatprep.subr.mxu0 0.0
        %3105 = vmatpush1.xpose.msra.mxu0 0.0
        %3106 = vmatprep.subr.mxu0 0.0
        %3107 = vmatpush1.xpose.msra.mxu0 0.0
        %3108 = vmatprep.subr.mxu0 0.0
        %3109 = vmatpush1.xpose.msra.mxu0 0.0
        %3110 = vmatprep.subr.mxu0 0.0
        %3111 = vmatpush1.xpose.msra.mxu0 0.0
        %3112 = vmatprep.subr.mxu0 0.0
        %3113 = vmatpush1.xpose.msra.mxu0 0.0
        %3114 = vmatprep.subr.mxu0 0.0
        %3115 = vmatpush1.xpose.msra.mxu0 0.0
        %3116 = vmatprep.subr.mxu0 0.0
        %3117 = vmatpush1.xpose.msra.mxu0 0.0
        %3118 = vmatprep.subr.mxu0 0.0
        %3119 = vmatpush1.xpose.msra.mxu0 0.0
        %3120 = vmatprep.subr.mxu0 0.0
        %3121 = vmatpush1.xpose.msra.mxu0 0.0
        %3122 = vmatprep.subr.mxu0 0.0
        %3123 = vmatpush1.xpose.msra.mxu0 0.0
        %3124 = vmatprep.subr.mxu0 0.0
        %3125 = vmatpush1.xpose.msra.mxu0 0.0
        %3126 = vmatprep.subr.mxu0 0.0
        %3127 = vmatpush1.xpose.msra.mxu0 0.0
        %3128 = vmatprep.subr.mxu0 0.0
        %3129 = vmatpush1.xpose.msra.mxu0 0.0
        %3130 = vmatprep.subr.mxu0 0.0
        %3131 = vmatpush1.xpose.msra.mxu0 0.0
        %3132 = vmatprep.subr.mxu0 0.0
        %3133 = vmatpush1.xpose.msra.mxu0 0.0
        %3134 = vmatprep.subr.mxu0 0.0
        %3135 = vmatpush1.xpose.msra.mxu0 0.0
        %3136 = vmatprep.subr.mxu0 0.0
        %3137 = vmatpush1.xpose.msra.mxu0 0.0
        %3138 = vmatprep.subr.mxu0 0.0
        %3139 = vmatpush1.xpose.msra.mxu0 0.0
        %3140 = vmatprep.subr.mxu0 0.0
        %3141 = vmatpush1.xpose.msra.mxu0 0.0
        %3142 = vmatprep.subr.mxu0 0.0
        %3143 = vmatpush1.xpose.msra.mxu0 0.0
        %3144 = vmatprep.subr.mxu0 0.0
        %3145 = vmatpush1.xpose.msra.mxu0 0.0
        %3146 = vmatprep.subr.mxu0 0.0
        %3147 = vmatpush1.xpose.msra.mxu0 0.0
        %3148 = vmatprep.subr.mxu0 0.0
        %3149 = vmatpush1.xpose.msra.mxu0 0.0
        %3150 = vmatprep.subr.mxu0 0.0
        %3151 = vmatpush1.xpose.msra.mxu0 0.0
        %3152 = vmatprep.subr.mxu0 0.0
        %3153 = vmatpush1.xpose.msra.mxu0 0.0
        %3154 = vmatprep.subr.mxu0 0.0
        %3155 = vmatpush1.xpose.msra.mxu0 0.0
        %3156 = vmatprep.subr.mxu0 0.0
        %3157 = vmatpush1.xpose.msra.mxu0 0.0
        %3158 = vmatprep.subr.mxu0 0.0
        %3159 = vmatpush1.xpose.msra.mxu0 0.0
        %3160 = vmatprep.subr.mxu0 0.0
        %3161 = vmatpush1.xpose.msra.mxu0 0.0
        %3162 = vmatprep.subr.mxu0 0.0
        %3163 = vmatpush1.xpose.msra.mxu0 0.0
        %3164 = vmatprep.subr.mxu0 0.0
        %3165 = vmatpush1.xpose.msra.mxu0 0.0
        %3166 = vmatprep.mubr.f32.mxu0 0.0
        %v3167 = vand.u32 %v2723, 4294901760
        %3168 = vmatmul.mubr.f32.gmra.mrb[0].mxu0 %v3167
        %v3169 = vpop.f32.mrb[0].mxu0
        %v3170 = vadd.f32 %v3098, %v3169
        %v3171 = vpop.f32.mrb[0].mxu0
        %3172 = vdwg.mxu0
        %v3173 = vsel %vm1372, %v1350, 0
        %v3175 = vsel %vm1372, %v1365, 0
        %3177 = vmatprep.subr.mxu0 0.0
        %v3178 = vand.u32 %v3175, 4294901760
        %3179 = vmatpush1.xpose.msra.mxu0 %v3178
        %3180 = vmatprep.subr.mxu0 0.0
        %3181 = vmatpush1.xpose.msra.mxu0 0.0
        %3182 = vmatprep.subr.mxu0 0.0
        %3183 = vmatpush1.xpose.msra.mxu0 0.0
        %3184 = vmatprep.subr.mxu0 0.0
        %3185 = vmatpush1.xpose.msra.mxu0 0.0
        %3186 = vmatprep.subr.mxu0 0.0
        %3187 = vmatpush1.xpose.msra.mxu0 0.0
        %3188 = vmatprep.subr.mxu0 0.0
        %3189 = vmatpush1.xpose.msra.mxu0 0.0
        %3190 = vmatprep.subr.mxu0 0.0
        %3191 = vmatpush1.xpose.msra.mxu0 0.0
        %3192 = vmatprep.subr.mxu0 0.0
        %3193 = vmatpush1.xpose.msra.mxu0 0.0
        %3194 = vmatprep.subr.mxu0 0.0
        %3195 = vmatpush1.xpose.msra.mxu0 0.0
        %3196 = vmatprep.subr.mxu0 0.0
        %3197 = vmatpush1.xpose.msra.mxu0 0.0
        %3198 = vmatprep.subr.mxu0 0.0
        %3199 = vmatpush1.xpose.msra.mxu0 0.0
        %3200 = vmatprep.subr.mxu0 0.0
        %3201 = vmatpush1.xpose.msra.mxu0 0.0
        %3202 = vmatprep.subr.mxu0 0.0
        %3203 = vmatpush1.xpose.msra.mxu0 0.0
        %3204 = vmatprep.subr.mxu0 0.0
        %3205 = vmatpush1.xpose.msra.mxu0 0.0
        %3206 = vmatprep.subr.mxu0 0.0
        %3207 = vmatpush1.xpose.msra.mxu0 0.0
        %3208 = vmatprep.subr.mxu0 0.0
        %3209 = vmatpush1.xpose.msra.mxu0 0.0
        %3210 = vmatprep.subr.mxu0 0.0
        %3211 = vmatpush1.xpose.msra.mxu0 0.0
        %3212 = vmatprep.subr.mxu0 0.0
        %3213 = vmatpush1.xpose.msra.mxu0 0.0
        %3214 = vmatprep.subr.mxu0 0.0
        %3215 = vmatpush1.xpose.msra.mxu0 0.0
        %3216 = vmatprep.subr.mxu0 0.0
        %3217 = vmatpush1.xpose.msra.mxu0 0.0
        %3218 = vmatprep.subr.mxu0 0.0
        %3219 = vmatpush1.xpose.msra.mxu0 0.0
        %3220 = vmatprep.subr.mxu0 0.0
        %3221 = vmatpush1.xpose.msra.mxu0 0.0
        %3222 = vmatprep.subr.mxu0 0.0
        %3223 = vmatpush1.xpose.msra.mxu0 0.0
        %3224 = vmatprep.subr.mxu0 0.0
        %3225 = vmatpush1.xpose.msra.mxu0 0.0
        %3226 = vmatprep.subr.mxu0 0.0
        %3227 = vmatpush1.xpose.msra.mxu0 0.0
        %3228 = vmatprep.subr.mxu0 0.0
        %3229 = vmatpush1.xpose.msra.mxu0 0.0
        %3230 = vmatprep.subr.mxu0 0.0
        %3231 = vmatpush1.xpose.msra.mxu0 0.0
        %3232 = vmatprep.subr.mxu0 0.0
        %3233 = vmatpush1.xpose.msra.mxu0 0.0
        %3234 = vmatprep.subr.mxu0 0.0
        %3235 = vmatpush1.xpose.msra.mxu0 0.0
        %3236 = vmatprep.subr.mxu0 0.0
        %3237 = vmatpush1.xpose.msra.mxu0 0.0
        %3238 = vmatprep.subr.mxu0 0.0
        %3239 = vmatpush1.xpose.msra.mxu0 0.0
        %3240 = vmatprep.subr.mxu0 0.0
        %3241 = vmatpush1.xpose.msra.mxu0 0.0
        %3242 = vmatprep.mubr.f32.mxu0 0.0
        %v3243 = vand.u32 %v3173, 4294901760
        %v3244 = vsub.f32 %v3173, %v3243
        %v3245 = vand.u32 %v3244, 4294901760
        %v3246 = vsub.f32 %v3244, %v3245
        %v3247 = vand.u32 %v3246, 4294901760
        %3248 = vmatmul.mubr.f32.gmra.mrb[0].mxu0 %v3247
        %v3249 = vpop.f32.mrb[0].mxu0
        %v3250 = vadd.f32 0.0, %v3249
        %v3251 = vpop.f32.mrb[0].mxu0
        %3252 = vdwg.mxu0
        %3253 = vmatprep.subr.mxu0 0.0
        %v3254 = vand.u32 %v3175, 4294901760
        %v3255 = vsub.f32 %v3175, %v3254
        %v3256 = vand.u32 %v3255, 4294901760
        %v3257 = vsub.f32 %v3255, %v3256
        %v3258 = vand.u32 %v3257, 4294901760
        %3259 = vmatpush1.xpose.msra.mxu0 %v3258
        %3260 = vmatprep.subr.mxu0 0.0
        %3261 = vmatpush1.xpose.msra.mxu0 0.0
        %3262 = vmatprep.subr.mxu0 0.0
        %3263 = vmatpush1.xpose.msra.mxu0 0.0
        %3264 = vmatprep.subr.mxu0 0.0
        %3265 = vmatpush1.xpose.msra.mxu0 0.0
        %3266 = vmatprep.subr.mxu0 0.0
        %3267 = vmatpush1.xpose.msra.mxu0 0.0
        %3268 = vmatprep.subr.mxu0 0.0
        %3269 = vmatpush1.xpose.msra.mxu0 0.0
        %3270 = vmatprep.subr.mxu0 0.0
        %3271 = vmatpush1.xpose.msra.mxu0 0.0
        %3272 = vmatprep.subr.mxu0 0.0
        %3273 = vmatpush1.xpose.msra.mxu0 0.0
        %3274 = vmatprep.subr.mxu0 0.0
        %3275 = vmatpush1.xpose.msra.mxu0 0.0
        %3276 = vmatprep.subr.mxu0 0.0
        %3277 = vmatpush1.xpose.msra.mxu0 0.0
        %3278 = vmatprep.subr.mxu0 0.0
        %3279 = vmatpush1.xpose.msra.mxu0 0.0
        %3280 = vmatprep.subr.mxu0 0.0
        %3281 = vmatpush1.xpose.msra.mxu0 0.0
        %3282 = vmatprep.subr.mxu0 0.0
        %3283 = vmatpush1.xpose.msra.mxu0 0.0
        %3284 = vmatprep.subr.mxu0 0.0
        %3285 = vmatpush1.xpose.msra.mxu0 0.0
        %3286 = vmatprep.subr.mxu0 0.0
        %3287 = vmatpush1.xpose.msra.mxu0 0.0
        %3288 = vmatprep.subr.mxu0 0.0
        %3289 = vmatpush1.xpose.msra.mxu0 0.0
        %3290 = vmatprep.subr.mxu0 0.0
        %3291 = vmatpush1.xpose.msra.mxu0 0.0
        %3292 = vmatprep.subr.mxu0 0.0
        %3293 = vmatpush1.xpose.msra.mxu0 0.0
        %3294 = vmatprep.subr.mxu0 0.0
        %3295 = vmatpush1.xpose.msra.mxu0 0.0
        %3296 = vmatprep.subr.mxu0 0.0
        %3297 = vmatpush1.xpose.msra.mxu0 0.0
        %3298 = vmatprep.subr.mxu0 0.0
        %3299 = vmatpush1.xpose.msra.mxu0 0.0
        %3300 = vmatprep.subr.mxu0 0.0
        %3301 = vmatpush1.xpose.msra.mxu0 0.0
        %3302 = vmatprep.subr.mxu0 0.0
        %3303 = vmatpush1.xpose.msra.mxu0 0.0
        %3304 = vmatprep.subr.mxu0 0.0
        %3305 = vmatpush1.xpose.msra.mxu0 0.0
        %3306 = vmatprep.subr.mxu0 0.0
        %3307 = vmatpush1.xpose.msra.mxu0 0.0
        %3308 = vmatprep.subr.mxu0 0.0
        %3309 = vmatpush1.xpose.msra.mxu0 0.0
        %3310 = vmatprep.subr.mxu0 0.0
        %3311 = vmatpush1.xpose.msra.mxu0 0.0
        %3312 = vmatprep.subr.mxu0 0.0
        %3313 = vmatpush1.xpose.msra.mxu0 0.0
        %3314 = vmatprep.subr.mxu0 0.0
        %3315 = vmatpush1.xpose.msra.mxu0 0.0
        %3316 = vmatprep.subr.mxu0 0.0
        %3317 = vmatpush1.xpose.msra.mxu0 0.0
        %3318 = vmatprep.subr.mxu0 0.0
        %3319 = vmatpush1.xpose.msra.mxu0 0.0
        %3320 = vmatprep.subr.mxu0 0.0
        %3321 = vmatpush1.xpose.msra.mxu0 0.0
        %3322 = vmatprep.mubr.f32.mxu0 0.0
        %v3323 = vand.u32 %v3173, 4294901760
        %3324 = vmatmul.mubr.f32.gmra.mrb[0].mxu0 %v3323
        %v3325 = vpop.f32.mrb[0].mxu0
        %v3326 = vadd.f32 %v3250, %v3325
        %v3327 = vpop.f32.mrb[0].mxu0
        %3328 = vdwg.mxu0
        %3329 = vmatprep.subr.mxu0 0.0
        %v3330 = vand.u32 %v3175, 4294901760
        %v3331 = vsub.f32 %v3175, %v3330
        %3332 = vmatpush1.xpose.msra.mxu0 %v3331
        %3333 = vmatprep.subr.mxu0 0.0
        %3334 = vmatpush1.xpose.msra.mxu0 0.0
        %3335 = vmatprep.subr.mxu0 0.0
        %3336 = vmatpush1.xpose.msra.mxu0 0.0
        %3337 = vmatprep.subr.mxu0 0.0
        %3338 = vmatpush1.xpose.msra.mxu0 0.0
        %3339 = vmatprep.subr.mxu0 0.0
        %3340 = vmatpush1.xpose.msra.mxu0 0.0
        %3341 = vmatprep.subr.mxu0 0.0
        %3342 = vmatpush1.xpose.msra.mxu0 0.0
        %3343 = vmatprep.subr.mxu0 0.0
        %3344 = vmatpush1.xpose.msra.mxu0 0.0
        %3345 = vmatprep.subr.mxu0 0.0
        %3346 = vmatpush1.xpose.msra.mxu0 0.0
        %3347 = vmatprep.subr.mxu0 0.0
        %3348 = vmatpush1.xpose.msra.mxu0 0.0
        %3349 = vmatprep.subr.mxu0 0.0
        %3350 = vmatpush1.xpose.msra.mxu0 0.0
        %3351 = vmatprep.subr.mxu0 0.0
        %3352 = vmatpush1.xpose.msra.mxu0 0.0
        %3353 = vmatprep.subr.mxu0 0.0
        %3354 = vmatpush1.xpose.msra.mxu0 0.0
        %3355 = vmatprep.subr.mxu0 0.0
        %3356 = vmatpush1.xpose.msra.mxu0 0.0
        %3357 = vmatprep.subr.mxu0 0.0
        %3358 = vmatpush1.xpose.msra.mxu0 0.0
        %3359 = vmatprep.subr.mxu0 0.0
        %3360 = vmatpush1.xpose.msra.mxu0 0.0
        %3361 = vmatprep.subr.mxu0 0.0
        %3362 = vmatpush1.xpose.msra.mxu0 0.0
        %3363 = vmatprep.subr.mxu0 0.0
        %3364 = vmatpush1.xpose.msra.mxu0 0.0
        %3365 = vmatprep.subr.mxu0 0.0
        %3366 = vmatpush1.xpose.msra.mxu0 0.0
        %3367 = vmatprep.subr.mxu0 0.0
        %3368 = vmatpush1.xpose.msra.mxu0 0.0
        %3369 = vmatprep.subr.mxu0 0.0
        %3370 = vmatpush1.xpose.msra.mxu0 0.0
        %3371 = vmatprep.subr.mxu0 0.0
        %3372 = vmatpush1.xpose.msra.mxu0 0.0
        %3373 = vmatprep.subr.mxu0 0.0
        %3374 = vmatpush1.xpose.msra.mxu0 0.0
        %3375 = vmatprep.subr.mxu0 0.0
        %3376 = vmatpush1.xpose.msra.mxu0 0.0
        %3377 = vmatprep.subr.mxu0 0.0
        %3378 = vmatpush1.xpose.msra.mxu0 0.0
        %3379 = vmatprep.subr.mxu0 0.0
        %3380 = vmatpush1.xpose.msra.mxu0 0.0
        %3381 = vmatprep.subr.mxu0 0.0
        %3382 = vmatpush1.xpose.msra.mxu0 0.0
        %3383 = vmatprep.subr.mxu0 0.0
        %3384 = vmatpush1.xpose.msra.mxu0 0.0
        %3385 = vmatprep.subr.mxu0 0.0
        %3386 = vmatpush1.xpose.msra.mxu0 0.0
        %3387 = vmatprep.subr.mxu0 0.0
        %3388 = vmatpush1.xpose.msra.mxu0 0.0
        %3389 = vmatprep.subr.mxu0 0.0
        %3390 = vmatpush1.xpose.msra.mxu0 0.0
        %3391 = vmatprep.subr.mxu0 0.0
        %3392 = vmatpush1.xpose.msra.mxu0 0.0
        %3393 = vmatprep.subr.mxu0 0.0
        %3394 = vmatpush1.xpose.msra.mxu0 0.0
        %3395 = vmatprep.mubr.f32.mxu0 0.0
        %v3396 = vand.u32 %v3173, 4294901760
        %v3397 = vsub.f32 %v3173, %v3396
        %3398 = vmatmul.mubr.f32.gmra.mrb[0].mxu0 %v3397
        %v3399 = vpop.f32.mrb[0].mxu0
        %v3400 = vadd.f32 %v3326, %v3399
        %v3401 = vpop.f32.mrb[0].mxu0
        %3402 = vdwg.mxu0
        %3403 = vmatprep.subr.mxu0 0.0
        %v3404 = vand.u32 %v3175, 4294901760
        %3405 = vmatpush1.xpose.msra.mxu0 %v3404
        %3406 = vmatprep.subr.mxu0 0.0
        %3407 = vmatpush1.xpose.msra.mxu0 0.0
        %3408 = vmatprep.subr.mxu0 0.0
        %3409 = vmatpush1.xpose.msra.mxu0 0.0
        %3410 = vmatprep.subr.mxu0 0.0
        %3411 = vmatpush1.xpose.msra.mxu0 0.0
        %3412 = vmatprep.subr.mxu0 0.0
        %3413 = vmatpush1.xpose.msra.mxu0 0.0
        %3414 = vmatprep.subr.mxu0 0.0
        %3415 = vmatpush1.xpose.msra.mxu0 0.0
        %3416 = vmatprep.subr.mxu0 0.0
        %3417 = vmatpush1.xpose.msra.mxu0 0.0
        %3418 = vmatprep.subr.mxu0 0.0
        %3419 = vmatpush1.xpose.msra.mxu0 0.0
        %3420 = vmatprep.subr.mxu0 0.0
        %3421 = vmatpush1.xpose.msra.mxu0 0.0
        %3422 = vmatprep.subr.mxu0 0.0
        %3423 = vmatpush1.xpose.msra.mxu0 0.0
        %3424 = vmatprep.subr.mxu0 0.0
        %3425 = vmatpush1.xpose.msra.mxu0 0.0
        %3426 = vmatprep.subr.mxu0 0.0
        %3427 = vmatpush1.xpose.msra.mxu0 0.0
        %3428 = vmatprep.subr.mxu0 0.0
        %3429 = vmatpush1.xpose.msra.mxu0 0.0
        %3430 = vmatprep.subr.mxu0 0.0
        %3431 = vmatpush1.xpose.msra.mxu0 0.0
        %3432 = vmatprep.subr.mxu0 0.0
        %3433 = vmatpush1.xpose.msra.mxu0 0.0
        %3434 = vmatprep.subr.mxu0 0.0
        %3435 = vmatpush1.xpose.msra.mxu0 0.0
        %3436 = vmatprep.subr.mxu0 0.0
        %3437 = vmatpush1.xpose.msra.mxu0 0.0
        %3438 = vmatprep.subr.mxu0 0.0
        %3439 = vmatpush1.xpose.msra.mxu0 0.0
        %3440 = vmatprep.subr.mxu0 0.0
        %3441 = vmatpush1.xpose.msra.mxu0 0.0
        %3442 = vmatprep.subr.mxu0 0.0
        %3443 = vmatpush1.xpose.msra.mxu0 0.0
        %3444 = vmatprep.subr.mxu0 0.0
        %3445 = vmatpush1.xpose.msra.mxu0 0.0
        %3446 = vmatprep.subr.mxu0 0.0
        %3447 = vmatpush1.xpose.msra.mxu0 0.0
        %3448 = vmatprep.subr.mxu0 0.0
        %3449 = vmatpush1.xpose.msra.mxu0 0.0
        %3450 = vmatprep.subr.mxu0 0.0
        %3451 = vmatpush1.xpose.msra.mxu0 0.0
        %3452 = vmatprep.subr.mxu0 0.0
        %3453 = vmatpush1.xpose.msra.mxu0 0.0
        %3454 = vmatprep.subr.mxu0 0.0
        %3455 = vmatpush1.xpose.msra.mxu0 0.0
        %3456 = vmatprep.subr.mxu0 0.0
        %3457 = vmatpush1.xpose.msra.mxu0 0.0
        %3458 = vmatprep.subr.mxu0 0.0
        %3459 = vmatpush1.xpose.msra.mxu0 0.0
        %3460 = vmatprep.subr.mxu0 0.0
        %3461 = vmatpush1.xpose.msra.mxu0 0.0
        %3462 = vmatprep.subr.mxu0 0.0
        %3463 = vmatpush1.xpose.msra.mxu0 0.0
        %3464 = vmatprep.subr.mxu0 0.0
        %3465 = vmatpush1.xpose.msra.mxu0 0.0
        %3466 = vmatprep.subr.mxu0 0.0
        %3467 = vmatpush1.xpose.msra.mxu0 0.0
        %3468 = vmatprep.mubr.f32.mxu0 0.0
        %v3469 = vand.u32 %v3173, 4294901760
        %v3470 = vsub.f32 %v3173, %v3469
        %v3471 = vand.u32 %v3470, 4294901760
        %3472 = vmatmul.mubr.f32.gmra.mrb[0].mxu0 %v3471
        %v3473 = vpop.f32.mrb[0].mxu0
        %v3474 = vadd.f32 %v3400, %v3473
        %v3475 = vpop.f32.mrb[0].mxu0
        %3476 = vdwg.mxu0
        %3477 = vmatprep.subr.mxu0 0.0
        %v3478 = vand.u32 %v3175, 4294901760
        %v3479 = vsub.f32 %v3175, %v3478
        %v3480 = vand.u32 %v3479, 4294901760
        %3481 = vmatpush1.xpose.msra.mxu0 %v3480
        %3482 = vmatprep.subr.mxu0 0.0
        %3483 = vmatpush1.xpose.msra.mxu0 0.0
        %3484 = vmatprep.subr.mxu0 0.0
        %3485 = vmatpush1.xpose.msra.mxu0 0.0
        %3486 = vmatprep.subr.mxu0 0.0
        %3487 = vmatpush1.xpose.msra.mxu0 0.0
        %3488 = vmatprep.subr.mxu0 0.0
        %3489 = vmatpush1.xpose.msra.mxu0 0.0
        %3490 = vmatprep.subr.mxu0 0.0
        %3491 = vmatpush1.xpose.msra.mxu0 0.0
        %3492 = vmatprep.subr.mxu0 0.0
        %3493 = vmatpush1.xpose.msra.mxu0 0.0
        %3494 = vmatprep.subr.mxu0 0.0
        %3495 = vmatpush1.xpose.msra.mxu0 0.0
        %3496 = vmatprep.subr.mxu0 0.0
        %3497 = vmatpush1.xpose.msra.mxu0 0.0
        %3498 = vmatprep.subr.mxu0 0.0
        %3499 = vmatpush1.xpose.msra.mxu0 0.0
        %3500 = vmatprep.subr.mxu0 0.0
        %3501 = vmatpush1.xpose.msra.mxu0 0.0
        %3502 = vmatprep.subr.mxu0 0.0
        %3503 = vmatpush1.xpose.msra.mxu0 0.0
        %3504 = vmatprep.subr.mxu0 0.0
        %3505 = vmatpush1.xpose.msra.mxu0 0.0
        %3506 = vmatprep.subr.mxu0 0.0
        %3507 = vmatpush1.xpose.msra.mxu0 0.0
        %3508 = vmatprep.subr.mxu0 0.0
        %3509 = vmatpush1.xpose.msra.mxu0 0.0
        %3510 = vmatprep.subr.mxu0 0.0
        %3511 = vmatpush1.xpose.msra.mxu0 0.0
        %3512 = vmatprep.subr.mxu0 0.0
        %3513 = vmatpush1.xpose.msra.mxu0 0.0
        %3514 = vmatprep.subr.mxu0 0.0
        %3515 = vmatpush1.xpose.msra.mxu0 0.0
        %3516 = vmatprep.subr.mxu0 0.0
        %3517 = vmatpush1.xpose.msra.mxu0 0.0
        %3518 = vmatprep.subr.mxu0 0.0
        %3519 = vmatpush1.xpose.msra.mxu0 0.0
        %3520 = vmatprep.subr.mxu0 0.0
        %3521 = vmatpush1.xpose.msra.mxu0 0.0
        %3522 = vmatprep.subr.mxu0 0.0
        %3523 = vmatpush1.xpose.msra.mxu0 0.0
        %3524 = vmatprep.subr.mxu0 0.0
        %3525 = vmatpush1.xpose.msra.mxu0 0.0
        %3526 = vmatprep.subr.mxu0 0.0
        %3527 = vmatpush1.xpose.msra.mxu0 0.0
        %3528 = vmatprep.subr.mxu0 0.0
        %3529 = vmatpush1.xpose.msra.mxu0 0.0
        %3530 = vmatprep.subr.mxu0 0.0
        %3531 = vmatpush1.xpose.msra.mxu0 0.0
        %3532 = vmatprep.subr.mxu0 0.0
        %3533 = vmatpush1.xpose.msra.mxu0 0.0
        %3534 = vmatprep.subr.mxu0 0.0
        %3535 = vmatpush1.xpose.msra.mxu0 0.0
        %3536 = vmatprep.subr.mxu0 0.0
        %3537 = vmatpush1.xpose.msra.mxu0 0.0
        %3538 = vmatprep.subr.mxu0 0.0
        %3539 = vmatpush1.xpose.msra.mxu0 0.0
        %3540 = vmatprep.subr.mxu0 0.0
        %3541 = vmatpush1.xpose.msra.mxu0 0.0
        %3542 = vmatprep.subr.mxu0 0.0
        %3543 = vmatpush1.xpose.msra.mxu0 0.0
        %3544 = vmatprep.mubr.f32.mxu0 0.0
        %v3545 = vand.u32 %v3173, 4294901760
        %3546 = vmatmul.mubr.f32.gmra.mrb[0].mxu0 %v3545
        %v3547 = vpop.f32.mrb[0].mxu0
        %v3548 = vadd.f32 %v3474, %v3547
        %v3549 = vpop.f32.mrb[0].mxu0
        %3550 = vdwg.mxu0
        %3551 = vmatprep.subr.mxu0 0.0
        %v3552 = vand.u32 %v3175, 4294901760
        %3553 = vmatpush1.xpose.msra.mxu0 %v3552
        %3554 = vmatprep.subr.mxu0 0.0
        %3555 = vmatpush1.xpose.msra.mxu0 0.0
        %3556 = vmatprep.subr.mxu0 0.0
        %3557 = vmatpush1.xpose.msra.mxu0 0.0
        %3558 = vmatprep.subr.mxu0 0.0
        %3559 = vmatpush1.xpose.msra.mxu0 0.0
        %3560 = vmatprep.subr.mxu0 0.0
        %3561 = vmatpush1.xpose.msra.mxu0 0.0
        %3562 = vmatprep.subr.mxu0 0.0
        %3563 = vmatpush1.xpose.msra.mxu0 0.0
        %3564 = vmatprep.subr.mxu0 0.0
        %3565 = vmatpush1.xpose.msra.mxu0 0.0
        %3566 = vmatprep.subr.mxu0 0.0
        %3567 = vmatpush1.xpose.msra.mxu0 0.0
        %3568 = vmatprep.subr.mxu0 0.0
        %3569 = vmatpush1.xpose.msra.mxu0 0.0
        %3570 = vmatprep.subr.mxu0 0.0
        %3571 = vmatpush1.xpose.msra.mxu0 0.0
        %3572 = vmatprep.subr.mxu0 0.0
        %3573 = vmatpush1.xpose.msra.mxu0 0.0
        %3574 = vmatprep.subr.mxu0 0.0
        %3575 = vmatpush1.xpose.msra.mxu0 0.0
        %3576 = vmatprep.subr.mxu0 0.0
        %3577 = vmatpush1.xpose.msra.mxu0 0.0
        %3578 = vmatprep.subr.mxu0 0.0
        %3579 = vmatpush1.xpose.msra.mxu0 0.0
        %3580 = vmatprep.subr.mxu0 0.0
        %3581 = vmatpush1.xpose.msra.mxu0 0.0
        %3582 = vmatprep.subr.mxu0 0.0
        %3583 = vmatpush1.xpose.msra.mxu0 0.0
        %3584 = vmatprep.subr.mxu0 0.0
        %3585 = vmatpush1.xpose.msra.mxu0 0.0
        %3586 = vmatprep.subr.mxu0 0.0
        %3587 = vmatpush1.xpose.msra.mxu0 0.0
        %3588 = vmatprep.subr.mxu0 0.0
        %3589 = vmatpush1.xpose.msra.mxu0 0.0
        %3590 = vmatprep.subr.mxu0 0.0
        %3591 = vmatpush1.xpose.msra.mxu0 0.0
        %3592 = vmatprep.subr.mxu0 0.0
        %3593 = vmatpush1.xpose.msra.mxu0 0.0
        %3594 = vmatprep.subr.mxu0 0.0
        %3595 = vmatpush1.xpose.msra.mxu0 0.0
        %3596 = vmatprep.subr.mxu0 0.0
        %3597 = vmatpush1.xpose.msra.mxu0 0.0
        %3598 = vmatprep.subr.mxu0 0.0
        %3599 = vmatpush1.xpose.msra.mxu0 0.0
        %3600 = vmatprep.subr.mxu0 0.0
        %3601 = vmatpush1.xpose.msra.mxu0 0.0
        %3602 = vmatprep.subr.mxu0 0.0
        %3603 = vmatpush1.xpose.msra.mxu0 0.0
        %3604 = vmatprep.subr.mxu0 0.0
        %3605 = vmatpush1.xpose.msra.mxu0 0.0
        %3606 = vmatprep.subr.mxu0 0.0
        %3607 = vmatpush1.xpose.msra.mxu0 0.0
        %3608 = vmatprep.subr.mxu0 0.0
        %3609 = vmatpush1.xpose.msra.mxu0 0.0
        %3610 = vmatprep.subr.mxu0 0.0
        %3611 = vmatpush1.xpose.msra.mxu0 0.0
        %3612 = vmatprep.subr.mxu0 0.0
        %3613 = vmatpush1.xpose.msra.mxu0 0.0
        %3614 = vmatprep.subr.mxu0 0.0
        %3615 = vmatpush1.xpose.msra.mxu0 0.0
        %3616 = vmatprep.mubr.f32.mxu0 0.0
        %v3617 = vand.u32 %v3173, 4294901760
        %3618 = vmatmul.mubr.f32.gmra.mrb[0].mxu0 %v3617
        %v3619 = vpop.f32.mrb[0].mxu0
        %v3620 = vadd.f32 %v3548, %v3619
        %v3621 = vpop.f32.mrb[0].mxu0
        %3622 = vdwg.mxu0
        %v3623 = vsel %vm1372, %v1352, 0
        %v3625 = vsel %vm1372, %v1367, 0
        %3627 = vmatprep.subr.mxu0 0.0
        %v3628 = vand.u32 %v3625, 4294901760
        %3629 = vmatpush1.xpose.msra.mxu0 %v3628
        %3630 = vmatprep.subr.mxu0 0.0
        %3631 = vmatpush1.xpose.msra.mxu0 0.0
        %3632 = vmatprep.subr.mxu0 0.0
        %3633 = vmatpush1.xpose.msra.mxu0 0.0
        %3634 = vmatprep.subr.mxu0 0.0
        %3635 = vmatpush1.xpose.msra.mxu0 0.0
        %3636 = vmatprep.subr.mxu0 0.0
        %3637 = vmatpush1.xpose.msra.mxu0 0.0
        %3638 = vmatprep.subr.mxu0 0.0
        %3639 = vmatpush1.xpose.msra.mxu0 0.0
        %3640 = vmatprep.subr.mxu0 0.0
        %3641 = vmatpush1.xpose.msra.mxu0 0.0
        %3642 = vmatprep.subr.mxu0 0.0
        %3643 = vmatpush1.xpose.msra.mxu0 0.0
        %3644 = vmatprep.subr.mxu0 0.0
        %3645 = vmatpush1.xpose.msra.mxu0 0.0
        %3646 = vmatprep.subr.mxu0 0.0
        %3647 = vmatpush1.xpose.msra.mxu0 0.0
        %3648 = vmatprep.subr.mxu0 0.0
        %3649 = vmatpush1.xpose.msra.mxu0 0.0
        %3650 = vmatprep.subr.mxu0 0.0
        %3651 = vmatpush1.xpose.msra.mxu0 0.0
        %3652 = vmatprep.subr.mxu0 0.0
        %3653 = vmatpush1.xpose.msra.mxu0 0.0
        %3654 = vmatprep.subr.mxu0 0.0
        %3655 = vmatpush1.xpose.msra.mxu0 0.0
        %3656 = vmatprep.subr.mxu0 0.0
        %3657 = vmatpush1.xpose.msra.mxu0 0.0
        %3658 = vmatprep.subr.mxu0 0.0
        %3659 = vmatpush1.xpose.msra.mxu0 0.0
        %3660 = vmatprep.subr.mxu0 0.0
        %3661 = vmatpush1.xpose.msra.mxu0 0.0
        %3662 = vmatprep.subr.mxu0 0.0
        %3663 = vmatpush1.xpose.msra.mxu0 0.0
        %3664 = vmatprep.subr.mxu0 0.0
        %3665 = vmatpush1.xpose.msra.mxu0 0.0
        %3666 = vmatprep.subr.mxu0 0.0
        %3667 = vmatpush1.xpose.msra.mxu0 0.0
        %3668 = vmatprep.subr.mxu0 0.0
        %3669 = vmatpush1.xpose.msra.mxu0 0.0
        %3670 = vmatprep.subr.mxu0 0.0
        %3671 = vmatpush1.xpose.msra.mxu0 0.0
        %3672 = vmatprep.subr.mxu0 0.0
        %3673 = vmatpush1.xpose.msra.mxu0 0.0
        %3674 = vmatprep.subr.mxu0 0.0
        %3675 = vmatpush1.xpose.msra.mxu0 0.0
        %3676 = vmatprep.subr.mxu0 0.0
        %3677 = vmatpush1.xpose.msra.mxu0 0.0
        %3678 = vmatprep.subr.mxu0 0.0
        %3679 = vmatpush1.xpose.msra.mxu0 0.0
        %3680 = vmatprep.subr.mxu0 0.0
        %3681 = vmatpush1.xpose.msra.mxu0 0.0
        %3682 = vmatprep.subr.mxu0 0.0
        %3683 = vmatpush1.xpose.msra.mxu0 0.0
        %3684 = vmatprep.subr.mxu0 0.0
        %3685 = vmatpush1.xpose.msra.mxu0 0.0
        %3686 = vmatprep.subr.mxu0 0.0
        %3687 = vmatpush1.xpose.msra.mxu0 0.0
        %3688 = vmatprep.subr.mxu0 0.0
        %3689 = vmatpush1.xpose.msra.mxu0 0.0
        %3690 = vmatprep.subr.mxu0 0.0
        %3691 = vmatpush1.xpose.msra.mxu0 0.0
        %3692 = vmatprep.mubr.f32.mxu0 0.0
        %v3693 = vand.u32 %v3623, 4294901760
        %v3694 = vsub.f32 %v3623, %v3693
        %v3695 = vand.u32 %v3694, 4294901760
        %v3696 = vsub.f32 %v3694, %v3695
        %v3697 = vand.u32 %v3696, 4294901760
        %3698 = vmatmul.mubr.f32.gmra.mrb[0].mxu0 %v3697
        %v3699 = vpop.f32.mrb[0].mxu0
        %v3700 = vadd.f32 0.0, %v3699
        %v3701 = vpop.f32.mrb[0].mxu0
        %3702 = vdwg.mxu0
        %3703 = vmatprep.subr.mxu0 0.0
        %v3704 = vand.u32 %v3625, 4294901760
        %v3705 = vsub.f32 %v3625, %v3704
        %v3706 = vand.u32 %v3705, 4294901760
        %v3707 = vsub.f32 %v3705, %v3706
        %v3708 = vand.u32 %v3707, 4294901760
        %3709 = vmatpush1.xpose.msra.mxu0 %v3708
        %3710 = vmatprep.subr.mxu0 0.0
        %3711 = vmatpush1.xpose.msra.mxu0 0.0
        %3712 = vmatprep.subr.mxu0 0.0
        %3713 = vmatpush1.xpose.msra.mxu0 0.0
        %3714 = vmatprep.subr.mxu0 0.0
        %3715 = vmatpush1.xpose.msra.mxu0 0.0
        %3716 = vmatprep.subr.mxu0 0.0
        %3717 = vmatpush1.xpose.msra.mxu0 0.0
        %3718 = vmatprep.subr.mxu0 0.0
        %3719 = vmatpush1.xpose.msra.mxu0 0.0
        %3720 = vmatprep.subr.mxu0 0.0
        %3721 = vmatpush1.xpose.msra.mxu0 0.0
        %3722 = vmatprep.subr.mxu0 0.0
        %3723 = vmatpush1.xpose.msra.mxu0 0.0
        %3724 = vmatprep.subr.mxu0 0.0
        %3725 = vmatpush1.xpose.msra.mxu0 0.0
        %3726 = vmatprep.subr.mxu0 0.0
        %3727 = vmatpush1.xpose.msra.mxu0 0.0
        %3728 = vmatprep.subr.mxu0 0.0
        %3729 = vmatpush1.xpose.msra.mxu0 0.0
        %3730 = vmatprep.subr.mxu0 0.0
        %3731 = vmatpush1.xpose.msra.mxu0 0.0
        %3732 = vmatprep.subr.mxu0 0.0
        %3733 = vmatpush1.xpose.msra.mxu0 0.0
        %3734 = vmatprep.subr.mxu0 0.0
        %3735 = vmatpush1.xpose.msra.mxu0 0.0
        %3736 = vmatprep.subr.mxu0 0.0
        %3737 = vmatpush1.xpose.msra.mxu0 0.0
        %3738 = vmatprep.subr.mxu0 0.0
        %3739 = vmatpush1.xpose.msra.mxu0 0.0
        %3740 = vmatprep.subr.mxu0 0.0
        %3741 = vmatpush1.xpose.msra.mxu0 0.0
        %3742 = vmatprep.subr.mxu0 0.0
        %3743 = vmatpush1.xpose.msra.mxu0 0.0
        %3744 = vmatprep.subr.mxu0 0.0
        %3745 = vmatpush1.xpose.msra.mxu0 0.0
        %3746 = vmatprep.subr.mxu0 0.0
        %3747 = vmatpush1.xpose.msra.mxu0 0.0
        %3748 = vmatprep.subr.mxu0 0.0
        %3749 = vmatpush1.xpose.msra.mxu0 0.0
        %3750 = vmatprep.subr.mxu0 0.0
        %3751 = vmatpush1.xpose.msra.mxu0 0.0
        %3752 = vmatprep.subr.mxu0 0.0
        %3753 = vmatpush1.xpose.msra.mxu0 0.0
        %3754 = vmatprep.subr.mxu0 0.0
        %3755 = vmatpush1.xpose.msra.mxu0 0.0
        %3756 = vmatprep.subr.mxu0 0.0
        %3757 = vmatpush1.xpose.msra.mxu0 0.0
        %3758 = vmatprep.subr.mxu0 0.0
        %3759 = vmatpush1.xpose.msra.mxu0 0.0
        %3760 = vmatprep.subr.mxu0 0.0
        %3761 = vmatpush1.xpose.msra.mxu0 0.0
        %3762 = vmatprep.subr.mxu0 0.0
        %3763 = vmatpush1.xpose.msra.mxu0 0.0
        %3764 = vmatprep.subr.mxu0 0.0
        %3765 = vmatpush1.xpose.msra.mxu0 0.0
        %3766 = vmatprep.subr.mxu0 0.0
        %3767 = vmatpush1.xpose.msra.mxu0 0.0
        %3768 = vmatprep.subr.mxu0 0.0
        %3769 = vmatpush1.xpose.msra.mxu0 0.0
        %3770 = vmatprep.subr.mxu0 0.0
        %3771 = vmatpush1.xpose.msra.mxu0 0.0
        %3772 = vmatprep.mubr.f32.mxu0 0.0
        %v3773 = vand.u32 %v3623, 4294901760
        %3774 = vmatmul.mubr.f32.gmra.mrb[0].mxu0 %v3773
        %v3775 = vpop.f32.mrb[0].mxu0
        %v3776 = vadd.f32 %v3700, %v3775
        %v3777 = vpop.f32.mrb[0].mxu0
        %3778 = vdwg.mxu0
        %3779 = vmatprep.subr.mxu0 0.0
        %v3780 = vand.u32 %v3625, 4294901760
        %v3781 = vsub.f32 %v3625, %v3780
        %3782 = vmatpush1.xpose.msra.mxu0 %v3781
        %3783 = vmatprep.subr.mxu0 0.0
        %3784 = vmatpush1.xpose.msra.mxu0 0.0
        %3785 = vmatprep.subr.mxu0 0.0
        %3786 = vmatpush1.xpose.msra.mxu0 0.0
        %3787 = vmatprep.subr.mxu0 0.0
        %3788 = vmatpush1.xpose.msra.mxu0 0.0
        %3789 = vmatprep.subr.mxu0 0.0
        %3790 = vmatpush1.xpose.msra.mxu0 0.0
        %3791 = vmatprep.subr.mxu0 0.0
        %3792 = vmatpush1.xpose.msra.mxu0 0.0
        %3793 = vmatprep.subr.mxu0 0.0
        %3794 = vmatpush1.xpose.msra.mxu0 0.0
        %3795 = vmatprep.subr.mxu0 0.0
        %3796 = vmatpush1.xpose.msra.mxu0 0.0
        %3797 = vmatprep.subr.mxu0 0.0
        %3798 = vmatpush1.xpose.msra.mxu0 0.0
        %3799 = vmatprep.subr.mxu0 0.0
        %3800 = vmatpush1.xpose.msra.mxu0 0.0
        %3801 = vmatprep.subr.mxu0 0.0
        %3802 = vmatpush1.xpose.msra.mxu0 0.0
        %3803 = vmatprep.subr.mxu0 0.0
        %3804 = vmatpush1.xpose.msra.mxu0 0.0
        %3805 = vmatprep.subr.mxu0 0.0
        %3806 = vmatpush1.xpose.msra.mxu0 0.0
        %3807 = vmatprep.subr.mxu0 0.0
        %3808 = vmatpush1.xpose.msra.mxu0 0.0
        %3809 = vmatprep.subr.mxu0 0.0
        %3810 = vmatpush1.xpose.msra.mxu0 0.0
        %3811 = vmatprep.subr.mxu0 0.0
        %3812 = vmatpush1.xpose.msra.mxu0 0.0
        %3813 = vmatprep.subr.mxu0 0.0
        %3814 = vmatpush1.xpose.msra.mxu0 0.0
        %3815 = vmatprep.subr.mxu0 0.0
        %3816 = vmatpush1.xpose.msra.mxu0 0.0
        %3817 = vmatprep.subr.mxu0 0.0
        %3818 = vmatpush1.xpose.msra.mxu0 0.0
        %3819 = vmatprep.subr.mxu0 0.0
        %3820 = vmatpush1.xpose.msra.mxu0 0.0
        %3821 = vmatprep.subr.mxu0 0.0
        %3822 = vmatpush1.xpose.msra.mxu0 0.0
        %3823 = vmatprep.subr.mxu0 0.0
        %3824 = vmatpush1.xpose.msra.mxu0 0.0
        %3825 = vmatprep.subr.mxu0 0.0
        %3826 = vmatpush1.xpose.msra.mxu0 0.0
        %3827 = vmatprep.subr.mxu0 0.0
        %3828 = vmatpush1.xpose.msra.mxu0 0.0
        %3829 = vmatprep.subr.mxu0 0.0
        %3830 = vmatpush1.xpose.msra.mxu0 0.0
        %3831 = vmatprep.subr.mxu0 0.0
        %3832 = vmatpush1.xpose.msra.mxu0 0.0
        %3833 = vmatprep.subr.mxu0 0.0
        %3834 = vmatpush1.xpose.msra.mxu0 0.0
        %3835 = vmatprep.subr.mxu0 0.0
        %3836 = vmatpush1.xpose.msra.mxu0 0.0
        %3837 = vmatprep.subr.mxu0 0.0
        %3838 = vmatpush1.xpose.msra.mxu0 0.0
        %3839 = vmatprep.subr.mxu0 0.0
        %3840 = vmatpush1.xpose.msra.mxu0 0.0
        %3841 = vmatprep.subr.mxu0 0.0
        %3842 = vmatpush1.xpose.msra.mxu0 0.0
        %3843 = vmatprep.subr.mxu0 0.0
        %3844 = vmatpush1.xpose.msra.mxu0 0.0
        %3845 = vmatprep.mubr.f32.mxu0 0.0
        %v3846 = vand.u32 %v3623, 4294901760
        %v3847 = vsub.f32 %v3623, %v3846
        %3848 = vmatmul.mubr.f32.gmra.mrb[0].mxu0 %v3847
        %v3849 = vpop.f32.mrb[0].mxu0
        %v3850 = vadd.f32 %v3776, %v3849
        %v3851 = vpop.f32.mrb[0].mxu0
        %3852 = vdwg.mxu0
        %3853 = vmatprep.subr.mxu0 0.0
        %v3854 = vand.u32 %v3625, 4294901760
        %3855 = vmatpush1.xpose.msra.mxu0 %v3854
        %3856 = vmatprep.subr.mxu0 0.0
        %3857 = vmatpush1.xpose.msra.mxu0 0.0
        %3858 = vmatprep.subr.mxu0 0.0
        %3859 = vmatpush1.xpose.msra.mxu0 0.0
        %3860 = vmatprep.subr.mxu0 0.0
        %3861 = vmatpush1.xpose.msra.mxu0 0.0
        %3862 = vmatprep.subr.mxu0 0.0
        %3863 = vmatpush1.xpose.msra.mxu0 0.0
        %3864 = vmatprep.subr.mxu0 0.0
        %3865 = vmatpush1.xpose.msra.mxu0 0.0
        %3866 = vmatprep.subr.mxu0 0.0
        %3867 = vmatpush1.xpose.msra.mxu0 0.0
        %3868 = vmatprep.subr.mxu0 0.0
        %3869 = vmatpush1.xpose.msra.mxu0 0.0
        %3870 = vmatprep.subr.mxu0 0.0
        %3871 = vmatpush1.xpose.msra.mxu0 0.0
        %3872 = vmatprep.subr.mxu0 0.0
        %3873 = vmatpush1.xpose.msra.mxu0 0.0
        %3874 = vmatprep.subr.mxu0 0.0
        %3875 = vmatpush1.xpose.msra.mxu0 0.0
        %3876 = vmatprep.subr.mxu0 0.0
        %3877 = vmatpush1.xpose.msra.mxu0 0.0
        %3878 = vmatprep.subr.mxu0 0.0
        %3879 = vmatpush1.xpose.msra.mxu0 0.0
        %3880 = vmatprep.subr.mxu0 0.0
        %3881 = vmatpush1.xpose.msra.mxu0 0.0
        %3882 = vmatprep.subr.mxu0 0.0
        %3883 = vmatpush1.xpose.msra.mxu0 0.0
        %3884 = vmatprep.subr.mxu0 0.0
        %3885 = vmatpush1.xpose.msra.mxu0 0.0
        %3886 = vmatprep.subr.mxu0 0.0
        %3887 = vmatpush1.xpose.msra.mxu0 0.0
        %3888 = vmatprep.subr.mxu0 0.0
        %3889 = vmatpush1.xpose.msra.mxu0 0.0
        %3890 = vmatprep.subr.mxu0 0.0
        %3891 = vmatpush1.xpose.msra.mxu0 0.0
        %3892 = vmatprep.subr.mxu0 0.0
        %3893 = vmatpush1.xpose.msra.mxu0 0.0
        %3894 = vmatprep.subr.mxu0 0.0
        %3895 = vmatpush1.xpose.msra.mxu0 0.0
        %3896 = vmatprep.subr.mxu0 0.0
        %3897 = vmatpush1.xpose.msra.mxu0 0.0
        %3898 = vmatprep.subr.mxu0 0.0
        %3899 = vmatpush1.xpose.msra.mxu0 0.0
        %3900 = vmatprep.subr.mxu0 0.0
        %3901 = vmatpush1.xpose.msra.mxu0 0.0
        %3902 = vmatprep.subr.mxu0 0.0
        %3903 = vmatpush1.xpose.msra.mxu0 0.0
        %3904 = vmatprep.subr.mxu0 0.0
        %3905 = vmatpush1.xpose.msra.mxu0 0.0
        %3906 = vmatprep.subr.mxu0 0.0
        %3907 = vmatpush1.xpose.msra.mxu0 0.0
        %3908 = vmatprep.subr.mxu0 0.0
        %3909 = vmatpush1.xpose.msra.mxu0 0.0
        %3910 = vmatprep.subr.mxu0 0.0
        %3911 = vmatpush1.xpose.msra.mxu0 0.0
        %3912 = vmatprep.subr.mxu0 0.0
        %3913 = vmatpush1.xpose.msra.mxu0 0.0
        %3914 = vmatprep.subr.mxu0 0.0
        %3915 = vmatpush1.xpose.msra.mxu0 0.0
        %3916 = vmatprep.subr.mxu0 0.0
        %3917 = vmatpush1.xpose.msra.mxu0 0.0
        %3918 = vmatprep.mubr.f32.mxu0 0.0
        %v3919 = vand.u32 %v3623, 4294901760
        %v3920 = vsub.f32 %v3623, %v3919
        %v3921 = vand.u32 %v3920, 4294901760
        %3922 = vmatmul.mubr.f32.gmra.mrb[0].mxu0 %v3921
        %v3923 = vpop.f32.mrb[0].mxu0
        %v3924 = vadd.f32 %v3850, %v3923
        %v3925 = vpop.f32.mrb[0].mxu0
        %3926 = vdwg.mxu0
        %3927 = vmatprep.subr.mxu0 0.0
        %v3928 = vand.u32 %v3625, 4294901760
        %v3929 = vsub.f32 %v3625, %v3928
        %v3930 = vand.u32 %v3929, 4294901760
        %3931 = vmatpush1.xpose.msra.mxu0 %v3930
        %3932 = vmatprep.subr.mxu0 0.0
        %3933 = vmatpush1.xpose.msra.mxu0 0.0
        %3934 = vmatprep.subr.mxu0 0.0
        %3935 = vmatpush1.xpose.msra.mxu0 0.0
        %3936 = vmatprep.subr.mxu0 0.0
        %3937 = vmatpush1.xpose.msra.mxu0 0.0
        %3938 = vmatprep.subr.mxu0 0.0
        %3939 = vmatpush1.xpose.msra.mxu0 0.0
        %3940 = vmatprep.subr.mxu0 0.0
        %3941 = vmatpush1.xpose.msra.mxu0 0.0
        %3942 = vmatprep.subr.mxu0 0.0
        %3943 = vmatpush1.xpose.msra.mxu0 0.0
        %3944 = vmatprep.subr.mxu0 0.0
        %3945 = vmatpush1.xpose.msra.mxu0 0.0
        %3946 = vmatprep.subr.mxu0 0.0
        %3947 = vmatpush1.xpose.msra.mxu0 0.0
        %3948 = vmatprep.subr.mxu0 0.0
        %3949 = vmatpush1.xpose.msra.mxu0 0.0
        %3950 = vmatprep.subr.mxu0 0.0
        %3951 = vmatpush1.xpose.msra.mxu0 0.0
        %3952 = vmatprep.subr.mxu0 0.0
        %3953 = vmatpush1.xpose.msra.mxu0 0.0
        %3954 = vmatprep.subr.mxu0 0.0
        %3955 = vmatpush1.xpose.msra.mxu0 0.0
        %3956 = vmatprep.subr.mxu0 0.0
        %3957 = vmatpush1.xpose.msra.mxu0 0.0
        %3958 = vmatprep.subr.mxu0 0.0
        %3959 = vmatpush1.xpose.msra.mxu0 0.0
        %3960 = vmatprep.subr.mxu0 0.0
        %3961 = vmatpush1.xpose.msra.mxu0 0.0
        %3962 = vmatprep.subr.mxu0 0.0
        %3963 = vmatpush1.xpose.msra.mxu0 0.0
        %3964 = vmatprep.subr.mxu0 0.0
        %3965 = vmatpush1.xpose.msra.mxu0 0.0
        %3966 = vmatprep.subr.mxu0 0.0
        %3967 = vmatpush1.xpose.msra.mxu0 0.0
        %3968 = vmatprep.subr.mxu0 0.0
        %3969 = vmatpush1.xpose.msra.mxu0 0.0
        %3970 = vmatprep.subr.mxu0 0.0
        %3971 = vmatpush1.xpose.msra.mxu0 0.0
        %3972 = vmatprep.subr.mxu0 0.0
        %3973 = vmatpush1.xpose.msra.mxu0 0.0
        %3974 = vmatprep.subr.mxu0 0.0
        %3975 = vmatpush1.xpose.msra.mxu0 0.0
        %3976 = vmatprep.subr.mxu0 0.0
        %3977 = vmatpush1.xpose.msra.mxu0 0.0
        %3978 = vmatprep.subr.mxu0 0.0
        %3979 = vmatpush1.xpose.msra.mxu0 0.0
        %3980 = vmatprep.subr.mxu0 0.0
        %3981 = vmatpush1.xpose.msra.mxu0 0.0
        %3982 = vmatprep.subr.mxu0 0.0
        %3983 = vmatpush1.xpose.msra.mxu0 0.0
        %3984 = vmatprep.subr.mxu0 0.0
        %3985 = vmatpush1.xpose.msra.mxu0 0.0
        %3986 = vmatprep.subr.mxu0 0.0
        %3987 = vmatpush1.xpose.msra.mxu0 0.0
        %3988 = vmatprep.subr.mxu0 0.0
        %3989 = vmatpush1.xpose.msra.mxu0 0.0
        %3990 = vmatprep.subr.mxu0 0.0
        %3991 = vmatpush1.xpose.msra.mxu0 0.0
        %3992 = vmatprep.subr.mxu0 0.0
        %3993 = vmatpush1.xpose.msra.mxu0 0.0
        %3994 = vmatprep.mubr.f32.mxu0 0.0
        %v3995 = vand.u32 %v3623, 4294901760
        %3996 = vmatmul.mubr.f32.gmra.mrb[0].mxu0 %v3995
        %v3997 = vpop.f32.mrb[0].mxu0
        %v3998 = vadd.f32 %v3924, %v3997
        %v3999 = vpop.f32.mrb[0].mxu0
        %4000 = vdwg.mxu0
        %4001 = vmatprep.subr.mxu0 0.0
        %v4002 = vand.u32 %v3625, 4294901760
        %4003 = vmatpush1.xpose.msra.mxu0 %v4002
        %4004 = vmatprep.subr.mxu0 0.0
        %4005 = vmatpush1.xpose.msra.mxu0 0.0
        %4006 = vmatprep.subr.mxu0 0.0
        %4007 = vmatpush1.xpose.msra.mxu0 0.0
        %4008 = vmatprep.subr.mxu0 0.0
        %4009 = vmatpush1.xpose.msra.mxu0 0.0
        %4010 = vmatprep.subr.mxu0 0.0
        %4011 = vmatpush1.xpose.msra.mxu0 0.0
        %4012 = vmatprep.subr.mxu0 0.0
        %4013 = vmatpush1.xpose.msra.mxu0 0.0
        %4014 = vmatprep.subr.mxu0 0.0
        %4015 = vmatpush1.xpose.msra.mxu0 0.0
        %4016 = vmatprep.subr.mxu0 0.0
        %4017 = vmatpush1.xpose.msra.mxu0 0.0
        %4018 = vmatprep.subr.mxu0 0.0
        %4019 = vmatpush1.xpose.msra.mxu0 0.0
        %4020 = vmatprep.subr.mxu0 0.0
        %4021 = vmatpush1.xpose.msra.mxu0 0.0
        %4022 = vmatprep.subr.mxu0 0.0
        %4023 = vmatpush1.xpose.msra.mxu0 0.0
        %4024 = vmatprep.subr.mxu0 0.0
        %4025 = vmatpush1.xpose.msra.mxu0 0.0
        %4026 = vmatprep.subr.mxu0 0.0
        %4027 = vmatpush1.xpose.msra.mxu0 0.0
        %4028 = vmatprep.subr.mxu0 0.0
        %4029 = vmatpush1.xpose.msra.mxu0 0.0
        %4030 = vmatprep.subr.mxu0 0.0
        %4031 = vmatpush1.xpose.msra.mxu0 0.0
        %4032 = vmatprep.subr.mxu0 0.0
        %4033 = vmatpush1.xpose.msra.mxu0 0.0
        %4034 = vmatprep.subr.mxu0 0.0
        %4035 = vmatpush1.xpose.msra.mxu0 0.0
        %4036 = vmatprep.subr.mxu0 0.0
        %4037 = vmatpush1.xpose.msra.mxu0 0.0
        %4038 = vmatprep.subr.mxu0 0.0
        %4039 = vmatpush1.xpose.msra.mxu0 0.0
        %4040 = vmatprep.subr.mxu0 0.0
        %4041 = vmatpush1.xpose.msra.mxu0 0.0
        %4042 = vmatprep.subr.mxu0 0.0
        %4043 = vmatpush1.xpose.msra.mxu0 0.0
        %4044 = vmatprep.subr.mxu0 0.0
        %4045 = vmatpush1.xpose.msra.mxu0 0.0
        %4046 = vmatprep.subr.mxu0 0.0
        %4047 = vmatpush1.xpose.msra.mxu0 0.0
        %4048 = vmatprep.subr.mxu0 0.0
        %4049 = vmatpush1.xpose.msra.mxu0 0.0
        %4050 = vmatprep.subr.mxu0 0.0
        %4051 = vmatpush1.xpose.msra.mxu0 0.0
        %4052 = vmatprep.subr.mxu0 0.0
        %4053 = vmatpush1.xpose.msra.mxu0 0.0
        %4054 = vmatprep.subr.mxu0 0.0
        %4055 = vmatpush1.xpose.msra.mxu0 0.0
        %4056 = vmatprep.subr.mxu0 0.0
        %4057 = vmatpush1.xpose.msra.mxu0 0.0
        %4058 = vmatprep.subr.mxu0 0.0
        %4059 = vmatpush1.xpose.msra.mxu0 0.0
        %4060 = vmatprep.subr.mxu0 0.0
        %4061 = vmatpush1.xpose.msra.mxu0 0.0
        %4062 = vmatprep.subr.mxu0 0.0
        %4063 = vmatpush1.xpose.msra.mxu0 0.0
        %4064 = vmatprep.subr.mxu0 0.0
        %4065 = vmatpush1.xpose.msra.mxu0 0.0
        %4066 = vmatprep.mubr.f32.mxu0 0.0
        %v4067 = vand.u32 %v3623, 4294901760
        %4068 = vmatmul.mubr.f32.gmra.mrb[0].mxu0 %v4067
        %v4069 = vpop.f32.mrb[0].mxu0
        %v4070 = vadd.f32 %v3998, %v4069
        %v4071 = vpop.f32.mrb[0].mxu0
        %4072 = vdwg.mxu0
        %v4073 = vsel %vm1372, %v1354, 0
        %v4075 = vsel %vm1372, %v1369, 0
        %4077 = vmatprep.subr.mxu0 0.0
        %v4078 = vand.u32 %v4075, 4294901760
        %4079 = vmatpush1.xpose.msra.mxu0 %v4078
        %4080 = vmatprep.subr.mxu0 0.0
        %4081 = vmatpush1.xpose.msra.mxu0 0.0
        %4082 = vmatprep.subr.mxu0 0.0
        %4083 = vmatpush1.xpose.msra.mxu0 0.0
        %4084 = vmatprep.subr.mxu0 0.0
        %4085 = vmatpush1.xpose.msra.mxu0 0.0
        %4086 = vmatprep.subr.mxu0 0.0
        %4087 = vmatpush1.xpose.msra.mxu0 0.0
        %4088 = vmatprep.subr.mxu0 0.0
        %4089 = vmatpush1.xpose.msra.mxu0 0.0
        %4090 = vmatprep.subr.mxu0 0.0
        %4091 = vmatpush1.xpose.msra.mxu0 0.0
        %4092 = vmatprep.subr.mxu0 0.0
        %4093 = vmatpush1.xpose.msra.mxu0 0.0
        %4094 = vmatprep.subr.mxu0 0.0
        %4095 = vmatpush1.xpose.msra.mxu0 0.0
        %4096 = vmatprep.subr.mxu0 0.0
        %4097 = vmatpush1.xpose.msra.mxu0 0.0
        %4098 = vmatprep.subr.mxu0 0.0
        %4099 = vmatpush1.xpose.msra.mxu0 0.0
        %4100 = vmatprep.subr.mxu0 0.0
        %4101 = vmatpush1.xpose.msra.mxu0 0.0
        %4102 = vmatprep.subr.mxu0 0.0
        %4103 = vmatpush1.xpose.msra.mxu0 0.0
        %4104 = vmatprep.subr.mxu0 0.0
        %4105 = vmatpush1.xpose.msra.mxu0 0.0
        %4106 = vmatprep.subr.mxu0 0.0
        %4107 = vmatpush1.xpose.msra.mxu0 0.0
        %4108 = vmatprep.subr.mxu0 0.0
        %4109 = vmatpush1.xpose.msra.mxu0 0.0
        %4110 = vmatprep.subr.mxu0 0.0
        %4111 = vmatpush1.xpose.msra.mxu0 0.0
        %4112 = vmatprep.subr.mxu0 0.0
        %4113 = vmatpush1.xpose.msra.mxu0 0.0
        %4114 = vmatprep.subr.mxu0 0.0
        %4115 = vmatpush1.xpose.msra.mxu0 0.0
        %4116 = vmatprep.subr.mxu0 0.0
        %4117 = vmatpush1.xpose.msra.mxu0 0.0
        %4118 = vmatprep.subr.mxu0 0.0
        %4119 = vmatpush1.xpose.msra.mxu0 0.0
        %4120 = vmatprep.subr.mxu0 0.0
        %4121 = vmatpush1.xpose.msra.mxu0 0.0
        %4122 = vmatprep.subr.mxu0 0.0
        %4123 = vmatpush1.xpose.msra.mxu0 0.0
        %4124 = vmatprep.subr.mxu0 0.0
        %4125 = vmatpush1.xpose.msra.mxu0 0.0
        %4126 = vmatprep.subr.mxu0 0.0
        %4127 = vmatpush1.xpose.msra.mxu0 0.0
        %4128 = vmatprep.subr.mxu0 0.0
        %4129 = vmatpush1.xpose.msra.mxu0 0.0
        %4130 = vmatprep.subr.mxu0 0.0
        %4131 = vmatpush1.xpose.msra.mxu0 0.0
        %4132 = vmatprep.subr.mxu0 0.0
        %4133 = vmatpush1.xpose.msra.mxu0 0.0
        %4134 = vmatprep.subr.mxu0 0.0
        %4135 = vmatpush1.xpose.msra.mxu0 0.0
        %4136 = vmatprep.subr.mxu0 0.0
        %4137 = vmatpush1.xpose.msra.mxu0 0.0
        %4138 = vmatprep.subr.mxu0 0.0
        %4139 = vmatpush1.xpose.msra.mxu0 0.0
        %4140 = vmatprep.subr.mxu0 0.0
        %4141 = vmatpush1.xpose.msra.mxu0 0.0
        %4142 = vmatprep.mubr.f32.mxu0 0.0
        %v4143 = vand.u32 %v4073, 4294901760
        %v4144 = vsub.f32 %v4073, %v4143
        %v4145 = vand.u32 %v4144, 4294901760
        %v4146 = vsub.f32 %v4144, %v4145
        %v4147 = vand.u32 %v4146, 4294901760
        %4148 = vmatmul.mubr.f32.gmra.mrb[0].mxu0 %v4147
        %v4149 = vpop.f32.mrb[0].mxu0
        %v4150 = vadd.f32 0.0, %v4149
        %v4151 = vpop.f32.mrb[0].mxu0
        %4152 = vdwg.mxu0
        %4153 = vmatprep.subr.mxu0 0.0
        %v4154 = vand.u32 %v4075, 4294901760
        %v4155 = vsub.f32 %v4075, %v4154
        %v4156 = vand.u32 %v4155, 4294901760
        %v4157 = vsub.f32 %v4155, %v4156
        %v4158 = vand.u32 %v4157, 4294901760
        %4159 = vmatpush1.xpose.msra.mxu0 %v4158
        %4160 = vmatprep.subr.mxu0 0.0
        %4161 = vmatpush1.xpose.msra.mxu0 0.0
        %4162 = vmatprep.subr.mxu0 0.0
        %4163 = vmatpush1.xpose.msra.mxu0 0.0
        %4164 = vmatprep.subr.mxu0 0.0
        %4165 = vmatpush1.xpose.msra.mxu0 0.0
        %4166 = vmatprep.subr.mxu0 0.0
        %4167 = vmatpush1.xpose.msra.mxu0 0.0
        %4168 = vmatprep.subr.mxu0 0.0
        %4169 = vmatpush1.xpose.msra.mxu0 0.0
        %4170 = vmatprep.subr.mxu0 0.0
        %4171 = vmatpush1.xpose.msra.mxu0 0.0
        %4172 = vmatprep.subr.mxu0 0.0
        %4173 = vmatpush1.xpose.msra.mxu0 0.0
        %4174 = vmatprep.subr.mxu0 0.0
        %4175 = vmatpush1.xpose.msra.mxu0 0.0
        %4176 = vmatprep.subr.mxu0 0.0
        %4177 = vmatpush1.xpose.msra.mxu0 0.0
        %4178 = vmatprep.subr.mxu0 0.0
        %4179 = vmatpush1.xpose.msra.mxu0 0.0
        %4180 = vmatprep.subr.mxu0 0.0
        %4181 = vmatpush1.xpose.msra.mxu0 0.0
        %4182 = vmatprep.subr.mxu0 0.0
        %4183 = vmatpush1.xpose.msra.mxu0 0.0
        %4184 = vmatprep.subr.mxu0 0.0
        %4185 = vmatpush1.xpose.msra.mxu0 0.0
        %4186 = vmatprep.subr.mxu0 0.0
        %4187 = vmatpush1.xpose.msra.mxu0 0.0
        %4188 = vmatprep.subr.mxu0 0.0
        %4189 = vmatpush1.xpose.msra.mxu0 0.0
        %4190 = vmatprep.subr.mxu0 0.0
        %4191 = vmatpush1.xpose.msra.mxu0 0.0
        %4192 = vmatprep.subr.mxu0 0.0
        %4193 = vmatpush1.xpose.msra.mxu0 0.0
        %4194 = vmatprep.subr.mxu0 0.0
        %4195 = vmatpush1.xpose.msra.mxu0 0.0
        %4196 = vmatprep.subr.mxu0 0.0
        %4197 = vmatpush1.xpose.msra.mxu0 0.0
        %4198 = vmatprep.subr.mxu0 0.0
        %4199 = vmatpush1.xpose.msra.mxu0 0.0
        %4200 = vmatprep.subr.mxu0 0.0
        %4201 = vmatpush1.xpose.msra.mxu0 0.0
        %4202 = vmatprep.subr.mxu0 0.0
        %4203 = vmatpush1.xpose.msra.mxu0 0.0
        %4204 = vmatprep.subr.mxu0 0.0
        %4205 = vmatpush1.xpose.msra.mxu0 0.0
        %4206 = vmatprep.subr.mxu0 0.0
        %4207 = vmatpush1.xpose.msra.mxu0 0.0
        %4208 = vmatprep.subr.mxu0 0.0
        %4209 = vmatpush1.xpose.msra.mxu0 0.0
        %4210 = vmatprep.subr.mxu0 0.0
        %4211 = vmatpush1.xpose.msra.mxu0 0.0
        %4212 = vmatprep.subr.mxu0 0.0
        %4213 = vmatpush1.xpose.msra.mxu0 0.0
        %4214 = vmatprep.subr.mxu0 0.0
        %4215 = vmatpush1.xpose.msra.mxu0 0.0
        %4216 = vmatprep.subr.mxu0 0.0
        %4217 = vmatpush1.xpose.msra.mxu0 0.0
        %4218 = vmatprep.subr.mxu0 0.0
        %4219 = vmatpush1.xpose.msra.mxu0 0.0
        %4220 = vmatprep.subr.mxu0 0.0
        %4221 = vmatpush1.xpose.msra.mxu0 0.0
        %4222 = vmatprep.mubr.f32.mxu0 0.0
        %v4223 = vand.u32 %v4073, 4294901760
        %4224 = vmatmul.mubr.f32.gmra.mrb[0].mxu0 %v4223
        %v4225 = vpop.f32.mrb[0].mxu0
        %v4226 = vadd.f32 %v4150, %v4225
        %v4227 = vpop.f32.mrb[0].mxu0
        %4228 = vdwg.mxu0
        %4229 = vmatprep.subr.mxu0 0.0
        %v4230 = vand.u32 %v4075, 4294901760
        %v4231 = vsub.f32 %v4075, %v4230
        %4232 = vmatpush1.xpose.msra.mxu0 %v4231
        %4233 = vmatprep.subr.mxu0 0.0
        %4234 = vmatpush1.xpose.msra.mxu0 0.0
        %4235 = vmatprep.subr.mxu0 0.0
        %4236 = vmatpush1.xpose.msra.mxu0 0.0
        %4237 = vmatprep.subr.mxu0 0.0
        %4238 = vmatpush1.xpose.msra.mxu0 0.0
        %4239 = vmatprep.subr.mxu0 0.0
        %4240 = vmatpush1.xpose.msra.mxu0 0.0
        %4241 = vmatprep.subr.mxu0 0.0
        %4242 = vmatpush1.xpose.msra.mxu0 0.0
        %4243 = vmatprep.subr.mxu0 0.0
        %4244 = vmatpush1.xpose.msra.mxu0 0.0
        %4245 = vmatprep.subr.mxu0 0.0
        %4246 = vmatpush1.xpose.msra.mxu0 0.0
        %4247 = vmatprep.subr.mxu0 0.0
        %4248 = vmatpush1.xpose.msra.mxu0 0.0
        %4249 = vmatprep.subr.mxu0 0.0
        %4250 = vmatpush1.xpose.msra.mxu0 0.0
        %4251 = vmatprep.subr.mxu0 0.0
        %4252 = vmatpush1.xpose.msra.mxu0 0.0
        %4253 = vmatprep.subr.mxu0 0.0
        %4254 = vmatpush1.xpose.msra.mxu0 0.0
        %4255 = vmatprep.subr.mxu0 0.0
        %4256 = vmatpush1.xpose.msra.mxu0 0.0
        %4257 = vmatprep.subr.mxu0 0.0
        %4258 = vmatpush1.xpose.msra.mxu0 0.0
        %4259 = vmatprep.subr.mxu0 0.0
        %4260 = vmatpush1.xpose.msra.mxu0 0.0
        %4261 = vmatprep.subr.mxu0 0.0
        %4262 = vmatpush1.xpose.msra.mxu0 0.0
        %4263 = vmatprep.subr.mxu0 0.0
        %4264 = vmatpush1.xpose.msra.mxu0 0.0
        %4265 = vmatprep.subr.mxu0 0.0
        %4266 = vmatpush1.xpose.msra.mxu0 0.0
        %4267 = vmatprep.subr.mxu0 0.0
        %4268 = vmatpush1.xpose.msra.mxu0 0.0
        %4269 = vmatprep.subr.mxu0 0.0
        %4270 = vmatpush1.xpose.msra.mxu0 0.0
        %4271 = vmatprep.subr.mxu0 0.0
        %4272 = vmatpush1.xpose.msra.mxu0 0.0
        %4273 = vmatprep.subr.mxu0 0.0
        %4274 = vmatpush1.xpose.msra.mxu0 0.0
        %4275 = vmatprep.subr.mxu0 0.0
        %4276 = vmatpush1.xpose.msra.mxu0 0.0
        %4277 = vmatprep.subr.mxu0 0.0
        %4278 = vmatpush1.xpose.msra.mxu0 0.0
        %4279 = vmatprep.subr.mxu0 0.0
        %4280 = vmatpush1.xpose.msra.mxu0 0.0
        %4281 = vmatprep.subr.mxu0 0.0
        %4282 = vmatpush1.xpose.msra.mxu0 0.0
        %4283 = vmatprep.subr.mxu0 0.0
        %4284 = vmatpush1.xpose.msra.mxu0 0.0
        %4285 = vmatprep.subr.mxu0 0.0
        %4286 = vmatpush1.xpose.msra.mxu0 0.0
        %4287 = vmatprep.subr.mxu0 0.0
        %4288 = vmatpush1.xpose.msra.mxu0 0.0
        %4289 = vmatprep.subr.mxu0 0.0
        %4290 = vmatpush1.xpose.msra.mxu0 0.0
        %4291 = vmatprep.subr.mxu0 0.0
        %4292 = vmatpush1.xpose.msra.mxu0 0.0
        %4293 = vmatprep.subr.mxu0 0.0
        %4294 = vmatpush1.xpose.msra.mxu0 0.0
        %4295 = vmatprep.mubr.f32.mxu0 0.0
        %v4296 = vand.u32 %v4073, 4294901760
        %v4297 = vsub.f32 %v4073, %v4296
        %4298 = vmatmul.mubr.f32.gmra.mrb[0].mxu0 %v4297
        %v4299 = vpop.f32.mrb[0].mxu0
        %v4300 = vadd.f32 %v4226, %v4299
        %v4301 = vpop.f32.mrb[0].mxu0
        %4302 = vdwg.mxu0
        %4303 = vmatprep.subr.mxu0 0.0
        %v4304 = vand.u32 %v4075, 4294901760
        %4305 = vmatpush1.xpose.msra.mxu0 %v4304
        %4306 = vmatprep.subr.mxu0 0.0
        %4307 = vmatpush1.xpose.msra.mxu0 0.0
        %4308 = vmatprep.subr.mxu0 0.0
        %4309 = vmatpush1.xpose.msra.mxu0 0.0
        %4310 = vmatprep.subr.mxu0 0.0
        %4311 = vmatpush1.xpose.msra.mxu0 0.0
        %4312 = vmatprep.subr.mxu0 0.0
        %4313 = vmatpush1.xpose.msra.mxu0 0.0
        %4314 = vmatprep.subr.mxu0 0.0
        %4315 = vmatpush1.xpose.msra.mxu0 0.0
        %4316 = vmatprep.subr.mxu0 0.0
        %4317 = vmatpush1.xpose.msra.mxu0 0.0
        %4318 = vmatprep.subr.mxu0 0.0
        %4319 = vmatpush1.xpose.msra.mxu0 0.0
        %4320 = vmatprep.subr.mxu0 0.0
        %4321 = vmatpush1.xpose.msra.mxu0 0.0
        %4322 = vmatprep.subr.mxu0 0.0
        %4323 = vmatpush1.xpose.msra.mxu0 0.0
        %4324 = vmatprep.subr.mxu0 0.0
        %4325 = vmatpush1.xpose.msra.mxu0 0.0
        %4326 = vmatprep.subr.mxu0 0.0
        %4327 = vmatpush1.xpose.msra.mxu0 0.0
        %4328 = vmatprep.subr.mxu0 0.0
        %4329 = vmatpush1.xpose.msra.mxu0 0.0
        %4330 = vmatprep.subr.mxu0 0.0
        %4331 = vmatpush1.xpose.msra.mxu0 0.0
        %4332 = vmatprep.subr.mxu0 0.0
        %4333 = vmatpush1.xpose.msra.mxu0 0.0
        %4334 = vmatprep.subr.mxu0 0.0
        %4335 = vmatpush1.xpose.msra.mxu0 0.0
        %4336 = vmatprep.subr.mxu0 0.0
        %4337 = vmatpush1.xpose.msra.mxu0 0.0
        %4338 = vmatprep.subr.mxu0 0.0
        %4339 = vmatpush1.xpose.msra.mxu0 0.0
        %4340 = vmatprep.subr.mxu0 0.0
        %4341 = vmatpush1.xpose.msra.mxu0 0.0
        %4342 = vmatprep.subr.mxu0 0.0
        %4343 = vmatpush1.xpose.msra.mxu0 0.0
        %4344 = vmatprep.subr.mxu0 0.0
        %4345 = vmatpush1.xpose.msra.mxu0 0.0
        %4346 = vmatprep.subr.mxu0 0.0
        %4347 = vmatpush1.xpose.msra.mxu0 0.0
        %4348 = vmatprep.subr.mxu0 0.0
        %4349 = vmatpush1.xpose.msra.mxu0 0.0
        %4350 = vmatprep.subr.mxu0 0.0
        %4351 = vmatpush1.xpose.msra.mxu0 0.0
        %4352 = vmatprep.subr.mxu0 0.0
        %4353 = vmatpush1.xpose.msra.mxu0 0.0
        %4354 = vmatprep.subr.mxu0 0.0
        %4355 = vmatpush1.xpose.msra.mxu0 0.0
        %4356 = vmatprep.subr.mxu0 0.0
        %4357 = vmatpush1.xpose.msra.mxu0 0.0
        %4358 = vmatprep.subr.mxu0 0.0
        %4359 = vmatpush1.xpose.msra.mxu0 0.0
        %4360 = vmatprep.subr.mxu0 0.0
        %4361 = vmatpush1.xpose.msra.mxu0 0.0
        %4362 = vmatprep.subr.mxu0 0.0
        %4363 = vmatpush1.xpose.msra.mxu0 0.0
        %4364 = vmatprep.subr.mxu0 0.0
        %4365 = vmatpush1.xpose.msra.mxu0 0.0
        %4366 = vmatprep.subr.mxu0 0.0
        %4367 = vmatpush1.xpose.msra.mxu0 0.0
        %4368 = vmatprep.mubr.f32.mxu0 0.0
        %v4369 = vand.u32 %v4073, 4294901760
        %v4370 = vsub.f32 %v4073, %v4369
        %v4371 = vand.u32 %v4370, 4294901760
        %4372 = vmatmul.mubr.f32.gmra.mrb[0].mxu0 %v4371
        %v4373 = vpop.f32.mrb[0].mxu0
        %v4374 = vadd.f32 %v4300, %v4373
        %v4375 = vpop.f32.mrb[0].mxu0
        %4376 = vdwg.mxu0
        %4377 = vmatprep.subr.mxu0 0.0
        %v4378 = vand.u32 %v4075, 4294901760
        %v4379 = vsub.f32 %v4075, %v4378
        %v4380 = vand.u32 %v4379, 4294901760
        %4381 = vmatpush1.xpose.msra.mxu0 %v4380
        %4382 = vmatprep.subr.mxu0 0.0
        %4383 = vmatpush1.xpose.msra.mxu0 0.0
        %4384 = vmatprep.subr.mxu0 0.0
        %4385 = vmatpush1.xpose.msra.mxu0 0.0
        %4386 = vmatprep.subr.mxu0 0.0
        %4387 = vmatpush1.xpose.msra.mxu0 0.0
        %4388 = vmatprep.subr.mxu0 0.0
        %4389 = vmatpush1.xpose.msra.mxu0 0.0
        %4390 = vmatprep.subr.mxu0 0.0
        %4391 = vmatpush1.xpose.msra.mxu0 0.0
        %4392 = vmatprep.subr.mxu0 0.0
        %4393 = vmatpush1.xpose.msra.mxu0 0.0
        %4394 = vmatprep.subr.mxu0 0.0
        %4395 = vmatpush1.xpose.msra.mxu0 0.0
        %4396 = vmatprep.subr.mxu0 0.0
        %4397 = vmatpush1.xpose.msra.mxu0 0.0
        %4398 = vmatprep.subr.mxu0 0.0
        %4399 = vmatpush1.xpose.msra.mxu0 0.0
        %4400 = vmatprep.subr.mxu0 0.0
        %4401 = vmatpush1.xpose.msra.mxu0 0.0
        %4402 = vmatprep.subr.mxu0 0.0
        %4403 = vmatpush1.xpose.msra.mxu0 0.0
        %4404 = vmatprep.subr.mxu0 0.0
        %4405 = vmatpush1.xpose.msra.mxu0 0.0
        %4406 = vmatprep.subr.mxu0 0.0
        %4407 = vmatpush1.xpose.msra.mxu0 0.0
        %4408 = vmatprep.subr.mxu0 0.0
        %4409 = vmatpush1.xpose.msra.mxu0 0.0
        %4410 = vmatprep.subr.mxu0 0.0
        %4411 = vmatpush1.xpose.msra.mxu0 0.0
        %4412 = vmatprep.subr.mxu0 0.0
        %4413 = vmatpush1.xpose.msra.mxu0 0.0
        %4414 = vmatprep.subr.mxu0 0.0
        %4415 = vmatpush1.xpose.msra.mxu0 0.0
        %4416 = vmatprep.subr.mxu0 0.0
        %4417 = vmatpush1.xpose.msra.mxu0 0.0
        %4418 = vmatprep.subr.mxu0 0.0
        %4419 = vmatpush1.xpose.msra.mxu0 0.0
        %4420 = vmatprep.subr.mxu0 0.0
        %4421 = vmatpush1.xpose.msra.mxu0 0.0
        %4422 = vmatprep.subr.mxu0 0.0
        %4423 = vmatpush1.xpose.msra.mxu0 0.0
        %4424 = vmatprep.subr.mxu0 0.0
        %4425 = vmatpush1.xpose.msra.mxu0 0.0
        %4426 = vmatprep.subr.mxu0 0.0
        %4427 = vmatpush1.xpose.msra.mxu0 0.0
        %4428 = vmatprep.subr.mxu0 0.0
        %4429 = vmatpush1.xpose.msra.mxu0 0.0
        %4430 = vmatprep.subr.mxu0 0.0
        %4431 = vmatpush1.xpose.msra.mxu0 0.0
        %4432 = vmatprep.subr.mxu0 0.0
        %4433 = vmatpush1.xpose.msra.mxu0 0.0
        %4434 = vmatprep.subr.mxu0 0.0
        %4435 = vmatpush1.xpose.msra.mxu0 0.0
        %4436 = vmatprep.subr.mxu0 0.0
        %4437 = vmatpush1.xpose.msra.mxu0 0.0
        %4438 = vmatprep.subr.mxu0 0.0
        %4439 = vmatpush1.xpose.msra.mxu0 0.0
        %4440 = vmatprep.subr.mxu0 0.0
        %4441 = vmatpush1.xpose.msra.mxu0 0.0
        %4442 = vmatprep.subr.mxu0 0.0
        %4443 = vmatpush1.xpose.msra.mxu0 0.0
        %4444 = vmatprep.mubr.f32.mxu0 0.0
        %v4445 = vand.u32 %v4073, 4294901760
        %4446 = vmatmul.mubr.f32.gmra.mrb[0].mxu0 %v4445
        %v4447 = vpop.f32.mrb[0].mxu0
        %v4448 = vadd.f32 %v4374, %v4447
        %v4449 = vpop.f32.mrb[0].mxu0
        %4450 = vdwg.mxu0
        %4451 = vmatprep.subr.mxu0 0.0
        %v4452 = vand.u32 %v4075, 4294901760
        %4453 = vmatpush1.xpose.msra.mxu0 %v4452
        %4454 = vmatprep.subr.mxu0 0.0
        %4455 = vmatpush1.xpose.msra.mxu0 0.0
        %4456 = vmatprep.subr.mxu0 0.0
        %4457 = vmatpush1.xpose.msra.mxu0 0.0
        %4458 = vmatprep.subr.mxu0 0.0
        %4459 = vmatpush1.xpose.msra.mxu0 0.0
        %4460 = vmatprep.subr.mxu0 0.0
        %4461 = vmatpush1.xpose.msra.mxu0 0.0
        %4462 = vmatprep.subr.mxu0 0.0
        %4463 = vmatpush1.xpose.msra.mxu0 0.0
        %4464 = vmatprep.subr.mxu0 0.0
        %4465 = vmatpush1.xpose.msra.mxu0 0.0
        %4466 = vmatprep.subr.mxu0 0.0
        %4467 = vmatpush1.xpose.msra.mxu0 0.0
        %4468 = vmatprep.subr.mxu0 0.0
        %4469 = vmatpush1.xpose.msra.mxu0 0.0
        %4470 = vmatprep.subr.mxu0 0.0
        %4471 = vmatpush1.xpose.msra.mxu0 0.0
        %4472 = vmatprep.subr.mxu0 0.0
        %4473 = vmatpush1.xpose.msra.mxu0 0.0
        %4474 = vmatprep.subr.mxu0 0.0
        %4475 = vmatpush1.xpose.msra.mxu0 0.0
        %4476 = vmatprep.subr.mxu0 0.0
        %4477 = vmatpush1.xpose.msra.mxu0 0.0
        %4478 = vmatprep.subr.mxu0 0.0
        %4479 = vmatpush1.xpose.msra.mxu0 0.0
        %4480 = vmatprep.subr.mxu0 0.0
        %4481 = vmatpush1.xpose.msra.mxu0 0.0
        %4482 = vmatprep.subr.mxu0 0.0
        %4483 = vmatpush1.xpose.msra.mxu0 0.0
        %4484 = vmatprep.subr.mxu0 0.0
        %4485 = vmatpush1.xpose.msra.mxu0 0.0
        %4486 = vmatprep.subr.mxu0 0.0
        %4487 = vmatpush1.xpose.msra.mxu0 0.0
        %4488 = vmatprep.subr.mxu0 0.0
        %4489 = vmatpush1.xpose.msra.mxu0 0.0
        %4490 = vmatprep.subr.mxu0 0.0
        %4491 = vmatpush1.xpose.msra.mxu0 0.0
        %4492 = vmatprep.subr.mxu0 0.0
        %4493 = vmatpush1.xpose.msra.mxu0 0.0
        %4494 = vmatprep.subr.mxu0 0.0
        %4495 = vmatpush1.xpose.msra.mxu0 0.0
        %4496 = vmatprep.subr.mxu0 0.0
        %4497 = vmatpush1.xpose.msra.mxu0 0.0
        %4498 = vmatprep.subr.mxu0 0.0
        %4499 = vmatpush1.xpose.msra.mxu0 0.0
        %4500 = vmatprep.subr.mxu0 0.0
        %4501 = vmatpush1.xpose.msra.mxu0 0.0
        %4502 = vmatprep.subr.mxu0 0.0
        %4503 = vmatpush1.xpose.msra.mxu0 0.0
        %4504 = vmatprep.subr.mxu0 0.0
        %4505 = vmatpush1.xpose.msra.mxu0 0.0
        %4506 = vmatprep.subr.mxu0 0.0
        %4507 = vmatpush1.xpose.msra.mxu0 0.0
        %4508 = vmatprep.subr.mxu0 0.0
        %4509 = vmatpush1.xpose.msra.mxu0 0.0
        %4510 = vmatprep.subr.mxu0 0.0
        %4511 = vmatpush1.xpose.msra.mxu0 0.0
        %4512 = vmatprep.subr.mxu0 0.0
        %4513 = vmatpush1.xpose.msra.mxu0 0.0
        %4514 = vmatprep.subr.mxu0 0.0
        %4515 = vmatpush1.xpose.msra.mxu0 0.0
        %4516 = vmatprep.mubr.f32.mxu0 0.0
        %v4517 = vand.u32 %v4073, 4294901760
        %4518 = vmatmul.mubr.f32.gmra.mrb[0].mxu0 %v4517
        %v4519 = vpop.f32.mrb[0].mxu0
        %v4520 = vadd.f32 %v4448, %v4519
        %v4521 = vpop.f32.mrb[0].mxu0
        %4522 = vdwg.mxu0
        %v4523 = vsel %vm1372, %v1356, 0
        %v4525 = vsel %vm1372, %v1371, 0
        %4527 = vmatprep.subr.mxu0 0.0
        %v4528 = vand.u32 %v4525, 4294901760
        %4529 = vmatpush1.xpose.msra.mxu0 %v4528
        %4530 = vmatprep.subr.mxu0 0.0
        %4531 = vmatpush1.xpose.msra.mxu0 0.0
        %4532 = vmatprep.subr.mxu0 0.0
        %4533 = vmatpush1.xpose.msra.mxu0 0.0
        %4534 = vmatprep.subr.mxu0 0.0
        %4535 = vmatpush1.xpose.msra.mxu0 0.0
        %4536 = vmatprep.subr.mxu0 0.0
        %4537 = vmatpush1.xpose.msra.mxu0 0.0
        %4538 = vmatprep.subr.mxu0 0.0
        %4539 = vmatpush1.xpose.msra.mxu0 0.0
        %4540 = vmatprep.subr.mxu0 0.0
        %4541 = vmatpush1.xpose.msra.mxu0 0.0
        %4542 = vmatprep.subr.mxu0 0.0
        %4543 = vmatpush1.xpose.msra.mxu0 0.0
        %4544 = vmatprep.subr.mxu0 0.0
        %4545 = vmatpush1.xpose.msra.mxu0 0.0
        %4546 = vmatprep.subr.mxu0 0.0
        %4547 = vmatpush1.xpose.msra.mxu0 0.0
        %4548 = vmatprep.subr.mxu0 0.0
        %4549 = vmatpush1.xpose.msra.mxu0 0.0
        %4550 = vmatprep.subr.mxu0 0.0
        %4551 = vmatpush1.xpose.msra.mxu0 0.0
        %4552 = vmatprep.subr.mxu0 0.0
        %4553 = vmatpush1.xpose.msra.mxu0 0.0
        %4554 = vmatprep.subr.mxu0 0.0
        %4555 = vmatpush1.xpose.msra.mxu0 0.0
        %4556 = vmatprep.subr.mxu0 0.0
        %4557 = vmatpush1.xpose.msra.mxu0 0.0
        %4558 = vmatprep.subr.mxu0 0.0
        %4559 = vmatpush1.xpose.msra.mxu0 0.0
        %4560 = vmatprep.subr.mxu0 0.0
        %4561 = vmatpush1.xpose.msra.mxu0 0.0
        %4562 = vmatprep.subr.mxu0 0.0
        %4563 = vmatpush1.xpose.msra.mxu0 0.0
        %4564 = vmatprep.subr.mxu0 0.0
        %4565 = vmatpush1.xpose.msra.mxu0 0.0
        %4566 = vmatprep.subr.mxu0 0.0
        %4567 = vmatpush1.xpose.msra.mxu0 0.0
        %4568 = vmatprep.subr.mxu0 0.0
        %4569 = vmatpush1.xpose.msra.mxu0 0.0
        %4570 = vmatprep.subr.mxu0 0.0
        %4571 = vmatpush1.xpose.msra.mxu0 0.0
        %4572 = vmatprep.subr.mxu0 0.0
        %4573 = vmatpush1.xpose.msra.mxu0 0.0
        %4574 = vmatprep.subr.mxu0 0.0
        %4575 = vmatpush1.xpose.msra.mxu0 0.0
        %4576 = vmatprep.subr.mxu0 0.0
        %4577 = vmatpush1.xpose.msra.mxu0 0.0
        %4578 = vmatprep.subr.mxu0 0.0
        %4579 = vmatpush1.xpose.msra.mxu0 0.0
        %4580 = vmatprep.subr.mxu0 0.0
        %4581 = vmatpush1.xpose.msra.mxu0 0.0
        %4582 = vmatprep.subr.mxu0 0.0
        %4583 = vmatpush1.xpose.msra.mxu0 0.0
        %4584 = vmatprep.subr.mxu0 0.0
        %4585 = vmatpush1.xpose.msra.mxu0 0.0
        %4586 = vmatprep.subr.mxu0 0.0
        %4587 = vmatpush1.xpose.msra.mxu0 0.0
        %4588 = vmatprep.subr.mxu0 0.0
        %4589 = vmatpush1.xpose.msra.mxu0 0.0
        %4590 = vmatprep.subr.mxu0 0.0
        %4591 = vmatpush1.xpose.msra.mxu0 0.0
        %4592 = vmatprep.mubr.f32.mxu0 0.0
        %v4593 = vand.u32 %v4523, 4294901760
        %v4594 = vsub.f32 %v4523, %v4593
        %v4595 = vand.u32 %v4594, 4294901760
        %v4596 = vsub.f32 %v4594, %v4595
        %v4597 = vand.u32 %v4596, 4294901760
        %4598 = vmatmul.mubr.f32.gmra.mrb[0].mxu0 %v4597
        %v4599 = vpop.f32.mrb[0].mxu0
        %v4600 = vadd.f32 0.0, %v4599
        %v4601 = vpop.f32.mrb[0].mxu0
        %4602 = vdwg.mxu0
        %4603 = vmatprep.subr.mxu0 0.0
        %v4604 = vand.u32 %v4525, 4294901760
        %v4605 = vsub.f32 %v4525, %v4604
        %v4606 = vand.u32 %v4605, 4294901760
        %v4607 = vsub.f32 %v4605, %v4606
        %v4608 = vand.u32 %v4607, 4294901760
        %4609 = vmatpush1.xpose.msra.mxu0 %v4608
        %4610 = vmatprep.subr.mxu0 0.0
        %4611 = vmatpush1.xpose.msra.mxu0 0.0
        %4612 = vmatprep.subr.mxu0 0.0
        %4613 = vmatpush1.xpose.msra.mxu0 0.0
        %4614 = vmatprep.subr.mxu0 0.0
        %4615 = vmatpush1.xpose.msra.mxu0 0.0
        %4616 = vmatprep.subr.mxu0 0.0
        %4617 = vmatpush1.xpose.msra.mxu0 0.0
        %4618 = vmatprep.subr.mxu0 0.0
        %4619 = vmatpush1.xpose.msra.mxu0 0.0
        %4620 = vmatprep.subr.mxu0 0.0
        %4621 = vmatpush1.xpose.msra.mxu0 0.0
        %4622 = vmatprep.subr.mxu0 0.0
        %4623 = vmatpush1.xpose.msra.mxu0 0.0
        %4624 = vmatprep.subr.mxu0 0.0
        %4625 = vmatpush1.xpose.msra.mxu0 0.0
        %4626 = vmatprep.subr.mxu0 0.0
        %4627 = vmatpush1.xpose.msra.mxu0 0.0
        %4628 = vmatprep.subr.mxu0 0.0
        %4629 = vmatpush1.xpose.msra.mxu0 0.0
        %4630 = vmatprep.subr.mxu0 0.0
        %4631 = vmatpush1.xpose.msra.mxu0 0.0
        %4632 = vmatprep.subr.mxu0 0.0
        %4633 = vmatpush1.xpose.msra.mxu0 0.0
        %4634 = vmatprep.subr.mxu0 0.0
        %4635 = vmatpush1.xpose.msra.mxu0 0.0
        %4636 = vmatprep.subr.mxu0 0.0
        %4637 = vmatpush1.xpose.msra.mxu0 0.0
        %4638 = vmatprep.subr.mxu0 0.0
        %4639 = vmatpush1.xpose.msra.mxu0 0.0
        %4640 = vmatprep.subr.mxu0 0.0
        %4641 = vmatpush1.xpose.msra.mxu0 0.0
        %4642 = vmatprep.subr.mxu0 0.0
        %4643 = vmatpush1.xpose.msra.mxu0 0.0
        %4644 = vmatprep.subr.mxu0 0.0
        %4645 = vmatpush1.xpose.msra.mxu0 0.0
        %4646 = vmatprep.subr.mxu0 0.0
        %4647 = vmatpush1.xpose.msra.mxu0 0.0
        %4648 = vmatprep.subr.mxu0 0.0
        %4649 = vmatpush1.xpose.msra.mxu0 0.0
        %4650 = vmatprep.subr.mxu0 0.0
        %4651 = vmatpush1.xpose.msra.mxu0 0.0
        %4652 = vmatprep.subr.mxu0 0.0
        %4653 = vmatpush1.xpose.msra.mxu0 0.0
        %4654 = vmatprep.subr.mxu0 0.0
        %4655 = vmatpush1.xpose.msra.mxu0 0.0
        %4656 = vmatprep.subr.mxu0 0.0
        %4657 = vmatpush1.xpose.msra.mxu0 0.0
        %4658 = vmatprep.subr.mxu0 0.0
        %4659 = vmatpush1.xpose.msra.mxu0 0.0
        %4660 = vmatprep.subr.mxu0 0.0
        %4661 = vmatpush1.xpose.msra.mxu0 0.0
        %4662 = vmatprep.subr.mxu0 0.0
        %4663 = vmatpush1.xpose.msra.mxu0 0.0
        %4664 = vmatprep.subr.mxu0 0.0
        %4665 = vmatpush1.xpose.msra.mxu0 0.0
        %4666 = vmatprep.subr.mxu0 0.0
        %4667 = vmatpush1.xpose.msra.mxu0 0.0
        %4668 = vmatprep.subr.mxu0 0.0
        %4669 = vmatpush1.xpose.msra.mxu0 0.0
        %4670 = vmatprep.subr.mxu0 0.0
        %4671 = vmatpush1.xpose.msra.mxu0 0.0
        %4672 = vmatprep.mubr.f32.mxu0 0.0
        %v4673 = vand.u32 %v4523, 4294901760
        %4674 = vmatmul.mubr.f32.gmra.mrb[0].mxu0 %v4673
        %v4675 = vpop.f32.mrb[0].mxu0
        %v4676 = vadd.f32 %v4600, %v4675
        %v4677 = vpop.f32.mrb[0].mxu0
        %4678 = vdwg.mxu0
        %4679 = vmatprep.subr.mxu0 0.0
        %v4680 = vand.u32 %v4525, 4294901760
        %v4681 = vsub.f32 %v4525, %v4680
        %4682 = vmatpush1.xpose.msra.mxu0 %v4681
        %4683 = vmatprep.subr.mxu0 0.0
        %4684 = vmatpush1.xpose.msra.mxu0 0.0
        %4685 = vmatprep.subr.mxu0 0.0
        %4686 = vmatpush1.xpose.msra.mxu0 0.0
        %4687 = vmatprep.subr.mxu0 0.0
        %4688 = vmatpush1.xpose.msra.mxu0 0.0
        %4689 = vmatprep.subr.mxu0 0.0
        %4690 = vmatpush1.xpose.msra.mxu0 0.0
        %4691 = vmatprep.subr.mxu0 0.0
        %4692 = vmatpush1.xpose.msra.mxu0 0.0
        %4693 = vmatprep.subr.mxu0 0.0
        %4694 = vmatpush1.xpose.msra.mxu0 0.0
        %4695 = vmatprep.subr.mxu0 0.0
        %4696 = vmatpush1.xpose.msra.mxu0 0.0
        %4697 = vmatprep.subr.mxu0 0.0
        %4698 = vmatpush1.xpose.msra.mxu0 0.0
        %4699 = vmatprep.subr.mxu0 0.0
        %4700 = vmatpush1.xpose.msra.mxu0 0.0
        %4701 = vmatprep.subr.mxu0 0.0
        %4702 = vmatpush1.xpose.msra.mxu0 0.0
        %4703 = vmatprep.subr.mxu0 0.0
        %4704 = vmatpush1.xpose.msra.mxu0 0.0
        %4705 = vmatprep.subr.mxu0 0.0
        %4706 = vmatpush1.xpose.msra.mxu0 0.0
        %4707 = vmatprep.subr.mxu0 0.0
        %4708 = vmatpush1.xpose.msra.mxu0 0.0
        %4709 = vmatprep.subr.mxu0 0.0
        %4710 = vmatpush1.xpose.msra.mxu0 0.0
        %4711 = vmatprep.subr.mxu0 0.0
        %4712 = vmatpush1.xpose.msra.mxu0 0.0
        %4713 = vmatprep.subr.mxu0 0.0
        %4714 = vmatpush1.xpose.msra.mxu0 0.0
        %4715 = vmatprep.subr.mxu0 0.0
        %4716 = vmatpush1.xpose.msra.mxu0 0.0
        %4717 = vmatprep.subr.mxu0 0.0
        %4718 = vmatpush1.xpose.msra.mxu0 0.0
        %4719 = vmatprep.subr.mxu0 0.0
        %4720 = vmatpush1.xpose.msra.mxu0 0.0
        %4721 = vmatprep.subr.mxu0 0.0
        %4722 = vmatpush1.xpose.msra.mxu0 0.0
        %4723 = vmatprep.subr.mxu0 0.0
        %4724 = vmatpush1.xpose.msra.mxu0 0.0
        %4725 = vmatprep.subr.mxu0 0.0
        %4726 = vmatpush1.xpose.msra.mxu0 0.0
        %4727 = vmatprep.subr.mxu0 0.0
        %4728 = vmatpush1.xpose.msra.mxu0 0.0
        %4729 = vmatprep.subr.mxu0 0.0
        %4730 = vmatpush1.xpose.msra.mxu0 0.0
        %4731 = vmatprep.subr.mxu0 0.0
        %4732 = vmatpush1.xpose.msra.mxu0 0.0
        %4733 = vmatprep.subr.mxu0 0.0
        %4734 = vmatpush1.xpose.msra.mxu0 0.0
        %4735 = vmatprep.subr.mxu0 0.0
        %4736 = vmatpush1.xpose.msra.mxu0 0.0
        %4737 = vmatprep.subr.mxu0 0.0
        %4738 = vmatpush1.xpose.msra.mxu0 0.0
        %4739 = vmatprep.subr.mxu0 0.0
        %4740 = vmatpush1.xpose.msra.mxu0 0.0
        %4741 = vmatprep.subr.mxu0 0.0
        %4742 = vmatpush1.xpose.msra.mxu0 0.0
        %4743 = vmatprep.subr.mxu0 0.0
        %4744 = vmatpush1.xpose.msra.mxu0 0.0
        %4745 = vmatprep.mubr.f32.mxu0 0.0
        %v4746 = vand.u32 %v4523, 4294901760
        %v4747 = vsub.f32 %v4523, %v4746
        %4748 = vmatmul.mubr.f32.gmra.mrb[0].mxu0 %v4747
        %v4749 = vpop.f32.mrb[0].mxu0
        %v4750 = vadd.f32 %v4676, %v4749
        %v4751 = vpop.f32.mrb[0].mxu0
        %4752 = vdwg.mxu0
        %4753 = vmatprep.subr.mxu0 0.0
        %v4754 = vand.u32 %v4525, 4294901760
        %4755 = vmatpush1.xpose.msra.mxu0 %v4754
        %4756 = vmatprep.subr.mxu0 0.0
        %4757 = vmatpush1.xpose.msra.mxu0 0.0
        %4758 = vmatprep.subr.mxu0 0.0
        %4759 = vmatpush1.xpose.msra.mxu0 0.0
        %4760 = vmatprep.subr.mxu0 0.0
        %4761 = vmatpush1.xpose.msra.mxu0 0.0
        %4762 = vmatprep.subr.mxu0 0.0
        %4763 = vmatpush1.xpose.msra.mxu0 0.0
        %4764 = vmatprep.subr.mxu0 0.0
        %4765 = vmatpush1.xpose.msra.mxu0 0.0
        %4766 = vmatprep.subr.mxu0 0.0
        %4767 = vmatpush1.xpose.msra.mxu0 0.0
        %4768 = vmatprep.subr.mxu0 0.0
        %4769 = vmatpush1.xpose.msra.mxu0 0.0
        %4770 = vmatprep.subr.mxu0 0.0
        %4771 = vmatpush1.xpose.msra.mxu0 0.0
        %4772 = vmatprep.subr.mxu0 0.0
        %4773 = vmatpush1.xpose.msra.mxu0 0.0
        %4774 = vmatprep.subr.mxu0 0.0
        %4775 = vmatpush1.xpose.msra.mxu0 0.0
        %4776 = vmatprep.subr.mxu0 0.0
        %4777 = vmatpush1.xpose.msra.mxu0 0.0
        %4778 = vmatprep.subr.mxu0 0.0
        %4779 = vmatpush1.xpose.msra.mxu0 0.0
        %4780 = vmatprep.subr.mxu0 0.0
        %4781 = vmatpush1.xpose.msra.mxu0 0.0
        %4782 = vmatprep.subr.mxu0 0.0
        %4783 = vmatpush1.xpose.msra.mxu0 0.0
        %4784 = vmatprep.subr.mxu0 0.0
        %4785 = vmatpush1.xpose.msra.mxu0 0.0
        %4786 = vmatprep.subr.mxu0 0.0
        %4787 = vmatpush1.xpose.msra.mxu0 0.0
        %4788 = vmatprep.subr.mxu0 0.0
        %4789 = vmatpush1.xpose.msra.mxu0 0.0
        %4790 = vmatprep.subr.mxu0 0.0
        %4791 = vmatpush1.xpose.msra.mxu0 0.0
        %4792 = vmatprep.subr.mxu0 0.0
        %4793 = vmatpush1.xpose.msra.mxu0 0.0
        %4794 = vmatprep.subr.mxu0 0.0
        %4795 = vmatpush1.xpose.msra.mxu0 0.0
        %4796 = vmatprep.subr.mxu0 0.0
        %4797 = vmatpush1.xpose.msra.mxu0 0.0
        %4798 = vmatprep.subr.mxu0 0.0
        %4799 = vmatpush1.xpose.msra.mxu0 0.0
        %4800 = vmatprep.subr.mxu0 0.0
        %4801 = vmatpush1.xpose.msra.mxu0 0.0
        %4802 = vmatprep.subr.mxu0 0.0
        %4803 = vmatpush1.xpose.msra.mxu0 0.0
        %4804 = vmatprep.subr.mxu0 0.0
        %4805 = vmatpush1.xpose.msra.mxu0 0.0
        %4806 = vmatprep.subr.mxu0 0.0
        %4807 = vmatpush1.xpose.msra.mxu0 0.0
        %4808 = vmatprep.subr.mxu0 0.0
        %4809 = vmatpush1.xpose.msra.mxu0 0.0
        %4810 = vmatprep.subr.mxu0 0.0
        %4811 = vmatpush1.xpose.msra.mxu0 0.0
        %4812 = vmatprep.subr.mxu0 0.0
        %4813 = vmatpush1.xpose.msra.mxu0 0.0
        %4814 = vmatprep.subr.mxu0 0.0
        %4815 = vmatpush1.xpose.msra.mxu0 0.0
        %4816 = vmatprep.subr.mxu0 0.0
        %4817 = vmatpush1.xpose.msra.mxu0 0.0
        %4818 = vmatprep.mubr.f32.mxu0 0.0
        %v4819 = vand.u32 %v4523, 4294901760
        %v4820 = vsub.f32 %v4523, %v4819
        %v4821 = vand.u32 %v4820, 4294901760
        %4822 = vmatmul.mubr.f32.gmra.mrb[0].mxu0 %v4821
        %v4823 = vpop.f32.mrb[0].mxu0
        %v4824 = vadd.f32 %v4750, %v4823
        %v4825 = vpop.f32.mrb[0].mxu0
        %4826 = vdwg.mxu0
        %4827 = vmatprep.subr.mxu0 0.0
        %v4828 = vand.u32 %v4525, 4294901760
        %v4829 = vsub.f32 %v4525, %v4828
        %v4830 = vand.u32 %v4829, 4294901760
        %4831 = vmatpush1.xpose.msra.mxu0 %v4830
        %4832 = vmatprep.subr.mxu0 0.0
        %4833 = vmatpush1.xpose.msra.mxu0 0.0
        %4834 = vmatprep.subr.mxu0 0.0
        %4835 = vmatpush1.xpose.msra.mxu0 0.0
        %4836 = vmatprep.subr.mxu0 0.0
        %4837 = vmatpush1.xpose.msra.mxu0 0.0
        %4838 = vmatprep.subr.mxu0 0.0
        %4839 = vmatpush1.xpose.msra.mxu0 0.0
        %4840 = vmatprep.subr.mxu0 0.0
        %4841 = vmatpush1.xpose.msra.mxu0 0.0
        %4842 = vmatprep.subr.mxu0 0.0
        %4843 = vmatpush1.xpose.msra.mxu0 0.0
        %4844 = vmatprep.subr.mxu0 0.0
        %4845 = vmatpush1.xpose.msra.mxu0 0.0
        %4846 = vmatprep.subr.mxu0 0.0
        %4847 = vmatpush1.xpose.msra.mxu0 0.0
        %4848 = vmatprep.subr.mxu0 0.0
        %4849 = vmatpush1.xpose.msra.mxu0 0.0
        %4850 = vmatprep.subr.mxu0 0.0
        %4851 = vmatpush1.xpose.msra.mxu0 0.0
        %4852 = vmatprep.subr.mxu0 0.0
        %4853 = vmatpush1.xpose.msra.mxu0 0.0
        %4854 = vmatprep.subr.mxu0 0.0
        %4855 = vmatpush1.xpose.msra.mxu0 0.0
        %4856 = vmatprep.subr.mxu0 0.0
        %4857 = vmatpush1.xpose.msra.mxu0 0.0
        %4858 = vmatprep.subr.mxu0 0.0
        %4859 = vmatpush1.xpose.msra.mxu0 0.0
        %4860 = vmatprep.subr.mxu0 0.0
        %4861 = vmatpush1.xpose.msra.mxu0 0.0
        %4862 = vmatprep.subr.mxu0 0.0
        %4863 = vmatpush1.xpose.msra.mxu0 0.0
        %4864 = vmatprep.subr.mxu0 0.0
        %4865 = vmatpush1.xpose.msra.mxu0 0.0
        %4866 = vmatprep.subr.mxu0 0.0
        %4867 = vmatpush1.xpose.msra.mxu0 0.0
        %4868 = vmatprep.subr.mxu0 0.0
        %4869 = vmatpush1.xpose.msra.mxu0 0.0
        %4870 = vmatprep.subr.mxu0 0.0
        %4871 = vmatpush1.xpose.msra.mxu0 0.0
        %4872 = vmatprep.subr.mxu0 0.0
        %4873 = vmatpush1.xpose.msra.mxu0 0.0
        %4874 = vmatprep.subr.mxu0 0.0
        %4875 = vmatpush1.xpose.msra.mxu0 0.0
        %4876 = vmatprep.subr.mxu0 0.0
        %4877 = vmatpush1.xpose.msra.mxu0 0.0
        %4878 = vmatprep.subr.mxu0 0.0
        %4879 = vmatpush1.xpose.msra.mxu0 0.0
        %4880 = vmatprep.subr.mxu0 0.0
        %4881 = vmatpush1.xpose.msra.mxu0 0.0
        %4882 = vmatprep.subr.mxu0 0.0
        %4883 = vmatpush1.xpose.msra.mxu0 0.0
        %4884 = vmatprep.subr.mxu0 0.0
        %4885 = vmatpush1.xpose.msra.mxu0 0.0
        %4886 = vmatprep.subr.mxu0 0.0
        %4887 = vmatpush1.xpose.msra.mxu0 0.0
        %4888 = vmatprep.subr.mxu0 0.0
        %4889 = vmatpush1.xpose.msra.mxu0 0.0
        %4890 = vmatprep.subr.mxu0 0.0
        %4891 = vmatpush1.xpose.msra.mxu0 0.0
        %4892 = vmatprep.subr.mxu0 0.0
        %4893 = vmatpush1.xpose.msra.mxu0 0.0
        %4894 = vmatprep.mubr.f32.mxu0 0.0
        %v4895 = vand.u32 %v4523, 4294901760
        %4896 = vmatmul.mubr.f32.gmra.mrb[0].mxu0 %v4895
        %v4897 = vpop.f32.mrb[0].mxu0
        %v4898 = vadd.f32 %v4824, %v4897
        %v4899 = vpop.f32.mrb[0].mxu0
        %4900 = vdwg.mxu0
        %4901 = vmatprep.subr.mxu0 0.0
        %v4902 = vand.u32 %v4525, 4294901760
        %4903 = vmatpush1.xpose.msra.mxu0 %v4902
        %4904 = vmatprep.subr.mxu0 0.0
        %4905 = vmatpush1.xpose.msra.mxu0 0.0
        %4906 = vmatprep.subr.mxu0 0.0
        %4907 = vmatpush1.xpose.msra.mxu0 0.0
        %4908 = vmatprep.subr.mxu0 0.0
        %4909 = vmatpush1.xpose.msra.mxu0 0.0
        %4910 = vmatprep.subr.mxu0 0.0
        %4911 = vmatpush1.xpose.msra.mxu0 0.0
        %4912 = vmatprep.subr.mxu0 0.0
        %4913 = vmatpush1.xpose.msra.mxu0 0.0
        %4914 = vmatprep.subr.mxu0 0.0
        %4915 = vmatpush1.xpose.msra.mxu0 0.0
        %4916 = vmatprep.subr.mxu0 0.0
        %4917 = vmatpush1.xpose.msra.mxu0 0.0
        %4918 = vmatprep.subr.mxu0 0.0
        %4919 = vmatpush1.xpose.msra.mxu0 0.0
        %4920 = vmatprep.subr.mxu0 0.0
        %4921 = vmatpush1.xpose.msra.mxu0 0.0
        %4922 = vmatprep.subr.mxu0 0.0
        %4923 = vmatpush1.xpose.msra.mxu0 0.0
        %4924 = vmatprep.subr.mxu0 0.0
        %4925 = vmatpush1.xpose.msra.mxu0 0.0
        %4926 = vmatprep.subr.mxu0 0.0
        %4927 = vmatpush1.xpose.msra.mxu0 0.0
        %4928 = vmatprep.subr.mxu0 0.0
        %4929 = vmatpush1.xpose.msra.mxu0 0.0
        %4930 = vmatprep.subr.mxu0 0.0
        %4931 = vmatpush1.xpose.msra.mxu0 0.0
        %4932 = vmatprep.subr.mxu0 0.0
        %4933 = vmatpush1.xpose.msra.mxu0 0.0
        %4934 = vmatprep.subr.mxu0 0.0
        %4935 = vmatpush1.xpose.msra.mxu0 0.0
        %4936 = vmatprep.subr.mxu0 0.0
        %4937 = vmatpush1.xpose.msra.mxu0 0.0
        %4938 = vmatprep.subr.mxu0 0.0
        %4939 = vmatpush1.xpose.msra.mxu0 0.0
        %4940 = vmatprep.subr.mxu0 0.0
        %4941 = vmatpush1.xpose.msra.mxu0 0.0
        %4942 = vmatprep.subr.mxu0 0.0
        %4943 = vmatpush1.xpose.msra.mxu0 0.0
        %4944 = vmatprep.subr.mxu0 0.0
        %4945 = vmatpush1.xpose.msra.mxu0 0.0
        %4946 = vmatprep.subr.mxu0 0.0
        %4947 = vmatpush1.xpose.msra.mxu0 0.0
        %4948 = vmatprep.subr.mxu0 0.0
        %4949 = vmatpush1.xpose.msra.mxu0 0.0
        %4950 = vmatprep.subr.mxu0 0.0
        %4951 = vmatpush1.xpose.msra.mxu0 0.0
        %4952 = vmatprep.subr.mxu0 0.0
        %4953 = vmatpush1.xpose.msra.mxu0 0.0
        %4954 = vmatprep.subr.mxu0 0.0
        %4955 = vmatpush1.xpose.msra.mxu0 0.0
        %4956 = vmatprep.subr.mxu0 0.0
        %4957 = vmatpush1.xpose.msra.mxu0 0.0
        %4958 = vmatprep.subr.mxu0 0.0
        %4959 = vmatpush1.xpose.msra.mxu0 0.0
        %4960 = vmatprep.subr.mxu0 0.0
        %4961 = vmatpush1.xpose.msra.mxu0 0.0
        %4962 = vmatprep.subr.mxu0 0.0
        %4963 = vmatpush1.xpose.msra.mxu0 0.0
        %4964 = vmatprep.subr.mxu0 0.0
        %4965 = vmatpush1.xpose.msra.mxu0 0.0
        %4966 = vmatprep.mubr.f32.mxu0 0.0
        %v4967 = vand.u32 %v4523, 4294901760
        %4968 = vmatmul.mubr.f32.gmra.mrb[0].mxu0 %v4967
        %v4969 = vpop.f32.mrb[0].mxu0
        %v4970 = vadd.f32 %v4898, %v4969
        %v4971 = vpop.f32.mrb[0].mxu0
        %4972 = vdwg.mxu0
        %v4973 = vmul.f32 %v1820, 0.5
        %v4974 = vmul.f32 %v2270, 0.5
        %v4975 = vmul.f32 %v2720, 0.5
        %v4976 = vmul.f32 %v3170, 0.5
        %v4977 = vmul.f32 %v3620, 0.5
        %v4978 = vmul.f32 %v4070, 0.5
        %v4979 = vmul.f32 %v4520, 0.5
        %v4980 = vmul.f32 %v4970, 0.5
        %vm4981 = vcmask 64512
        %v4982 = vsel %vm4981, %v4973, -inf
        %4983 = vmax.xlane.f32.xlu0 %v4982
        %v4984 = vpop.xlane.xlu0 %4983
        %v4985 = vsel %vm4981, %v4974, -inf
        %4986 = vmax.xlane.f32.xlu0 %v4985
        %v4987 = vpop.xlane.xlu0 %4986
        %v4988 = vsel %vm4981, %v4975, -inf
        %4989 = vmax.xlane.f32.xlu0 %v4988
        %v4990 = vpop.xlane.xlu0 %4989
        %v4991 = vsel %vm4981, %v4976, -inf
        %4992 = vmax.xlane.f32.xlu0 %v4991
        %v4993 = vpop.xlane.xlu0 %4992
        %v4994 = vsel %vm4981, %v4977, -inf
        %4995 = vmax.xlane.f32.xlu0 %v4994
        %v4996 = vpop.xlane.xlu0 %4995
        %v4997 = vsel %vm4981, %v4978, -inf
        %4998 = vmax.xlane.f32.xlu0 %v4997
        %v4999 = vpop.xlane.xlu0 %4998
        %v5000 = vsel %vm4981, %v4979, -inf
        %5001 = vmax.xlane.f32.xlu0 %v5000
        %v5002 = vpop.xlane.xlu0 %5001
        %v5003 = vsel %vm4981, %v4980, -inf
        %5004 = vmax.xlane.f32.xlu0 %v5003
        %v5005 = vpop.xlane.xlu0 %5004
        %v5006 = vsub.f32 %v4973, %v4984
        %v5007 = vsub.f32 %v4974, %v4987
        %v5008 = vsub.f32 %v4975, %v4990
        %v5009 = vsub.f32 %v4976, %v4993
        %v5010 = vsub.f32 %v4977, %v4996
        %v5011 = vsub.f32 %v4978, %v4999
        %v5012 = vsub.f32 %v4979, %v5002
        %v5013 = vsub.f32 %v4980, %v5005
        %v5014 = vmul.f32 %v5006, 1.442695
        %v5015 = vpow.pop %v5014
        %v5016 = vmul.f32 %v5007, 1.442695
        %v5017 = vpow.pop %v5016
        %v5018 = vmul.f32 %v5008, 1.442695
        %v5019 = vpow.pop %v5018
        %v5020 = vmul.f32 %v5009, 1.442695
        %v5021 = vpow.pop %v5020
        %v5022 = vmul.f32 %v5010, 1.442695
        %v5023 = vpow.pop %v5022
        %v5024 = vmul.f32 %v5011, 1.442695
        %v5025 = vpow.pop %v5024
        %v5026 = vmul.f32 %v5012, 1.442695
        %v5027 = vpow.pop %v5026
        %v5028 = vmul.f32 %v5013, 1.442695
        %v5029 = vpow.pop %v5028
        %v5030 = vsel %vm4981, %v5015, 0.0
        %5031 = vadd.xlane.f32.xlu0 %v5030
        %v5032 = vpop.xlane.xlu0 %5031
        %v5033 = vsel %vm4981, %v5017, 0.0
        %5034 = vadd.xlane.f32.xlu0 %v5033
        %v5035 = vpop.xlane.xlu0 %5034
        %v5036 = vsel %vm4981, %v5019, 0.0
        %5037 = vadd.xlane.f32.xlu0 %v5036
        %v5038 = vpop.xlane.xlu0 %5037
        %v5039 = vsel %vm4981, %v5021, 0.0
        %5040 = vadd.xlane.f32.xlu0 %v5039
        %v5041 = vpop.xlane.xlu0 %5040
        %v5042 = vsel %vm4981, %v5023, 0.0
        %5043 = vadd.xlane.f32.xlu0 %v5042
        %v5044 = vpop.xlane.xlu0 %5043
        %v5045 = vsel %vm4981, %v5025, 0.0
        %5046 = vadd.xlane.f32.xlu0 %v5045
        %v5047 = vpop.xlane.xlu0 %5046
        %v5048 = vsel %vm4981, %v5027, 0.0
        %5049 = vadd.xlane.f32.xlu0 %v5048
        %v5050 = vpop.xlane.xlu0 %5049
        %v5051 = vsel %vm4981, %v5029, 0.0
        %5052 = vadd.xlane.f32.xlu0 %v5051
        %v5053 = vpop.xlane.xlu0 %5052
        %v5054 = vrcp.pop %v5032
        %v5055 = vmul.f32 %v5015, %v5054
        %v5056 = vrcp.pop %v5035
        %v5057 = vmul.f32 %v5017, %v5056
        %v5058 = vrcp.pop %v5038
        %v5059 = vmul.f32 %v5019, %v5058
        %v5060 = vrcp.pop %v5041
        %v5061 = vmul.f32 %v5021, %v5060
        %v5062 = vrcp.pop %v5044
        %v5063 = vmul.f32 %v5023, %v5062
        %v5064 = vrcp.pop %v5047
        %v5065 = vmul.f32 %v5025, %v5064
        %v5066 = vrcp.pop %v5050
        %v5067 = vmul.f32 %v5027, %v5066
        %v5068 = vrcp.pop %v5053
        %v5069 = vmul.f32 %v5029, %v5068
        %5070 = vrot.lane.b32.xlu0 %v1339, 96
        %v5071 = vpop.permute.xlu0 %5070
        %v5074 = vsel %vm4981, %v5055, 0
        %5076 = vmatprep.subr.mxu0 0.0
        %v5077 = vand.u32 %v5071, 4294901760
        %5078 = vmatpush1.msra.mxu0 %v5077
        %5079 = vmatprep.subr.mxu0 0.0
        %5080 = vmatpush1.msra.mxu0 0.0
        %5081 = vmatprep.subr.mxu0 0.0
        %5082 = vmatpush1.msra.mxu0 0.0
        %5083 = vmatprep.subr.mxu0 0.0
        %5084 = vmatpush1.msra.mxu0 0.0
        %5085 = vmatprep.subr.mxu0 0.0
        %5086 = vmatpush1.msra.mxu0 0.0
        %5087 = vmatprep.subr.mxu0 0.0
        %5088 = vmatpush1.msra.mxu0 0.0
        %5089 = vmatprep.subr.mxu0 0.0
        %5090 = vmatpush1.msra.mxu0 0.0
        %5091 = vmatprep.subr.mxu0 0.0
        %5092 = vmatpush1.msra.mxu0 0.0
        %5093 = vmatprep.subr.mxu0 0.0
        %5094 = vmatpush1.msra.mxu0 0.0
        %5095 = vmatprep.subr.mxu0 0.0
        %5096 = vmatpush1.msra.mxu0 0.0
        %5097 = vmatprep.subr.mxu0 0.0
        %5098 = vmatpush1.msra.mxu0 0.0
        %5099 = vmatprep.subr.mxu0 0.0
        %5100 = vmatpush1.msra.mxu0 0.0
        %5101 = vmatprep.subr.mxu0 0.0
        %5102 = vmatpush1.msra.mxu0 0.0
        %5103 = vmatprep.subr.mxu0 0.0
        %5104 = vmatpush1.msra.mxu0 0.0
        %5105 = vmatprep.subr.mxu0 0.0
        %5106 = vmatpush1.msra.mxu0 0.0
        %5107 = vmatprep.subr.mxu0 0.0
        %5108 = vmatpush1.msra.mxu0 0.0
        %5109 = vmatprep.subr.mxu0 0.0
        %5110 = vmatpush1.msra.mxu0 0.0
        %5111 = vmatprep.subr.mxu0 0.0
        %5112 = vmatpush1.msra.mxu0 0.0
        %5113 = vmatprep.subr.mxu0 0.0
        %5114 = vmatpush1.msra.mxu0 0.0
        %5115 = vmatprep.subr.mxu0 0.0
        %5116 = vmatpush1.msra.mxu0 0.0
        %5117 = vmatprep.subr.mxu0 0.0
        %5118 = vmatpush1.msra.mxu0 0.0
        %5119 = vmatprep.subr.mxu0 0.0
        %5120 = vmatpush1.msra.mxu0 0.0
        %5121 = vmatprep.subr.mxu0 0.0
        %5122 = vmatpush1.msra.mxu0 0.0
        %5123 = vmatprep.subr.mxu0 0.0
        %5124 = vmatpush1.msra.mxu0 0.0
        %5125 = vmatprep.subr.mxu0 0.0
        %5126 = vmatpush1.msra.mxu0 0.0
        %5127 = vmatprep.subr.mxu0 0.0
        %5128 = vmatpush1.msra.mxu0 0.0
        %5129 = vmatprep.subr.mxu0 0.0
        %5130 = vmatpush1.msra.mxu0 0.0
        %5131 = vmatprep.subr.mxu0 0.0
        %5132 = vmatpush1.msra.mxu0 0.0
        %5133 = vmatprep.subr.mxu0 0.0
        %5134 = vmatpush1.msra.mxu0 0.0
        %5135 = vmatprep.subr.mxu0 0.0
        %5136 = vmatpush1.msra.mxu0 0.0
        %5137 = vmatprep.subr.mxu0 0.0
        %5138 = vmatpush1.msra.mxu0 0.0
        %5139 = vmatprep.subr.mxu0 0.0
        %5140 = vmatpush1.msra.mxu0 0.0
        %5141 = vmatprep.mubr.f32.mxu0 0.0
        %v5142 = vand.u32 %v5074, 4294901760
        %v5143 = vsub.f32 %v5074, %v5142
        %v5144 = vand.u32 %v5143, 4294901760
        %v5145 = vsub.f32 %v5143, %v5144
        %v5146 = vand.u32 %v5145, 4294901760
        %5147 = vmatmul.mubr.f32.gmra.mrb[0].mxu0 %v5146
        %v5148 = vpop.f32.mrb[0].mxu0
        %v5149 = vadd.f32 0.0, %v5148
        %v5150 = vpop.f32.mrb[0].mxu0
        %5151 = vdwg.mxu0
        %5152 = vmatprep.subr.mxu0 0.0
        %v5153 = vand.u32 %v5071, 4294901760
        %v5154 = vsub.f32 %v5071, %v5153
        %v5155 = vand.u32 %v5154, 4294901760
        %v5156 = vsub.f32 %v5154, %v5155
        %v5157 = vand.u32 %v5156, 4294901760
        %5158 = vmatpush1.msra.mxu0 %v5157
        %5159 = vmatprep.subr.mxu0 0.0
        %5160 = vmatpush1.msra.mxu0 0.0
        %5161 = vmatprep.subr.mxu0 0.0
        %5162 = vmatpush1.msra.mxu0 0.0
        %5163 = vmatprep.subr.mxu0 0.0
        %5164 = vmatpush1.msra.mxu0 0.0
        %5165 = vmatprep.subr.mxu0 0.0
        %5166 = vmatpush1.msra.mxu0 0.0
        %5167 = vmatprep.subr.mxu0 0.0
        %5168 = vmatpush1.msra.mxu0 0.0
        %5169 = vmatprep.subr.mxu0 0.0
        %5170 = vmatpush1.msra.mxu0 0.0
        %5171 = vmatprep.subr.mxu0 0.0
        %5172 = vmatpush1.msra.mxu0 0.0
        %5173 = vmatprep.subr.mxu0 0.0
        %5174 = vmatpush1.msra.mxu0 0.0
        %5175 = vmatprep.subr.mxu0 0.0
        %5176 = vmatpush1.msra.mxu0 0.0
        %5177 = vmatprep.subr.mxu0 0.0
        %5178 = vmatpush1.msra.mxu0 0.0
        %5179 = vmatprep.subr.mxu0 0.0
        %5180 = vmatpush1.msra.mxu0 0.0
        %5181 = vmatprep.subr.mxu0 0.0
        %5182 = vmatpush1.msra.mxu0 0.0
        %5183 = vmatprep.subr.mxu0 0.0
        %5184 = vmatpush1.msra.mxu0 0.0
        %5185 = vmatprep.subr.mxu0 0.0
        %5186 = vmatpush1.msra.mxu0 0.0
        %5187 = vmatprep.subr.mxu0 0.0
        %5188 = vmatpush1.msra.mxu0 0.0
        %5189 = vmatprep.subr.mxu0 0.0
        %5190 = vmatpush1.msra.mxu0 0.0
        %5191 = vmatprep.subr.mxu0 0.0
        %5192 = vmatpush1.msra.mxu0 0.0
        %5193 = vmatprep.subr.mxu0 0.0
        %5194 = vmatpush1.msra.mxu0 0.0
        %5195 = vmatprep.subr.mxu0 0.0
        %5196 = vmatpush1.msra.mxu0 0.0
        %5197 = vmatprep.subr.mxu0 0.0
        %5198 = vmatpush1.msra.mxu0 0.0
        %5199 = vmatprep.subr.mxu0 0.0
        %5200 = vmatpush1.msra.mxu0 0.0
        %5201 = vmatprep.subr.mxu0 0.0
        %5202 = vmatpush1.msra.mxu0 0.0
        %5203 = vmatprep.subr.mxu0 0.0
        %5204 = vmatpush1.msra.mxu0 0.0
        %5205 = vmatprep.subr.mxu0 0.0
        %5206 = vmatpush1.msra.mxu0 0.0
        %5207 = vmatprep.subr.mxu0 0.0
        %5208 = vmatpush1.msra.mxu0 0.0
        %5209 = vmatprep.subr.mxu0 0.0
        %5210 = vmatpush1.msra.mxu0 0.0
        %5211 = vmatprep.subr.mxu0 0.0
        %5212 = vmatpush1.msra.mxu0 0.0
        %5213 = vmatprep.subr.mxu0 0.0
        %5214 = vmatpush1.msra.mxu0 0.0
        %5215 = vmatprep.subr.mxu0 0.0
        %5216 = vmatpush1.msra.mxu0 0.0
        %5217 = vmatprep.subr.mxu0 0.0
        %5218 = vmatpush1.msra.mxu0 0.0
        %5219 = vmatprep.subr.mxu0 0.0
        %5220 = vmatpush1.msra.mxu0 0.0
        %5221 = vmatprep.mubr.f32.mxu0 0.0
        %v5222 = vand.u32 %v5074, 4294901760
        %5223 = vmatmul.mubr.f32.gmra.mrb[0].mxu0 %v5222
        %v5224 = vpop.f32.mrb[0].mxu0
        %v5225 = vadd.f32 %v5149, %v5224
        %v5226 = vpop.f32.mrb[0].mxu0
        %5227 = vdwg.mxu0
        %5228 = vmatprep.subr.mxu0 0.0
        %v5229 = vand.u32 %v5071, 4294901760
        %v5230 = vsub.f32 %v5071, %v5229
        %5231 = vmatpush1.msra.mxu0 %v5230
        %5232 = vmatprep.subr.mxu0 0.0
        %5233 = vmatpush1.msra.mxu0 0.0
        %5234 = vmatprep.subr.mxu0 0.0
        %5235 = vmatpush1.msra.mxu0 0.0
        %5236 = vmatprep.subr.mxu0 0.0
        %5237 = vmatpush1.msra.mxu0 0.0
        %5238 = vmatprep.subr.mxu0 0.0
        %5239 = vmatpush1.msra.mxu0 0.0
        %5240 = vmatprep.subr.mxu0 0.0
        %5241 = vmatpush1.msra.mxu0 0.0
        %5242 = vmatprep.subr.mxu0 0.0
        %5243 = vmatpush1.msra.mxu0 0.0
        %5244 = vmatprep.subr.mxu0 0.0
        %5245 = vmatpush1.msra.mxu0 0.0
        %5246 = vmatprep.subr.mxu0 0.0
        %5247 = vmatpush1.msra.mxu0 0.0
        %5248 = vmatprep.subr.mxu0 0.0
        %5249 = vmatpush1.msra.mxu0 0.0
        %5250 = vmatprep.subr.mxu0 0.0
        %5251 = vmatpush1.msra.mxu0 0.0
        %5252 = vmatprep.subr.mxu0 0.0
        %5253 = vmatpush1.msra.mxu0 0.0
        %5254 = vmatprep.subr.mxu0 0.0
        %5255 = vmatpush1.msra.mxu0 0.0
        %5256 = vmatprep.subr.mxu0 0.0
        %5257 = vmatpush1.msra.mxu0 0.0
        %5258 = vmatprep.subr.mxu0 0.0
        %5259 = vmatpush1.msra.mxu0 0.0
        %5260 = vmatprep.subr.mxu0 0.0
        %5261 = vmatpush1.msra.mxu0 0.0
        %5262 = vmatprep.subr.mxu0 0.0
        %5263 = vmatpush1.msra.mxu0 0.0
        %5264 = vmatprep.subr.mxu0 0.0
        %5265 = vmatpush1.msra.mxu0 0.0
        %5266 = vmatprep.subr.mxu0 0.0
        %5267 = vmatpush1.msra.mxu0 0.0
        %5268 = vmatprep.subr.mxu0 0.0
        %5269 = vmatpush1.msra.mxu0 0.0
        %5270 = vmatprep.subr.mxu0 0.0
        %5271 = vmatpush1.msra.mxu0 0.0
        %5272 = vmatprep.subr.mxu0 0.0
        %5273 = vmatpush1.msra.mxu0 0.0
        %5274 = vmatprep.subr.mxu0 0.0
        %5275 = vmatpush1.msra.mxu0 0.0
        %5276 = vmatprep.subr.mxu0 0.0
        %5277 = vmatpush1.msra.mxu0 0.0
        %5278 = vmatprep.subr.mxu0 0.0
        %5279 = vmatpush1.msra.mxu0 0.0
        %5280 = vmatprep.subr.mxu0 0.0
        %5281 = vmatpush1.msra.mxu0 0.0
        %5282 = vmatprep.subr.mxu0 0.0
        %5283 = vmatpush1.msra.mxu0 0.0
        %5284 = vmatprep.subr.mxu0 0.0
        %5285 = vmatpush1.msra.mxu0 0.0
        %5286 = vmatprep.subr.mxu0 0.0
        %5287 = vmatpush1.msra.mxu0 0.0
        %5288 = vmatprep.subr.mxu0 0.0
        %5289 = vmatpush1.msra.mxu0 0.0
        %5290 = vmatprep.subr.mxu0 0.0
        %5291 = vmatpush1.msra.mxu0 0.0
        %5292 = vmatprep.subr.mxu0 0.0
        %5293 = vmatpush1.msra.mxu0 0.0
        %5294 = vmatprep.mubr.f32.mxu0 0.0
        %v5295 = vand.u32 %v5074, 4294901760
        %v5296 = vsub.f32 %v5074, %v5295
        %5297 = vmatmul.mubr.f32.gmra.mrb[0].mxu0 %v5296
        %v5298 = vpop.f32.mrb[0].mxu0
        %v5299 = vadd.f32 %v5225, %v5298
        %v5300 = vpop.f32.mrb[0].mxu0
        %5301 = vdwg.mxu0
        %5302 = vmatprep.subr.mxu0 0.0
        %v5303 = vand.u32 %v5071, 4294901760
        %5304 = vmatpush1.msra.mxu0 %v5303
        %5305 = vmatprep.subr.mxu0 0.0
        %5306 = vmatpush1.msra.mxu0 0.0
        %5307 = vmatprep.subr.mxu0 0.0
        %5308 = vmatpush1.msra.mxu0 0.0
        %5309 = vmatprep.subr.mxu0 0.0
        %5310 = vmatpush1.msra.mxu0 0.0
        %5311 = vmatprep.subr.mxu0 0.0
        %5312 = vmatpush1.msra.mxu0 0.0
        %5313 = vmatprep.subr.mxu0 0.0
        %5314 = vmatpush1.msra.mxu0 0.0
        %5315 = vmatprep.subr.mxu0 0.0
        %5316 = vmatpush1.msra.mxu0 0.0
        %5317 = vmatprep.subr.mxu0 0.0
        %5318 = vmatpush1.msra.mxu0 0.0
        %5319 = vmatprep.subr.mxu0 0.0
        %5320 = vmatpush1.msra.mxu0 0.0
        %5321 = vmatprep.subr.mxu0 0.0
        %5322 = vmatpush1.msra.mxu0 0.0
        %5323 = vmatprep.subr.mxu0 0.0
        %5324 = vmatpush1.msra.mxu0 0.0
        %5325 = vmatprep.subr.mxu0 0.0
        %5326 = vmatpush1.msra.mxu0 0.0
        %5327 = vmatprep.subr.mxu0 0.0
        %5328 = vmatpush1.msra.mxu0 0.0
        %5329 = vmatprep.subr.mxu0 0.0
        %5330 = vmatpush1.msra.mxu0 0.0
        %5331 = vmatprep.subr.mxu0 0.0
        %5332 = vmatpush1.msra.mxu0 0.0
        %5333 = vmatprep.subr.mxu0 0.0
        %5334 = vmatpush1.msra.mxu0 0.0
        %5335 = vmatprep.subr.mxu0 0.0
        %5336 = vmatpush1.msra.mxu0 0.0
        %5337 = vmatprep.subr.mxu0 0.0
        %5338 = vmatpush1.msra.mxu0 0.0
        %5339 = vmatprep.subr.mxu0 0.0
        %5340 = vmatpush1.msra.mxu0 0.0
        %5341 = vmatprep.subr.mxu0 0.0
        %5342 = vmatpush1.msra.mxu0 0.0
        %5343 = vmatprep.subr.mxu0 0.0
        %5344 = vmatpush1.msra.mxu0 0.0
        %5345 = vmatprep.subr.mxu0 0.0
        %5346 = vmatpush1.msra.mxu0 0.0
        %5347 = vmatprep.subr.mxu0 0.0
        %5348 = vmatpush1.msra.mxu0 0.0
        %5349 = vmatprep.subr.mxu0 0.0
        %5350 = vmatpush1.msra.mxu0 0.0
        %5351 = vmatprep.subr.mxu0 0.0
        %5352 = vmatpush1.msra.mxu0 0.0
        %5353 = vmatprep.subr.mxu0 0.0
        %5354 = vmatpush1.msra.mxu0 0.0
        %5355 = vmatprep.subr.mxu0 0.0
        %5356 = vmatpush1.msra.mxu0 0.0
        %5357 = vmatprep.subr.mxu0 0.0
        %5358 = vmatpush1.msra.mxu0 0.0
        %5359 = vmatprep.subr.mxu0 0.0
        %5360 = vmatpush1.msra.mxu0 0.0
        %5361 = vmatprep.subr.mxu0 0.0
        %5362 = vmatpush1.msra.mxu0 0.0
        %5363 = vmatprep.subr.mxu0 0.0
        %5364 = vmatpush1.msra.mxu0 0.0
        %5365 = vmatprep.subr.mxu0 0.0
        %5366 = vmatpush1.msra.mxu0 0.0
        %5367 = vmatprep.mubr.f32.mxu0 0.0
        %v5368 = vand.u32 %v5074, 4294901760
        %v5369 = vsub.f32 %v5074, %v5368
        %v5370 = vand.u32 %v5369, 4294901760
        %5371 = vmatmul.mubr.f32.gmra.mrb[0].mxu0 %v5370
        %v5372 = vpop.f32.mrb[0].mxu0
        %v5373 = vadd.f32 %v5299, %v5372
        %v5374 = vpop.f32.mrb[0].mxu0
        %5375 = vdwg.mxu0
        %5376 = vmatprep.subr.mxu0 0.0
        %v5377 = vand.u32 %v5071, 4294901760
        %v5378 = vsub.f32 %v5071, %v5377
        %v5379 = vand.u32 %v5378, 4294901760
        %5380 = vmatpush1.msra.mxu0 %v5379
        %5381 = vmatprep.subr.mxu0 0.0
        %5382 = vmatpush1.msra.mxu0 0.0
        %5383 = vmatprep.subr.mxu0 0.0
        %5384 = vmatpush1.msra.mxu0 0.0
        %5385 = vmatprep.subr.mxu0 0.0
        %5386 = vmatpush1.msra.mxu0 0.0
        %5387 = vmatprep.subr.mxu0 0.0
        %5388 = vmatpush1.msra.mxu0 0.0
        %5389 = vmatprep.subr.mxu0 0.0
        %5390 = vmatpush1.msra.mxu0 0.0
        %5391 = vmatprep.subr.mxu0 0.0
        %5392 = vmatpush1.msra.mxu0 0.0
        %5393 = vmatprep.subr.mxu0 0.0
        %5394 = vmatpush1.msra.mxu0 0.0
        %5395 = vmatprep.subr.mxu0 0.0
        %5396 = vmatpush1.msra.mxu0 0.0
        %5397 = vmatprep.subr.mxu0 0.0
        %5398 = vmatpush1.msra.mxu0 0.0
        %5399 = vmatprep.subr.mxu0 0.0
        %5400 = vmatpush1.msra.mxu0 0.0
        %5401 = vmatprep.subr.mxu0 0.0
        %5402 = vmatpush1.msra.mxu0 0.0
        %5403 = vmatprep.subr.mxu0 0.0
        %5404 = vmatpush1.msra.mxu0 0.0
        %5405 = vmatprep.subr.mxu0 0.0
        %5406 = vmatpush1.msra.mxu0 0.0
        %5407 = vmatprep.subr.mxu0 0.0
        %5408 = vmatpush1.msra.mxu0 0.0
        %5409 = vmatprep.subr.mxu0 0.0
        %5410 = vmatpush1.msra.mxu0 0.0
        %5411 = vmatprep.subr.mxu0 0.0
        %5412 = vmatpush1.msra.mxu0 0.0
        %5413 = vmatprep.subr.mxu0 0.0
        %5414 = vmatpush1.msra.mxu0 0.0
        %5415 = vmatprep.subr.mxu0 0.0
        %5416 = vmatpush1.msra.mxu0 0.0
        %5417 = vmatprep.subr.mxu0 0.0
        %5418 = vmatpush1.msra.mxu0 0.0
        %5419 = vmatprep.subr.mxu0 0.0
        %5420 = vmatpush1.msra.mxu0 0.0
        %5421 = vmatprep.subr.mxu0 0.0
        %5422 = vmatpush1.msra.mxu0 0.0
        %5423 = vmatprep.subr.mxu0 0.0
        %5424 = vmatpush1.msra.mxu0 0.0
        %5425 = vmatprep.subr.mxu0 0.0
        %5426 = vmatpush1.msra.mxu0 0.0
        %5427 = vmatprep.subr.mxu0 0.0
        %5428 = vmatpush1.msra.mxu0 0.0
        %5429 = vmatprep.subr.mxu0 0.0
        %5430 = vmatpush1.msra.mxu0 0.0
        %5431 = vmatprep.subr.mxu0 0.0
        %5432 = vmatpush1.msra.mxu0 0.0
        %5433 = vmatprep.subr.mxu0 0.0
        %5434 = vmatpush1.msra.mxu0 0.0
        %5435 = vmatprep.subr.mxu0 0.0
        %5436 = vmatpush1.msra.mxu0 0.0
        %5437 = vmatprep.subr.mxu0 0.0
        %5438 = vmatpush1.msra.mxu0 0.0
        %5439 = vmatprep.subr.mxu0 0.0
        %5440 = vmatpush1.msra.mxu0 0.0
        %5441 = vmatprep.subr.mxu0 0.0
        %5442 = vmatpush1.msra.mxu0 0.0
        %5443 = vmatprep.mubr.f32.mxu0 0.0
        %v5444 = vand.u32 %v5074, 4294901760
        %5445 = vmatmul.mubr.f32.gmra.mrb[0].mxu0 %v5444
        %v5446 = vpop.f32.mrb[0].mxu0
        %v5447 = vadd.f32 %v5373, %v5446
        %v5448 = vpop.f32.mrb[0].mxu0
        %5449 = vdwg.mxu0
        %5450 = vmatprep.subr.mxu0 0.0
        %v5451 = vand.u32 %v5071, 4294901760
        %5452 = vmatpush1.msra.mxu0 %v5451
        %5453 = vmatprep.subr.mxu0 0.0
        %5454 = vmatpush1.msra.mxu0 0.0
        %5455 = vmatprep.subr.mxu0 0.0
        %5456 = vmatpush1.msra.mxu0 0.0
        %5457 = vmatprep.subr.mxu0 0.0
        %5458 = vmatpush1.msra.mxu0 0.0
        %5459 = vmatprep.subr.mxu0 0.0
        %5460 = vmatpush1.msra.mxu0 0.0
        %5461 = vmatprep.subr.mxu0 0.0
        %5462 = vmatpush1.msra.mxu0 0.0
        %5463 = vmatprep.subr.mxu0 0.0
        %5464 = vmatpush1.msra.mxu0 0.0
        %5465 = vmatprep.subr.mxu0 0.0
        %5466 = vmatpush1.msra.mxu0 0.0
        %5467 = vmatprep.subr.mxu0 0.0
        %5468 = vmatpush1.msra.mxu0 0.0
        %5469 = vmatprep.subr.mxu0 0.0
        %5470 = vmatpush1.msra.mxu0 0.0
        %5471 = vmatprep.subr.mxu0 0.0
        %5472 = vmatpush1.msra.mxu0 0.0
        %5473 = vmatprep.subr.mxu0 0.0
        %5474 = vmatpush1.msra.mxu0 0.0
        %5475 = vmatprep.subr.mxu0 0.0
        %5476 = vmatpush1.msra.mxu0 0.0
        %5477 = vmatprep.subr.mxu0 0.0
        %5478 = vmatpush1.msra.mxu0 0.0
        %5479 = vmatprep.subr.mxu0 0.0
        %5480 = vmatpush1.msra.mxu0 0.0
        %5481 = vmatprep.subr.mxu0 0.0
        %5482 = vmatpush1.msra.mxu0 0.0
        %5483 = vmatprep.subr.mxu0 0.0
        %5484 = vmatpush1.msra.mxu0 0.0
        %5485 = vmatprep.subr.mxu0 0.0
        %5486 = vmatpush1.msra.mxu0 0.0
        %5487 = vmatprep.subr.mxu0 0.0
        %5488 = vmatpush1.msra.mxu0 0.0
        %5489 = vmatprep.subr.mxu0 0.0
        %5490 = vmatpush1.msra.mxu0 0.0
        %5491 = vmatprep.subr.mxu0 0.0
        %5492 = vmatpush1.msra.mxu0 0.0
        %5493 = vmatprep.subr.mxu0 0.0
        %5494 = vmatpush1.msra.mxu0 0.0
        %5495 = vmatprep.subr.mxu0 0.0
        %5496 = vmatpush1.msra.mxu0 0.0
        %5497 = vmatprep.subr.mxu0 0.0
        %5498 = vmatpush1.msra.mxu0 0.0
        %5499 = vmatprep.subr.mxu0 0.0
        %5500 = vmatpush1.msra.mxu0 0.0
        %5501 = vmatprep.subr.mxu0 0.0
        %5502 = vmatpush1.msra.mxu0 0.0
        %5503 = vmatprep.subr.mxu0 0.0
        %5504 = vmatpush1.msra.mxu0 0.0
        %5505 = vmatprep.subr.mxu0 0.0
        %5506 = vmatpush1.msra.mxu0 0.0
        %5507 = vmatprep.subr.mxu0 0.0
        %5508 = vmatpush1.msra.mxu0 0.0
        %5509 = vmatprep.subr.mxu0 0.0
        %5510 = vmatpush1.msra.mxu0 0.0
        %5511 = vmatprep.subr.mxu0 0.0
        %5512 = vmatpush1.msra.mxu0 0.0
        %5513 = vmatprep.subr.mxu0 0.0
        %5514 = vmatpush1.msra.mxu0 0.0
        %5515 = vmatprep.mubr.f32.mxu0 0.0
        %v5516 = vand.u32 %v5074, 4294901760
        %5517 = vmatmul.mubr.f32.gmra.mrb[0].mxu0 %v5516
        %v5518 = vpop.f32.mrb[0].mxu0
        %v5519 = vadd.f32 %v5447, %v5518
        %v5520 = vpop.f32.mrb[0].mxu0
        %5521 = vdwg.mxu0
        %5522 = vrot.lane.b32.xlu0 %v1359, 96
        %v5523 = vpop.permute.xlu0 %5522
        %v5526 = vsel %vm4981, %v5057, 0
        %5528 = vmatprep.subr.mxu0 0.0
        %v5529 = vand.u32 %v5523, 4294901760
        %5530 = vmatpush1.msra.mxu0 %v5529
        %5531 = vmatprep.subr.mxu0 0.0
        %5532 = vmatpush1.msra.mxu0 0.0
        %5533 = vmatprep.subr.mxu0 0.0
        %5534 = vmatpush1.msra.mxu0 0.0
        %5535 = vmatprep.subr.mxu0 0.0
        %5536 = vmatpush1.msra.mxu0 0.0
        %5537 = vmatprep.subr.mxu0 0.0
        %5538 = vmatpush1.msra.mxu0 0.0
        %5539 = vmatprep.subr.mxu0 0.0
        %5540 = vmatpush1.msra.mxu0 0.0
        %5541 = vmatprep.subr.mxu0 0.0
        %5542 = vmatpush1.msra.mxu0 0.0
        %5543 = vmatprep.subr.mxu0 0.0
        %5544 = vmatpush1.msra.mxu0 0.0
        %5545 = vmatprep.subr.mxu0 0.0
        %5546 = vmatpush1.msra.mxu0 0.0
        %5547 = vmatprep.subr.mxu0 0.0
        %5548 = vmatpush1.msra.mxu0 0.0
        %5549 = vmatprep.subr.mxu0 0.0
        %5550 = vmatpush1.msra.mxu0 0.0
        %5551 = vmatprep.subr.mxu0 0.0
        %5552 = vmatpush1.msra.mxu0 0.0
        %5553 = vmatprep.subr.mxu0 0.0
        %5554 = vmatpush1.msra.mxu0 0.0
        %5555 = vmatprep.subr.mxu0 0.0
        %5556 = vmatpush1.msra.mxu0 0.0
        %5557 = vmatprep.subr.mxu0 0.0
        %5558 = vmatpush1.msra.mxu0 0.0
        %5559 = vmatprep.subr.mxu0 0.0
        %5560 = vmatpush1.msra.mxu0 0.0
        %5561 = vmatprep.subr.mxu0 0.0
        %5562 = vmatpush1.msra.mxu0 0.0
        %5563 = vmatprep.subr.mxu0 0.0
        %5564 = vmatpush1.msra.mxu0 0.0
        %5565 = vmatprep.subr.mxu0 0.0
        %5566 = vmatpush1.msra.mxu0 0.0
        %5567 = vmatprep.subr.mxu0 0.0
        %5568 = vmatpush1.msra.mxu0 0.0
        %5569 = vmatprep.subr.mxu0 0.0
        %5570 = vmatpush1.msra.mxu0 0.0
        %5571 = vmatprep.subr.mxu0 0.0
        %5572 = vmatpush1.msra.mxu0 0.0
        %5573 = vmatprep.subr.mxu0 0.0
        %5574 = vmatpush1.msra.mxu0 0.0
        %5575 = vmatprep.subr.mxu0 0.0
        %5576 = vmatpush1.msra.mxu0 0.0
        %5577 = vmatprep.subr.mxu0 0.0
        %5578 = vmatpush1.msra.mxu0 0.0
        %5579 = vmatprep.subr.mxu0 0.0
        %5580 = vmatpush1.msra.mxu0 0.0
        %5581 = vmatprep.subr.mxu0 0.0
        %5582 = vmatpush1.msra.mxu0 0.0
        %5583 = vmatprep.subr.mxu0 0.0
        %5584 = vmatpush1.msra.mxu0 0.0
        %5585 = vmatprep.subr.mxu0 0.0
        %5586 = vmatpush1.msra.mxu0 0.0
        %5587 = vmatprep.subr.mxu0 0.0
        %5588 = vmatpush1.msra.mxu0 0.0
        %5589 = vmatprep.subr.mxu0 0.0
        %5590 = vmatpush1.msra.mxu0 0.0
        %5591 = vmatprep.subr.mxu0 0.0
        %5592 = vmatpush1.msra.mxu0 0.0
        %5593 = vmatprep.mubr.f32.mxu0 0.0
        %v5594 = vand.u32 %v5526, 4294901760
        %v5595 = vsub.f32 %v5526, %v5594
        %v5596 = vand.u32 %v5595, 4294901760
        %v5597 = vsub.f32 %v5595, %v5596
        %v5598 = vand.u32 %v5597, 4294901760
        %5599 = vmatmul.mubr.f32.gmra.mrb[0].mxu0 %v5598
        %v5600 = vpop.f32.mrb[0].mxu0
        %v5601 = vadd.f32 0.0, %v5600
        %v5602 = vpop.f32.mrb[0].mxu0
        %5603 = vdwg.mxu0
        %5604 = vmatprep.subr.mxu0 0.0
        %v5605 = vand.u32 %v5523, 4294901760
        %v5606 = vsub.f32 %v5523, %v5605
        %v5607 = vand.u32 %v5606, 4294901760
        %v5608 = vsub.f32 %v5606, %v5607
        %v5609 = vand.u32 %v5608, 4294901760
        %5610 = vmatpush1.msra.mxu0 %v5609
        %5611 = vmatprep.subr.mxu0 0.0
        %5612 = vmatpush1.msra.mxu0 0.0
        %5613 = vmatprep.subr.mxu0 0.0
        %5614 = vmatpush1.msra.mxu0 0.0
        %5615 = vmatprep.subr.mxu0 0.0
        %5616 = vmatpush1.msra.mxu0 0.0
        %5617 = vmatprep.subr.mxu0 0.0
        %5618 = vmatpush1.msra.mxu0 0.0
        %5619 = vmatprep.subr.mxu0 0.0
        %5620 = vmatpush1.msra.mxu0 0.0
        %5621 = vmatprep.subr.mxu0 0.0
        %5622 = vmatpush1.msra.mxu0 0.0
        %5623 = vmatprep.subr.mxu0 0.0
        %5624 = vmatpush1.msra.mxu0 0.0
        %5625 = vmatprep.subr.mxu0 0.0
        %5626 = vmatpush1.msra.mxu0 0.0
        %5627 = vmatprep.subr.mxu0 0.0
        %5628 = vmatpush1.msra.mxu0 0.0
        %5629 = vmatprep.subr.mxu0 0.0
        %5630 = vmatpush1.msra.mxu0 0.0
        %5631 = vmatprep.subr.mxu0 0.0
        %5632 = vmatpush1.msra.mxu0 0.0
        %5633 = vmatprep.subr.mxu0 0.0
        %5634 = vmatpush1.msra.mxu0 0.0
        %5635 = vmatprep.subr.mxu0 0.0
        %5636 = vmatpush1.msra.mxu0 0.0
        %5637 = vmatprep.subr.mxu0 0.0
        %5638 = vmatpush1.msra.mxu0 0.0
        %5639 = vmatprep.subr.mxu0 0.0
        %5640 = vmatpush1.msra.mxu0 0.0
        %5641 = vmatprep.subr.mxu0 0.0
        %5642 = vmatpush1.msra.mxu0 0.0
        %5643 = vmatprep.subr.mxu0 0.0
        %5644 = vmatpush1.msra.mxu0 0.0
        %5645 = vmatprep.subr.mxu0 0.0
        %5646 = vmatpush1.msra.mxu0 0.0
        %5647 = vmatprep.subr.mxu0 0.0
        %5648 = vmatpush1.msra.mxu0 0.0
        %5649 = vmatprep.subr.mxu0 0.0
        %5650 = vmatpush1.msra.mxu0 0.0
        %5651 = vmatprep.subr.mxu0 0.0
        %5652 = vmatpush1.msra.mxu0 0.0
        %5653 = vmatprep.subr.mxu0 0.0
        %5654 = vmatpush1.msra.mxu0 0.0
        %5655 = vmatprep.subr.mxu0 0.0
        %5656 = vmatpush1.msra.mxu0 0.0
        %5657 = vmatprep.subr.mxu0 0.0
        %5658 = vmatpush1.msra.mxu0 0.0
        %5659 = vmatprep.subr.mxu0 0.0
        %5660 = vmatpush1.msra.mxu0 0.0
        %5661 = vmatprep.subr.mxu0 0.0
        %5662 = vmatpush1.msra.mxu0 0.0
        %5663 = vmatprep.subr.mxu0 0.0
        %5664 = vmatpush1.msra.mxu0 0.0
        %5665 = vmatprep.subr.mxu0 0.0
        %5666 = vmatpush1.msra.mxu0 0.0
        %5667 = vmatprep.subr.mxu0 0.0
        %5668 = vmatpush1.msra.mxu0 0.0
        %5669 = vmatprep.subr.mxu0 0.0
        %5670 = vmatpush1.msra.mxu0 0.0
        %5671 = vmatprep.subr.mxu0 0.0
        %5672 = vmatpush1.msra.mxu0 0.0
        %5673 = vmatprep.mubr.f32.mxu0 0.0
        %v5674 = vand.u32 %v5526, 4294901760
        %5675 = vmatmul.mubr.f32.gmra.mrb[0].mxu0 %v5674
        %v5676 = vpop.f32.mrb[0].mxu0
        %v5677 = vadd.f32 %v5601, %v5676
        %v5678 = vpop.f32.mrb[0].mxu0
        %5679 = vdwg.mxu0
        %5680 = vmatprep.subr.mxu0 0.0
        %v5681 = vand.u32 %v5523, 4294901760
        %v5682 = vsub.f32 %v5523, %v5681
        %5683 = vmatpush1.msra.mxu0 %v5682
        %5684 = vmatprep.subr.mxu0 0.0
        %5685 = vmatpush1.msra.mxu0 0.0
        %5686 = vmatprep.subr.mxu0 0.0
        %5687 = vmatpush1.msra.mxu0 0.0
        %5688 = vmatprep.subr.mxu0 0.0
        %5689 = vmatpush1.msra.mxu0 0.0
        %5690 = vmatprep.subr.mxu0 0.0
        %5691 = vmatpush1.msra.mxu0 0.0
        %5692 = vmatprep.subr.mxu0 0.0
        %5693 = vmatpush1.msra.mxu0 0.0
        %5694 = vmatprep.subr.mxu0 0.0
        %5695 = vmatpush1.msra.mxu0 0.0
        %5696 = vmatprep.subr.mxu0 0.0
        %5697 = vmatpush1.msra.mxu0 0.0
        %5698 = vmatprep.subr.mxu0 0.0
        %5699 = vmatpush1.msra.mxu0 0.0
        %5700 = vmatprep.subr.mxu0 0.0
        %5701 = vmatpush1.msra.mxu0 0.0
        %5702 = vmatprep.subr.mxu0 0.0
        %5703 = vmatpush1.msra.mxu0 0.0
        %5704 = vmatprep.subr.mxu0 0.0
        %5705 = vmatpush1.msra.mxu0 0.0
        %5706 = vmatprep.subr.mxu0 0.0
        %5707 = vmatpush1.msra.mxu0 0.0
        %5708 = vmatprep.subr.mxu0 0.0
        %5709 = vmatpush1.msra.mxu0 0.0
        %5710 = vmatprep.subr.mxu0 0.0
        %5711 = vmatpush1.msra.mxu0 0.0
        %5712 = vmatprep.subr.mxu0 0.0
        %5713 = vmatpush1.msra.mxu0 0.0
        %5714 = vmatprep.subr.mxu0 0.0
        %5715 = vmatpush1.msra.mxu0 0.0
        %5716 = vmatprep.subr.mxu0 0.0
        %5717 = vmatpush1.msra.mxu0 0.0
        %5718 = vmatprep.subr.mxu0 0.0
        %5719 = vmatpush1.msra.mxu0 0.0
        %5720 = vmatprep.subr.mxu0 0.0
        %5721 = vmatpush1.msra.mxu0 0.0
        %5722 = vmatprep.subr.mxu0 0.0
        %5723 = vmatpush1.msra.mxu0 0.0
        %5724 = vmatprep.subr.mxu0 0.0
        %5725 = vmatpush1.msra.mxu0 0.0
        %5726 = vmatprep.subr.mxu0 0.0
        %5727 = vmatpush1.msra.mxu0 0.0
        %5728 = vmatprep.subr.mxu0 0.0
        %5729 = vmatpush1.msra.mxu0 0.0
        %5730 = vmatprep.subr.mxu0 0.0
        %5731 = vmatpush1.msra.mxu0 0.0
        %5732 = vmatprep.subr.mxu0 0.0
        %5733 = vmatpush1.msra.mxu0 0.0
        %5734 = vmatprep.subr.mxu0 0.0
        %5735 = vmatpush1.msra.mxu0 0.0
        %5736 = vmatprep.subr.mxu0 0.0
        %5737 = vmatpush1.msra.mxu0 0.0
        %5738 = vmatprep.subr.mxu0 0.0
        %5739 = vmatpush1.msra.mxu0 0.0
        %5740 = vmatprep.subr.mxu0 0.0
        %5741 = vmatpush1.msra.mxu0 0.0
        %5742 = vmatprep.subr.mxu0 0.0
        %5743 = vmatpush1.msra.mxu0 0.0
        %5744 = vmatprep.subr.mxu0 0.0
        %5745 = vmatpush1.msra.mxu0 0.0
        %5746 = vmatprep.mubr.f32.mxu0 0.0
        %v5747 = vand.u32 %v5526, 4294901760
        %v5748 = vsub.f32 %v5526, %v5747
        %5749 = vmatmul.mubr.f32.gmra.mrb[0].mxu0 %v5748
        %v5750 = vpop.f32.mrb[0].mxu0
        %v5751 = vadd.f32 %v5677, %v5750
        %v5752 = vpop.f32.mrb[0].mxu0
        %5753 = vdwg.mxu0
        %5754 = vmatprep.subr.mxu0 0.0
        %v5755 = vand.u32 %v5523, 4294901760
        %5756 = vmatpush1.msra.mxu0 %v5755
        %5757 = vmatprep.subr.mxu0 0.0
        %5758 = vmatpush1.msra.mxu0 0.0
        %5759 = vmatprep.subr.mxu0 0.0
        %5760 = vmatpush1.msra.mxu0 0.0
        %5761 = vmatprep.subr.mxu0 0.0
        %5762 = vmatpush1.msra.mxu0 0.0
        %5763 = vmatprep.subr.mxu0 0.0
        %5764 = vmatpush1.msra.mxu0 0.0
        %5765 = vmatprep.subr.mxu0 0.0
        %5766 = vmatpush1.msra.mxu0 0.0
        %5767 = vmatprep.subr.mxu0 0.0
        %5768 = vmatpush1.msra.mxu0 0.0
        %5769 = vmatprep.subr.mxu0 0.0
        %5770 = vmatpush1.msra.mxu0 0.0
        %5771 = vmatprep.subr.mxu0 0.0
        %5772 = vmatpush1.msra.mxu0 0.0
        %5773 = vmatprep.subr.mxu0 0.0
        %5774 = vmatpush1.msra.mxu0 0.0
        %5775 = vmatprep.subr.mxu0 0.0
        %5776 = vmatpush1.msra.mxu0 0.0
        %5777 = vmatprep.subr.mxu0 0.0
        %5778 = vmatpush1.msra.mxu0 0.0
        %5779 = vmatprep.subr.mxu0 0.0
        %5780 = vmatpush1.msra.mxu0 0.0
        %5781 = vmatprep.subr.mxu0 0.0
        %5782 = vmatpush1.msra.mxu0 0.0
        %5783 = vmatprep.subr.mxu0 0.0
        %5784 = vmatpush1.msra.mxu0 0.0
        %5785 = vmatprep.subr.mxu0 0.0
        %5786 = vmatpush1.msra.mxu0 0.0
        %5787 = vmatprep.subr.mxu0 0.0
        %5788 = vmatpush1.msra.mxu0 0.0
        %5789 = vmatprep.subr.mxu0 0.0
        %5790 = vmatpush1.msra.mxu0 0.0
        %5791 = vmatprep.subr.mxu0 0.0
        %5792 = vmatpush1.msra.mxu0 0.0
        %5793 = vmatprep.subr.mxu0 0.0
        %5794 = vmatpush1.msra.mxu0 0.0
        %5795 = vmatprep.subr.mxu0 0.0
        %5796 = vmatpush1.msra.mxu0 0.0
        %5797 = vmatprep.subr.mxu0 0.0
        %5798 = vmatpush1.msra.mxu0 0.0
        %5799 = vmatprep.subr.mxu0 0.0
        %5800 = vmatpush1.msra.mxu0 0.0
        %5801 = vmatprep.subr.mxu0 0.0
        %5802 = vmatpush1.msra.mxu0 0.0
        %5803 = vmatprep.subr.mxu0 0.0
        %5804 = vmatpush1.msra.mxu0 0.0
        %5805 = vmatprep.subr.mxu0 0.0
        %5806 = vmatpush1.msra.mxu0 0.0
        %5807 = vmatprep.subr.mxu0 0.0
        %5808 = vmatpush1.msra.mxu0 0.0
        %5809 = vmatprep.subr.mxu0 0.0
        %5810 = vmatpush1.msra.mxu0 0.0
        %5811 = vmatprep.subr.mxu0 0.0
        %5812 = vmatpush1.msra.mxu0 0.0
        %5813 = vmatprep.subr.mxu0 0.0
        %5814 = vmatpush1.msra.mxu0 0.0
        %5815 = vmatprep.subr.mxu0 0.0
        %5816 = vmatpush1.msra.mxu0 0.0
        %5817 = vmatprep.subr.mxu0 0.0
        %5818 = vmatpush1.msra.mxu0 0.0
        %5819 = vmatprep.mubr.f32.mxu0 0.0
        %v5820 = vand.u32 %v5526, 4294901760
        %v5821 = vsub.f32 %v5526, %v5820
        %v5822 = vand.u32 %v5821, 4294901760
        %5823 = vmatmul.mubr.f32.gmra.mrb[0].mxu0 %v5822
        %v5824 = vpop.f32.mrb[0].mxu0
        %v5825 = vadd.f32 %v5751, %v5824
        %v5826 = vpop.f32.mrb[0].mxu0
        %5827 = vdwg.mxu0
        %5828 = vmatprep.subr.mxu0 0.0
        %v5829 = vand.u32 %v5523, 4294901760
        %v5830 = vsub.f32 %v5523, %v5829
        %v5831 = vand.u32 %v5830, 4294901760
        %5832 = vmatpush1.msra.mxu0 %v5831
        %5833 = vmatprep.subr.mxu0 0.0
        %5834 = vmatpush1.msra.mxu0 0.0
        %5835 = vmatprep.subr.mxu0 0.0
        %5836 = vmatpush1.msra.mxu0 0.0
        %5837 = vmatprep.subr.mxu0 0.0
        %5838 = vmatpush1.msra.mxu0 0.0
        %5839 = vmatprep.subr.mxu0 0.0
        %5840 = vmatpush1.msra.mxu0 0.0
        %5841 = vmatprep.subr.mxu0 0.0
        %5842 = vmatpush1.msra.mxu0 0.0
        %5843 = vmatprep.subr.mxu0 0.0
        %5844 = vmatpush1.msra.mxu0 0.0
        %5845 = vmatprep.subr.mxu0 0.0
        %5846 = vmatpush1.msra.mxu0 0.0
        %5847 = vmatprep.subr.mxu0 0.0
        %5848 = vmatpush1.msra.mxu0 0.0
        %5849 = vmatprep.subr.mxu0 0.0
        %5850 = vmatpush1.msra.mxu0 0.0
        %5851 = vmatprep.subr.mxu0 0.0
        %5852 = vmatpush1.msra.mxu0 0.0
        %5853 = vmatprep.subr.mxu0 0.0
        %5854 = vmatpush1.msra.mxu0 0.0
        %5855 = vmatprep.subr.mxu0 0.0
        %5856 = vmatpush1.msra.mxu0 0.0
        %5857 = vmatprep.subr.mxu0 0.0
        %5858 = vmatpush1.msra.mxu0 0.0
        %5859 = vmatprep.subr.mxu0 0.0
        %5860 = vmatpush1.msra.mxu0 0.0
        %5861 = vmatprep.subr.mxu0 0.0
        %5862 = vmatpush1.msra.mxu0 0.0
        %5863 = vmatprep.subr.mxu0 0.0
        %5864 = vmatpush1.msra.mxu0 0.0
        %5865 = vmatprep.subr.mxu0 0.0
        %5866 = vmatpush1.msra.mxu0 0.0
        %5867 = vmatprep.subr.mxu0 0.0
        %5868 = vmatpush1.msra.mxu0 0.0
        %5869 = vmatprep.subr.mxu0 0.0
        %5870 = vmatpush1.msra.mxu0 0.0
        %5871 = vmatprep.subr.mxu0 0.0
        %5872 = vmatpush1.msra.mxu0 0.0
        %5873 = vmatprep.subr.mxu0 0.0
        %5874 = vmatpush1.msra.mxu0 0.0
        %5875 = vmatprep.subr.mxu0 0.0
        %5876 = vmatpush1.msra.mxu0 0.0
        %5877 = vmatprep.subr.mxu0 0.0
        %5878 = vmatpush1.msra.mxu0 0.0
        %5879 = vmatprep.subr.mxu0 0.0
        %5880 = vmatpush1.msra.mxu0 0.0
        %5881 = vmatprep.subr.mxu0 0.0
        %5882 = vmatpush1.msra.mxu0 0.0
        %5883 = vmatprep.subr.mxu0 0.0
        %5884 = vmatpush1.msra.mxu0 0.0
        %5885 = vmatprep.subr.mxu0 0.0
        %5886 = vmatpush1.msra.mxu0 0.0
        %5887 = vmatprep.subr.mxu0 0.0
        %5888 = vmatpush1.msra.mxu0 0.0
        %5889 = vmatprep.subr.mxu0 0.0
        %5890 = vmatpush1.msra.mxu0 0.0
        %5891 = vmatprep.subr.mxu0 0.0
        %5892 = vmatpush1.msra.mxu0 0.0
        %5893 = vmatprep.subr.mxu0 0.0
        %5894 = vmatpush1.msra.mxu0 0.0
        %5895 = vmatprep.mubr.f32.mxu0 0.0
        %v5896 = vand.u32 %v5526, 4294901760
        %5897 = vmatmul.mubr.f32.gmra.mrb[0].mxu0 %v5896
        %v5898 = vpop.f32.mrb[0].mxu0
        %v5899 = vadd.f32 %v5825, %v5898
        %v5900 = vpop.f32.mrb[0].mxu0
        %5901 = vdwg.mxu0
        %5902 = vmatprep.subr.mxu0 0.0
        %v5903 = vand.u32 %v5523, 4294901760
        %5904 = vmatpush1.msra.mxu0 %v5903
        %5905 = vmatprep.subr.mxu0 0.0
        %5906 = vmatpush1.msra.mxu0 0.0
        %5907 = vmatprep.subr.mxu0 0.0
        %5908 = vmatpush1.msra.mxu0 0.0
        %5909 = vmatprep.subr.mxu0 0.0
        %5910 = vmatpush1.msra.mxu0 0.0
        %5911 = vmatprep.subr.mxu0 0.0
        %5912 = vmatpush1.msra.mxu0 0.0
        %5913 = vmatprep.subr.mxu0 0.0
        %5914 = vmatpush1.msra.mxu0 0.0
        %5915 = vmatprep.subr.mxu0 0.0
        %5916 = vmatpush1.msra.mxu0 0.0
        %5917 = vmatprep.subr.mxu0 0.0
        %5918 = vmatpush1.msra.mxu0 0.0
        %5919 = vmatprep.subr.mxu0 0.0
        %5920 = vmatpush1.msra.mxu0 0.0
        %5921 = vmatprep.subr.mxu0 0.0
        %5922 = vmatpush1.msra.mxu0 0.0
        %5923 = vmatprep.subr.mxu0 0.0
        %5924 = vmatpush1.msra.mxu0 0.0
        %5925 = vmatprep.subr.mxu0 0.0
        %5926 = vmatpush1.msra.mxu0 0.0
        %5927 = vmatprep.subr.mxu0 0.0
        %5928 = vmatpush1.msra.mxu0 0.0
        %5929 = vmatprep.subr.mxu0 0.0
        %5930 = vmatpush1.msra.mxu0 0.0
        %5931 = vmatprep.subr.mxu0 0.0
        %5932 = vmatpush1.msra.mxu0 0.0
        %5933 = vmatprep.subr.mxu0 0.0
        %5934 = vmatpush1.msra.mxu0 0.0
        %5935 = vmatprep.subr.mxu0 0.0
        %5936 = vmatpush1.msra.mxu0 0.0
        %5937 = vmatprep.subr.mxu0 0.0
        %5938 = vmatpush1.msra.mxu0 0.0
        %5939 = vmatprep.subr.mxu0 0.0
        %5940 = vmatpush1.msra.mxu0 0.0
        %5941 = vmatprep.subr.mxu0 0.0
        %5942 = vmatpush1.msra.mxu0 0.0
        %5943 = vmatprep.subr.mxu0 0.0
        %5944 = vmatpush1.msra.mxu0 0.0
        %5945 = vmatprep.subr.mxu0 0.0
        %5946 = vmatpush1.msra.mxu0 0.0
        %5947 = vmatprep.subr.mxu0 0.0
        %5948 = vmatpush1.msra.mxu0 0.0
        %5949 = vmatprep.subr.mxu0 0.0
        %5950 = vmatpush1.msra.mxu0 0.0
        %5951 = vmatprep.subr.mxu0 0.0
        %5952 = vmatpush1.msra.mxu0 0.0
        %5953 = vmatprep.subr.mxu0 0.0
        %5954 = vmatpush1.msra.mxu0 0.0
        %5955 = vmatprep.subr.mxu0 0.0
        %5956 = vmatpush1.msra.mxu0 0.0
        %5957 = vmatprep.subr.mxu0 0.0
        %5958 = vmatpush1.msra.mxu0 0.0
        %5959 = vmatprep.subr.mxu0 0.0
        %5960 = vmatpush1.msra.mxu0 0.0
        %5961 = vmatprep.subr.mxu0 0.0
        %5962 = vmatpush1.msra.mxu0 0.0
        %5963 = vmatprep.subr.mxu0 0.0
        %5964 = vmatpush1.msra.mxu0 0.0
        %5965 = vmatprep.subr.mxu0 0.0
        %5966 = vmatpush1.msra.mxu0 0.0
        %5967 = vmatprep.mubr.f32.mxu0 0.0
        %v5968 = vand.u32 %v5526, 4294901760
        %5969 = vmatmul.mubr.f32.gmra.mrb[0].mxu0 %v5968
        %v5970 = vpop.f32.mrb[0].mxu0
        %v5971 = vadd.f32 %v5899, %v5970
        %v5972 = vpop.f32.mrb[0].mxu0
        %5973 = vdwg.mxu0
        %5974 = vrot.lane.b32.xlu0 %v1361, 96
        %v5975 = vpop.permute.xlu0 %5974
        %v5978 = vsel %vm4981, %v5059, 0
        %5980 = vmatprep.subr.mxu0 0.0
        %v5981 = vand.u32 %v5975, 4294901760
        %5982 = vmatpush1.msra.mxu0 %v5981
        %5983 = vmatprep.subr.mxu0 0.0
        %5984 = vmatpush1.msra.mxu0 0.0
        %5985 = vmatprep.subr.mxu0 0.0
        %5986 = vmatpush1.msra.mxu0 0.0
        %5987 = vmatprep.subr.mxu0 0.0
        %5988 = vmatpush1.msra.mxu0 0.0
        %5989 = vmatprep.subr.mxu0 0.0
        %5990 = vmatpush1.msra.mxu0 0.0
        %5991 = vmatprep.subr.mxu0 0.0
        %5992 = vmatpush1.msra.mxu0 0.0
        %5993 = vmatprep.subr.mxu0 0.0
        %5994 = vmatpush1.msra.mxu0 0.0
        %5995 = vmatprep.subr.mxu0 0.0
        %5996 = vmatpush1.msra.mxu0 0.0
        %5997 = vmatprep.subr.mxu0 0.0
        %5998 = vmatpush1.msra.mxu0 0.0
        %5999 = vmatprep.subr.mxu0 0.0
        %6000 = vmatpush1.msra.mxu0 0.0
        %6001 = vmatprep.subr.mxu0 0.0
        %6002 = vmatpush1.msra.mxu0 0.0
        %6003 = vmatprep.subr.mxu0 0.0
        %6004 = vmatpush1.msra.mxu0 0.0
        %6005 = vmatprep.subr.mxu0 0.0
        %6006 = vmatpush1.msra.mxu0 0.0
        %6007 = vmatprep.subr.mxu0 0.0
        %6008 = vmatpush1.msra.mxu0 0.0
        %6009 = vmatprep.subr.mxu0 0.0
        %6010 = vmatpush1.msra.mxu0 0.0
        %6011 = vmatprep.subr.mxu0 0.0
        %6012 = vmatpush1.msra.mxu0 0.0
        %6013 = vmatprep.subr.mxu0 0.0
        %6014 = vmatpush1.msra.mxu0 0.0
        %6015 = vmatprep.subr.mxu0 0.0
        %6016 = vmatpush1.msra.mxu0 0.0
        %6017 = vmatprep.subr.mxu0 0.0
        %6018 = vmatpush1.msra.mxu0 0.0
        %6019 = vmatprep.subr.mxu0 0.0
        %6020 = vmatpush1.msra.mxu0 0.0
        %6021 = vmatprep.subr.mxu0 0.0
        %6022 = vmatpush1.msra.mxu0 0.0
        %6023 = vmatprep.subr.mxu0 0.0
        %6024 = vmatpush1.msra.mxu0 0.0
        %6025 = vmatprep.subr.mxu0 0.0
        %6026 = vmatpush1.msra.mxu0 0.0
        %6027 = vmatprep.subr.mxu0 0.0
        %6028 = vmatpush1.msra.mxu0 0.0
        %6029 = vmatprep.subr.mxu0 0.0
        %6030 = vmatpush1.msra.mxu0 0.0
        %6031 = vmatprep.subr.mxu0 0.0
        %6032 = vmatpush1.msra.mxu0 0.0
        %6033 = vmatprep.subr.mxu0 0.0
        %6034 = vmatpush1.msra.mxu0 0.0
        %6035 = vmatprep.subr.mxu0 0.0
        %6036 = vmatpush1.msra.mxu0 0.0
        %6037 = vmatprep.subr.mxu0 0.0
        %6038 = vmatpush1.msra.mxu0 0.0
        %6039 = vmatprep.subr.mxu0 0.0
        %6040 = vmatpush1.msra.mxu0 0.0
        %6041 = vmatprep.subr.mxu0 0.0
        %6042 = vmatpush1.msra.mxu0 0.0
        %6043 = vmatprep.subr.mxu0 0.0
        %6044 = vmatpush1.msra.mxu0 0.0
        %6045 = vmatprep.mubr.f32.mxu0 0.0
        %v6046 = vand.u32 %v5978, 4294901760
        %v6047 = vsub.f32 %v5978, %v6046
        %v6048 = vand.u32 %v6047, 4294901760
        %v6049 = vsub.f32 %v6047, %v6048
        %v6050 = vand.u32 %v6049, 4294901760
        %6051 = vmatmul.mubr.f32.gmra.mrb[0].mxu0 %v6050
        %v6052 = vpop.f32.mrb[0].mxu0
        %v6053 = vadd.f32 0.0, %v6052
        %v6054 = vpop.f32.mrb[0].mxu0
        %6055 = vdwg.mxu0
        %6056 = vmatprep.subr.mxu0 0.0
        %v6057 = vand.u32 %v5975, 4294901760
        %v6058 = vsub.f32 %v5975, %v6057
        %v6059 = vand.u32 %v6058, 4294901760
        %v6060 = vsub.f32 %v6058, %v6059
        %v6061 = vand.u32 %v6060, 4294901760
        %6062 = vmatpush1.msra.mxu0 %v6061
        %6063 = vmatprep.subr.mxu0 0.0
        %6064 = vmatpush1.msra.mxu0 0.0
        %6065 = vmatprep.subr.mxu0 0.0
        %6066 = vmatpush1.msra.mxu0 0.0
        %6067 = vmatprep.subr.mxu0 0.0
        %6068 = vmatpush1.msra.mxu0 0.0
        %6069 = vmatprep.subr.mxu0 0.0
        %6070 = vmatpush1.msra.mxu0 0.0
        %6071 = vmatprep.subr.mxu0 0.0
        %6072 = vmatpush1.msra.mxu0 0.0
        %6073 = vmatprep.subr.mxu0 0.0
        %6074 = vmatpush1.msra.mxu0 0.0
        %6075 = vmatprep.subr.mxu0 0.0
        %6076 = vmatpush1.msra.mxu0 0.0
        %6077 = vmatprep.subr.mxu0 0.0
        %6078 = vmatpush1.msra.mxu0 0.0
        %6079 = vmatprep.subr.mxu0 0.0
        %6080 = vmatpush1.msra.mxu0 0.0
        %6081 = vmatprep.subr.mxu0 0.0
        %6082 = vmatpush1.msra.mxu0 0.0
        %6083 = vmatprep.subr.mxu0 0.0
        %6084 = vmatpush1.msra.mxu0 0.0
        %6085 = vmatprep.subr.mxu0 0.0
        %6086 = vmatpush1.msra.mxu0 0.0
        %6087 = vmatprep.subr.mxu0 0.0
        %6088 = vmatpush1.msra.mxu0 0.0
        %6089 = vmatprep.subr.mxu0 0.0
        %6090 = vmatpush1.msra.mxu0 0.0
        %6091 = vmatprep.subr.mxu0 0.0
        %6092 = vmatpush1.msra.mxu0 0.0
        %6093 = vmatprep.subr.mxu0 0.0
        %6094 = vmatpush1.msra.mxu0 0.0
        %6095 = vmatprep.subr.mxu0 0.0
        %6096 = vmatpush1.msra.mxu0 0.0
        %6097 = vmatprep.subr.mxu0 0.0
        %6098 = vmatpush1.msra.mxu0 0.0
        %6099 = vmatprep.subr.mxu0 0.0
        %6100 = vmatpush1.msra.mxu0 0.0
        %6101 = vmatprep.subr.mxu0 0.0
        %6102 = vmatpush1.msra.mxu0 0.0
        %6103 = vmatprep.subr.mxu0 0.0
        %6104 = vmatpush1.msra.mxu0 0.0
        %6105 = vmatprep.subr.mxu0 0.0
        %6106 = vmatpush1.msra.mxu0 0.0
        %6107 = vmatprep.subr.mxu0 0.0
        %6108 = vmatpush1.msra.mxu0 0.0
        %6109 = vmatprep.subr.mxu0 0.0
        %6110 = vmatpush1.msra.mxu0 0.0
        %6111 = vmatprep.subr.mxu0 0.0
        %6112 = vmatpush1.msra.mxu0 0.0
        %6113 = vmatprep.subr.mxu0 0.0
        %6114 = vmatpush1.msra.mxu0 0.0
        %6115 = vmatprep.subr.mxu0 0.0
        %6116 = vmatpush1.msra.mxu0 0.0
        %6117 = vmatprep.subr.mxu0 0.0
        %6118 = vmatpush1.msra.mxu0 0.0
        %6119 = vmatprep.subr.mxu0 0.0
        %6120 = vmatpush1.msra.mxu0 0.0
        %6121 = vmatprep.subr.mxu0 0.0
        %6122 = vmatpush1.msra.mxu0 0.0
        %6123 = vmatprep.subr.mxu0 0.0
        %6124 = vmatpush1.msra.mxu0 0.0
        %6125 = vmatprep.mubr.f32.mxu0 0.0
        %v6126 = vand.u32 %v5978, 4294901760
        %6127 = vmatmul.mubr.f32.gmra.mrb[0].mxu0 %v6126
        %v6128 = vpop.f32.mrb[0].mxu0
        %v6129 = vadd.f32 %v6053, %v6128
        %v6130 = vpop.f32.mrb[0].mxu0
        %6131 = vdwg.mxu0
        %6132 = vmatprep.subr.mxu0 0.0
        %v6133 = vand.u32 %v5975, 4294901760
        %v6134 = vsub.f32 %v5975, %v6133
        %6135 = vmatpush1.msra.mxu0 %v6134
        %6136 = vmatprep.subr.mxu0 0.0
        %6137 = vmatpush1.msra.mxu0 0.0
        %6138 = vmatprep.subr.mxu0 0.0
        %6139 = vmatpush1.msra.mxu0 0.0
        %6140 = vmatprep.subr.mxu0 0.0
        %6141 = vmatpush1.msra.mxu0 0.0
        %6142 = vmatprep.subr.mxu0 0.0
        %6143 = vmatpush1.msra.mxu0 0.0
        %6144 = vmatprep.subr.mxu0 0.0
        %6145 = vmatpush1.msra.mxu0 0.0
        %6146 = vmatprep.subr.mxu0 0.0
        %6147 = vmatpush1.msra.mxu0 0.0
        %6148 = vmatprep.subr.mxu0 0.0
        %6149 = vmatpush1.msra.mxu0 0.0
        %6150 = vmatprep.subr.mxu0 0.0
        %6151 = vmatpush1.msra.mxu0 0.0
        %6152 = vmatprep.subr.mxu0 0.0
        %6153 = vmatpush1.msra.mxu0 0.0
        %6154 = vmatprep.subr.mxu0 0.0
        %6155 = vmatpush1.msra.mxu0 0.0
        %6156 = vmatprep.subr.mxu0 0.0
        %6157 = vmatpush1.msra.mxu0 0.0
        %6158 = vmatprep.subr.mxu0 0.0
        %6159 = vmatpush1.msra.mxu0 0.0
        %6160 = vmatprep.subr.mxu0 0.0
        %6161 = vmatpush1.msra.mxu0 0.0
        %6162 = vmatprep.subr.mxu0 0.0
        %6163 = vmatpush1.msra.mxu0 0.0
        %6164 = vmatprep.subr.mxu0 0.0
        %6165 = vmatpush1.msra.mxu0 0.0
        %6166 = vmatprep.subr.mxu0 0.0
        %6167 = vmatpush1.msra.mxu0 0.0
        %6168 = vmatprep.subr.mxu0 0.0
        %6169 = vmatpush1.msra.mxu0 0.0
        %6170 = vmatprep.subr.mxu0 0.0
        %6171 = vmatpush1.msra.mxu0 0.0
        %6172 = vmatprep.subr.mxu0 0.0
        %6173 = vmatpush1.msra.mxu0 0.0
        %6174 = vmatprep.subr.mxu0 0.0
        %6175 = vmatpush1.msra.mxu0 0.0
        %6176 = vmatprep.subr.mxu0 0.0
        %6177 = vmatpush1.msra.mxu0 0.0
        %6178 = vmatprep.subr.mxu0 0.0
        %6179 = vmatpush1.msra.mxu0 0.0
        %6180 = vmatprep.subr.mxu0 0.0
        %6181 = vmatpush1.msra.mxu0 0.0
        %6182 = vmatprep.subr.mxu0 0.0
        %6183 = vmatpush1.msra.mxu0 0.0
        %6184 = vmatprep.subr.mxu0 0.0
        %6185 = vmatpush1.msra.mxu0 0.0
        %6186 = vmatprep.subr.mxu0 0.0
        %6187 = vmatpush1.msra.mxu0 0.0
        %6188 = vmatprep.subr.mxu0 0.0
        %6189 = vmatpush1.msra.mxu0 0.0
        %6190 = vmatprep.subr.mxu0 0.0
        %6191 = vmatpush1.msra.mxu0 0.0
        %6192 = vmatprep.subr.mxu0 0.0
        %6193 = vmatpush1.msra.mxu0 0.0
        %6194 = vmatprep.subr.mxu0 0.0
        %6195 = vmatpush1.msra.mxu0 0.0
        %6196 = vmatprep.subr.mxu0 0.0
        %6197 = vmatpush1.msra.mxu0 0.0
        %6198 = vmatprep.mubr.f32.mxu0 0.0
        %v6199 = vand.u32 %v5978, 4294901760
        %v6200 = vsub.f32 %v5978, %v6199
        %6201 = vmatmul.mubr.f32.gmra.mrb[0].mxu0 %v6200
        %v6202 = vpop.f32.mrb[0].mxu0
        %v6203 = vadd.f32 %v6129, %v6202
        %v6204 = vpop.f32.mrb[0].mxu0
        %6205 = vdwg.mxu0
        %6206 = vmatprep.subr.mxu0 0.0
        %v6207 = vand.u32 %v5975, 4294901760
        %6208 = vmatpush1.msra.mxu0 %v6207
        %6209 = vmatprep.subr.mxu0 0.0
        %6210 = vmatpush1.msra.mxu0 0.0
        %6211 = vmatprep.subr.mxu0 0.0
        %6212 = vmatpush1.msra.mxu0 0.0
        %6213 = vmatprep.subr.mxu0 0.0
        %6214 = vmatpush1.msra.mxu0 0.0
        %6215 = vmatprep.subr.mxu0 0.0
        %6216 = vmatpush1.msra.mxu0 0.0
        %6217 = vmatprep.subr.mxu0 0.0
        %6218 = vmatpush1.msra.mxu0 0.0
        %6219 = vmatprep.subr.mxu0 0.0
        %6220 = vmatpush1.msra.mxu0 0.0
        %6221 = vmatprep.subr.mxu0 0.0
        %6222 = vmatpush1.msra.mxu0 0.0
        %6223 = vmatprep.subr.mxu0 0.0
        %6224 = vmatpush1.msra.mxu0 0.0
        %6225 = vmatprep.subr.mxu0 0.0
        %6226 = vmatpush1.msra.mxu0 0.0
        %6227 = vmatprep.subr.mxu0 0.0
        %6228 = vmatpush1.msra.mxu0 0.0
        %6229 = vmatprep.subr.mxu0 0.0
        %6230 = vmatpush1.msra.mxu0 0.0
        %6231 = vmatprep.subr.mxu0 0.0
        %6232 = vmatpush1.msra.mxu0 0.0
        %6233 = vmatprep.subr.mxu0 0.0
        %6234 = vmatpush1.msra.mxu0 0.0
        %6235 = vmatprep.subr.mxu0 0.0
        %6236 = vmatpush1.msra.mxu0 0.0
        %6237 = vmatprep.subr.mxu0 0.0
        %6238 = vmatpush1.msra.mxu0 0.0
        %6239 = vmatprep.subr.mxu0 0.0
        %6240 = vmatpush1.msra.mxu0 0.0
        %6241 = vmatprep.subr.mxu0 0.0
        %6242 = vmatpush1.msra.mxu0 0.0
        %6243 = vmatprep.subr.mxu0 0.0
        %6244 = vmatpush1.msra.mxu0 0.0
        %6245 = vmatprep.subr.mxu0 0.0
        %6246 = vmatpush1.msra.mxu0 0.0
        %6247 = vmatprep.subr.mxu0 0.0
        %6248 = vmatpush1.msra.mxu0 0.0
        %6249 = vmatprep.subr.mxu0 0.0
        %6250 = vmatpush1.msra.mxu0 0.0
        %6251 = vmatprep.subr.mxu0 0.0
        %6252 = vmatpush1.msra.mxu0 0.0
        %6253 = vmatprep.subr.mxu0 0.0
        %6254 = vmatpush1.msra.mxu0 0.0
        %6255 = vmatprep.subr.mxu0 0.0
        %6256 = vmatpush1.msra.mxu0 0.0
        %6257 = vmatprep.subr.mxu0 0.0
        %6258 = vmatpush1.msra.mxu0 0.0
        %6259 = vmatprep.subr.mxu0 0.0
        %6260 = vmatpush1.msra.mxu0 0.0
        %6261 = vmatprep.subr.mxu0 0.0
        %6262 = vmatpush1.msra.mxu0 0.0
        %6263 = vmatprep.subr.mxu0 0.0
        %6264 = vmatpush1.msra.mxu0 0.0
        %6265 = vmatprep.subr.mxu0 0.0
        %6266 = vmatpush1.msra.mxu0 0.0
        %6267 = vmatprep.subr.mxu0 0.0
        %6268 = vmatpush1.msra.mxu0 0.0
        %6269 = vmatprep.subr.mxu0 0.0
        %6270 = vmatpush1.msra.mxu0 0.0
        %6271 = vmatprep.mubr.f32.mxu0 0.0
        %v6272 = vand.u32 %v5978, 4294901760
        %v6273 = vsub.f32 %v5978, %v6272
        %v6274 = vand.u32 %v6273, 4294901760
        %6275 = vmatmul.mubr.f32.gmra.mrb[0].mxu0 %v6274
        %v6276 = vpop.f32.mrb[0].mxu0
        %v6277 = vadd.f32 %v6203, %v6276
        %v6278 = vpop.f32.mrb[0].mxu0
        %6279 = vdwg.mxu0
        %6280 = vmatprep.subr.mxu0 0.0
        %v6281 = vand.u32 %v5975, 4294901760
        %v6282 = vsub.f32 %v5975, %v6281
        %v6283 = vand.u32 %v6282, 4294901760
        %6284 = vmatpush1.msra.mxu0 %v6283
        %6285 = vmatprep.subr.mxu0 0.0
        %6286 = vmatpush1.msra.mxu0 0.0
        %6287 = vmatprep.subr.mxu0 0.0
        %6288 = vmatpush1.msra.mxu0 0.0
        %6289 = vmatprep.subr.mxu0 0.0
        %6290 = vmatpush1.msra.mxu0 0.0
        %6291 = vmatprep.subr.mxu0 0.0
        %6292 = vmatpush1.msra.mxu0 0.0
        %6293 = vmatprep.subr.mxu0 0.0
        %6294 = vmatpush1.msra.mxu0 0.0
        %6295 = vmatprep.subr.mxu0 0.0
        %6296 = vmatpush1.msra.mxu0 0.0
        %6297 = vmatprep.subr.mxu0 0.0
        %6298 = vmatpush1.msra.mxu0 0.0
        %6299 = vmatprep.subr.mxu0 0.0
        %6300 = vmatpush1.msra.mxu0 0.0
        %6301 = vmatprep.subr.mxu0 0.0
        %6302 = vmatpush1.msra.mxu0 0.0
        %6303 = vmatprep.subr.mxu0 0.0
        %6304 = vmatpush1.msra.mxu0 0.0
        %6305 = vmatprep.subr.mxu0 0.0
        %6306 = vmatpush1.msra.mxu0 0.0
        %6307 = vmatprep.subr.mxu0 0.0
        %6308 = vmatpush1.msra.mxu0 0.0
        %6309 = vmatprep.subr.mxu0 0.0
        %6310 = vmatpush1.msra.mxu0 0.0
        %6311 = vmatprep.subr.mxu0 0.0
        %6312 = vmatpush1.msra.mxu0 0.0
        %6313 = vmatprep.subr.mxu0 0.0
        %6314 = vmatpush1.msra.mxu0 0.0
        %6315 = vmatprep.subr.mxu0 0.0
        %6316 = vmatpush1.msra.mxu0 0.0
        %6317 = vmatprep.subr.mxu0 0.0
        %6318 = vmatpush1.msra.mxu0 0.0
        %6319 = vmatprep.subr.mxu0 0.0
        %6320 = vmatpush1.msra.mxu0 0.0
        %6321 = vmatprep.subr.mxu0 0.0
        %6322 = vmatpush1.msra.mxu0 0.0
        %6323 = vmatprep.subr.mxu0 0.0
        %6324 = vmatpush1.msra.mxu0 0.0
        %6325 = vmatprep.subr.mxu0 0.0
        %6326 = vmatpush1.msra.mxu0 0.0
        %6327 = vmatprep.subr.mxu0 0.0
        %6328 = vmatpush1.msra.mxu0 0.0
        %6329 = vmatprep.subr.mxu0 0.0
        %6330 = vmatpush1.msra.mxu0 0.0
        %6331 = vmatprep.subr.mxu0 0.0
        %6332 = vmatpush1.msra.mxu0 0.0
        %6333 = vmatprep.subr.mxu0 0.0
        %6334 = vmatpush1.msra.mxu0 0.0
        %6335 = vmatprep.subr.mxu0 0.0
        %6336 = vmatpush1.msra.mxu0 0.0
        %6337 = vmatprep.subr.mxu0 0.0
        %6338 = vmatpush1.msra.mxu0 0.0
        %6339 = vmatprep.subr.mxu0 0.0
        %6340 = vmatpush1.msra.mxu0 0.0
        %6341 = vmatprep.subr.mxu0 0.0
        %6342 = vmatpush1.msra.mxu0 0.0
        %6343 = vmatprep.subr.mxu0 0.0
        %6344 = vmatpush1.msra.mxu0 0.0
        %6345 = vmatprep.subr.mxu0 0.0
        %6346 = vmatpush1.msra.mxu0 0.0
        %6347 = vmatprep.mubr.f32.mxu0 0.0
        %v6348 = vand.u32 %v5978, 4294901760
        %6349 = vmatmul.mubr.f32.gmra.mrb[0].mxu0 %v6348
        %v6350 = vpop.f32.mrb[0].mxu0
        %v6351 = vadd.f32 %v6277, %v6350
        %v6352 = vpop.f32.mrb[0].mxu0
        %6353 = vdwg.mxu0
        %6354 = vmatprep.subr.mxu0 0.0
        %v6355 = vand.u32 %v5975, 4294901760
        %6356 = vmatpush1.msra.mxu0 %v6355
        %6357 = vmatprep.subr.mxu0 0.0
        %6358 = vmatpush1.msra.mxu0 0.0
        %6359 = vmatprep.subr.mxu0 0.0
        %6360 = vmatpush1.msra.mxu0 0.0
        %6361 = vmatprep.subr.mxu0 0.0
        %6362 = vmatpush1.msra.mxu0 0.0
        %6363 = vmatprep.subr.mxu0 0.0
        %6364 = vmatpush1.msra.mxu0 0.0
        %6365 = vmatprep.subr.mxu0 0.0
        %6366 = vmatpush1.msra.mxu0 0.0
        %6367 = vmatprep.subr.mxu0 0.0
        %6368 = vmatpush1.msra.mxu0 0.0
        %6369 = vmatprep.subr.mxu0 0.0
        %6370 = vmatpush1.msra.mxu0 0.0
        %6371 = vmatprep.subr.mxu0 0.0
        %6372 = vmatpush1.msra.mxu0 0.0
        %6373 = vmatprep.subr.mxu0 0.0
        %6374 = vmatpush1.msra.mxu0 0.0
        %6375 = vmatprep.subr.mxu0 0.0
        %6376 = vmatpush1.msra.mxu0 0.0
        %6377 = vmatprep.subr.mxu0 0.0
        %6378 = vmatpush1.msra.mxu0 0.0
        %6379 = vmatprep.subr.mxu0 0.0
        %6380 = vmatpush1.msra.mxu0 0.0
        %6381 = vmatprep.subr.mxu0 0.0
        %6382 = vmatpush1.msra.mxu0 0.0
        %6383 = vmatprep.subr.mxu0 0.0
        %6384 = vmatpush1.msra.mxu0 0.0
        %6385 = vmatprep.subr.mxu0 0.0
        %6386 = vmatpush1.msra.mxu0 0.0
        %6387 = vmatprep.subr.mxu0 0.0
        %6388 = vmatpush1.msra.mxu0 0.0
        %6389 = vmatprep.subr.mxu0 0.0
        %6390 = vmatpush1.msra.mxu0 0.0
        %6391 = vmatprep.subr.mxu0 0.0
        %6392 = vmatpush1.msra.mxu0 0.0
        %6393 = vmatprep.subr.mxu0 0.0
        %6394 = vmatpush1.msra.mxu0 0.0
        %6395 = vmatprep.subr.mxu0 0.0
        %6396 = vmatpush1.msra.mxu0 0.0
        %6397 = vmatprep.subr.mxu0 0.0
        %6398 = vmatpush1.msra.mxu0 0.0
        %6399 = vmatprep.subr.mxu0 0.0
        %6400 = vmatpush1.msra.mxu0 0.0
        %6401 = vmatprep.subr.mxu0 0.0
        %6402 = vmatpush1.msra.mxu0 0.0
        %6403 = vmatprep.subr.mxu0 0.0
        %6404 = vmatpush1.msra.mxu0 0.0
        %6405 = vmatprep.subr.mxu0 0.0
        %6406 = vmatpush1.msra.mxu0 0.0
        %6407 = vmatprep.subr.mxu0 0.0
        %6408 = vmatpush1.msra.mxu0 0.0
        %6409 = vmatprep.subr.mxu0 0.0
        %6410 = vmatpush1.msra.mxu0 0.0
        %6411 = vmatprep.subr.mxu0 0.0
        %6412 = vmatpush1.msra.mxu0 0.0
        %6413 = vmatprep.subr.mxu0 0.0
        %6414 = vmatpush1.msra.mxu0 0.0
        %6415 = vmatprep.subr.mxu0 0.0
        %6416 = vmatpush1.msra.mxu0 0.0
        %6417 = vmatprep.subr.mxu0 0.0
        %6418 = vmatpush1.msra.mxu0 0.0
        %6419 = vmatprep.mubr.f32.mxu0 0.0
        %v6420 = vand.u32 %v5978, 4294901760
        %6421 = vmatmul.mubr.f32.gmra.mrb[0].mxu0 %v6420
        %v6422 = vpop.f32.mrb[0].mxu0
        %v6423 = vadd.f32 %v6351, %v6422
        %v6424 = vpop.f32.mrb[0].mxu0
        %6425 = vdwg.mxu0
        %6426 = vrot.lane.b32.xlu0 %v1363, 96
        %v6427 = vpop.permute.xlu0 %6426
        %v6430 = vsel %vm4981, %v5061, 0
        %6432 = vmatprep.subr.mxu0 0.0
        %v6433 = vand.u32 %v6427, 4294901760
        %6434 = vmatpush1.msra.mxu0 %v6433
        %6435 = vmatprep.subr.mxu0 0.0
        %6436 = vmatpush1.msra.mxu0 0.0
        %6437 = vmatprep.subr.mxu0 0.0
        %6438 = vmatpush1.msra.mxu0 0.0
        %6439 = vmatprep.subr.mxu0 0.0
        %6440 = vmatpush1.msra.mxu0 0.0
        %6441 = vmatprep.subr.mxu0 0.0
        %6442 = vmatpush1.msra.mxu0 0.0
        %6443 = vmatprep.subr.mxu0 0.0
        %6444 = vmatpush1.msra.mxu0 0.0
        %6445 = vmatprep.subr.mxu0 0.0
        %6446 = vmatpush1.msra.mxu0 0.0
        %6447 = vmatprep.subr.mxu0 0.0
        %6448 = vmatpush1.msra.mxu0 0.0
        %6449 = vmatprep.subr.mxu0 0.0
        %6450 = vmatpush1.msra.mxu0 0.0
        %6451 = vmatprep.subr.mxu0 0.0
        %6452 = vmatpush1.msra.mxu0 0.0
        %6453 = vmatprep.subr.mxu0 0.0
        %6454 = vmatpush1.msra.mxu0 0.0
        %6455 = vmatprep.subr.mxu0 0.0
        %6456 = vmatpush1.msra.mxu0 0.0
        %6457 = vmatprep.subr.mxu0 0.0
        %6458 = vmatpush1.msra.mxu0 0.0
        %6459 = vmatprep.subr.mxu0 0.0
        %6460 = vmatpush1.msra.mxu0 0.0
        %6461 = vmatprep.subr.mxu0 0.0
        %6462 = vmatpush1.msra.mxu0 0.0
        %6463 = vmatprep.subr.mxu0 0.0
        %6464 = vmatpush1.msra.mxu0 0.0
        %6465 = vmatprep.subr.mxu0 0.0
        %6466 = vmatpush1.msra.mxu0 0.0
        %6467 = vmatprep.subr.mxu0 0.0
        %6468 = vmatpush1.msra.mxu0 0.0
        %6469 = vmatprep.subr.mxu0 0.0
        %6470 = vmatpush1.msra.mxu0 0.0
        %6471 = vmatprep.subr.mxu0 0.0
        %6472 = vmatpush1.msra.mxu0 0.0
        %6473 = vmatprep.subr.mxu0 0.0
        %6474 = vmatpush1.msra.mxu0 0.0
        %6475 = vmatprep.subr.mxu0 0.0
        %6476 = vmatpush1.msra.mxu0 0.0
        %6477 = vmatprep.subr.mxu0 0.0
        %6478 = vmatpush1.msra.mxu0 0.0
        %6479 = vmatprep.subr.mxu0 0.0
        %6480 = vmatpush1.msra.mxu0 0.0
        %6481 = vmatprep.subr.mxu0 0.0
        %6482 = vmatpush1.msra.mxu0 0.0
        %6483 = vmatprep.subr.mxu0 0.0
        %6484 = vmatpush1.msra.mxu0 0.0
        %6485 = vmatprep.subr.mxu0 0.0
        %6486 = vmatpush1.msra.mxu0 0.0
        %6487 = vmatprep.subr.mxu0 0.0
        %6488 = vmatpush1.msra.mxu0 0.0
        %6489 = vmatprep.subr.mxu0 0.0
        %6490 = vmatpush1.msra.mxu0 0.0
        %6491 = vmatprep.subr.mxu0 0.0
        %6492 = vmatpush1.msra.mxu0 0.0
        %6493 = vmatprep.subr.mxu0 0.0
        %6494 = vmatpush1.msra.mxu0 0.0
        %6495 = vmatprep.subr.mxu0 0.0
        %6496 = vmatpush1.msra.mxu0 0.0
        %6497 = vmatprep.mubr.f32.mxu0 0.0
        %v6498 = vand.u32 %v6430, 4294901760
        %v6499 = vsub.f32 %v6430, %v6498
        %v6500 = vand.u32 %v6499, 4294901760
        %v6501 = vsub.f32 %v6499, %v6500
        %v6502 = vand.u32 %v6501, 4294901760
        %6503 = vmatmul.mubr.f32.gmra.mrb[0].mxu0 %v6502
        %v6504 = vpop.f32.mrb[0].mxu0
        %v6505 = vadd.f32 0.0, %v6504
        %v6506 = vpop.f32.mrb[0].mxu0
        %6507 = vdwg.mxu0
        %6508 = vmatprep.subr.mxu0 0.0
        %v6509 = vand.u32 %v6427, 4294901760
        %v6510 = vsub.f32 %v6427, %v6509
        %v6511 = vand.u32 %v6510, 4294901760
        %v6512 = vsub.f32 %v6510, %v6511
        %v6513 = vand.u32 %v6512, 4294901760
        %6514 = vmatpush1.msra.mxu0 %v6513
        %6515 = vmatprep.subr.mxu0 0.0
        %6516 = vmatpush1.msra.mxu0 0.0
        %6517 = vmatprep.subr.mxu0 0.0
        %6518 = vmatpush1.msra.mxu0 0.0
        %6519 = vmatprep.subr.mxu0 0.0
        %6520 = vmatpush1.msra.mxu0 0.0
        %6521 = vmatprep.subr.mxu0 0.0
        %6522 = vmatpush1.msra.mxu0 0.0
        %6523 = vmatprep.subr.mxu0 0.0
        %6524 = vmatpush1.msra.mxu0 0.0
        %6525 = vmatprep.subr.mxu0 0.0
        %6526 = vmatpush1.msra.mxu0 0.0
        %6527 = vmatprep.subr.mxu0 0.0
        %6528 = vmatpush1.msra.mxu0 0.0
        %6529 = vmatprep.subr.mxu0 0.0
        %6530 = vmatpush1.msra.mxu0 0.0
        %6531 = vmatprep.subr.mxu0 0.0
        %6532 = vmatpush1.msra.mxu0 0.0
        %6533 = vmatprep.subr.mxu0 0.0
        %6534 = vmatpush1.msra.mxu0 0.0
        %6535 = vmatprep.subr.mxu0 0.0
        %6536 = vmatpush1.msra.mxu0 0.0
        %6537 = vmatprep.subr.mxu0 0.0
        %6538 = vmatpush1.msra.mxu0 0.0
        %6539 = vmatprep.subr.mxu0 0.0
        %6540 = vmatpush1.msra.mxu0 0.0
        %6541 = vmatprep.subr.mxu0 0.0
        %6542 = vmatpush1.msra.mxu0 0.0
        %6543 = vmatprep.subr.mxu0 0.0
        %6544 = vmatpush1.msra.mxu0 0.0
        %6545 = vmatprep.subr.mxu0 0.0
        %6546 = vmatpush1.msra.mxu0 0.0
        %6547 = vmatprep.subr.mxu0 0.0
        %6548 = vmatpush1.msra.mxu0 0.0
        %6549 = vmatprep.subr.mxu0 0.0
        %6550 = vmatpush1.msra.mxu0 0.0
        %6551 = vmatprep.subr.mxu0 0.0
        %6552 = vmatpush1.msra.mxu0 0.0
        %6553 = vmatprep.subr.mxu0 0.0
        %6554 = vmatpush1.msra.mxu0 0.0
        %6555 = vmatprep.subr.mxu0 0.0
        %6556 = vmatpush1.msra.mxu0 0.0
        %6557 = vmatprep.subr.mxu0 0.0
        %6558 = vmatpush1.msra.mxu0 0.0
        %6559 = vmatprep.subr.mxu0 0.0
        %6560 = vmatpush1.msra.mxu0 0.0
        %6561 = vmatprep.subr.mxu0 0.0
        %6562 = vmatpush1.msra.mxu0 0.0
        %6563 = vmatprep.subr.mxu0 0.0
        %6564 = vmatpush1.msra.mxu0 0.0
        %6565 = vmatprep.subr.mxu0 0.0
        %6566 = vmatpush1.msra.mxu0 0.0
        %6567 = vmatprep.subr.mxu0 0.0
        %6568 = vmatpush1.msra.mxu0 0.0
        %6569 = vmatprep.subr.mxu0 0.0
        %6570 = vmatpush1.msra.mxu0 0.0
        %6571 = vmatprep.subr.mxu0 0.0
        %6572 = vmatpush1.msra.mxu0 0.0
        %6573 = vmatprep.subr.mxu0 0.0
        %6574 = vmatpush1.msra.mxu0 0.0
        %6575 = vmatprep.subr.mxu0 0.0
        %6576 = vmatpush1.msra.mxu0 0.0
        %6577 = vmatprep.mubr.f32.mxu0 0.0
        %v6578 = vand.u32 %v6430, 4294901760
        %6579 = vmatmul.mubr.f32.gmra.mrb[0].mxu0 %v6578
        %v6580 = vpop.f32.mrb[0].mxu0
        %v6581 = vadd.f32 %v6505, %v6580
        %v6582 = vpop.f32.mrb[0].mxu0
        %6583 = vdwg.mxu0
        %6584 = vmatprep.subr.mxu0 0.0
        %v6585 = vand.u32 %v6427, 4294901760
        %v6586 = vsub.f32 %v6427, %v6585
        %6587 = vmatpush1.msra.mxu0 %v6586
        %6588 = vmatprep.subr.mxu0 0.0
        %6589 = vmatpush1.msra.mxu0 0.0
        %6590 = vmatprep.subr.mxu0 0.0
        %6591 = vmatpush1.msra.mxu0 0.0
        %6592 = vmatprep.subr.mxu0 0.0
        %6593 = vmatpush1.msra.mxu0 0.0
        %6594 = vmatprep.subr.mxu0 0.0
        %6595 = vmatpush1.msra.mxu0 0.0
        %6596 = vmatprep.subr.mxu0 0.0
        %6597 = vmatpush1.msra.mxu0 0.0
        %6598 = vmatprep.subr.mxu0 0.0
        %6599 = vmatpush1.msra.mxu0 0.0
        %6600 = vmatprep.subr.mxu0 0.0
        %6601 = vmatpush1.msra.mxu0 0.0
        %6602 = vmatprep.subr.mxu0 0.0
        %6603 = vmatpush1.msra.mxu0 0.0
        %6604 = vmatprep.subr.mxu0 0.0
        %6605 = vmatpush1.msra.mxu0 0.0
        %6606 = vmatprep.subr.mxu0 0.0
        %6607 = vmatpush1.msra.mxu0 0.0
        %6608 = vmatprep.subr.mxu0 0.0
        %6609 = vmatpush1.msra.mxu0 0.0
        %6610 = vmatprep.subr.mxu0 0.0
        %6611 = vmatpush1.msra.mxu0 0.0
        %6612 = vmatprep.subr.mxu0 0.0
        %6613 = vmatpush1.msra.mxu0 0.0
        %6614 = vmatprep.subr.mxu0 0.0
        %6615 = vmatpush1.msra.mxu0 0.0
        %6616 = vmatprep.subr.mxu0 0.0
        %6617 = vmatpush1.msra.mxu0 0.0
        %6618 = vmatprep.subr.mxu0 0.0
        %6619 = vmatpush1.msra.mxu0 0.0
        %6620 = vmatprep.subr.mxu0 0.0
        %6621 = vmatpush1.msra.mxu0 0.0
        %6622 = vmatprep.subr.mxu0 0.0
        %6623 = vmatpush1.msra.mxu0 0.0
        %6624 = vmatprep.subr.mxu0 0.0
        %6625 = vmatpush1.msra.mxu0 0.0
        %6626 = vmatprep.subr.mxu0 0.0
        %6627 = vmatpush1.msra.mxu0 0.0
        %6628 = vmatprep.subr.mxu0 0.0
        %6629 = vmatpush1.msra.mxu0 0.0
        %6630 = vmatprep.subr.mxu0 0.0
        %6631 = vmatpush1.msra.mxu0 0.0
        %6632 = vmatprep.subr.mxu0 0.0
        %6633 = vmatpush1.msra.mxu0 0.0
        %6634 = vmatprep.subr.mxu0 0.0
        %6635 = vmatpush1.msra.mxu0 0.0
        %6636 = vmatprep.subr.mxu0 0.0
        %6637 = vmatpush1.msra.mxu0 0.0
        %6638 = vmatprep.subr.mxu0 0.0
        %6639 = vmatpush1.msra.mxu0 0.0
        %6640 = vmatprep.subr.mxu0 0.0
        %6641 = vmatpush1.msra.mxu0 0.0
        %6642 = vmatprep.subr.mxu0 0.0
        %6643 = vmatpush1.msra.mxu0 0.0
        %6644 = vmatprep.subr.mxu0 0.0
        %6645 = vmatpush1.msra.mxu0 0.0
        %6646 = vmatprep.subr.mxu0 0.0
        %6647 = vmatpush1.msra.mxu0 0.0
        %6648 = vmatprep.subr.mxu0 0.0
        %6649 = vmatpush1.msra.mxu0 0.0
        %6650 = vmatprep.mubr.f32.mxu0 0.0
        %v6651 = vand.u32 %v6430, 4294901760
        %v6652 = vsub.f32 %v6430, %v6651
        %6653 = vmatmul.mubr.f32.gmra.mrb[0].mxu0 %v6652
        %v6654 = vpop.f32.mrb[0].mxu0
        %v6655 = vadd.f32 %v6581, %v6654
        %v6656 = vpop.f32.mrb[0].mxu0
        %6657 = vdwg.mxu0
        %6658 = vmatprep.subr.mxu0 0.0
        %v6659 = vand.u32 %v6427, 4294901760
        %6660 = vmatpush1.msra.mxu0 %v6659
        %6661 = vmatprep.subr.mxu0 0.0
        %6662 = vmatpush1.msra.mxu0 0.0
        %6663 = vmatprep.subr.mxu0 0.0
        %6664 = vmatpush1.msra.mxu0 0.0
        %6665 = vmatprep.subr.mxu0 0.0
        %6666 = vmatpush1.msra.mxu0 0.0
        %6667 = vmatprep.subr.mxu0 0.0
        %6668 = vmatpush1.msra.mxu0 0.0
        %6669 = vmatprep.subr.mxu0 0.0
        %6670 = vmatpush1.msra.mxu0 0.0
        %6671 = vmatprep.subr.mxu0 0.0
        %6672 = vmatpush1.msra.mxu0 0.0
        %6673 = vmatprep.subr.mxu0 0.0
        %6674 = vmatpush1.msra.mxu0 0.0
        %6675 = vmatprep.subr.mxu0 0.0
        %6676 = vmatpush1.msra.mxu0 0.0
        %6677 = vmatprep.subr.mxu0 0.0
        %6678 = vmatpush1.msra.mxu0 0.0
        %6679 = vmatprep.subr.mxu0 0.0
        %6680 = vmatpush1.msra.mxu0 0.0
        %6681 = vmatprep.subr.mxu0 0.0
        %6682 = vmatpush1.msra.mxu0 0.0
        %6683 = vmatprep.subr.mxu0 0.0
        %6684 = vmatpush1.msra.mxu0 0.0
        %6685 = vmatprep.subr.mxu0 0.0
        %6686 = vmatpush1.msra.mxu0 0.0
        %6687 = vmatprep.subr.mxu0 0.0
        %6688 = vmatpush1.msra.mxu0 0.0
        %6689 = vmatprep.subr.mxu0 0.0
        %6690 = vmatpush1.msra.mxu0 0.0
        %6691 = vmatprep.subr.mxu0 0.0
        %6692 = vmatpush1.msra.mxu0 0.0
        %6693 = vmatprep.subr.mxu0 0.0
        %6694 = vmatpush1.msra.mxu0 0.0
        %6695 = vmatprep.subr.mxu0 0.0
        %6696 = vmatpush1.msra.mxu0 0.0
        %6697 = vmatprep.subr.mxu0 0.0
        %6698 = vmatpush1.msra.mxu0 0.0
        %6699 = vmatprep.subr.mxu0 0.0
        %6700 = vmatpush1.msra.mxu0 0.0
        %6701 = vmatprep.subr.mxu0 0.0
        %6702 = vmatpush1.msra.mxu0 0.0
        %6703 = vmatprep.subr.mxu0 0.0
        %6704 = vmatpush1.msra.mxu0 0.0
        %6705 = vmatprep.subr.mxu0 0.0
        %6706 = vmatpush1.msra.mxu0 0.0
        %6707 = vmatprep.subr.mxu0 0.0
        %6708 = vmatpush1.msra.mxu0 0.0
        %6709 = vmatprep.subr.mxu0 0.0
        %6710 = vmatpush1.msra.mxu0 0.0
        %6711 = vmatprep.subr.mxu0 0.0
        %6712 = vmatpush1.msra.mxu0 0.0
        %6713 = vmatprep.subr.mxu0 0.0
        %6714 = vmatpush1.msra.mxu0 0.0
        %6715 = vmatprep.subr.mxu0 0.0
        %6716 = vmatpush1.msra.mxu0 0.0
        %6717 = vmatprep.subr.mxu0 0.0
        %6718 = vmatpush1.msra.mxu0 0.0
        %6719 = vmatprep.subr.mxu0 0.0
        %6720 = vmatpush1.msra.mxu0 0.0
        %6721 = vmatprep.subr.mxu0 0.0
        %6722 = vmatpush1.msra.mxu0 0.0
        %6723 = vmatprep.mubr.f32.mxu0 0.0
        %v6724 = vand.u32 %v6430, 4294901760
        %v6725 = vsub.f32 %v6430, %v6724
        %v6726 = vand.u32 %v6725, 4294901760
        %6727 = vmatmul.mubr.f32.gmra.mrb[0].mxu0 %v6726
        %v6728 = vpop.f32.mrb[0].mxu0
        %v6729 = vadd.f32 %v6655, %v6728
        %v6730 = vpop.f32.mrb[0].mxu0
        %6731 = vdwg.mxu0
        %6732 = vmatprep.subr.mxu0 0.0
        %v6733 = vand.u32 %v6427, 4294901760
        %v6734 = vsub.f32 %v6427, %v6733
        %v6735 = vand.u32 %v6734, 4294901760
        %6736 = vmatpush1.msra.mxu0 %v6735
        %6737 = vmatprep.subr.mxu0 0.0
        %6738 = vmatpush1.msra.mxu0 0.0
        %6739 = vmatprep.subr.mxu0 0.0
        %6740 = vmatpush1.msra.mxu0 0.0
        %6741 = vmatprep.subr.mxu0 0.0
        %6742 = vmatpush1.msra.mxu0 0.0
        %6743 = vmatprep.subr.mxu0 0.0
        %6744 = vmatpush1.msra.mxu0 0.0
        %6745 = vmatprep.subr.mxu0 0.0
        %6746 = vmatpush1.msra.mxu0 0.0
        %6747 = vmatprep.subr.mxu0 0.0
        %6748 = vmatpush1.msra.mxu0 0.0
        %6749 = vmatprep.subr.mxu0 0.0
        %6750 = vmatpush1.msra.mxu0 0.0
        %6751 = vmatprep.subr.mxu0 0.0
        %6752 = vmatpush1.msra.mxu0 0.0
        %6753 = vmatprep.subr.mxu0 0.0
        %6754 = vmatpush1.msra.mxu0 0.0
        %6755 = vmatprep.subr.mxu0 0.0
        %6756 = vmatpush1.msra.mxu0 0.0
        %6757 = vmatprep.subr.mxu0 0.0
        %6758 = vmatpush1.msra.mxu0 0.0
        %6759 = vmatprep.subr.mxu0 0.0
        %6760 = vmatpush1.msra.mxu0 0.0
        %6761 = vmatprep.subr.mxu0 0.0
        %6762 = vmatpush1.msra.mxu0 0.0
        %6763 = vmatprep.subr.mxu0 0.0
        %6764 = vmatpush1.msra.mxu0 0.0
        %6765 = vmatprep.subr.mxu0 0.0
        %6766 = vmatpush1.msra.mxu0 0.0
        %6767 = vmatprep.subr.mxu0 0.0
        %6768 = vmatpush1.msra.mxu0 0.0
        %6769 = vmatprep.subr.mxu0 0.0
        %6770 = vmatpush1.msra.mxu0 0.0
        %6771 = vmatprep.subr.mxu0 0.0
        %6772 = vmatpush1.msra.mxu0 0.0
        %6773 = vmatprep.subr.mxu0 0.0
        %6774 = vmatpush1.msra.mxu0 0.0
        %6775 = vmatprep.subr.mxu0 0.0
        %6776 = vmatpush1.msra.mxu0 0.0
        %6777 = vmatprep.subr.mxu0 0.0
        %6778 = vmatpush1.msra.mxu0 0.0
        %6779 = vmatprep.subr.mxu0 0.0
        %6780 = vmatpush1.msra.mxu0 0.0
        %6781 = vmatprep.subr.mxu0 0.0
        %6782 = vmatpush1.msra.mxu0 0.0
        %6783 = vmatprep.subr.mxu0 0.0
        %6784 = vmatpush1.msra.mxu0 0.0
        %6785 = vmatprep.subr.mxu0 0.0
        %6786 = vmatpush1.msra.mxu0 0.0
        %6787 = vmatprep.subr.mxu0 0.0
        %6788 = vmatpush1.msra.mxu0 0.0
        %6789 = vmatprep.subr.mxu0 0.0
        %6790 = vmatpush1.msra.mxu0 0.0
        %6791 = vmatprep.subr.mxu0 0.0
        %6792 = vmatpush1.msra.mxu0 0.0
        %6793 = vmatprep.subr.mxu0 0.0
        %6794 = vmatpush1.msra.mxu0 0.0
        %6795 = vmatprep.subr.mxu0 0.0
        %6796 = vmatpush1.msra.mxu0 0.0
        %6797 = vmatprep.subr.mxu0 0.0
        %6798 = vmatpush1.msra.mxu0 0.0
        %6799 = vmatprep.mubr.f32.mxu0 0.0
        %v6800 = vand.u32 %v6430, 4294901760
        %6801 = vmatmul.mubr.f32.gmra.mrb[0].mxu0 %v6800
        %v6802 = vpop.f32.mrb[0].mxu0
        %v6803 = vadd.f32 %v6729, %v6802
        %v6804 = vpop.f32.mrb[0].mxu0
        %6805 = vdwg.mxu0
        %6806 = vmatprep.subr.mxu0 0.0
        %v6807 = vand.u32 %v6427, 4294901760
        %6808 = vmatpush1.msra.mxu0 %v6807
        %6809 = vmatprep.subr.mxu0 0.0
        %6810 = vmatpush1.msra.mxu0 0.0
        %6811 = vmatprep.subr.mxu0 0.0
        %6812 = vmatpush1.msra.mxu0 0.0
        %6813 = vmatprep.subr.mxu0 0.0
        %6814 = vmatpush1.msra.mxu0 0.0
        %6815 = vmatprep.subr.mxu0 0.0
        %6816 = vmatpush1.msra.mxu0 0.0
        %6817 = vmatprep.subr.mxu0 0.0
        %6818 = vmatpush1.msra.mxu0 0.0
        %6819 = vmatprep.subr.mxu0 0.0
        %6820 = vmatpush1.msra.mxu0 0.0
        %6821 = vmatprep.subr.mxu0 0.0
        %6822 = vmatpush1.msra.mxu0 0.0
        %6823 = vmatprep.subr.mxu0 0.0
        %6824 = vmatpush1.msra.mxu0 0.0
        %6825 = vmatprep.subr.mxu0 0.0
        %6826 = vmatpush1.msra.mxu0 0.0
        %6827 = vmatprep.subr.mxu0 0.0
        %6828 = vmatpush1.msra.mxu0 0.0
        %6829 = vmatprep.subr.mxu0 0.0
        %6830 = vmatpush1.msra.mxu0 0.0
        %6831 = vmatprep.subr.mxu0 0.0
        %6832 = vmatpush1.msra.mxu0 0.0
        %6833 = vmatprep.subr.mxu0 0.0
        %6834 = vmatpush1.msra.mxu0 0.0
        %6835 = vmatprep.subr.mxu0 0.0
        %6836 = vmatpush1.msra.mxu0 0.0
        %6837 = vmatprep.subr.mxu0 0.0
        %6838 = vmatpush1.msra.mxu0 0.0
        %6839 = vmatprep.subr.mxu0 0.0
        %6840 = vmatpush1.msra.mxu0 0.0
        %6841 = vmatprep.subr.mxu0 0.0
        %6842 = vmatpush1.msra.mxu0 0.0
        %6843 = vmatprep.subr.mxu0 0.0
        %6844 = vmatpush1.msra.mxu0 0.0
        %6845 = vmatprep.subr.mxu0 0.0
        %6846 = vmatpush1.msra.mxu0 0.0
        %6847 = vmatprep.subr.mxu0 0.0
        %6848 = vmatpush1.msra.mxu0 0.0
        %6849 = vmatprep.subr.mxu0 0.0
        %6850 = vmatpush1.msra.mxu0 0.0
        %6851 = vmatprep.subr.mxu0 0.0
        %6852 = vmatpush1.msra.mxu0 0.0
        %6853 = vmatprep.subr.mxu0 0.0
        %6854 = vmatpush1.msra.mxu0 0.0
        %6855 = vmatprep.subr.mxu0 0.0
        %6856 = vmatpush1.msra.mxu0 0.0
        %6857 = vmatprep.subr.mxu0 0.0
        %6858 = vmatpush1.msra.mxu0 0.0
        %6859 = vmatprep.subr.mxu0 0.0
        %6860 = vmatpush1.msra.mxu0 0.0
        %6861 = vmatprep.subr.mxu0 0.0
        %6862 = vmatpush1.msra.mxu0 0.0
        %6863 = vmatprep.subr.mxu0 0.0
        %6864 = vmatpush1.msra.mxu0 0.0
        %6865 = vmatprep.subr.mxu0 0.0
        %6866 = vmatpush1.msra.mxu0 0.0
        %6867 = vmatprep.subr.mxu0 0.0
        %6868 = vmatpush1.msra.mxu0 0.0
        %6869 = vmatprep.subr.mxu0 0.0
        %6870 = vmatpush1.msra.mxu0 0.0
        %6871 = vmatprep.mubr.f32.mxu0 0.0
        %v6872 = vand.u32 %v6430, 4294901760
        %6873 = vmatmul.mubr.f32.gmra.mrb[0].mxu0 %v6872
        %v6874 = vpop.f32.mrb[0].mxu0
        %v6875 = vadd.f32 %v6803, %v6874
        %v6876 = vpop.f32.mrb[0].mxu0
        %6877 = vdwg.mxu0
        %6878 = vrot.lane.b32.xlu0 %v1365, 96
        %v6879 = vpop.permute.xlu0 %6878
        %v6882 = vsel %vm4981, %v5063, 0
        %6884 = vmatprep.subr.mxu0 0.0
        %v6885 = vand.u32 %v6879, 4294901760
        %6886 = vmatpush1.msra.mxu0 %v6885
        %6887 = vmatprep.subr.mxu0 0.0
        %6888 = vmatpush1.msra.mxu0 0.0
        %6889 = vmatprep.subr.mxu0 0.0
        %6890 = vmatpush1.msra.mxu0 0.0
        %6891 = vmatprep.subr.mxu0 0.0
        %6892 = vmatpush1.msra.mxu0 0.0
        %6893 = vmatprep.subr.mxu0 0.0
        %6894 = vmatpush1.msra.mxu0 0.0
        %6895 = vmatprep.subr.mxu0 0.0
        %6896 = vmatpush1.msra.mxu0 0.0
        %6897 = vmatprep.subr.mxu0 0.0
        %6898 = vmatpush1.msra.mxu0 0.0
        %6899 = vmatprep.subr.mxu0 0.0
        %6900 = vmatpush1.msra.mxu0 0.0
        %6901 = vmatprep.subr.mxu0 0.0
        %6902 = vmatpush1.msra.mxu0 0.0
        %6903 = vmatprep.subr.mxu0 0.0
        %6904 = vmatpush1.msra.mxu0 0.0
        %6905 = vmatprep.subr.mxu0 0.0
        %6906 = vmatpush1.msra.mxu0 0.0
        %6907 = vmatprep.subr.mxu0 0.0
        %6908 = vmatpush1.msra.mxu0 0.0
        %6909 = vmatprep.subr.mxu0 0.0
        %6910 = vmatpush1.msra.mxu0 0.0
        %6911 = vmatprep.subr.mxu0 0.0
        %6912 = vmatpush1.msra.mxu0 0.0
        %6913 = vmatprep.subr.mxu0 0.0
        %6914 = vmatpush1.msra.mxu0 0.0
        %6915 = vmatprep.subr.mxu0 0.0
        %6916 = vmatpush1.msra.mxu0 0.0
        %6917 = vmatprep.subr.mxu0 0.0
        %6918 = vmatpush1.msra.mxu0 0.0
        %6919 = vmatprep.subr.mxu0 0.0
        %6920 = vmatpush1.msra.mxu0 0.0
        %6921 = vmatprep.subr.mxu0 0.0
        %6922 = vmatpush1.msra.mxu0 0.0
        %6923 = vmatprep.subr.mxu0 0.0
        %6924 = vmatpush1.msra.mxu0 0.0
        %6925 = vmatprep.subr.mxu0 0.0
        %6926 = vmatpush1.msra.mxu0 0.0
        %6927 = vmatprep.subr.mxu0 0.0
        %6928 = vmatpush1.msra.mxu0 0.0
        %6929 = vmatprep.subr.mxu0 0.0
        %6930 = vmatpush1.msra.mxu0 0.0
        %6931 = vmatprep.subr.mxu0 0.0
        %6932 = vmatpush1.msra.mxu0 0.0
        %6933 = vmatprep.subr.mxu0 0.0
        %6934 = vmatpush1.msra.mxu0 0.0
        %6935 = vmatprep.subr.mxu0 0.0
        %6936 = vmatpush1.msra.mxu0 0.0
        %6937 = vmatprep.subr.mxu0 0.0
        %6938 = vmatpush1.msra.mxu0 0.0
        %6939 = vmatprep.subr.mxu0 0.0
        %6940 = vmatpush1.msra.mxu0 0.0
        %6941 = vmatprep.subr.mxu0 0.0
        %6942 = vmatpush1.msra.mxu0 0.0
        %6943 = vmatprep.subr.mxu0 0.0
        %6944 = vmatpush1.msra.mxu0 0.0
        %6945 = vmatprep.subr.mxu0 0.0
        %6946 = vmatpush1.msra.mxu0 0.0
        %6947 = vmatprep.subr.mxu0 0.0
        %6948 = vmatpush1.msra.mxu0 0.0
        %6949 = vmatprep.mubr.f32.mxu0 0.0
        %v6950 = vand.u32 %v6882, 4294901760
        %v6951 = vsub.f32 %v6882, %v6950
        %v6952 = vand.u32 %v6951, 4294901760
        %v6953 = vsub.f32 %v6951, %v6952
        %v6954 = vand.u32 %v6953, 4294901760
        %6955 = vmatmul.mubr.f32.gmra.mrb[0].mxu0 %v6954
        %v6956 = vpop.f32.mrb[0].mxu0
        %v6957 = vadd.f32 0.0, %v6956
        %v6958 = vpop.f32.mrb[0].mxu0
        %6959 = vdwg.mxu0
        %6960 = vmatprep.subr.mxu0 0.0
        %v6961 = vand.u32 %v6879, 4294901760
        %v6962 = vsub.f32 %v6879, %v6961
        %v6963 = vand.u32 %v6962, 4294901760
        %v6964 = vsub.f32 %v6962, %v6963
        %v6965 = vand.u32 %v6964, 4294901760
        %6966 = vmatpush1.msra.mxu0 %v6965
        %6967 = vmatprep.subr.mxu0 0.0
        %6968 = vmatpush1.msra.mxu0 0.0
        %6969 = vmatprep.subr.mxu0 0.0
        %6970 = vmatpush1.msra.mxu0 0.0
        %6971 = vmatprep.subr.mxu0 0.0
        %6972 = vmatpush1.msra.mxu0 0.0
        %6973 = vmatprep.subr.mxu0 0.0
        %6974 = vmatpush1.msra.mxu0 0.0
        %6975 = vmatprep.subr.mxu0 0.0
        %6976 = vmatpush1.msra.mxu0 0.0
        %6977 = vmatprep.subr.mxu0 0.0
        %6978 = vmatpush1.msra.mxu0 0.0
        %6979 = vmatprep.subr.mxu0 0.0
        %6980 = vmatpush1.msra.mxu0 0.0
        %6981 = vmatprep.subr.mxu0 0.0
        %6982 = vmatpush1.msra.mxu0 0.0
        %6983 = vmatprep.subr.mxu0 0.0
        %6984 = vmatpush1.msra.mxu0 0.0
        %6985 = vmatprep.subr.mxu0 0.0
        %6986 = vmatpush1.msra.mxu0 0.0
        %6987 = vmatprep.subr.mxu0 0.0
        %6988 = vmatpush1.msra.mxu0 0.0
        %6989 = vmatprep.subr.mxu0 0.0
        %6990 = vmatpush1.msra.mxu0 0.0
        %6991 = vmatprep.subr.mxu0 0.0
        %6992 = vmatpush1.msra.mxu0 0.0
        %6993 = vmatprep.subr.mxu0 0.0
        %6994 = vmatpush1.msra.mxu0 0.0
        %6995 = vmatprep.subr.mxu0 0.0
        %6996 = vmatpush1.msra.mxu0 0.0
        %6997 = vmatprep.subr.mxu0 0.0
        %6998 = vmatpush1.msra.mxu0 0.0
        %6999 = vmatprep.subr.mxu0 0.0
        %7000 = vmatpush1.msra.mxu0 0.0
        %7001 = vmatprep.subr.mxu0 0.0
        %7002 = vmatpush1.msra.mxu0 0.0
        %7003 = vmatprep.subr.mxu0 0.0
        %7004 = vmatpush1.msra.mxu0 0.0
        %7005 = vmatprep.subr.mxu0 0.0
        %7006 = vmatpush1.msra.mxu0 0.0
        %7007 = vmatprep.subr.mxu0 0.0
        %7008 = vmatpush1.msra.mxu0 0.0
        %7009 = vmatprep.subr.mxu0 0.0
        %7010 = vmatpush1.msra.mxu0 0.0
        %7011 = vmatprep.subr.mxu0 0.0
        %7012 = vmatpush1.msra.mxu0 0.0
        %7013 = vmatprep.subr.mxu0 0.0
        %7014 = vmatpush1.msra.mxu0 0.0
        %7015 = vmatprep.subr.mxu0 0.0
        %7016 = vmatpush1.msra.mxu0 0.0
        %7017 = vmatprep.subr.mxu0 0.0
        %7018 = vmatpush1.msra.mxu0 0.0
        %7019 = vmatprep.subr.mxu0 0.0
        %7020 = vmatpush1.msra.mxu0 0.0
        %7021 = vmatprep.subr.mxu0 0.0
        %7022 = vmatpush1.msra.mxu0 0.0
        %7023 = vmatprep.subr.mxu0 0.0
        %7024 = vmatpush1.msra.mxu0 0.0
        %7025 = vmatprep.subr.mxu0 0.0
        %7026 = vmatpush1.msra.mxu0 0.0
        %7027 = vmatprep.subr.mxu0 0.0
        %7028 = vmatpush1.msra.mxu0 0.0
        %7029 = vmatprep.mubr.f32.mxu0 0.0
        %v7030 = vand.u32 %v6882, 4294901760
        %7031 = vmatmul.mubr.f32.gmra.mrb[0].mxu0 %v7030
        %v7032 = vpop.f32.mrb[0].mxu0
        %v7033 = vadd.f32 %v6957, %v7032
        %v7034 = vpop.f32.mrb[0].mxu0
        %7035 = vdwg.mxu0
        %7036 = vmatprep.subr.mxu0 0.0
        %v7037 = vand.u32 %v6879, 4294901760
        %v7038 = vsub.f32 %v6879, %v7037
        %7039 = vmatpush1.msra.mxu0 %v7038
        %7040 = vmatprep.subr.mxu0 0.0
        %7041 = vmatpush1.msra.mxu0 0.0
        %7042 = vmatprep.subr.mxu0 0.0
        %7043 = vmatpush1.msra.mxu0 0.0
        %7044 = vmatprep.subr.mxu0 0.0
        %7045 = vmatpush1.msra.mxu0 0.0
        %7046 = vmatprep.subr.mxu0 0.0
        %7047 = vmatpush1.msra.mxu0 0.0
        %7048 = vmatprep.subr.mxu0 0.0
        %7049 = vmatpush1.msra.mxu0 0.0
        %7050 = vmatprep.subr.mxu0 0.0
        %7051 = vmatpush1.msra.mxu0 0.0
        %7052 = vmatprep.subr.mxu0 0.0
        %7053 = vmatpush1.msra.mxu0 0.0
        %7054 = vmatprep.subr.mxu0 0.0
        %7055 = vmatpush1.msra.mxu0 0.0
        %7056 = vmatprep.subr.mxu0 0.0
        %7057 = vmatpush1.msra.mxu0 0.0
        %7058 = vmatprep.subr.mxu0 0.0
        %7059 = vmatpush1.msra.mxu0 0.0
        %7060 = vmatprep.subr.mxu0 0.0
        %7061 = vmatpush1.msra.mxu0 0.0
        %7062 = vmatprep.subr.mxu0 0.0
        %7063 = vmatpush1.msra.mxu0 0.0
        %7064 = vmatprep.subr.mxu0 0.0
        %7065 = vmatpush1.msra.mxu0 0.0
        %7066 = vmatprep.subr.mxu0 0.0
        %7067 = vmatpush1.msra.mxu0 0.0
        %7068 = vmatprep.subr.mxu0 0.0
        %7069 = vmatpush1.msra.mxu0 0.0
        %7070 = vmatprep.subr.mxu0 0.0
        %7071 = vmatpush1.msra.mxu0 0.0
        %7072 = vmatprep.subr.mxu0 0.0
        %7073 = vmatpush1.msra.mxu0 0.0
        %7074 = vmatprep.subr.mxu0 0.0
        %7075 = vmatpush1.msra.mxu0 0.0
        %7076 = vmatprep.subr.mxu0 0.0
        %7077 = vmatpush1.msra.mxu0 0.0
        %7078 = vmatprep.subr.mxu0 0.0
        %7079 = vmatpush1.msra.mxu0 0.0
        %7080 = vmatprep.subr.mxu0 0.0
        %7081 = vmatpush1.msra.mxu0 0.0
        %7082 = vmatprep.subr.mxu0 0.0
        %7083 = vmatpush1.msra.mxu0 0.0
        %7084 = vmatprep.subr.mxu0 0.0
        %7085 = vmatpush1.msra.mxu0 0.0
        %7086 = vmatprep.subr.mxu0 0.0
        %7087 = vmatpush1.msra.mxu0 0.0
        %7088 = vmatprep.subr.mxu0 0.0
        %7089 = vmatpush1.msra.mxu0 0.0
        %7090 = vmatprep.subr.mxu0 0.0
        %7091 = vmatpush1.msra.mxu0 0.0
        %7092 = vmatprep.subr.mxu0 0.0
        %7093 = vmatpush1.msra.mxu0 0.0
        %7094 = vmatprep.subr.mxu0 0.0
        %7095 = vmatpush1.msra.mxu0 0.0
        %7096 = vmatprep.subr.mxu0 0.0
        %7097 = vmatpush1.msra.mxu0 0.0
        %7098 = vmatprep.subr.mxu0 0.0
        %7099 = vmatpush1.msra.mxu0 0.0
        %7100 = vmatprep.subr.mxu0 0.0
        %7101 = vmatpush1.msra.mxu0 0.0
        %7102 = vmatprep.mubr.f32.mxu0 0.0
        %v7103 = vand.u32 %v6882, 4294901760
        %v7104 = vsub.f32 %v6882, %v7103
        %7105 = vmatmul.mubr.f32.gmra.mrb[0].mxu0 %v7104
        %v7106 = vpop.f32.mrb[0].mxu0
        %v7107 = vadd.f32 %v7033, %v7106
        %v7108 = vpop.f32.mrb[0].mxu0
        %7109 = vdwg.mxu0
        %7110 = vmatprep.subr.mxu0 0.0
        %v7111 = vand.u32 %v6879, 4294901760
        %7112 = vmatpush1.msra.mxu0 %v7111
        %7113 = vmatprep.subr.mxu0 0.0
        %7114 = vmatpush1.msra.mxu0 0.0
        %7115 = vmatprep.subr.mxu0 0.0
        %7116 = vmatpush1.msra.mxu0 0.0
        %7117 = vmatprep.subr.mxu0 0.0
        %7118 = vmatpush1.msra.mxu0 0.0
        %7119 = vmatprep.subr.mxu0 0.0
        %7120 = vmatpush1.msra.mxu0 0.0
        %7121 = vmatprep.subr.mxu0 0.0
        %7122 = vmatpush1.msra.mxu0 0.0
        %7123 = vmatprep.subr.mxu0 0.0
        %7124 = vmatpush1.msra.mxu0 0.0
        %7125 = vmatprep.subr.mxu0 0.0
        %7126 = vmatpush1.msra.mxu0 0.0
        %7127 = vmatprep.subr.mxu0 0.0
        %7128 = vmatpush1.msra.mxu0 0.0
        %7129 = vmatprep.subr.mxu0 0.0
        %7130 = vmatpush1.msra.mxu0 0.0
        %7131 = vmatprep.subr.mxu0 0.0
        %7132 = vmatpush1.msra.mxu0 0.0
        %7133 = vmatprep.subr.mxu0 0.0
        %7134 = vmatpush1.msra.mxu0 0.0
        %7135 = vmatprep.subr.mxu0 0.0
        %7136 = vmatpush1.msra.mxu0 0.0
        %7137 = vmatprep.subr.mxu0 0.0
        %7138 = vmatpush1.msra.mxu0 0.0
        %7139 = vmatprep.subr.mxu0 0.0
        %7140 = vmatpush1.msra.mxu0 0.0
        %7141 = vmatprep.subr.mxu0 0.0
        %7142 = vmatpush1.msra.mxu0 0.0
        %7143 = vmatprep.subr.mxu0 0.0
        %7144 = vmatpush1.msra.mxu0 0.0
        %7145 = vmatprep.subr.mxu0 0.0
        %7146 = vmatpush1.msra.mxu0 0.0
        %7147 = vmatprep.subr.mxu0 0.0
        %7148 = vmatpush1.msra.mxu0 0.0
        %7149 = vmatprep.subr.mxu0 0.0
        %7150 = vmatpush1.msra.mxu0 0.0
        %7151 = vmatprep.subr.mxu0 0.0
        %7152 = vmatpush1.msra.mxu0 0.0
        %7153 = vmatprep.subr.mxu0 0.0
        %7154 = vmatpush1.msra.mxu0 0.0
        %7155 = vmatprep.subr.mxu0 0.0
        %7156 = vmatpush1.msra.mxu0 0.0
        %7157 = vmatprep.subr.mxu0 0.0
        %7158 = vmatpush1.msra.mxu0 0.0
        %7159 = vmatprep.subr.mxu0 0.0
        %7160 = vmatpush1.msra.mxu0 0.0
        %7161 = vmatprep.subr.mxu0 0.0
        %7162 = vmatpush1.msra.mxu0 0.0
        %7163 = vmatprep.subr.mxu0 0.0
        %7164 = vmatpush1.msra.mxu0 0.0
        %7165 = vmatprep.subr.mxu0 0.0
        %7166 = vmatpush1.msra.mxu0 0.0
        %7167 = vmatprep.subr.mxu0 0.0
        %7168 = vmatpush1.msra.mxu0 0.0
        %7169 = vmatprep.subr.mxu0 0.0
        %7170 = vmatpush1.msra.mxu0 0.0
        %7171 = vmatprep.subr.mxu0 0.0
        %7172 = vmatpush1.msra.mxu0 0.0
        %7173 = vmatprep.subr.mxu0 0.0
        %7174 = vmatpush1.msra.mxu0 0.0
        %7175 = vmatprep.mubr.f32.mxu0 0.0
        %v7176 = vand.u32 %v6882, 4294901760
        %v7177 = vsub.f32 %v6882, %v7176
        %v7178 = vand.u32 %v7177, 4294901760
        %7179 = vmatmul.mubr.f32.gmra.mrb[0].mxu0 %v7178
        %v7180 = vpop.f32.mrb[0].mxu0
        %v7181 = vadd.f32 %v7107, %v7180
        %v7182 = vpop.f32.mrb[0].mxu0
        %7183 = vdwg.mxu0
        %7184 = vmatprep.subr.mxu0 0.0
        %v7185 = vand.u32 %v6879, 4294901760
        %v7186 = vsub.f32 %v6879, %v7185
        %v7187 = vand.u32 %v7186, 4294901760
        %7188 = vmatpush1.msra.mxu0 %v7187
        %7189 = vmatprep.subr.mxu0 0.0
        %7190 = vmatpush1.msra.mxu0 0.0
        %7191 = vmatprep.subr.mxu0 0.0
        %7192 = vmatpush1.msra.mxu0 0.0
        %7193 = vmatprep.subr.mxu0 0.0
        %7194 = vmatpush1.msra.mxu0 0.0
        %7195 = vmatprep.subr.mxu0 0.0
        %7196 = vmatpush1.msra.mxu0 0.0
        %7197 = vmatprep.subr.mxu0 0.0
        %7198 = vmatpush1.msra.mxu0 0.0
        %7199 = vmatprep.subr.mxu0 0.0
        %7200 = vmatpush1.msra.mxu0 0.0
        %7201 = vmatprep.subr.mxu0 0.0
        %7202 = vmatpush1.msra.mxu0 0.0
        %7203 = vmatprep.subr.mxu0 0.0
        %7204 = vmatpush1.msra.mxu0 0.0
        %7205 = vmatprep.subr.mxu0 0.0
        %7206 = vmatpush1.msra.mxu0 0.0
        %7207 = vmatprep.subr.mxu0 0.0
        %7208 = vmatpush1.msra.mxu0 0.0
        %7209 = vmatprep.subr.mxu0 0.0
        %7210 = vmatpush1.msra.mxu0 0.0
        %7211 = vmatprep.subr.mxu0 0.0
        %7212 = vmatpush1.msra.mxu0 0.0
        %7213 = vmatprep.subr.mxu0 0.0
        %7214 = vmatpush1.msra.mxu0 0.0
        %7215 = vmatprep.subr.mxu0 0.0
        %7216 = vmatpush1.msra.mxu0 0.0
        %7217 = vmatprep.subr.mxu0 0.0
        %7218 = vmatpush1.msra.mxu0 0.0
        %7219 = vmatprep.subr.mxu0 0.0
        %7220 = vmatpush1.msra.mxu0 0.0
        %7221 = vmatprep.subr.mxu0 0.0
        %7222 = vmatpush1.msra.mxu0 0.0
        %7223 = vmatprep.subr.mxu0 0.0
        %7224 = vmatpush1.msra.mxu0 0.0
        %7225 = vmatprep.subr.mxu0 0.0
        %7226 = vmatpush1.msra.mxu0 0.0
        %7227 = vmatprep.subr.mxu0 0.0
        %7228 = vmatpush1.msra.mxu0 0.0
        %7229 = vmatprep.subr.mxu0 0.0
        %7230 = vmatpush1.msra.mxu0 0.0
        %7231 = vmatprep.subr.mxu0 0.0
        %7232 = vmatpush1.msra.mxu0 0.0
        %7233 = vmatprep.subr.mxu0 0.0
        %7234 = vmatpush1.msra.mxu0 0.0
        %7235 = vmatprep.subr.mxu0 0.0
        %7236 = vmatpush1.msra.mxu0 0.0
        %7237 = vmatprep.subr.mxu0 0.0
        %7238 = vmatpush1.msra.mxu0 0.0
        %7239 = vmatprep.subr.mxu0 0.0
        %7240 = vmatpush1.msra.mxu0 0.0
        %7241 = vmatprep.subr.mxu0 0.0
        %7242 = vmatpush1.msra.mxu0 0.0
        %7243 = vmatprep.subr.mxu0 0.0
        %7244 = vmatpush1.msra.mxu0 0.0
        %7245 = vmatprep.subr.mxu0 0.0
        %7246 = vmatpush1.msra.mxu0 0.0
        %7247 = vmatprep.subr.mxu0 0.0
        %7248 = vmatpush1.msra.mxu0 0.0
        %7249 = vmatprep.subr.mxu0 0.0
        %7250 = vmatpush1.msra.mxu0 0.0
        %7251 = vmatprep.mubr.f32.mxu0 0.0
        %v7252 = vand.u32 %v6882, 4294901760
        %7253 = vmatmul.mubr.f32.gmra.mrb[0].mxu0 %v7252
        %v7254 = vpop.f32.mrb[0].mxu0
        %v7255 = vadd.f32 %v7181, %v7254
        %v7256 = vpop.f32.mrb[0].mxu0
        %7257 = vdwg.mxu0
        %7258 = vmatprep.subr.mxu0 0.0
        %v7259 = vand.u32 %v6879, 4294901760
        %7260 = vmatpush1.msra.mxu0 %v7259
        %7261 = vmatprep.subr.mxu0 0.0
        %7262 = vmatpush1.msra.mxu0 0.0
        %7263 = vmatprep.subr.mxu0 0.0
        %7264 = vmatpush1.msra.mxu0 0.0
        %7265 = vmatprep.subr.mxu0 0.0
        %7266 = vmatpush1.msra.mxu0 0.0
        %7267 = vmatprep.subr.mxu0 0.0
        %7268 = vmatpush1.msra.mxu0 0.0
        %7269 = vmatprep.subr.mxu0 0.0
        %7270 = vmatpush1.msra.mxu0 0.0
        %7271 = vmatprep.subr.mxu0 0.0
        %7272 = vmatpush1.msra.mxu0 0.0
        %7273 = vmatprep.subr.mxu0 0.0
        %7274 = vmatpush1.msra.mxu0 0.0
        %7275 = vmatprep.subr.mxu0 0.0
        %7276 = vmatpush1.msra.mxu0 0.0
        %7277 = vmatprep.subr.mxu0 0.0
        %7278 = vmatpush1.msra.mxu0 0.0
        %7279 = vmatprep.subr.mxu0 0.0
        %7280 = vmatpush1.msra.mxu0 0.0
        %7281 = vmatprep.subr.mxu0 0.0
        %7282 = vmatpush1.msra.mxu0 0.0
        %7283 = vmatprep.subr.mxu0 0.0
        %7284 = vmatpush1.msra.mxu0 0.0
        %7285 = vmatprep.subr.mxu0 0.0
        %7286 = vmatpush1.msra.mxu0 0.0
        %7287 = vmatprep.subr.mxu0 0.0
        %7288 = vmatpush1.msra.mxu0 0.0
        %7289 = vmatprep.subr.mxu0 0.0
        %7290 = vmatpush1.msra.mxu0 0.0
        %7291 = vmatprep.subr.mxu0 0.0
        %7292 = vmatpush1.msra.mxu0 0.0
        %7293 = vmatprep.subr.mxu0 0.0
        %7294 = vmatpush1.msra.mxu0 0.0
        %7295 = vmatprep.subr.mxu0 0.0
        %7296 = vmatpush1.msra.mxu0 0.0
        %7297 = vmatprep.subr.mxu0 0.0
        %7298 = vmatpush1.msra.mxu0 0.0
        %7299 = vmatprep.subr.mxu0 0.0
        %7300 = vmatpush1.msra.mxu0 0.0
        %7301 = vmatprep.subr.mxu0 0.0
        %7302 = vmatpush1.msra.mxu0 0.0
        %7303 = vmatprep.subr.mxu0 0.0
        %7304 = vmatpush1.msra.mxu0 0.0
        %7305 = vmatprep.subr.mxu0 0.0
        %7306 = vmatpush1.msra.mxu0 0.0
        %7307 = vmatprep.subr.mxu0 0.0
        %7308 = vmatpush1.msra.mxu0 0.0
        %7309 = vmatprep.subr.mxu0 0.0
        %7310 = vmatpush1.msra.mxu0 0.0
        %7311 = vmatprep.subr.mxu0 0.0
        %7312 = vmatpush1.msra.mxu0 0.0
        %7313 = vmatprep.subr.mxu0 0.0
        %7314 = vmatpush1.msra.mxu0 0.0
        %7315 = vmatprep.subr.mxu0 0.0
        %7316 = vmatpush1.msra.mxu0 0.0
        %7317 = vmatprep.subr.mxu0 0.0
        %7318 = vmatpush1.msra.mxu0 0.0
        %7319 = vmatprep.subr.mxu0 0.0
        %7320 = vmatpush1.msra.mxu0 0.0
        %7321 = vmatprep.subr.mxu0 0.0
        %7322 = vmatpush1.msra.mxu0 0.0
        %7323 = vmatprep.mubr.f32.mxu0 0.0
        %v7324 = vand.u32 %v6882, 4294901760
        %7325 = vmatmul.mubr.f32.gmra.mrb[0].mxu0 %v7324
        %v7326 = vpop.f32.mrb[0].mxu0
        %v7327 = vadd.f32 %v7255, %v7326
        %v7328 = vpop.f32.mrb[0].mxu0
        %7329 = vdwg.mxu0
        %7330 = vrot.lane.b32.xlu0 %v1367, 96
        %v7331 = vpop.permute.xlu0 %7330
        %v7334 = vsel %vm4981, %v5065, 0
        %7336 = vmatprep.subr.mxu0 0.0
        %v7337 = vand.u32 %v7331, 4294901760
        %7338 = vmatpush1.msra.mxu0 %v7337
        %7339 = vmatprep.subr.mxu0 0.0
        %7340 = vmatpush1.msra.mxu0 0.0
        %7341 = vmatprep.subr.mxu0 0.0
        %7342 = vmatpush1.msra.mxu0 0.0
        %7343 = vmatprep.subr.mxu0 0.0
        %7344 = vmatpush1.msra.mxu0 0.0
        %7345 = vmatprep.subr.mxu0 0.0
        %7346 = vmatpush1.msra.mxu0 0.0
        %7347 = vmatprep.subr.mxu0 0.0
        %7348 = vmatpush1.msra.mxu0 0.0
        %7349 = vmatprep.subr.mxu0 0.0
        %7350 = vmatpush1.msra.mxu0 0.0
        %7351 = vmatprep.subr.mxu0 0.0
        %7352 = vmatpush1.msra.mxu0 0.0
        %7353 = vmatprep.subr.mxu0 0.0
        %7354 = vmatpush1.msra.mxu0 0.0
        %7355 = vmatprep.subr.mxu0 0.0
        %7356 = vmatpush1.msra.mxu0 0.0
        %7357 = vmatprep.subr.mxu0 0.0
        %7358 = vmatpush1.msra.mxu0 0.0
        %7359 = vmatprep.subr.mxu0 0.0
        %7360 = vmatpush1.msra.mxu0 0.0
        %7361 = vmatprep.subr.mxu0 0.0
        %7362 = vmatpush1.msra.mxu0 0.0
        %7363 = vmatprep.subr.mxu0 0.0
        %7364 = vmatpush1.msra.mxu0 0.0
        %7365 = vmatprep.subr.mxu0 0.0
        %7366 = vmatpush1.msra.mxu0 0.0
        %7367 = vmatprep.subr.mxu0 0.0
        %7368 = vmatpush1.msra.mxu0 0.0
        %7369 = vmatprep.subr.mxu0 0.0
        %7370 = vmatpush1.msra.mxu0 0.0
        %7371 = vmatprep.subr.mxu0 0.0
        %7372 = vmatpush1.msra.mxu0 0.0
        %7373 = vmatprep.subr.mxu0 0.0
        %7374 = vmatpush1.msra.mxu0 0.0
        %7375 = vmatprep.subr.mxu0 0.0
        %7376 = vmatpush1.msra.mxu0 0.0
        %7377 = vmatprep.subr.mxu0 0.0
        %7378 = vmatpush1.msra.mxu0 0.0
        %7379 = vmatprep.subr.mxu0 0.0
        %7380 = vmatpush1.msra.mxu0 0.0
        %7381 = vmatprep.subr.mxu0 0.0
        %7382 = vmatpush1.msra.mxu0 0.0
        %7383 = vmatprep.subr.mxu0 0.0
        %7384 = vmatpush1.msra.mxu0 0.0
        %7385 = vmatprep.subr.mxu0 0.0
        %7386 = vmatpush1.msra.mxu0 0.0
        %7387 = vmatprep.subr.mxu0 0.0
        %7388 = vmatpush1.msra.mxu0 0.0
        %7389 = vmatprep.subr.mxu0 0.0
        %7390 = vmatpush1.msra.mxu0 0.0
        %7391 = vmatprep.subr.mxu0 0.0
        %7392 = vmatpush1.msra.mxu0 0.0
        %7393 = vmatprep.subr.mxu0 0.0
        %7394 = vmatpush1.msra.mxu0 0.0
        %7395 = vmatprep.subr.mxu0 0.0
        %7396 = vmatpush1.msra.mxu0 0.0
        %7397 = vmatprep.subr.mxu0 0.0
        %7398 = vmatpush1.msra.mxu0 0.0
        %7399 = vmatprep.subr.mxu0 0.0
        %7400 = vmatpush1.msra.mxu0 0.0
        %7401 = vmatprep.mubr.f32.mxu0 0.0
        %v7402 = vand.u32 %v7334, 4294901760
        %v7403 = vsub.f32 %v7334, %v7402
        %v7404 = vand.u32 %v7403, 4294901760
        %v7405 = vsub.f32 %v7403, %v7404
        %v7406 = vand.u32 %v7405, 4294901760
        %7407 = vmatmul.mubr.f32.gmra.mrb[0].mxu0 %v7406
        %v7408 = vpop.f32.mrb[0].mxu0
        %v7409 = vadd.f32 0.0, %v7408
        %v7410 = vpop.f32.mrb[0].mxu0
        %7411 = vdwg.mxu0
        %7412 = vmatprep.subr.mxu0 0.0
        %v7413 = vand.u32 %v7331, 4294901760
        %v7414 = vsub.f32 %v7331, %v7413
        %v7415 = vand.u32 %v7414, 4294901760
        %v7416 = vsub.f32 %v7414, %v7415
        %v7417 = vand.u32 %v7416, 4294901760
        %7418 = vmatpush1.msra.mxu0 %v7417
        %7419 = vmatprep.subr.mxu0 0.0
        %7420 = vmatpush1.msra.mxu0 0.0
        %7421 = vmatprep.subr.mxu0 0.0
        %7422 = vmatpush1.msra.mxu0 0.0
        %7423 = vmatprep.subr.mxu0 0.0
        %7424 = vmatpush1.msra.mxu0 0.0
        %7425 = vmatprep.subr.mxu0 0.0
        %7426 = vmatpush1.msra.mxu0 0.0
        %7427 = vmatprep.subr.mxu0 0.0
        %7428 = vmatpush1.msra.mxu0 0.0
        %7429 = vmatprep.subr.mxu0 0.0
        %7430 = vmatpush1.msra.mxu0 0.0
        %7431 = vmatprep.subr.mxu0 0.0
        %7432 = vmatpush1.msra.mxu0 0.0
        %7433 = vmatprep.subr.mxu0 0.0
        %7434 = vmatpush1.msra.mxu0 0.0
        %7435 = vmatprep.subr.mxu0 0.0
        %7436 = vmatpush1.msra.mxu0 0.0
        %7437 = vmatprep.subr.mxu0 0.0
        %7438 = vmatpush1.msra.mxu0 0.0
        %7439 = vmatprep.subr.mxu0 0.0
        %7440 = vmatpush1.msra.mxu0 0.0
        %7441 = vmatprep.subr.mxu0 0.0
        %7442 = vmatpush1.msra.mxu0 0.0
        %7443 = vmatprep.subr.mxu0 0.0
        %7444 = vmatpush1.msra.mxu0 0.0
        %7445 = vmatprep.subr.mxu0 0.0
        %7446 = vmatpush1.msra.mxu0 0.0
        %7447 = vmatprep.subr.mxu0 0.0
        %7448 = vmatpush1.msra.mxu0 0.0
        %7449 = vmatprep.subr.mxu0 0.0
        %7450 = vmatpush1.msra.mxu0 0.0
        %7451 = vmatprep.subr.mxu0 0.0
        %7452 = vmatpush1.msra.mxu0 0.0
        %7453 = vmatprep.subr.mxu0 0.0
        %7454 = vmatpush1.msra.mxu0 0.0
        %7455 = vmatprep.subr.mxu0 0.0
        %7456 = vmatpush1.msra.mxu0 0.0
        %7457 = vmatprep.subr.mxu0 0.0
        %7458 = vmatpush1.msra.mxu0 0.0
        %7459 = vmatprep.subr.mxu0 0.0
        %7460 = vmatpush1.msra.mxu0 0.0
        %7461 = vmatprep.subr.mxu0 0.0
        %7462 = vmatpush1.msra.mxu0 0.0
        %7463 = vmatprep.subr.mxu0 0.0
        %7464 = vmatpush1.msra.mxu0 0.0
        %7465 = vmatprep.subr.mxu0 0.0
        %7466 = vmatpush1.msra.mxu0 0.0
        %7467 = vmatprep.subr.mxu0 0.0
        %7468 = vmatpush1.msra.mxu0 0.0
        %7469 = vmatprep.subr.mxu0 0.0
        %7470 = vmatpush1.msra.mxu0 0.0
        %7471 = vmatprep.subr.mxu0 0.0
        %7472 = vmatpush1.msra.mxu0 0.0
        %7473 = vmatprep.subr.mxu0 0.0
        %7474 = vmatpush1.msra.mxu0 0.0
        %7475 = vmatprep.subr.mxu0 0.0
        %7476 = vmatpush1.msra.mxu0 0.0
        %7477 = vmatprep.subr.mxu0 0.0
        %7478 = vmatpush1.msra.mxu0 0.0
        %7479 = vmatprep.subr.mxu0 0.0
        %7480 = vmatpush1.msra.mxu0 0.0
        %7481 = vmatprep.mubr.f32.mxu0 0.0
        %v7482 = vand.u32 %v7334, 4294901760
        %7483 = vmatmul.mubr.f32.gmra.mrb[0].mxu0 %v7482
        %v7484 = vpop.f32.mrb[0].mxu0
        %v7485 = vadd.f32 %v7409, %v7484
        %v7486 = vpop.f32.mrb[0].mxu0
        %7487 = vdwg.mxu0
        %7488 = vmatprep.subr.mxu0 0.0
        %v7489 = vand.u32 %v7331, 4294901760
        %v7490 = vsub.f32 %v7331, %v7489
        %7491 = vmatpush1.msra.mxu0 %v7490
        %7492 = vmatprep.subr.mxu0 0.0
        %7493 = vmatpush1.msra.mxu0 0.0
        %7494 = vmatprep.subr.mxu0 0.0
        %7495 = vmatpush1.msra.mxu0 0.0
        %7496 = vmatprep.subr.mxu0 0.0
        %7497 = vmatpush1.msra.mxu0 0.0
        %7498 = vmatprep.subr.mxu0 0.0
        %7499 = vmatpush1.msra.mxu0 0.0
        %7500 = vmatprep.subr.mxu0 0.0
        %7501 = vmatpush1.msra.mxu0 0.0
        %7502 = vmatprep.subr.mxu0 0.0
        %7503 = vmatpush1.msra.mxu0 0.0
        %7504 = vmatprep.subr.mxu0 0.0
        %7505 = vmatpush1.msra.mxu0 0.0
        %7506 = vmatprep.subr.mxu0 0.0
        %7507 = vmatpush1.msra.mxu0 0.0
        %7508 = vmatprep.subr.mxu0 0.0
        %7509 = vmatpush1.msra.mxu0 0.0
        %7510 = vmatprep.subr.mxu0 0.0
        %7511 = vmatpush1.msra.mxu0 0.0
        %7512 = vmatprep.subr.mxu0 0.0
        %7513 = vmatpush1.msra.mxu0 0.0
        %7514 = vmatprep.subr.mxu0 0.0
        %7515 = vmatpush1.msra.mxu0 0.0
        %7516 = vmatprep.subr.mxu0 0.0
        %7517 = vmatpush1.msra.mxu0 0.0
        %7518 = vmatprep.subr.mxu0 0.0
        %7519 = vmatpush1.msra.mxu0 0.0
        %7520 = vmatprep.subr.mxu0 0.0
        %7521 = vmatpush1.msra.mxu0 0.0
        %7522 = vmatprep.subr.mxu0 0.0
        %7523 = vmatpush1.msra.mxu0 0.0
        %7524 = vmatprep.subr.mxu0 0.0
        %7525 = vmatpush1.msra.mxu0 0.0
        %7526 = vmatprep.subr.mxu0 0.0
        %7527 = vmatpush1.msra.mxu0 0.0
        %7528 = vmatprep.subr.mxu0 0.0
        %7529 = vmatpush1.msra.mxu0 0.0
        %7530 = vmatprep.subr.mxu0 0.0
        %7531 = vmatpush1.msra.mxu0 0.0
        %7532 = vmatprep.subr.mxu0 0.0
        %7533 = vmatpush1.msra.mxu0 0.0
        %7534 = vmatprep.subr.mxu0 0.0
        %7535 = vmatpush1.msra.mxu0 0.0
        %7536 = vmatprep.subr.mxu0 0.0
        %7537 = vmatpush1.msra.mxu0 0.0
        %7538 = vmatprep.subr.mxu0 0.0
        %7539 = vmatpush1.msra.mxu0 0.0
        %7540 = vmatprep.subr.mxu0 0.0
        %7541 = vmatpush1.msra.mxu0 0.0
        %7542 = vmatprep.subr.mxu0 0.0
        %7543 = vmatpush1.msra.mxu0 0.0
        %7544 = vmatprep.subr.mxu0 0.0
        %7545 = vmatpush1.msra.mxu0 0.0
        %7546 = vmatprep.subr.mxu0 0.0
        %7547 = vmatpush1.msra.mxu0 0.0
        %7548 = vmatprep.subr.mxu0 0.0
        %7549 = vmatpush1.msra.mxu0 0.0
        %7550 = vmatprep.subr.mxu0 0.0
        %7551 = vmatpush1.msra.mxu0 0.0
        %7552 = vmatprep.subr.mxu0 0.0
        %7553 = vmatpush1.msra.mxu0 0.0
        %7554 = vmatprep.mubr.f32.mxu0 0.0
        %v7555 = vand.u32 %v7334, 4294901760
        %v7556 = vsub.f32 %v7334, %v7555
        %7557 = vmatmul.mubr.f32.gmra.mrb[0].mxu0 %v7556
        %v7558 = vpop.f32.mrb[0].mxu0
        %v7559 = vadd.f32 %v7485, %v7558
        %v7560 = vpop.f32.mrb[0].mxu0
        %7561 = vdwg.mxu0
        %7562 = vmatprep.subr.mxu0 0.0
        %v7563 = vand.u32 %v7331, 4294901760
        %7564 = vmatpush1.msra.mxu0 %v7563
        %7565 = vmatprep.subr.mxu0 0.0
        %7566 = vmatpush1.msra.mxu0 0.0
        %7567 = vmatprep.subr.mxu0 0.0
        %7568 = vmatpush1.msra.mxu0 0.0
        %7569 = vmatprep.subr.mxu0 0.0
        %7570 = vmatpush1.msra.mxu0 0.0
        %7571 = vmatprep.subr.mxu0 0.0
        %7572 = vmatpush1.msra.mxu0 0.0
        %7573 = vmatprep.subr.mxu0 0.0
        %7574 = vmatpush1.msra.mxu0 0.0
        %7575 = vmatprep.subr.mxu0 0.0
        %7576 = vmatpush1.msra.mxu0 0.0
        %7577 = vmatprep.subr.mxu0 0.0
        %7578 = vmatpush1.msra.mxu0 0.0
        %7579 = vmatprep.subr.mxu0 0.0
        %7580 = vmatpush1.msra.mxu0 0.0
        %7581 = vmatprep.subr.mxu0 0.0
        %7582 = vmatpush1.msra.mxu0 0.0
        %7583 = vmatprep.subr.mxu0 0.0
        %7584 = vmatpush1.msra.mxu0 0.0
        %7585 = vmatprep.subr.mxu0 0.0
        %7586 = vmatpush1.msra.mxu0 0.0
        %7587 = vmatprep.subr.mxu0 0.0
        %7588 = vmatpush1.msra.mxu0 0.0
        %7589 = vmatprep.subr.mxu0 0.0
        %7590 = vmatpush1.msra.mxu0 0.0
        %7591 = vmatprep.subr.mxu0 0.0
        %7592 = vmatpush1.msra.mxu0 0.0
        %7593 = vmatprep.subr.mxu0 0.0
        %7594 = vmatpush1.msra.mxu0 0.0
        %7595 = vmatprep.subr.mxu0 0.0
        %7596 = vmatpush1.msra.mxu0 0.0
        %7597 = vmatprep.subr.mxu0 0.0
        %7598 = vmatpush1.msra.mxu0 0.0
        %7599 = vmatprep.subr.mxu0 0.0
        %7600 = vmatpush1.msra.mxu0 0.0
        %7601 = vmatprep.subr.mxu0 0.0
        %7602 = vmatpush1.msra.mxu0 0.0
        %7603 = vmatprep.subr.mxu0 0.0
        %7604 = vmatpush1.msra.mxu0 0.0
        %7605 = vmatprep.subr.mxu0 0.0
        %7606 = vmatpush1.msra.mxu0 0.0
        %7607 = vmatprep.subr.mxu0 0.0
        %7608 = vmatpush1.msra.mxu0 0.0
        %7609 = vmatprep.subr.mxu0 0.0
        %7610 = vmatpush1.msra.mxu0 0.0
        %7611 = vmatprep.subr.mxu0 0.0
        %7612 = vmatpush1.msra.mxu0 0.0
        %7613 = vmatprep.subr.mxu0 0.0
        %7614 = vmatpush1.msra.mxu0 0.0
        %7615 = vmatprep.subr.mxu0 0.0
        %7616 = vmatpush1.msra.mxu0 0.0
        %7617 = vmatprep.subr.mxu0 0.0
        %7618 = vmatpush1.msra.mxu0 0.0
        %7619 = vmatprep.subr.mxu0 0.0
        %7620 = vmatpush1.msra.mxu0 0.0
        %7621 = vmatprep.subr.mxu0 0.0
        %7622 = vmatpush1.msra.mxu0 0.0
        %7623 = vmatprep.subr.mxu0 0.0
        %7624 = vmatpush1.msra.mxu0 0.0
        %7625 = vmatprep.subr.mxu0 0.0
        %7626 = vmatpush1.msra.mxu0 0.0
        %7627 = vmatprep.mubr.f32.mxu0 0.0
        %v7628 = vand.u32 %v7334, 4294901760
        %v7629 = vsub.f32 %v7334, %v7628
        %v7630 = vand.u32 %v7629, 4294901760
        %7631 = vmatmul.mubr.f32.gmra.mrb[0].mxu0 %v7630
        %v7632 = vpop.f32.mrb[0].mxu0
        %v7633 = vadd.f32 %v7559, %v7632
        %v7634 = vpop.f32.mrb[0].mxu0
        %7635 = vdwg.mxu0
        %7636 = vmatprep.subr.mxu0 0.0
        %v7637 = vand.u32 %v7331, 4294901760
        %v7638 = vsub.f32 %v7331, %v7637
        %v7639 = vand.u32 %v7638, 4294901760
        %7640 = vmatpush1.msra.mxu0 %v7639
        %7641 = vmatprep.subr.mxu0 0.0
        %7642 = vmatpush1.msra.mxu0 0.0
        %7643 = vmatprep.subr.mxu0 0.0
        %7644 = vmatpush1.msra.mxu0 0.0
        %7645 = vmatprep.subr.mxu0 0.0
        %7646 = vmatpush1.msra.mxu0 0.0
        %7647 = vmatprep.subr.mxu0 0.0
        %7648 = vmatpush1.msra.mxu0 0.0
        %7649 = vmatprep.subr.mxu0 0.0
        %7650 = vmatpush1.msra.mxu0 0.0
        %7651 = vmatprep.subr.mxu0 0.0
        %7652 = vmatpush1.msra.mxu0 0.0
        %7653 = vmatprep.subr.mxu0 0.0
        %7654 = vmatpush1.msra.mxu0 0.0
        %7655 = vmatprep.subr.mxu0 0.0
        %7656 = vmatpush1.msra.mxu0 0.0
        %7657 = vmatprep.subr.mxu0 0.0
        %7658 = vmatpush1.msra.mxu0 0.0
        %7659 = vmatprep.subr.mxu0 0.0
        %7660 = vmatpush1.msra.mxu0 0.0
        %7661 = vmatprep.subr.mxu0 0.0
        %7662 = vmatpush1.msra.mxu0 0.0
        %7663 = vmatprep.subr.mxu0 0.0
        %7664 = vmatpush1.msra.mxu0 0.0
        %7665 = vmatprep.subr.mxu0 0.0
        %7666 = vmatpush1.msra.mxu0 0.0
        %7667 = vmatprep.subr.mxu0 0.0
        %7668 = vmatpush1.msra.mxu0 0.0
        %7669 = vmatprep.subr.mxu0 0.0
        %7670 = vmatpush1.msra.mxu0 0.0
        %7671 = vmatprep.subr.mxu0 0.0
        %7672 = vmatpush1.msra.mxu0 0.0
        %7673 = vmatprep.subr.mxu0 0.0
        %7674 = vmatpush1.msra.mxu0 0.0
        %7675 = vmatprep.subr.mxu0 0.0
        %7676 = vmatpush1.msra.mxu0 0.0
        %7677 = vmatprep.subr.mxu0 0.0
        %7678 = vmatpush1.msra.mxu0 0.0
        %7679 = vmatprep.subr.mxu0 0.0
        %7680 = vmatpush1.msra.mxu0 0.0
        %7681 = vmatprep.subr.mxu0 0.0
        %7682 = vmatpush1.msra.mxu0 0.0
        %7683 = vmatprep.subr.mxu0 0.0
        %7684 = vmatpush1.msra.mxu0 0.0
        %7685 = vmatprep.subr.mxu0 0.0
        %7686 = vmatpush1.msra.mxu0 0.0
        %7687 = vmatprep.subr.mxu0 0.0
        %7688 = vmatpush1.msra.mxu0 0.0
        %7689 = vmatprep.subr.mxu0 0.0
        %7690 = vmatpush1.msra.mxu0 0.0
        %7691 = vmatprep.subr.mxu0 0.0
        %7692 = vmatpush1.msra.mxu0 0.0
        %7693 = vmatprep.subr.mxu0 0.0
        %7694 = vmatpush1.msra.mxu0 0.0
        %7695 = vmatprep.subr.mxu0 0.0
        %7696 = vmatpush1.msra.mxu0 0.0
        %7697 = vmatprep.subr.mxu0 0.0
        %7698 = vmatpush1.msra.mxu0 0.0
        %7699 = vmatprep.subr.mxu0 0.0
        %7700 = vmatpush1.msra.mxu0 0.0
        %7701 = vmatprep.subr.mxu0 0.0
        %7702 = vmatpush1.msra.mxu0 0.0
        %7703 = vmatprep.mubr.f32.mxu0 0.0
        %v7704 = vand.u32 %v7334, 4294901760
        %7705 = vmatmul.mubr.f32.gmra.mrb[0].mxu0 %v7704
        %v7706 = vpop.f32.mrb[0].mxu0
        %v7707 = vadd.f32 %v7633, %v7706
        %v7708 = vpop.f32.mrb[0].mxu0
        %7709 = vdwg.mxu0
        %7710 = vmatprep.subr.mxu0 0.0
        %v7711 = vand.u32 %v7331, 4294901760
        %7712 = vmatpush1.msra.mxu0 %v7711
        %7713 = vmatprep.subr.mxu0 0.0
        %7714 = vmatpush1.msra.mxu0 0.0
        %7715 = vmatprep.subr.mxu0 0.0
        %7716 = vmatpush1.msra.mxu0 0.0
        %7717 = vmatprep.subr.mxu0 0.0
        %7718 = vmatpush1.msra.mxu0 0.0
        %7719 = vmatprep.subr.mxu0 0.0
        %7720 = vmatpush1.msra.mxu0 0.0
        %7721 = vmatprep.subr.mxu0 0.0
        %7722 = vmatpush1.msra.mxu0 0.0
        %7723 = vmatprep.subr.mxu0 0.0
        %7724 = vmatpush1.msra.mxu0 0.0
        %7725 = vmatprep.subr.mxu0 0.0
        %7726 = vmatpush1.msra.mxu0 0.0
        %7727 = vmatprep.subr.mxu0 0.0
        %7728 = vmatpush1.msra.mxu0 0.0
        %7729 = vmatprep.subr.mxu0 0.0
        %7730 = vmatpush1.msra.mxu0 0.0
        %7731 = vmatprep.subr.mxu0 0.0
        %7732 = vmatpush1.msra.mxu0 0.0
        %7733 = vmatprep.subr.mxu0 0.0
        %7734 = vmatpush1.msra.mxu0 0.0
        %7735 = vmatprep.subr.mxu0 0.0
        %7736 = vmatpush1.msra.mxu0 0.0
        %7737 = vmatprep.subr.mxu0 0.0
        %7738 = vmatpush1.msra.mxu0 0.0
        %7739 = vmatprep.subr.mxu0 0.0
        %7740 = vmatpush1.msra.mxu0 0.0
        %7741 = vmatprep.subr.mxu0 0.0
        %7742 = vmatpush1.msra.mxu0 0.0
        %7743 = vmatprep.subr.mxu0 0.0
        %7744 = vmatpush1.msra.mxu0 0.0
        %7745 = vmatprep.subr.mxu0 0.0
        %7746 = vmatpush1.msra.mxu0 0.0
        %7747 = vmatprep.subr.mxu0 0.0
        %7748 = vmatpush1.msra.mxu0 0.0
        %7749 = vmatprep.subr.mxu0 0.0
        %7750 = vmatpush1.msra.mxu0 0.0
        %7751 = vmatprep.subr.mxu0 0.0
        %7752 = vmatpush1.msra.mxu0 0.0
        %7753 = vmatprep.subr.mxu0 0.0
        %7754 = vmatpush1.msra.mxu0 0.0
        %7755 = vmatprep.subr.mxu0 0.0
        %7756 = vmatpush1.msra.mxu0 0.0
        %7757 = vmatprep.subr.mxu0 0.0
        %7758 = vmatpush1.msra.mxu0 0.0
        %7759 = vmatprep.subr.mxu0 0.0
        %7760 = vmatpush1.msra.mxu0 0.0
        %7761 = vmatprep.subr.mxu0 0.0
        %7762 = vmatpush1.msra.mxu0 0.0
        %7763 = vmatprep.subr.mxu0 0.0
        %7764 = vmatpush1.msra.mxu0 0.0
        %7765 = vmatprep.subr.mxu0 0.0
        %7766 = vmatpush1.msra.mxu0 0.0
        %7767 = vmatprep.subr.mxu0 0.0
        %7768 = vmatpush1.msra.mxu0 0.0
        %7769 = vmatprep.subr.mxu0 0.0
        %7770 = vmatpush1.msra.mxu0 0.0
        %7771 = vmatprep.subr.mxu0 0.0
        %7772 = vmatpush1.msra.mxu0 0.0
        %7773 = vmatprep.subr.mxu0 0.0
        %7774 = vmatpush1.msra.mxu0 0.0
        %7775 = vmatprep.mubr.f32.mxu0 0.0
        %v7776 = vand.u32 %v7334, 4294901760
        %7777 = vmatmul.mubr.f32.gmra.mrb[0].mxu0 %v7776
        %v7778 = vpop.f32.mrb[0].mxu0
        %v7779 = vadd.f32 %v7707, %v7778
        %v7780 = vpop.f32.mrb[0].mxu0
        %7781 = vdwg.mxu0
        %7782 = vrot.lane.b32.xlu0 %v1369, 96
        %v7783 = vpop.permute.xlu0 %7782
        %v7786 = vsel %vm4981, %v5067, 0
        %7788 = vmatprep.subr.mxu0 0.0
        %v7789 = vand.u32 %v7783, 4294901760
        %7790 = vmatpush1.msra.mxu0 %v7789
        %7791 = vmatprep.subr.mxu0 0.0
        %7792 = vmatpush1.msra.mxu0 0.0
        %7793 = vmatprep.subr.mxu0 0.0
        %7794 = vmatpush1.msra.mxu0 0.0
        %7795 = vmatprep.subr.mxu0 0.0
        %7796 = vmatpush1.msra.mxu0 0.0
        %7797 = vmatprep.subr.mxu0 0.0
        %7798 = vmatpush1.msra.mxu0 0.0
        %7799 = vmatprep.subr.mxu0 0.0
        %7800 = vmatpush1.msra.mxu0 0.0
        %7801 = vmatprep.subr.mxu0 0.0
        %7802 = vmatpush1.msra.mxu0 0.0
        %7803 = vmatprep.subr.mxu0 0.0
        %7804 = vmatpush1.msra.mxu0 0.0
        %7805 = vmatprep.subr.mxu0 0.0
        %7806 = vmatpush1.msra.mxu0 0.0
        %7807 = vmatprep.subr.mxu0 0.0
        %7808 = vmatpush1.msra.mxu0 0.0
        %7809 = vmatprep.subr.mxu0 0.0
        %7810 = vmatpush1.msra.mxu0 0.0
        %7811 = vmatprep.subr.mxu0 0.0
        %7812 = vmatpush1.msra.mxu0 0.0
        %7813 = vmatprep.subr.mxu0 0.0
        %7814 = vmatpush1.msra.mxu0 0.0
        %7815 = vmatprep.subr.mxu0 0.0
        %7816 = vmatpush1.msra.mxu0 0.0
        %7817 = vmatprep.subr.mxu0 0.0
        %7818 = vmatpush1.msra.mxu0 0.0
        %7819 = vmatprep.subr.mxu0 0.0
        %7820 = vmatpush1.msra.mxu0 0.0
        %7821 = vmatprep.subr.mxu0 0.0
        %7822 = vmatpush1.msra.mxu0 0.0
        %7823 = vmatprep.subr.mxu0 0.0
        %7824 = vmatpush1.msra.mxu0 0.0
        %7825 = vmatprep.subr.mxu0 0.0
        %7826 = vmatpush1.msra.mxu0 0.0
        %7827 = vmatprep.subr.mxu0 0.0
        %7828 = vmatpush1.msra.mxu0 0.0
        %7829 = vmatprep.subr.mxu0 0.0
        %7830 = vmatpush1.msra.mxu0 0.0
        %7831 = vmatprep.subr.mxu0 0.0
        %7832 = vmatpush1.msra.mxu0 0.0
        %7833 = vmatprep.subr.mxu0 0.0
        %7834 = vmatpush1.msra.mxu0 0.0
        %7835 = vmatprep.subr.mxu0 0.0
        %7836 = vmatpush1.msra.mxu0 0.0
        %7837 = vmatprep.subr.mxu0 0.0
        %7838 = vmatpush1.msra.mxu0 0.0
        %7839 = vmatprep.subr.mxu0 0.0
        %7840 = vmatpush1.msra.mxu0 0.0
        %7841 = vmatprep.subr.mxu0 0.0
        %7842 = vmatpush1.msra.mxu0 0.0
        %7843 = vmatprep.subr.mxu0 0.0
        %7844 = vmatpush1.msra.mxu0 0.0
        %7845 = vmatprep.subr.mxu0 0.0
        %7846 = vmatpush1.msra.mxu0 0.0
        %7847 = vmatprep.subr.mxu0 0.0
        %7848 = vmatpush1.msra.mxu0 0.0
        %7849 = vmatprep.subr.mxu0 0.0
        %7850 = vmatpush1.msra.mxu0 0.0
        %7851 = vmatprep.subr.mxu0 0.0
        %7852 = vmatpush1.msra.mxu0 0.0
        %7853 = vmatprep.mubr.f32.mxu0 0.0
        %v7854 = vand.u32 %v7786, 4294901760
        %v7855 = vsub.f32 %v7786, %v7854
        %v7856 = vand.u32 %v7855, 4294901760
        %v7857 = vsub.f32 %v7855, %v7856
        %v7858 = vand.u32 %v7857, 4294901760
        %7859 = vmatmul.mubr.f32.gmra.mrb[0].mxu0 %v7858
        %v7860 = vpop.f32.mrb[0].mxu0
        %v7861 = vadd.f32 0.0, %v7860
        %v7862 = vpop.f32.mrb[0].mxu0
        %7863 = vdwg.mxu0
        %7864 = vmatprep.subr.mxu0 0.0
        %v7865 = vand.u32 %v7783, 4294901760
        %v7866 = vsub.f32 %v7783, %v7865
        %v7867 = vand.u32 %v7866, 4294901760
        %v7868 = vsub.f32 %v7866, %v7867
        %v7869 = vand.u32 %v7868, 4294901760
        %7870 = vmatpush1.msra.mxu0 %v7869
        %7871 = vmatprep.subr.mxu0 0.0
        %7872 = vmatpush1.msra.mxu0 0.0
        %7873 = vmatprep.subr.mxu0 0.0
        %7874 = vmatpush1.msra.mxu0 0.0
        %7875 = vmatprep.subr.mxu0 0.0
        %7876 = vmatpush1.msra.mxu0 0.0
        %7877 = vmatprep.subr.mxu0 0.0
        %7878 = vmatpush1.msra.mxu0 0.0
        %7879 = vmatprep.subr.mxu0 0.0
        %7880 = vmatpush1.msra.mxu0 0.0
        %7881 = vmatprep.subr.mxu0 0.0
        %7882 = vmatpush1.msra.mxu0 0.0
        %7883 = vmatprep.subr.mxu0 0.0
        %7884 = vmatpush1.msra.mxu0 0.0
        %7885 = vmatprep.subr.mxu0 0.0
        %7886 = vmatpush1.msra.mxu0 0.0
        %7887 = vmatprep.subr.mxu0 0.0
        %7888 = vmatpush1.msra.mxu0 0.0
        %7889 = vmatprep.subr.mxu0 0.0
        %7890 = vmatpush1.msra.mxu0 0.0
        %7891 = vmatprep.subr.mxu0 0.0
        %7892 = vmatpush1.msra.mxu0 0.0
        %7893 = vmatprep.subr.mxu0 0.0
        %7894 = vmatpush1.msra.mxu0 0.0
        %7895 = vmatprep.subr.mxu0 0.0
        %7896 = vmatpush1.msra.mxu0 0.0
        %7897 = vmatprep.subr.mxu0 0.0
        %7898 = vmatpush1.msra.mxu0 0.0
        %7899 = vmatprep.subr.mxu0 0.0
        %7900 = vmatpush1.msra.mxu0 0.0
        %7901 = vmatprep.subr.mxu0 0.0
        %7902 = vmatpush1.msra.mxu0 0.0
        %7903 = vmatprep.subr.mxu0 0.0
        %7904 = vmatpush1.msra.mxu0 0.0
        %7905 = vmatprep.subr.mxu0 0.0
        %7906 = vmatpush1.msra.mxu0 0.0
        %7907 = vmatprep.subr.mxu0 0.0
        %7908 = vmatpush1.msra.mxu0 0.0
        %7909 = vmatprep.subr.mxu0 0.0
        %7910 = vmatpush1.msra.mxu0 0.0
        %7911 = vmatprep.subr.mxu0 0.0
        %7912 = vmatpush1.msra.mxu0 0.0
        %7913 = vmatprep.subr.mxu0 0.0
        %7914 = vmatpush1.msra.mxu0 0.0
        %7915 = vmatprep.subr.mxu0 0.0
        %7916 = vmatpush1.msra.mxu0 0.0
        %7917 = vmatprep.subr.mxu0 0.0
        %7918 = vmatpush1.msra.mxu0 0.0
        %7919 = vmatprep.subr.mxu0 0.0
        %7920 = vmatpush1.msra.mxu0 0.0
        %7921 = vmatprep.subr.mxu0 0.0
        %7922 = vmatpush1.msra.mxu0 0.0
        %7923 = vmatprep.subr.mxu0 0.0
        %7924 = vmatpush1.msra.mxu0 0.0
        %7925 = vmatprep.subr.mxu0 0.0
        %7926 = vmatpush1.msra.mxu0 0.0
        %7927 = vmatprep.subr.mxu0 0.0
        %7928 = vmatpush1.msra.mxu0 0.0
        %7929 = vmatprep.subr.mxu0 0.0
        %7930 = vmatpush1.msra.mxu0 0.0
        %7931 = vmatprep.subr.mxu0 0.0
        %7932 = vmatpush1.msra.mxu0 0.0
        %7933 = vmatprep.mubr.f32.mxu0 0.0
        %v7934 = vand.u32 %v7786, 4294901760
        %7935 = vmatmul.mubr.f32.gmra.mrb[0].mxu0 %v7934
        %v7936 = vpop.f32.mrb[0].mxu0
        %v7937 = vadd.f32 %v7861, %v7936
        %v7938 = vpop.f32.mrb[0].mxu0
        %7939 = vdwg.mxu0
        %7940 = vmatprep.subr.mxu0 0.0
        %v7941 = vand.u32 %v7783, 4294901760
        %v7942 = vsub.f32 %v7783, %v7941
        %7943 = vmatpush1.msra.mxu0 %v7942
        %7944 = vmatprep.subr.mxu0 0.0
        %7945 = vmatpush1.msra.mxu0 0.0
        %7946 = vmatprep.subr.mxu0 0.0
        %7947 = vmatpush1.msra.mxu0 0.0
        %7948 = vmatprep.subr.mxu0 0.0
        %7949 = vmatpush1.msra.mxu0 0.0
        %7950 = vmatprep.subr.mxu0 0.0
        %7951 = vmatpush1.msra.mxu0 0.0
        %7952 = vmatprep.subr.mxu0 0.0
        %7953 = vmatpush1.msra.mxu0 0.0
        %7954 = vmatprep.subr.mxu0 0.0
        %7955 = vmatpush1.msra.mxu0 0.0
        %7956 = vmatprep.subr.mxu0 0.0
        %7957 = vmatpush1.msra.mxu0 0.0
        %7958 = vmatprep.subr.mxu0 0.0
        %7959 = vmatpush1.msra.mxu0 0.0
        %7960 = vmatprep.subr.mxu0 0.0
        %7961 = vmatpush1.msra.mxu0 0.0
        %7962 = vmatprep.subr.mxu0 0.0
        %7963 = vmatpush1.msra.mxu0 0.0
        %7964 = vmatprep.subr.mxu0 0.0
        %7965 = vmatpush1.msra.mxu0 0.0
        %7966 = vmatprep.subr.mxu0 0.0
        %7967 = vmatpush1.msra.mxu0 0.0
        %7968 = vmatprep.subr.mxu0 0.0
        %7969 = vmatpush1.msra.mxu0 0.0
        %7970 = vmatprep.subr.mxu0 0.0
        %7971 = vmatpush1.msra.mxu0 0.0
        %7972 = vmatprep.subr.mxu0 0.0
        %7973 = vmatpush1.msra.mxu0 0.0
        %7974 = vmatprep.subr.mxu0 0.0
        %7975 = vmatpush1.msra.mxu0 0.0
        %7976 = vmatprep.subr.mxu0 0.0
        %7977 = vmatpush1.msra.mxu0 0.0
        %7978 = vmatprep.subr.mxu0 0.0
        %7979 = vmatpush1.msra.mxu0 0.0
        %7980 = vmatprep.subr.mxu0 0.0
        %7981 = vmatpush1.msra.mxu0 0.0
        %7982 = vmatprep.subr.mxu0 0.0
        %7983 = vmatpush1.msra.mxu0 0.0
        %7984 = vmatprep.subr.mxu0 0.0
        %7985 = vmatpush1.msra.mxu0 0.0
        %7986 = vmatprep.subr.mxu0 0.0
        %7987 = vmatpush1.msra.mxu0 0.0
        %7988 = vmatprep.subr.mxu0 0.0
        %7989 = vmatpush1.msra.mxu0 0.0
        %7990 = vmatprep.subr.mxu0 0.0
        %7991 = vmatpush1.msra.mxu0 0.0
        %7992 = vmatprep.subr.mxu0 0.0
        %7993 = vmatpush1.msra.mxu0 0.0
        %7994 = vmatprep.subr.mxu0 0.0
        %7995 = vmatpush1.msra.mxu0 0.0
        %7996 = vmatprep.subr.mxu0 0.0
        %7997 = vmatpush1.msra.mxu0 0.0
        %7998 = vmatprep.subr.mxu0 0.0
        %7999 = vmatpush1.msra.mxu0 0.0
        %8000 = vmatprep.subr.mxu0 0.0
        %8001 = vmatpush1.msra.mxu0 0.0
        %8002 = vmatprep.subr.mxu0 0.0
        %8003 = vmatpush1.msra.mxu0 0.0
        %8004 = vmatprep.subr.mxu0 0.0
        %8005 = vmatpush1.msra.mxu0 0.0
        %8006 = vmatprep.mubr.f32.mxu0 0.0
        %v8007 = vand.u32 %v7786, 4294901760
        %v8008 = vsub.f32 %v7786, %v8007
        %8009 = vmatmul.mubr.f32.gmra.mrb[0].mxu0 %v8008
        %v8010 = vpop.f32.mrb[0].mxu0
        %v8011 = vadd.f32 %v7937, %v8010
        %v8012 = vpop.f32.mrb[0].mxu0
        %8013 = vdwg.mxu0
        %8014 = vmatprep.subr.mxu0 0.0
        %v8015 = vand.u32 %v7783, 4294901760
        %8016 = vmatpush1.msra.mxu0 %v8015
        %8017 = vmatprep.subr.mxu0 0.0
        %8018 = vmatpush1.msra.mxu0 0.0
        %8019 = vmatprep.subr.mxu0 0.0
        %8020 = vmatpush1.msra.mxu0 0.0
        %8021 = vmatprep.subr.mxu0 0.0
        %8022 = vmatpush1.msra.mxu0 0.0
        %8023 = vmatprep.subr.mxu0 0.0
        %8024 = vmatpush1.msra.mxu0 0.0
        %8025 = vmatprep.subr.mxu0 0.0
        %8026 = vmatpush1.msra.mxu0 0.0
        %8027 = vmatprep.subr.mxu0 0.0
        %8028 = vmatpush1.msra.mxu0 0.0
        %8029 = vmatprep.subr.mxu0 0.0
        %8030 = vmatpush1.msra.mxu0 0.0
        %8031 = vmatprep.subr.mxu0 0.0
        %8032 = vmatpush1.msra.mxu0 0.0
        %8033 = vmatprep.subr.mxu0 0.0
        %8034 = vmatpush1.msra.mxu0 0.0
        %8035 = vmatprep.subr.mxu0 0.0
        %8036 = vmatpush1.msra.mxu0 0.0
        %8037 = vmatprep.subr.mxu0 0.0
        %8038 = vmatpush1.msra.mxu0 0.0
        %8039 = vmatprep.subr.mxu0 0.0
        %8040 = vmatpush1.msra.mxu0 0.0
        %8041 = vmatprep.subr.mxu0 0.0
        %8042 = vmatpush1.msra.mxu0 0.0
        %8043 = vmatprep.subr.mxu0 0.0
        %8044 = vmatpush1.msra.mxu0 0.0
        %8045 = vmatprep.subr.mxu0 0.0
        %8046 = vmatpush1.msra.mxu0 0.0
        %8047 = vmatprep.subr.mxu0 0.0
        %8048 = vmatpush1.msra.mxu0 0.0
        %8049 = vmatprep.subr.mxu0 0.0
        %8050 = vmatpush1.msra.mxu0 0.0
        %8051 = vmatprep.subr.mxu0 0.0
        %8052 = vmatpush1.msra.mxu0 0.0
        %8053 = vmatprep.subr.mxu0 0.0
        %8054 = vmatpush1.msra.mxu0 0.0
        %8055 = vmatprep.subr.mxu0 0.0
        %8056 = vmatpush1.msra.mxu0 0.0
        %8057 = vmatprep.subr.mxu0 0.0
        %8058 = vmatpush1.msra.mxu0 0.0
        %8059 = vmatprep.subr.mxu0 0.0
        %8060 = vmatpush1.msra.mxu0 0.0
        %8061 = vmatprep.subr.mxu0 0.0
        %8062 = vmatpush1.msra.mxu0 0.0
        %8063 = vmatprep.subr.mxu0 0.0
        %8064 = vmatpush1.msra.mxu0 0.0
        %8065 = vmatprep.subr.mxu0 0.0
        %8066 = vmatpush1.msra.mxu0 0.0
        %8067 = vmatprep.subr.mxu0 0.0
        %8068 = vmatpush1.msra.mxu0 0.0
        %8069 = vmatprep.subr.mxu0 0.0
        %8070 = vmatpush1.msra.mxu0 0.0
        %8071 = vmatprep.subr.mxu0 0.0
        %8072 = vmatpush1.msra.mxu0 0.0
        %8073 = vmatprep.subr.mxu0 0.0
        %8074 = vmatpush1.msra.mxu0 0.0
        %8075 = vmatprep.subr.mxu0 0.0
        %8076 = vmatpush1.msra.mxu0 0.0
        %8077 = vmatprep.subr.mxu0 0.0
        %8078 = vmatpush1.msra.mxu0 0.0
        %8079 = vmatprep.mubr.f32.mxu0 0.0
        %v8080 = vand.u32 %v7786, 4294901760
        %v8081 = vsub.f32 %v7786, %v8080
        %v8082 = vand.u32 %v8081, 4294901760
        %8083 = vmatmul.mubr.f32.gmra.mrb[0].mxu0 %v8082
        %v8084 = vpop.f32.mrb[0].mxu0
        %v8085 = vadd.f32 %v8011, %v8084
        %v8086 = vpop.f32.mrb[0].mxu0
        %8087 = vdwg.mxu0
        %8088 = vmatprep.subr.mxu0 0.0
        %v8089 = vand.u32 %v7783, 4294901760
        %v8090 = vsub.f32 %v7783, %v8089
        %v8091 = vand.u32 %v8090, 4294901760
        %8092 = vmatpush1.msra.mxu0 %v8091
        %8093 = vmatprep.subr.mxu0 0.0
        %8094 = vmatpush1.msra.mxu0 0.0
        %8095 = vmatprep.subr.mxu0 0.0
        %8096 = vmatpush1.msra.mxu0 0.0
        %8097 = vmatprep.subr.mxu0 0.0
        %8098 = vmatpush1.msra.mxu0 0.0
        %8099 = vmatprep.subr.mxu0 0.0
        %8100 = vmatpush1.msra.mxu0 0.0
        %8101 = vmatprep.subr.mxu0 0.0
        %8102 = vmatpush1.msra.mxu0 0.0
        %8103 = vmatprep.subr.mxu0 0.0
        %8104 = vmatpush1.msra.mxu0 0.0
        %8105 = vmatprep.subr.mxu0 0.0
        %8106 = vmatpush1.msra.mxu0 0.0
        %8107 = vmatprep.subr.mxu0 0.0
        %8108 = vmatpush1.msra.mxu0 0.0
        %8109 = vmatprep.subr.mxu0 0.0
        %8110 = vmatpush1.msra.mxu0 0.0
        %8111 = vmatprep.subr.mxu0 0.0
        %8112 = vmatpush1.msra.mxu0 0.0
        %8113 = vmatprep.subr.mxu0 0.0
        %8114 = vmatpush1.msra.mxu0 0.0
        %8115 = vmatprep.subr.mxu0 0.0
        %8116 = vmatpush1.msra.mxu0 0.0
        %8117 = vmatprep.subr.mxu0 0.0
        %8118 = vmatpush1.msra.mxu0 0.0
        %8119 = vmatprep.subr.mxu0 0.0
        %8120 = vmatpush1.msra.mxu0 0.0
        %8121 = vmatprep.subr.mxu0 0.0
        %8122 = vmatpush1.msra.mxu0 0.0
        %8123 = vmatprep.subr.mxu0 0.0
        %8124 = vmatpush1.msra.mxu0 0.0
        %8125 = vmatprep.subr.mxu0 0.0
        %8126 = vmatpush1.msra.mxu0 0.0
        %8127 = vmatprep.subr.mxu0 0.0
        %8128 = vmatpush1.msra.mxu0 0.0
        %8129 = vmatprep.subr.mxu0 0.0
        %8130 = vmatpush1.msra.mxu0 0.0
        %8131 = vmatprep.subr.mxu0 0.0
        %8132 = vmatpush1.msra.mxu0 0.0
        %8133 = vmatprep.subr.mxu0 0.0
        %8134 = vmatpush1.msra.mxu0 0.0
        %8135 = vmatprep.subr.mxu0 0.0
        %8136 = vmatpush1.msra.mxu0 0.0
        %8137 = vmatprep.subr.mxu0 0.0
        %8138 = vmatpush1.msra.mxu0 0.0
        %8139 = vmatprep.subr.mxu0 0.0
        %8140 = vmatpush1.msra.mxu0 0.0
        %8141 = vmatprep.subr.mxu0 0.0
        %8142 = vmatpush1.msra.mxu0 0.0
        %8143 = vmatprep.subr.mxu0 0.0
        %8144 = vmatpush1.msra.mxu0 0.0
        %8145 = vmatprep.subr.mxu0 0.0
        %8146 = vmatpush1.msra.mxu0 0.0
        %8147 = vmatprep.subr.mxu0 0.0
        %8148 = vmatpush1.msra.mxu0 0.0
        %8149 = vmatprep.subr.mxu0 0.0
        %8150 = vmatpush1.msra.mxu0 0.0
        %8151 = vmatprep.subr.mxu0 0.0
        %8152 = vmatpush1.msra.mxu0 0.0
        %8153 = vmatprep.subr.mxu0 0.0
        %8154 = vmatpush1.msra.mxu0 0.0
        %8155 = vmatprep.mubr.f32.mxu0 0.0
        %v8156 = vand.u32 %v7786, 4294901760
        %8157 = vmatmul.mubr.f32.gmra.mrb[0].mxu0 %v8156
        %v8158 = vpop.f32.mrb[0].mxu0
        %v8159 = vadd.f32 %v8085, %v8158
        %v8160 = vpop.f32.mrb[0].mxu0
        %8161 = vdwg.mxu0
        %8162 = vmatprep.subr.mxu0 0.0
        %v8163 = vand.u32 %v7783, 4294901760
        %8164 = vmatpush1.msra.mxu0 %v8163
        %8165 = vmatprep.subr.mxu0 0.0
        %8166 = vmatpush1.msra.mxu0 0.0
        %8167 = vmatprep.subr.mxu0 0.0
        %8168 = vmatpush1.msra.mxu0 0.0
        %8169 = vmatprep.subr.mxu0 0.0
        %8170 = vmatpush1.msra.mxu0 0.0
        %8171 = vmatprep.subr.mxu0 0.0
        %8172 = vmatpush1.msra.mxu0 0.0
        %8173 = vmatprep.subr.mxu0 0.0
        %8174 = vmatpush1.msra.mxu0 0.0
        %8175 = vmatprep.subr.mxu0 0.0
        %8176 = vmatpush1.msra.mxu0 0.0
        %8177 = vmatprep.subr.mxu0 0.0
        %8178 = vmatpush1.msra.mxu0 0.0
        %8179 = vmatprep.subr.mxu0 0.0
        %8180 = vmatpush1.msra.mxu0 0.0
        %8181 = vmatprep.subr.mxu0 0.0
        %8182 = vmatpush1.msra.mxu0 0.0
        %8183 = vmatprep.subr.mxu0 0.0
        %8184 = vmatpush1.msra.mxu0 0.0
        %8185 = vmatprep.subr.mxu0 0.0
        %8186 = vmatpush1.msra.mxu0 0.0
        %8187 = vmatprep.subr.mxu0 0.0
        %8188 = vmatpush1.msra.mxu0 0.0
        %8189 = vmatprep.subr.mxu0 0.0
        %8190 = vmatpush1.msra.mxu0 0.0
        %8191 = vmatprep.subr.mxu0 0.0
        %8192 = vmatpush1.msra.mxu0 0.0
        %8193 = vmatprep.subr.mxu0 0.0
        %8194 = vmatpush1.msra.mxu0 0.0
        %8195 = vmatprep.subr.mxu0 0.0
        %8196 = vmatpush1.msra.mxu0 0.0
        %8197 = vmatprep.subr.mxu0 0.0
        %8198 = vmatpush1.msra.mxu0 0.0
        %8199 = vmatprep.subr.mxu0 0.0
        %8200 = vmatpush1.msra.mxu0 0.0
        %8201 = vmatprep.subr.mxu0 0.0
        %8202 = vmatpush1.msra.mxu0 0.0
        %8203 = vmatprep.subr.mxu0 0.0
        %8204 = vmatpush1.msra.mxu0 0.0
        %8205 = vmatprep.subr.mxu0 0.0
        %8206 = vmatpush1.msra.mxu0 0.0
        %8207 = vmatprep.subr.mxu0 0.0
        %8208 = vmatpush1.msra.mxu0 0.0
        %8209 = vmatprep.subr.mxu0 0.0
        %8210 = vmatpush1.msra.mxu0 0.0
        %8211 = vmatprep.subr.mxu0 0.0
        %8212 = vmatpush1.msra.mxu0 0.0
        %8213 = vmatprep.subr.mxu0 0.0
        %8214 = vmatpush1.msra.mxu0 0.0
        %8215 = vmatprep.subr.mxu0 0.0
        %8216 = vmatpush1.msra.mxu0 0.0
        %8217 = vmatprep.subr.mxu0 0.0
        %8218 = vmatpush1.msra.mxu0 0.0
        %8219 = vmatprep.subr.mxu0 0.0
        %8220 = vmatpush1.msra.mxu0 0.0
        %8221 = vmatprep.subr.mxu0 0.0
        %8222 = vmatpush1.msra.mxu0 0.0
        %8223 = vmatprep.subr.mxu0 0.0
        %8224 = vmatpush1.msra.mxu0 0.0
        %8225 = vmatprep.subr.mxu0 0.0
        %8226 = vmatpush1.msra.mxu0 0.0
        %8227 = vmatprep.mubr.f32.mxu0 0.0
        %v8228 = vand.u32 %v7786, 4294901760
        %8229 = vmatmul.mubr.f32.gmra.mrb[0].mxu0 %v8228
        %v8230 = vpop.f32.mrb[0].mxu0
        %v8231 = vadd.f32 %v8159, %v8230
        %v8232 = vpop.f32.mrb[0].mxu0
        %8233 = vdwg.mxu0
        %8234 = vrot.lane.b32.xlu0 %v1371, 96
        %v8235 = vpop.permute.xlu0 %8234
        %v8238 = vsel %vm4981, %v5069, 0
        %8240 = vmatprep.subr.mxu0 0.0
        %v8241 = vand.u32 %v8235, 4294901760
        %8242 = vmatpush1.msra.mxu0 %v8241
        %8243 = vmatprep.subr.mxu0 0.0
        %8244 = vmatpush1.msra.mxu0 0.0
        %8245 = vmatprep.subr.mxu0 0.0
        %8246 = vmatpush1.msra.mxu0 0.0
        %8247 = vmatprep.subr.mxu0 0.0
        %8248 = vmatpush1.msra.mxu0 0.0
        %8249 = vmatprep.subr.mxu0 0.0
        %8250 = vmatpush1.msra.mxu0 0.0
        %8251 = vmatprep.subr.mxu0 0.0
        %8252 = vmatpush1.msra.mxu0 0.0
        %8253 = vmatprep.subr.mxu0 0.0
        %8254 = vmatpush1.msra.mxu0 0.0
        %8255 = vmatprep.subr.mxu0 0.0
        %8256 = vmatpush1.msra.mxu0 0.0
        %8257 = vmatprep.subr.mxu0 0.0
        %8258 = vmatpush1.msra.mxu0 0.0
        %8259 = vmatprep.subr.mxu0 0.0
        %8260 = vmatpush1.msra.mxu0 0.0
        %8261 = vmatprep.subr.mxu0 0.0
        %8262 = vmatpush1.msra.mxu0 0.0
        %8263 = vmatprep.subr.mxu0 0.0
        %8264 = vmatpush1.msra.mxu0 0.0
        %8265 = vmatprep.subr.mxu0 0.0
        %8266 = vmatpush1.msra.mxu0 0.0
        %8267 = vmatprep.subr.mxu0 0.0
        %8268 = vmatpush1.msra.mxu0 0.0
        %8269 = vmatprep.subr.mxu0 0.0
        %8270 = vmatpush1.msra.mxu0 0.0
        %8271 = vmatprep.subr.mxu0 0.0
        %8272 = vmatpush1.msra.mxu0 0.0
        %8273 = vmatprep.subr.mxu0 0.0
        %8274 = vmatpush1.msra.mxu0 0.0
        %8275 = vmatprep.subr.mxu0 0.0
        %8276 = vmatpush1.msra.mxu0 0.0
        %8277 = vmatprep.subr.mxu0 0.0
        %8278 = vmatpush1.msra.mxu0 0.0
        %8279 = vmatprep.subr.mxu0 0.0
        %8280 = vmatpush1.msra.mxu0 0.0
        %8281 = vmatprep.subr.mxu0 0.0
        %8282 = vmatpush1.msra.mxu0 0.0
        %8283 = vmatprep.subr.mxu0 0.0
        %8284 = vmatpush1.msra.mxu0 0.0
        %8285 = vmatprep.subr.mxu0 0.0
        %8286 = vmatpush1.msra.mxu0 0.0
        %8287 = vmatprep.subr.mxu0 0.0
        %8288 = vmatpush1.msra.mxu0 0.0
        %8289 = vmatprep.subr.mxu0 0.0
        %8290 = vmatpush1.msra.mxu0 0.0
        %8291 = vmatprep.subr.mxu0 0.0
        %8292 = vmatpush1.msra.mxu0 0.0
        %8293 = vmatprep.subr.mxu0 0.0
        %8294 = vmatpush1.msra.mxu0 0.0
        %8295 = vmatprep.subr.mxu0 0.0
        %8296 = vmatpush1.msra.mxu0 0.0
        %8297 = vmatprep.subr.mxu0 0.0
        %8298 = vmatpush1.msra.mxu0 0.0
        %8299 = vmatprep.subr.mxu0 0.0
        %8300 = vmatpush1.msra.mxu0 0.0
        %8301 = vmatprep.subr.mxu0 0.0
        %8302 = vmatpush1.msra.mxu0 0.0
        %8303 = vmatprep.subr.mxu0 0.0
        %8304 = vmatpush1.msra.mxu0 0.0
        %8305 = vmatprep.mubr.f32.mxu0 0.0
        %v8306 = vand.u32 %v8238, 4294901760
        %v8307 = vsub.f32 %v8238, %v8306
        %v8308 = vand.u32 %v8307, 4294901760
        %v8309 = vsub.f32 %v8307, %v8308
        %v8310 = vand.u32 %v8309, 4294901760
        %8311 = vmatmul.mubr.f32.gmra.mrb[0].mxu0 %v8310
        %v8312 = vpop.f32.mrb[0].mxu0
        %v8313 = vadd.f32 0.0, %v8312
        %v8314 = vpop.f32.mrb[0].mxu0
        %8315 = vdwg.mxu0
        %8316 = vmatprep.subr.mxu0 0.0
        %v8317 = vand.u32 %v8235, 4294901760
        %v8318 = vsub.f32 %v8235, %v8317
        %v8319 = vand.u32 %v8318, 4294901760
        %v8320 = vsub.f32 %v8318, %v8319
        %v8321 = vand.u32 %v8320, 4294901760
        %8322 = vmatpush1.msra.mxu0 %v8321
        %8323 = vmatprep.subr.mxu0 0.0
        %8324 = vmatpush1.msra.mxu0 0.0
        %8325 = vmatprep.subr.mxu0 0.0
        %8326 = vmatpush1.msra.mxu0 0.0
        %8327 = vmatprep.subr.mxu0 0.0
        %8328 = vmatpush1.msra.mxu0 0.0
        %8329 = vmatprep.subr.mxu0 0.0
        %8330 = vmatpush1.msra.mxu0 0.0
        %8331 = vmatprep.subr.mxu0 0.0
        %8332 = vmatpush1.msra.mxu0 0.0
        %8333 = vmatprep.subr.mxu0 0.0
        %8334 = vmatpush1.msra.mxu0 0.0
        %8335 = vmatprep.subr.mxu0 0.0
        %8336 = vmatpush1.msra.mxu0 0.0
        %8337 = vmatprep.subr.mxu0 0.0
        %8338 = vmatpush1.msra.mxu0 0.0
        %8339 = vmatprep.subr.mxu0 0.0
        %8340 = vmatpush1.msra.mxu0 0.0
        %8341 = vmatprep.subr.mxu0 0.0
        %8342 = vmatpush1.msra.mxu0 0.0
        %8343 = vmatprep.subr.mxu0 0.0
        %8344 = vmatpush1.msra.mxu0 0.0
        %8345 = vmatprep.subr.mxu0 0.0
        %8346 = vmatpush1.msra.mxu0 0.0
        %8347 = vmatprep.subr.mxu0 0.0
        %8348 = vmatpush1.msra.mxu0 0.0
        %8349 = vmatprep.subr.mxu0 0.0
        %8350 = vmatpush1.msra.mxu0 0.0
        %8351 = vmatprep.subr.mxu0 0.0
        %8352 = vmatpush1.msra.mxu0 0.0
        %8353 = vmatprep.subr.mxu0 0.0
        %8354 = vmatpush1.msra.mxu0 0.0
        %8355 = vmatprep.subr.mxu0 0.0
        %8356 = vmatpush1.msra.mxu0 0.0
        %8357 = vmatprep.subr.mxu0 0.0
        %8358 = vmatpush1.msra.mxu0 0.0
        %8359 = vmatprep.subr.mxu0 0.0
        %8360 = vmatpush1.msra.mxu0 0.0
        %8361 = vmatprep.subr.mxu0 0.0
        %8362 = vmatpush1.msra.mxu0 0.0
        %8363 = vmatprep.subr.mxu0 0.0
        %8364 = vmatpush1.msra.mxu0 0.0
        %8365 = vmatprep.subr.mxu0 0.0
        %8366 = vmatpush1.msra.mxu0 0.0
        %8367 = vmatprep.subr.mxu0 0.0
        %8368 = vmatpush1.msra.mxu0 0.0
        %8369 = vmatprep.subr.mxu0 0.0
        %8370 = vmatpush1.msra.mxu0 0.0
        %8371 = vmatprep.subr.mxu0 0.0
        %8372 = vmatpush1.msra.mxu0 0.0
        %8373 = vmatprep.subr.mxu0 0.0
        %8374 = vmatpush1.msra.mxu0 0.0
        %8375 = vmatprep.subr.mxu0 0.0
        %8376 = vmatpush1.msra.mxu0 0.0
        %8377 = vmatprep.subr.mxu0 0.0
        %8378 = vmatpush1.msra.mxu0 0.0
        %8379 = vmatprep.subr.mxu0 0.0
        %8380 = vmatpush1.msra.mxu0 0.0
        %8381 = vmatprep.subr.mxu0 0.0
        %8382 = vmatpush1.msra.mxu0 0.0
        %8383 = vmatprep.subr.mxu0 0.0
        %8384 = vmatpush1.msra.mxu0 0.0
        %8385 = vmatprep.mubr.f32.mxu0 0.0
        %v8386 = vand.u32 %v8238, 4294901760
        %8387 = vmatmul.mubr.f32.gmra.mrb[0].mxu0 %v8386
        %v8388 = vpop.f32.mrb[0].mxu0
        %v8389 = vadd.f32 %v8313, %v8388
        %v8390 = vpop.f32.mrb[0].mxu0
        %8391 = vdwg.mxu0
        %8392 = vmatprep.subr.mxu0 0.0
        %v8393 = vand.u32 %v8235, 4294901760
        %v8394 = vsub.f32 %v8235, %v8393
        %8395 = vmatpush1.msra.mxu0 %v8394
        %8396 = vmatprep.subr.mxu0 0.0
        %8397 = vmatpush1.msra.mxu0 0.0
        %8398 = vmatprep.subr.mxu0 0.0
        %8399 = vmatpush1.msra.mxu0 0.0
        %8400 = vmatprep.subr.mxu0 0.0
        %8401 = vmatpush1.msra.mxu0 0.0
        %8402 = vmatprep.subr.mxu0 0.0
        %8403 = vmatpush1.msra.mxu0 0.0
        %8404 = vmatprep.subr.mxu0 0.0
        %8405 = vmatpush1.msra.mxu0 0.0
        %8406 = vmatprep.subr.mxu0 0.0
        %8407 = vmatpush1.msra.mxu0 0.0
        %8408 = vmatprep.subr.mxu0 0.0
        %8409 = vmatpush1.msra.mxu0 0.0
        %8410 = vmatprep.subr.mxu0 0.0
        %8411 = vmatpush1.msra.mxu0 0.0
        %8412 = vmatprep.subr.mxu0 0.0
        %8413 = vmatpush1.msra.mxu0 0.0
        %8414 = vmatprep.subr.mxu0 0.0
        %8415 = vmatpush1.msra.mxu0 0.0
        %8416 = vmatprep.subr.mxu0 0.0
        %8417 = vmatpush1.msra.mxu0 0.0
        %8418 = vmatprep.subr.mxu0 0.0
        %8419 = vmatpush1.msra.mxu0 0.0
        %8420 = vmatprep.subr.mxu0 0.0
        %8421 = vmatpush1.msra.mxu0 0.0
        %8422 = vmatprep.subr.mxu0 0.0
        %8423 = vmatpush1.msra.mxu0 0.0
        %8424 = vmatprep.subr.mxu0 0.0
        %8425 = vmatpush1.msra.mxu0 0.0
        %8426 = vmatprep.subr.mxu0 0.0
        %8427 = vmatpush1.msra.mxu0 0.0
        %8428 = vmatprep.subr.mxu0 0.0
        %8429 = vmatpush1.msra.mxu0 0.0
        %8430 = vmatprep.subr.mxu0 0.0
        %8431 = vmatpush1.msra.mxu0 0.0
        %8432 = vmatprep.subr.mxu0 0.0
        %8433 = vmatpush1.msra.mxu0 0.0
        %8434 = vmatprep.subr.mxu0 0.0
        %8435 = vmatpush1.msra.mxu0 0.0
        %8436 = vmatprep.subr.mxu0 0.0
        %8437 = vmatpush1.msra.mxu0 0.0
        %8438 = vmatprep.subr.mxu0 0.0
        %8439 = vmatpush1.msra.mxu0 0.0
        %8440 = vmatprep.subr.mxu0 0.0
        %8441 = vmatpush1.msra.mxu0 0.0
        %8442 = vmatprep.subr.mxu0 0.0
        %8443 = vmatpush1.msra.mxu0 0.0
        %8444 = vmatprep.subr.mxu0 0.0
        %8445 = vmatpush1.msra.mxu0 0.0
        %8446 = vmatprep.subr.mxu0 0.0
        %8447 = vmatpush1.msra.mxu0 0.0
        %8448 = vmatprep.subr.mxu0 0.0
        %8449 = vmatpush1.msra.mxu0 0.0
        %8450 = vmatprep.subr.mxu0 0.0
        %8451 = vmatpush1.msra.mxu0 0.0
        %8452 = vmatprep.subr.mxu0 0.0
        %8453 = vmatpush1.msra.mxu0 0.0
        %8454 = vmatprep.subr.mxu0 0.0
        %8455 = vmatpush1.msra.mxu0 0.0
        %8456 = vmatprep.subr.mxu0 0.0
        %8457 = vmatpush1.msra.mxu0 0.0
        %8458 = vmatprep.mubr.f32.mxu0 0.0
        %v8459 = vand.u32 %v8238, 4294901760
        %v8460 = vsub.f32 %v8238, %v8459
        %8461 = vmatmul.mubr.f32.gmra.mrb[0].mxu0 %v8460
        %v8462 = vpop.f32.mrb[0].mxu0
        %v8463 = vadd.f32 %v8389, %v8462
        %v8464 = vpop.f32.mrb[0].mxu0
        %8465 = vdwg.mxu0
        %8466 = vmatprep.subr.mxu0 0.0
        %v8467 = vand.u32 %v8235, 4294901760
        %8468 = vmatpush1.msra.mxu0 %v8467
        %8469 = vmatprep.subr.mxu0 0.0
        %8470 = vmatpush1.msra.mxu0 0.0
        %8471 = vmatprep.subr.mxu0 0.0
        %8472 = vmatpush1.msra.mxu0 0.0
        %8473 = vmatprep.subr.mxu0 0.0
        %8474 = vmatpush1.msra.mxu0 0.0
        %8475 = vmatprep.subr.mxu0 0.0
        %8476 = vmatpush1.msra.mxu0 0.0
        %8477 = vmatprep.subr.mxu0 0.0
        %8478 = vmatpush1.msra.mxu0 0.0
        %8479 = vmatprep.subr.mxu0 0.0
        %8480 = vmatpush1.msra.mxu0 0.0
        %8481 = vmatprep.subr.mxu0 0.0
        %8482 = vmatpush1.msra.mxu0 0.0
        %8483 = vmatprep.subr.mxu0 0.0
        %8484 = vmatpush1.msra.mxu0 0.0
        %8485 = vmatprep.subr.mxu0 0.0
        %8486 = vmatpush1.msra.mxu0 0.0
        %8487 = vmatprep.subr.mxu0 0.0
        %8488 = vmatpush1.msra.mxu0 0.0
        %8489 = vmatprep.subr.mxu0 0.0
        %8490 = vmatpush1.msra.mxu0 0.0
        %8491 = vmatprep.subr.mxu0 0.0
        %8492 = vmatpush1.msra.mxu0 0.0
        %8493 = vmatprep.subr.mxu0 0.0
        %8494 = vmatpush1.msra.mxu0 0.0
        %8495 = vmatprep.subr.mxu0 0.0
        %8496 = vmatpush1.msra.mxu0 0.0
        %8497 = vmatprep.subr.mxu0 0.0
        %8498 = vmatpush1.msra.mxu0 0.0
        %8499 = vmatprep.subr.mxu0 0.0
        %8500 = vmatpush1.msra.mxu0 0.0
        %8501 = vmatprep.subr.mxu0 0.0
        %8502 = vmatpush1.msra.mxu0 0.0
        %8503 = vmatprep.subr.mxu0 0.0
        %8504 = vmatpush1.msra.mxu0 0.0
        %8505 = vmatprep.subr.mxu0 0.0
        %8506 = vmatpush1.msra.mxu0 0.0
        %8507 = vmatprep.subr.mxu0 0.0
        %8508 = vmatpush1.msra.mxu0 0.0
        %8509 = vmatprep.subr.mxu0 0.0
        %8510 = vmatpush1.msra.mxu0 0.0
        %8511 = vmatprep.subr.mxu0 0.0
        %8512 = vmatpush1.msra.mxu0 0.0
        %8513 = vmatprep.subr.mxu0 0.0
        %8514 = vmatpush1.msra.mxu0 0.0
        %8515 = vmatprep.subr.mxu0 0.0
        %8516 = vmatpush1.msra.mxu0 0.0
        %8517 = vmatprep.subr.mxu0 0.0
        %8518 = vmatpush1.msra.mxu0 0.0
        %8519 = vmatprep.subr.mxu0 0.0
        %8520 = vmatpush1.msra.mxu0 0.0
        %8521 = vmatprep.subr.mxu0 0.0
        %8522 = vmatpush1.msra.mxu0 0.0
        %8523 = vmatprep.subr.mxu0 0.0
        %8524 = vmatpush1.msra.mxu0 0.0
        %8525 = vmatprep.subr.mxu0 0.0
        %8526 = vmatpush1.msra.mxu0 0.0
        %8527 = vmatprep.subr.mxu0 0.0
        %8528 = vmatpush1.msra.mxu0 0.0
        %8529 = vmatprep.subr.mxu0 0.0
        %8530 = vmatpush1.msra.mxu0 0.0
        %8531 = vmatprep.mubr.f32.mxu0 0.0
        %v8532 = vand.u32 %v8238, 4294901760
        %v8533 = vsub.f32 %v8238, %v8532
        %v8534 = vand.u32 %v8533, 4294901760
        %8535 = vmatmul.mubr.f32.gmra.mrb[0].mxu0 %v8534
        %v8536 = vpop.f32.mrb[0].mxu0
        %v8537 = vadd.f32 %v8463, %v8536
        %v8538 = vpop.f32.mrb[0].mxu0
        %8539 = vdwg.mxu0
        %8540 = vmatprep.subr.mxu0 0.0
        %v8541 = vand.u32 %v8235, 4294901760
        %v8542 = vsub.f32 %v8235, %v8541
        %v8543 = vand.u32 %v8542, 4294901760
        %8544 = vmatpush1.msra.mxu0 %v8543
        %8545 = vmatprep.subr.mxu0 0.0
        %8546 = vmatpush1.msra.mxu0 0.0
        %8547 = vmatprep.subr.mxu0 0.0
        %8548 = vmatpush1.msra.mxu0 0.0
        %8549 = vmatprep.subr.mxu0 0.0
        %8550 = vmatpush1.msra.mxu0 0.0
        %8551 = vmatprep.subr.mxu0 0.0
        %8552 = vmatpush1.msra.mxu0 0.0
        %8553 = vmatprep.subr.mxu0 0.0
        %8554 = vmatpush1.msra.mxu0 0.0
        %8555 = vmatprep.subr.mxu0 0.0
        %8556 = vmatpush1.msra.mxu0 0.0
        %8557 = vmatprep.subr.mxu0 0.0
        %8558 = vmatpush1.msra.mxu0 0.0
        %8559 = vmatprep.subr.mxu0 0.0
        %8560 = vmatpush1.msra.mxu0 0.0
        %8561 = vmatprep.subr.mxu0 0.0
        %8562 = vmatpush1.msra.mxu0 0.0
        %8563 = vmatprep.subr.mxu0 0.0
        %8564 = vmatpush1.msra.mxu0 0.0
        %8565 = vmatprep.subr.mxu0 0.0
        %8566 = vmatpush1.msra.mxu0 0.0
        %8567 = vmatprep.subr.mxu0 0.0
        %8568 = vmatpush1.msra.mxu0 0.0
        %8569 = vmatprep.subr.mxu0 0.0
        %8570 = vmatpush1.msra.mxu0 0.0
        %8571 = vmatprep.subr.mxu0 0.0
        %8572 = vmatpush1.msra.mxu0 0.0
        %8573 = vmatprep.subr.mxu0 0.0
        %8574 = vmatpush1.msra.mxu0 0.0
        %8575 = vmatprep.subr.mxu0 0.0
        %8576 = vmatpush1.msra.mxu0 0.0
        %8577 = vmatprep.subr.mxu0 0.0
        %8578 = vmatpush1.msra.mxu0 0.0
        %8579 = vmatprep.subr.mxu0 0.0
        %8580 = vmatpush1.msra.mxu0 0.0
        %8581 = vmatprep.subr.mxu0 0.0
        %8582 = vmatpush1.msra.mxu0 0.0
        %8583 = vmatprep.subr.mxu0 0.0
        %8584 = vmatpush1.msra.mxu0 0.0
        %8585 = vmatprep.subr.mxu0 0.0
        %8586 = vmatpush1.msra.mxu0 0.0
        %8587 = vmatprep.subr.mxu0 0.0
        %8588 = vmatpush1.msra.mxu0 0.0
        %8589 = vmatprep.subr.mxu0 0.0
        %8590 = vmatpush1.msra.mxu0 0.0
        %8591 = vmatprep.subr.mxu0 0.0
        %8592 = vmatpush1.msra.mxu0 0.0
        %8593 = vmatprep.subr.mxu0 0.0
        %8594 = vmatpush1.msra.mxu0 0.0
        %8595 = vmatprep.subr.mxu0 0.0
        %8596 = vmatpush1.msra.mxu0 0.0
        %8597 = vmatprep.subr.mxu0 0.0
        %8598 = vmatpush1.msra.mxu0 0.0
        %8599 = vmatprep.subr.mxu0 0.0
        %8600 = vmatpush1.msra.mxu0 0.0
        %8601 = vmatprep.subr.mxu0 0.0
        %8602 = vmatpush1.msra.mxu0 0.0
        %8603 = vmatprep.subr.mxu0 0.0
        %8604 = vmatpush1.msra.mxu0 0.0
        %8605 = vmatprep.subr.mxu0 0.0
        %8606 = vmatpush1.msra.mxu0 0.0
        %8607 = vmatprep.mubr.f32.mxu0 0.0
        %v8608 = vand.u32 %v8238, 4294901760
        %8609 = vmatmul.mubr.f32.gmra.mrb[0].mxu0 %v8608
        %v8610 = vpop.f32.mrb[0].mxu0
        %v8611 = vadd.f32 %v8537, %v8610
        %v8612 = vpop.f32.mrb[0].mxu0
        %8613 = vdwg.mxu0
        %8614 = vmatprep.subr.mxu0 0.0
        %v8615 = vand.u32 %v8235, 4294901760
        %8616 = vmatpush1.msra.mxu0 %v8615
        %8617 = vmatprep.subr.mxu0 0.0
        %8618 = vmatpush1.msra.mxu0 0.0
        %8619 = vmatprep.subr.mxu0 0.0
        %8620 = vmatpush1.msra.mxu0 0.0
        %8621 = vmatprep.subr.mxu0 0.0
        %8622 = vmatpush1.msra.mxu0 0.0
        %8623 = vmatprep.subr.mxu0 0.0
        %8624 = vmatpush1.msra.mxu0 0.0
        %8625 = vmatprep.subr.mxu0 0.0
        %8626 = vmatpush1.msra.mxu0 0.0
        %8627 = vmatprep.subr.mxu0 0.0
        %8628 = vmatpush1.msra.mxu0 0.0
        %8629 = vmatprep.subr.mxu0 0.0
        %8630 = vmatpush1.msra.mxu0 0.0
        %8631 = vmatprep.subr.mxu0 0.0
        %8632 = vmatpush1.msra.mxu0 0.0
        %8633 = vmatprep.subr.mxu0 0.0
        %8634 = vmatpush1.msra.mxu0 0.0
        %8635 = vmatprep.subr.mxu0 0.0
        %8636 = vmatpush1.msra.mxu0 0.0
        %8637 = vmatprep.subr.mxu0 0.0
        %8638 = vmatpush1.msra.mxu0 0.0
        %8639 = vmatprep.subr.mxu0 0.0
        %8640 = vmatpush1.msra.mxu0 0.0
        %8641 = vmatprep.subr.mxu0 0.0
        %8642 = vmatpush1.msra.mxu0 0.0
        %8643 = vmatprep.subr.mxu0 0.0
        %8644 = vmatpush1.msra.mxu0 0.0
        %8645 = vmatprep.subr.mxu0 0.0
        %8646 = vmatpush1.msra.mxu0 0.0
        %8647 = vmatprep.subr.mxu0 0.0
        %8648 = vmatpush1.msra.mxu0 0.0
        %8649 = vmatprep.subr.mxu0 0.0
        %8650 = vmatpush1.msra.mxu0 0.0
        %8651 = vmatprep.subr.mxu0 0.0
        %8652 = vmatpush1.msra.mxu0 0.0
        %8653 = vmatprep.subr.mxu0 0.0
        %8654 = vmatpush1.msra.mxu0 0.0
        %8655 = vmatprep.subr.mxu0 0.0
        %8656 = vmatpush1.msra.mxu0 0.0
        %8657 = vmatprep.subr.mxu0 0.0
        %8658 = vmatpush1.msra.mxu0 0.0
        %8659 = vmatprep.subr.mxu0 0.0
        %8660 = vmatpush1.msra.mxu0 0.0
        %8661 = vmatprep.subr.mxu0 0.0
        %8662 = vmatpush1.msra.mxu0 0.0
        %8663 = vmatprep.subr.mxu0 0.0
        %8664 = vmatpush1.msra.mxu0 0.0
        %8665 = vmatprep.subr.mxu0 0.0
        %8666 = vmatpush1.msra.mxu0 0.0
        %8667 = vmatprep.subr.mxu0 0.0
        %8668 = vmatpush1.msra.mxu0 0.0
        %8669 = vmatprep.subr.mxu0 0.0
        %8670 = vmatpush1.msra.mxu0 0.0
        %8671 = vmatprep.subr.mxu0 0.0
        %8672 = vmatpush1.msra.mxu0 0.0
        %8673 = vmatprep.subr.mxu0 0.0
        %8674 = vmatpush1.msra.mxu0 0.0
        %8675 = vmatprep.subr.mxu0 0.0
        %8676 = vmatpush1.msra.mxu0 0.0
        %8677 = vmatprep.subr.mxu0 0.0
        %8678 = vmatpush1.msra.mxu0 0.0
        %8679 = vmatprep.mubr.f32.mxu0 0.0
        %v8680 = vand.u32 %v8238, 4294901760
        %8681 = vmatmul.mubr.f32.gmra.mrb[0].mxu0 %v8680
        %v8682 = vpop.f32.mrb[0].mxu0
        %v8683 = vadd.f32 %v8611, %v8682
        %v8684 = vpop.f32.mrb[0].mxu0
        %8685 = vdwg.mxu0
        %8687 = vrot.lane.b32.xlu0 %v5971, 4
        %v8688 = vpop.permute.xlu0 %8687
        %8691 = vrot.lane.b32.xlu0 %v6423, 8
        %v8692 = vpop.permute.xlu0 %8691
        %8695 = vrot.lane.b32.xlu0 %v6875, 12
        %v8696 = vpop.permute.xlu0 %8695
        %8699 = vrot.lane.b32.xlu0 %v7327, 16
        %v8700 = vpop.permute.xlu0 %8699
        %8703 = vrot.lane.b32.xlu0 %v7779, 20
        %v8704 = vpop.permute.xlu0 %8703
        %8707 = vrot.lane.b32.xlu0 %v8231, 24
        %v8708 = vpop.permute.xlu0 %8707
        %8711 = vrot.lane.b32.xlu0 %v8683, 28
        %v8712 = vpop.permute.xlu0 %8711
        %v8714 = vsel %vm1372, %v5519, %v8688
        %v8715 = vsel %vm4981, %v8714, %v8692
        %vm8716 = vcmask 97280
        %v8717 = vsel %vm8716, %v8715, %v8696
        %vm8718 = vcmask 130048
        %v8719 = vsel %vm8718, %v8717, %v8700
        %vm8720 = vcmask 162816
        %v8721 = vsel %vm8720, %v8719, %v8704
        %vm8722 = vcmask 195584
        %v8723 = vsel %vm8722, %v8721, %v8708
        %vm8724 = vcmask 228352
        %v8725 = vsel %vm8724, %v8723, %v8712
        %v8726 = vld [vmem:[#allocation8] sm:$0xff]
        %v8727 = vld [vmem:[#allocation8 + $0x8] sm:$0xff]
        %v8728 = vld [vmem:[#allocation8 + $0x10] sm:$0xff]
        %v8729 = vld [vmem:[#allocation8 + $0x18] sm:$0xff]
        %v8730 = vld [vmem:[%s5] sm:$0x1]
        %v8732 = vlaneseq
        %v8733 = vshrl.u32 %v8732, 7
        %v8734 = vsub.s32 0, %v8733
        %v8735 = vrot.slane %v8730, %v8734
        %v8738 = vsel %vm346, %v8725, 0
        %8740 = vmatprep.subr.mxu0 0.0
        %v8741 = vand.u32 %v8726, 4294901760
        %8742 = vmatpush1.msra.mxu0 %v8741
        %8743 = vmatprep.subr.mxu0 0.0
        %v8744 = vand.u32 %v8727, 4294901760
        %8745 = vmatpush1.msra.mxu0 %v8744
        %8746 = vmatprep.subr.mxu0 0.0
        %v8747 = vand.u32 %v8728, 4294901760
        %8748 = vmatpush1.msra.mxu0 %v8747
        %8749 = vmatprep.subr.mxu0 0.0
        %v8750 = vand.u32 %v8729, 4294901760
        %8751 = vmatpush1.msra.mxu0 %v8750
        %8752 = vmatprep.subr.mxu0 0.0
        %8753 = vmatpush1.msra.mxu0 0.0
        %8754 = vmatprep.subr.mxu0 0.0
        %8755 = vmatpush1.msra.mxu0 0.0
        %8756 = vmatprep.subr.mxu0 0.0
        %8757 = vmatpush1.msra.mxu0 0.0
        %8758 = vmatprep.subr.mxu0 0.0
        %8759 = vmatpush1.msra.mxu0 0.0
        %8760 = vmatprep.subr.mxu0 0.0
        %8761 = vmatpush1.msra.mxu0 0.0
        %8762 = vmatprep.subr.mxu0 0.0
        %8763 = vmatpush1.msra.mxu0 0.0
        %8764 = vmatprep.subr.mxu0 0.0
        %8765 = vmatpush1.msra.mxu0 0.0
        %8766 = vmatprep.subr.mxu0 0.0
        %8767 = vmatpush1.msra.mxu0 0.0
        %8768 = vmatprep.subr.mxu0 0.0
        %8769 = vmatpush1.msra.mxu0 0.0
        %8770 = vmatprep.subr.mxu0 0.0
        %8771 = vmatpush1.msra.mxu0 0.0
        %8772 = vmatprep.subr.mxu0 0.0
        %8773 = vmatpush1.msra.mxu0 0.0
        %8774 = vmatprep.subr.mxu0 0.0
        %8775 = vmatpush1.msra.mxu0 0.0
        %8776 = vmatprep.subr.mxu0 0.0
        %8777 = vmatpush1.msra.mxu0 0.0
        %8778 = vmatprep.subr.mxu0 0.0
        %8779 = vmatpush1.msra.mxu0 0.0
        %8780 = vmatprep.subr.mxu0 0.0
        %8781 = vmatpush1.msra.mxu0 0.0
        %8782 = vmatprep.subr.mxu0 0.0
        %8783 = vmatpush1.msra.mxu0 0.0
        %8784 = vmatprep.subr.mxu0 0.0
        %8785 = vmatpush1.msra.mxu0 0.0
        %8786 = vmatprep.subr.mxu0 0.0
        %8787 = vmatpush1.msra.mxu0 0.0
        %8788 = vmatprep.subr.mxu0 0.0
        %8789 = vmatpush1.msra.mxu0 0.0
        %8790 = vmatprep.subr.mxu0 0.0
        %8791 = vmatpush1.msra.mxu0 0.0
        %8792 = vmatprep.subr.mxu0 0.0
        %8793 = vmatpush1.msra.mxu0 0.0
        %8794 = vmatprep.subr.mxu0 0.0
        %8795 = vmatpush1.msra.mxu0 0.0
        %8796 = vmatprep.subr.mxu0 0.0
        %8797 = vmatpush1.msra.mxu0 0.0
        %8798 = vmatprep.subr.mxu0 0.0
        %8799 = vmatpush1.msra.mxu0 0.0
        %8800 = vmatprep.subr.mxu0 0.0
        %8801 = vmatpush1.msra.mxu0 0.0
        %8802 = vmatprep.subr.mxu0 0.0
        %8803 = vmatpush1.msra.mxu0 0.0
        %8804 = vmatprep.subr.mxu0 0.0
        %8805 = vmatpush1.msra.mxu0 0.0
        %8806 = vmatprep.subr.mxu0 0.0
        %8807 = vmatpush1.msra.mxu0 0.0
        %8808 = vmatprep.mubr.f32.mxu0 0.0
        %v8809 = vand.u32 %v8738, 4294901760
        %v8810 = vsub.f32 %v8738, %v8809
        %v8811 = vand.u32 %v8810, 4294901760
        %v8812 = vsub.f32 %v8810, %v8811
        %v8813 = vand.u32 %v8812, 4294901760
        %8814 = vmatmul.mubr.f32.gmra.mrb[0].mxu0 %v8813
        %v8815 = vpop.f32.mrb[0].mxu0
        %v8816 = vadd.f32 %v8735, %v8815
        %v8817 = vpop.f32.mrb[0].mxu0
        %8818 = vdwg.mxu0
        %8819 = vmatprep.subr.mxu0 0.0
        %v8820 = vand.u32 %v8726, 4294901760
        %v8821 = vsub.f32 %v8726, %v8820
        %v8822 = vand.u32 %v8821, 4294901760
        %v8823 = vsub.f32 %v8821, %v8822
        %v8824 = vand.u32 %v8823, 4294901760
        %8825 = vmatpush1.msra.mxu0 %v8824
        %8826 = vmatprep.subr.mxu0 0.0
        %v8827 = vand.u32 %v8727, 4294901760
        %v8828 = vsub.f32 %v8727, %v8827
        %v8829 = vand.u32 %v8828, 4294901760
        %v8830 = vsub.f32 %v8828, %v8829
        %v8831 = vand.u32 %v8830, 4294901760
        %8832 = vmatpush1.msra.mxu0 %v8831
        %8833 = vmatprep.subr.mxu0 0.0
        %v8834 = vand.u32 %v8728, 4294901760
        %v8835 = vsub.f32 %v8728, %v8834
        %v8836 = vand.u32 %v8835, 4294901760
        %v8837 = vsub.f32 %v8835, %v8836
        %v8838 = vand.u32 %v8837, 4294901760
        %8839 = vmatpush1.msra.mxu0 %v8838
        %8840 = vmatprep.subr.mxu0 0.0
        %v8841 = vand.u32 %v8729, 4294901760
        %v8842 = vsub.f32 %v8729, %v8841
        %v8843 = vand.u32 %v8842, 4294901760
        %v8844 = vsub.f32 %v8842, %v8843
        %v8845 = vand.u32 %v8844, 4294901760
        %8846 = vmatpush1.msra.mxu0 %v8845
        %8847 = vmatprep.subr.mxu0 0.0
        %8848 = vmatpush1.msra.mxu0 0.0
        %8849 = vmatprep.subr.mxu0 0.0
        %8850 = vmatpush1.msra.mxu0 0.0
        %8851 = vmatprep.subr.mxu0 0.0
        %8852 = vmatpush1.msra.mxu0 0.0
        %8853 = vmatprep.subr.mxu0 0.0
        %8854 = vmatpush1.msra.mxu0 0.0
        %8855 = vmatprep.subr.mxu0 0.0
        %8856 = vmatpush1.msra.mxu0 0.0
        %8857 = vmatprep.subr.mxu0 0.0
        %8858 = vmatpush1.msra.mxu0 0.0
        %8859 = vmatprep.subr.mxu0 0.0
        %8860 = vmatpush1.msra.mxu0 0.0
        %8861 = vmatprep.subr.mxu0 0.0
        %8862 = vmatpush1.msra.mxu0 0.0
        %8863 = vmatprep.subr.mxu0 0.0
        %8864 = vmatpush1.msra.mxu0 0.0
        %8865 = vmatprep.subr.mxu0 0.0
        %8866 = vmatpush1.msra.mxu0 0.0
        %8867 = vmatprep.subr.mxu0 0.0
        %8868 = vmatpush1.msra.mxu0 0.0
        %8869 = vmatprep.subr.mxu0 0.0
        %8870 = vmatpush1.msra.mxu0 0.0
        %8871 = vmatprep.subr.mxu0 0.0
        %8872 = vmatpush1.msra.mxu0 0.0
        %8873 = vmatprep.subr.mxu0 0.0
        %8874 = vmatpush1.msra.mxu0 0.0
        %8875 = vmatprep.subr.mxu0 0.0
        %8876 = vmatpush1.msra.mxu0 0.0
        %8877 = vmatprep.subr.mxu0 0.0
        %8878 = vmatpush1.msra.mxu0 0.0
        %8879 = vmatprep.subr.mxu0 0.0
        %8880 = vmatpush1.msra.mxu0 0.0
        %8881 = vmatprep.subr.mxu0 0.0
        %8882 = vmatpush1.msra.mxu0 0.0
        %8883 = vmatprep.subr.mxu0 0.0
        %8884 = vmatpush1.msra.mxu0 0.0
        %8885 = vmatprep.subr.mxu0 0.0
        %8886 = vmatpush1.msra.mxu0 0.0
        %8887 = vmatprep.subr.mxu0 0.0
        %8888 = vmatpush1.msra.mxu0 0.0
        %8889 = vmatprep.subr.mxu0 0.0
        %8890 = vmatpush1.msra.mxu0 0.0
        %8891 = vmatprep.subr.mxu0 0.0
        %8892 = vmatpush1.msra.mxu0 0.0
        %8893 = vmatprep.subr.mxu0 0.0
        %8894 = vmatpush1.msra.mxu0 0.0
        %8895 = vmatprep.subr.mxu0 0.0
        %8896 = vmatpush1.msra.mxu0 0.0
        %8897 = vmatprep.subr.mxu0 0.0
        %8898 = vmatpush1.msra.mxu0 0.0
        %8899 = vmatprep.subr.mxu0 0.0
        %8900 = vmatpush1.msra.mxu0 0.0
        %8901 = vmatprep.subr.mxu0 0.0
        %8902 = vmatpush1.msra.mxu0 0.0
        %8903 = vmatprep.mubr.f32.mxu0 0.0
        %v8904 = vand.u32 %v8738, 4294901760
        %8905 = vmatmul.mubr.f32.gmra.mrb[0].mxu0 %v8904
        %v8906 = vpop.f32.mrb[0].mxu0
        %v8907 = vadd.f32 %v8816, %v8906
        %v8908 = vpop.f32.mrb[0].mxu0
        %8909 = vdwg.mxu0
        %8910 = vmatprep.subr.mxu0 0.0
        %v8911 = vand.u32 %v8726, 4294901760
        %v8912 = vsub.f32 %v8726, %v8911
        %8913 = vmatpush1.msra.mxu0 %v8912
        %8914 = vmatprep.subr.mxu0 0.0
        %v8915 = vand.u32 %v8727, 4294901760
        %v8916 = vsub.f32 %v8727, %v8915
        %8917 = vmatpush1.msra.mxu0 %v8916
        %8918 = vmatprep.subr.mxu0 0.0
        %v8919 = vand.u32 %v8728, 4294901760
        %v8920 = vsub.f32 %v8728, %v8919
        %8921 = vmatpush1.msra.mxu0 %v8920
        %8922 = vmatprep.subr.mxu0 0.0
        %v8923 = vand.u32 %v8729, 4294901760
        %v8924 = vsub.f32 %v8729, %v8923
        %8925 = vmatpush1.msra.mxu0 %v8924
        %8926 = vmatprep.subr.mxu0 0.0
        %8927 = vmatpush1.msra.mxu0 0.0
        %8928 = vmatprep.subr.mxu0 0.0
        %8929 = vmatpush1.msra.mxu0 0.0
        %8930 = vmatprep.subr.mxu0 0.0
        %8931 = vmatpush1.msra.mxu0 0.0
        %8932 = vmatprep.subr.mxu0 0.0
        %8933 = vmatpush1.msra.mxu0 0.0
        %8934 = vmatprep.subr.mxu0 0.0
        %8935 = vmatpush1.msra.mxu0 0.0
        %8936 = vmatprep.subr.mxu0 0.0
        %8937 = vmatpush1.msra.mxu0 0.0
        %8938 = vmatprep.subr.mxu0 0.0
        %8939 = vmatpush1.msra.mxu0 0.0
        %8940 = vmatprep.subr.mxu0 0.0
        %8941 = vmatpush1.msra.mxu0 0.0
        %8942 = vmatprep.subr.mxu0 0.0
        %8943 = vmatpush1.msra.mxu0 0.0
        %8944 = vmatprep.subr.mxu0 0.0
        %8945 = vmatpush1.msra.mxu0 0.0
        %8946 = vmatprep.subr.mxu0 0.0
        %8947 = vmatpush1.msra.mxu0 0.0
        %8948 = vmatprep.subr.mxu0 0.0
        %8949 = vmatpush1.msra.mxu0 0.0
        %8950 = vmatprep.subr.mxu0 0.0
        %8951 = vmatpush1.msra.mxu0 0.0
        %8952 = vmatprep.subr.mxu0 0.0
        %8953 = vmatpush1.msra.mxu0 0.0
        %8954 = vmatprep.subr.mxu0 0.0
        %8955 = vmatpush1.msra.mxu0 0.0
        %8956 = vmatprep.subr.mxu0 0.0
        %8957 = vmatpush1.msra.mxu0 0.0
        %8958 = vmatprep.subr.mxu0 0.0
        %8959 = vmatpush1.msra.mxu0 0.0
        %8960 = vmatprep.subr.mxu0 0.0
        %8961 = vmatpush1.msra.mxu0 0.0
        %8962 = vmatprep.subr.mxu0 0.0
        %8963 = vmatpush1.msra.mxu0 0.0
        %8964 = vmatprep.subr.mxu0 0.0
        %8965 = vmatpush1.msra.mxu0 0.0
        %8966 = vmatprep.subr.mxu0 0.0
        %8967 = vmatpush1.msra.mxu0 0.0
        %8968 = vmatprep.subr.mxu0 0.0
        %8969 = vmatpush1.msra.mxu0 0.0
        %8970 = vmatprep.subr.mxu0 0.0
        %8971 = vmatpush1.msra.mxu0 0.0
        %8972 = vmatprep.subr.mxu0 0.0
        %8973 = vmatpush1.msra.mxu0 0.0
        %8974 = vmatprep.subr.mxu0 0.0
        %8975 = vmatpush1.msra.mxu0 0.0
        %8976 = vmatprep.subr.mxu0 0.0
        %8977 = vmatpush1.msra.mxu0 0.0
        %8978 = vmatprep.subr.mxu0 0.0
        %8979 = vmatpush1.msra.mxu0 0.0
        %8980 = vmatprep.subr.mxu0 0.0
        %8981 = vmatpush1.msra.mxu0 0.0
        %8982 = vmatprep.mubr.f32.mxu0 0.0
        %v8983 = vand.u32 %v8738, 4294901760
        %v8984 = vsub.f32 %v8738, %v8983
        %8985 = vmatmul.mubr.f32.gmra.mrb[0].mxu0 %v8984
        %v8986 = vpop.f32.mrb[0].mxu0
        %v8987 = vadd.f32 %v8907, %v8986
        %v8988 = vpop.f32.mrb[0].mxu0
        %8989 = vdwg.mxu0
        %8990 = vmatprep.subr.mxu0 0.0
        %v8991 = vand.u32 %v8726, 4294901760
        %8992 = vmatpush1.msra.mxu0 %v8991
        %8993 = vmatprep.subr.mxu0 0.0
        %v8994 = vand.u32 %v8727, 4294901760
        %8995 = vmatpush1.msra.mxu0 %v8994
        %8996 = vmatprep.subr.mxu0 0.0
        %v8997 = vand.u32 %v8728, 4294901760
        %8998 = vmatpush1.msra.mxu0 %v8997
        %8999 = vmatprep.subr.mxu0 0.0
        %v9000 = vand.u32 %v8729, 4294901760
        %9001 = vmatpush1.msra.mxu0 %v9000
        %9002 = vmatprep.subr.mxu0 0.0
        %9003 = vmatpush1.msra.mxu0 0.0
        %9004 = vmatprep.subr.mxu0 0.0
        %9005 = vmatpush1.msra.mxu0 0.0
        %9006 = vmatprep.subr.mxu0 0.0
        %9007 = vmatpush1.msra.mxu0 0.0
        %9008 = vmatprep.subr.mxu0 0.0
        %9009 = vmatpush1.msra.mxu0 0.0
        %9010 = vmatprep.subr.mxu0 0.0
        %9011 = vmatpush1.msra.mxu0 0.0
        %9012 = vmatprep.subr.mxu0 0.0
        %9013 = vmatpush1.msra.mxu0 0.0
        %9014 = vmatprep.subr.mxu0 0.0
        %9015 = vmatpush1.msra.mxu0 0.0
        %9016 = vmatprep.subr.mxu0 0.0
        %9017 = vmatpush1.msra.mxu0 0.0
        %9018 = vmatprep.subr.mxu0 0.0
        %9019 = vmatpush1.msra.mxu0 0.0
        %9020 = vmatprep.subr.mxu0 0.0
        %9021 = vmatpush1.msra.mxu0 0.0
        %9022 = vmatprep.subr.mxu0 0.0
        %9023 = vmatpush1.msra.mxu0 0.0
        %9024 = vmatprep.subr.mxu0 0.0
        %9025 = vmatpush1.msra.mxu0 0.0
        %9026 = vmatprep.subr.mxu0 0.0
        %9027 = vmatpush1.msra.mxu0 0.0
        %9028 = vmatprep.subr.mxu0 0.0
        %9029 = vmatpush1.msra.mxu0 0.0
        %9030 = vmatprep.subr.mxu0 0.0
        %9031 = vmatpush1.msra.mxu0 0.0
        %9032 = vmatprep.subr.mxu0 0.0
        %9033 = vmatpush1.msra.mxu0 0.0
        %9034 = vmatprep.subr.mxu0 0.0
        %9035 = vmatpush1.msra.mxu0 0.0
        %9036 = vmatprep.subr.mxu0 0.0
        %9037 = vmatpush1.msra.mxu0 0.0
        %9038 = vmatprep.subr.mxu0 0.0
        %9039 = vmatpush1.msra.mxu0 0.0
        %9040 = vmatprep.subr.mxu0 0.0
        %9041 = vmatpush1.msra.mxu0 0.0
        %9042 = vmatprep.subr.mxu0 0.0
        %9043 = vmatpush1.msra.mxu0 0.0
        %9044 = vmatprep.subr.mxu0 0.0
        %9045 = vmatpush1.msra.mxu0 0.0
        %9046 = vmatprep.subr.mxu0 0.0
        %9047 = vmatpush1.msra.mxu0 0.0
        %9048 = vmatprep.subr.mxu0 0.0
        %9049 = vmatpush1.msra.mxu0 0.0
        %9050 = vmatprep.subr.mxu0 0.0
        %9051 = vmatpush1.msra.mxu0 0.0
        %9052 = vmatprep.subr.mxu0 0.0
        %9053 = vmatpush1.msra.mxu0 0.0
        %9054 = vmatprep.subr.mxu0 0.0
        %9055 = vmatpush1.msra.mxu0 0.0
        %9056 = vmatprep.subr.mxu0 0.0
        %9057 = vmatpush1.msra.mxu0 0.0
        %9058 = vmatprep.mubr.f32.mxu0 0.0
        %v9059 = vand.u32 %v8738, 4294901760
        %v9060 = vsub.f32 %v8738, %v9059
        %v9061 = vand.u32 %v9060, 4294901760
        %9062 = vmatmul.mubr.f32.gmra.mrb[0].mxu0 %v9061
        %v9063 = vpop.f32.mrb[0].mxu0
        %v9064 = vadd.f32 %v8987, %v9063
        %v9065 = vpop.f32.mrb[0].mxu0
        %9066 = vdwg.mxu0
        %9067 = vmatprep.subr.mxu0 0.0
        %v9068 = vand.u32 %v8726, 4294901760
        %v9069 = vsub.f32 %v8726, %v9068
        %v9070 = vand.u32 %v9069, 4294901760
        %9071 = vmatpush1.msra.mxu0 %v9070
        %9072 = vmatprep.subr.mxu0 0.0
        %v9073 = vand.u32 %v8727, 4294901760
        %v9074 = vsub.f32 %v8727, %v9073
        %v9075 = vand.u32 %v9074, 4294901760
        %9076 = vmatpush1.msra.mxu0 %v9075
        %9077 = vmatprep.subr.mxu0 0.0
        %v9078 = vand.u32 %v8728, 4294901760
        %v9079 = vsub.f32 %v8728, %v9078
        %v9080 = vand.u32 %v9079, 4294901760
        %9081 = vmatpush1.msra.mxu0 %v9080
        %9082 = vmatprep.subr.mxu0 0.0
        %v9083 = vand.u32 %v8729, 4294901760
        %v9084 = vsub.f32 %v8729, %v9083
        %v9085 = vand.u32 %v9084, 4294901760
        %9086 = vmatpush1.msra.mxu0 %v9085
        %9087 = vmatprep.subr.mxu0 0.0
        %9088 = vmatpush1.msra.mxu0 0.0
        %9089 = vmatprep.subr.mxu0 0.0
        %9090 = vmatpush1.msra.mxu0 0.0
        %9091 = vmatprep.subr.mxu0 0.0
        %9092 = vmatpush1.msra.mxu0 0.0
        %9093 = vmatprep.subr.mxu0 0.0
        %9094 = vmatpush1.msra.mxu0 0.0
        %9095 = vmatprep.subr.mxu0 0.0
        %9096 = vmatpush1.msra.mxu0 0.0
        %9097 = vmatprep.subr.mxu0 0.0
        %9098 = vmatpush1.msra.mxu0 0.0
        %9099 = vmatprep.subr.mxu0 0.0
        %9100 = vmatpush1.msra.mxu0 0.0
        %9101 = vmatprep.subr.mxu0 0.0
        %9102 = vmatpush1.msra.mxu0 0.0
        %9103 = vmatprep.subr.mxu0 0.0
        %9104 = vmatpush1.msra.mxu0 0.0
        %9105 = vmatprep.subr.mxu0 0.0
        %9106 = vmatpush1.msra.mxu0 0.0
        %9107 = vmatprep.subr.mxu0 0.0
        %9108 = vmatpush1.msra.mxu0 0.0
        %9109 = vmatprep.subr.mxu0 0.0
        %9110 = vmatpush1.msra.mxu0 0.0
        %9111 = vmatprep.subr.mxu0 0.0
        %9112 = vmatpush1.msra.mxu0 0.0
        %9113 = vmatprep.subr.mxu0 0.0
        %9114 = vmatpush1.msra.mxu0 0.0
        %9115 = vmatprep.subr.mxu0 0.0
        %9116 = vmatpush1.msra.mxu0 0.0
        %9117 = vmatprep.subr.mxu0 0.0
        %9118 = vmatpush1.msra.mxu0 0.0
        %9119 = vmatprep.subr.mxu0 0.0
        %9120 = vmatpush1.msra.mxu0 0.0
        %9121 = vmatprep.subr.mxu0 0.0
        %9122 = vmatpush1.msra.mxu0 0.0
        %9123 = vmatprep.subr.mxu0 0.0
        %9124 = vmatpush1.msra.mxu0 0.0
        %9125 = vmatprep.subr.mxu0 0.0
        %9126 = vmatpush1.msra.mxu0 0.0
        %9127 = vmatprep.subr.mxu0 0.0
        %9128 = vmatpush1.msra.mxu0 0.0
        %9129 = vmatprep.subr.mxu0 0.0
        %9130 = vmatpush1.msra.mxu0 0.0
        %9131 = vmatprep.subr.mxu0 0.0
        %9132 = vmatpush1.msra.mxu0 0.0
        %9133 = vmatprep.subr.mxu0 0.0
        %9134 = vmatpush1.msra.mxu0 0.0
        %9135 = vmatprep.subr.mxu0 0.0
        %9136 = vmatpush1.msra.mxu0 0.0
        %9137 = vmatprep.subr.mxu0 0.0
        %9138 = vmatpush1.msra.mxu0 0.0
        %9139 = vmatprep.subr.mxu0 0.0
        %9140 = vmatpush1.msra.mxu0 0.0
        %9141 = vmatprep.subr.mxu0 0.0
        %9142 = vmatpush1.msra.mxu0 0.0
        %9143 = vmatprep.mubr.f32.mxu0 0.0
        %v9144 = vand.u32 %v8738, 4294901760
        %9145 = vmatmul.mubr.f32.gmra.mrb[0].mxu0 %v9144
        %v9146 = vpop.f32.mrb[0].mxu0
        %v9147 = vadd.f32 %v9064, %v9146
        %v9148 = vpop.f32.mrb[0].mxu0
        %9149 = vdwg.mxu0
        %9150 = vmatprep.subr.mxu0 0.0
        %v9151 = vand.u32 %v8726, 4294901760
        %9152 = vmatpush1.msra.mxu0 %v9151
        %9153 = vmatprep.subr.mxu0 0.0
        %v9154 = vand.u32 %v8727, 4294901760
        %9155 = vmatpush1.msra.mxu0 %v9154
        %9156 = vmatprep.subr.mxu0 0.0
        %v9157 = vand.u32 %v8728, 4294901760
        %9158 = vmatpush1.msra.mxu0 %v9157
        %9159 = vmatprep.subr.mxu0 0.0
        %v9160 = vand.u32 %v8729, 4294901760
        %9161 = vmatpush1.msra.mxu0 %v9160
        %9162 = vmatprep.subr.mxu0 0.0
        %9163 = vmatpush1.msra.mxu0 0.0
        %9164 = vmatprep.subr.mxu0 0.0
        %9165 = vmatpush1.msra.mxu0 0.0
        %9166 = vmatprep.subr.mxu0 0.0
        %9167 = vmatpush1.msra.mxu0 0.0
        %9168 = vmatprep.subr.mxu0 0.0
        %9169 = vmatpush1.msra.mxu0 0.0
        %9170 = vmatprep.subr.mxu0 0.0
        %9171 = vmatpush1.msra.mxu0 0.0
        %9172 = vmatprep.subr.mxu0 0.0
        %9173 = vmatpush1.msra.mxu0 0.0
        %9174 = vmatprep.subr.mxu0 0.0
        %9175 = vmatpush1.msra.mxu0 0.0
        %9176 = vmatprep.subr.mxu0 0.0
        %9177 = vmatpush1.msra.mxu0 0.0
        %9178 = vmatprep.subr.mxu0 0.0
        %9179 = vmatpush1.msra.mxu0 0.0
        %9180 = vmatprep.subr.mxu0 0.0
        %9181 = vmatpush1.msra.mxu0 0.0
        %9182 = vmatprep.subr.mxu0 0.0
        %9183 = vmatpush1.msra.mxu0 0.0
        %9184 = vmatprep.subr.mxu0 0.0
        %9185 = vmatpush1.msra.mxu0 0.0
        %9186 = vmatprep.subr.mxu0 0.0
        %9187 = vmatpush1.msra.mxu0 0.0
        %9188 = vmatprep.subr.mxu0 0.0
        %9189 = vmatpush1.msra.mxu0 0.0
        %9190 = vmatprep.subr.mxu0 0.0
        %9191 = vmatpush1.msra.mxu0 0.0
        %9192 = vmatprep.subr.mxu0 0.0
        %9193 = vmatpush1.msra.mxu0 0.0
        %9194 = vmatprep.subr.mxu0 0.0
        %9195 = vmatpush1.msra.mxu0 0.0
        %9196 = vmatprep.subr.mxu0 0.0
        %9197 = vmatpush1.msra.mxu0 0.0
        %9198 = vmatprep.subr.mxu0 0.0
        %9199 = vmatpush1.msra.mxu0 0.0
        %9200 = vmatprep.subr.mxu0 0.0
        %9201 = vmatpush1.msra.mxu0 0.0
        %9202 = vmatprep.subr.mxu0 0.0
        %9203 = vmatpush1.msra.mxu0 0.0
        %9204 = vmatprep.subr.mxu0 0.0
        %9205 = vmatpush1.msra.mxu0 0.0
        %9206 = vmatprep.subr.mxu0 0.0
        %9207 = vmatpush1.msra.mxu0 0.0
        %9208 = vmatprep.subr.mxu0 0.0
        %9209 = vmatpush1.msra.mxu0 0.0
        %9210 = vmatprep.subr.mxu0 0.0
        %9211 = vmatpush1.msra.mxu0 0.0
        %9212 = vmatprep.subr.mxu0 0.0
        %9213 = vmatpush1.msra.mxu0 0.0
        %9214 = vmatprep.subr.mxu0 0.0
        %9215 = vmatpush1.msra.mxu0 0.0
        %9216 = vmatprep.subr.mxu0 0.0
        %9217 = vmatpush1.msra.mxu0 0.0
        %9218 = vmatprep.mubr.f32.mxu0 0.0
        %v9219 = vand.u32 %v8738, 4294901760
        %9220 = vmatmul.mubr.f32.gmra.mrb[0].mxu0 %v9219
        %v9221 = vpop.f32.mrb[0].mxu0
        %v9222 = vadd.f32 %v9147, %v9221
        %v9223 = vpop.f32.mrb[0].mxu0
        %9224 = vdwg.mxu0
        %9225 = vst.msk [vmem:[%s332] sm:$0xff] %vm346, %v9222
        %s9226 = sand.u32 %s171, 1
        %s9227 = scalar_lea.sflag [#allocation4], %s9226
        %s9228 = sand.u32 %s171, 1
        %s9229 = smul.addr %s9228, 8
        %s9230 = scalar_lea.vmem [#allocation10], %s9229
        // Predicated region
        $region61: #{tpu_custom_call.1} parent=43 // pred_check
          %p9231 = pneg %p181
        $region62: #{tpu_custom_call.1} parent=43 // pred_check_branch
          %9233 = sbr.rel (%p9231) target = $region64
        $region63: #{tpu_custom_call.1} parent=43 // pred_region
          %s9235 = ssub.s32 128, 128
          %9236 = vsyncadd %s9227, %s9235
          %s9237 = smul.addr %s27, 128
          %s9238 = scalar_lea.hbm %s6, %s9237
          %s9240 = sshll.u32 %s9230, 4
          %s9241 = int_to_ptr.vmem [resolvable:$true] %s9240
          %9243 = dma.vmem_to_hbm [thread:$0]  %s9241, 128, %s9238, %s9227
        $region64: #{tpu_custom_call.1} parent=43 // pred_fallthru
          _
      $region44: #{tpu_custom_call.1} parent=5 // pred_fallthru
        _
      %p9244 = scmp.le.s32.totalorder 2, %s22
      // Predicated region
      $region65: #{tpu_custom_call.1} parent=5 // pred_check
        %p9245 = pneg %p9244
      $region66: #{tpu_custom_call.1} parent=5 // pred_check_branch
        %9247 = sbr.rel (%p9245) target = $region68
      $region67: #{tpu_custom_call.1} parent=5 // pred_region
        %s9248 = ssub.s32 %s22, 2
        // Predicated region
        $region69: #{tpu_custom_call.1} parent=67 // pred_check
          %p9249 = pneg %p187
        $region70: #{tpu_custom_call.1} parent=67 // pred_check_branch
          %9251 = sbr.rel (%p9249) target = $region72
        $region71: #{tpu_custom_call.1} parent=67 // pred_region
          %s9252 = sand.u32 %s172, 1
          %s9253 = scalar_lea.sflag [#allocation4], %s9252
          %s9254 = sand.u32 %s172, 1
          %s9255 = smul.addr %s9254, 8
          %s9256 = scalar_lea.vmem [#allocation10], %s9255
          %9257 = dma.done %s9253, 128
        $region72: #{tpu_custom_call.1} parent=67 // pred_fallthru
          _
      $region68: #{tpu_custom_call.1} parent=5 // pred_fallthru
        _
    $region6: #{tpu_custom_call.1} parent=1 // loop_footer
      %s26 = sadd.s32 1, %s22
    $region7: #{tpu_custom_call.1} parent=1 // loop_footer_branch
      %21 = sbr.rel target = $region3
    $region8: #{tpu_custom_call.1} parent=1 // loop_exit
      _
    %9258 = vsyncpa [#allocation3], 1
    %s9259 = scalar_lea.sflag [#allocation3], 1
    %9260 = vsyncpa %s9259, 1
    %9261 = vsyncpa [#allocation6], 1
    %s9262 = scalar_lea.sflag [#allocation6], 1
    %9263 = vsyncpa %s9262, 1
    %9264 = vsyncpa [#allocation9], 1
    %9265 = vsyncpa [#allocation4], 1
    %s9266 = scalar_lea.sflag [#allocation4], 1
    %9267 = vsyncpa %s9266, 1

</llo_original>
